<compile_context>
chip_gen: v6e
topology: v6e:2x2x1
jax: 0.10.0
libtpu: 0.0.40
codegen_flags: <defaults>
</compile_context>

<pallas_src>
import functools

import jax
import jax.numpy as jnp
from jax import lax
from jax.experimental import pallas as pl
from jax.experimental.pallas import tpu as pltpu
import numpy as np

BN_EPS = 1e-5
LANE = 128
VMEM_LIMIT_BYTES = 32 * 1024 * 1024     # conservative across v5e / v6e / v7x
TILE_VMEM_BUDGET = 8 * 1024 * 1024      # per-step (double-buffered) working set


# ----------------------------------------------------------------------------
# Small static helpers (tile-size selection, padding)
# ----------------------------------------------------------------------------
def _round_up(x, m):
    return ((x + m - 1) // m) * m


def _pick_tile_h(h, width, cin, cpad, budget=TILE_VMEM_BUDGET):
    """Largest divisor of H whose double-buffered in+out tiles fit the budget."""
    for th in range(h, 0, -1):
        if h % th:
            continue
        per_step = 2 * ((th + 2) * (width + 2) * cin * 4 + th * width * cpad * 4)
        if per_step <= budget:
            return th
    return 1


def _pick_row_tile(r):
    for tr in (4096, 2048, 1024, 512, 256, 128, 64, 32, 16, 8):
        if r % tr == 0:
            return tr
    return r


# ----------------------------------------------------------------------------
# Pallas kernel 1: 3x3 conv (9 shifted MXU matmuls) + global BN statistics.
# Optionally fuses the previous conv's BN+ReLU onto the (raw) input tile.
# ----------------------------------------------------------------------------
def _make_conv_stats_kernel(th, width, cin, cpad, fuse_input_act, compute_dtype):
    thp, wp = th + 2, width + 2
    taps = [(dy, dx) for dy in range(3) for dx in range(3)]

    def kernel(x_ref, w_ref, s_ref, t_ref, y_ref, sum_ref, ssq_ref):
        n = pl.program_id(0)
        i = pl.program_id(1)

        # Resident global-stats accumulators: zero them on the very first step.
        @pl.when(jnp.logical_and(n == 0, i == 0))
        def _():
            sum_ref[...] = jnp.zeros_like(sum_ref)
            ssq_ref[...] = jnp.zeros_like(ssq_ref)

        x = x_ref[...].astype(jnp.float32)               # (TH+2, W+2, Cin)

        if fuse_input_act:
            # Fused BN+ReLU of the previous conv's raw output (s,t already hold
            # the global batch statistics), then re-zero the out-of-image halo
            # so the "SAME" zero padding is applied *after* the activation.
            a = jnp.maximum(x * s_ref[...] + t_ref[...], 0.0)
            col = lax.broadcasted_iota(jnp.int32, (thp, wp, 1), 1)
            row = lax.broadcasted_iota(jnp.int32, (thp, wp, 1), 0)
            valid = jnp.logical_and(col >= 1, col <= width)
            valid = jnp.logical_and(valid, jnp.logical_or(i > 0, row >= 1))
            valid = jnp.logical_and(
                valid, jnp.logical_or(i < pl.num_programs(1) - 1, row <= th))
            x = jnp.where(valid, a, 0.0)

        # 3x3 "SAME" conv == 9 shifted accumulating matmuls (bf16 MXU, f32 acc).
        acc = jnp.zeros((th * width, cpad), jnp.float32)
        for k, (dy, dx) in enumerate(taps):
            xs = x[dy:dy + th, dx:dx + width, :].reshape(th * width, cin)
            acc = acc + jnp.dot(xs.astype(compute_dtype), w_ref[k],
                                preferred_element_type=jnp.float32)

        y_ref[...] = acc.reshape(th, width, cpad).astype(y_ref.dtype)

        # Global BN statistics (sum, sum of squares) in f32.
        sum_ref[...] += jnp.sum(acc, axis=0, keepdims=True)
        ssq_ref[...] += jnp.sum(acc * acc, axis=0, keepdims=True)

    return kernel


def _conv_with_stats(x_tiles, w9, s_in, t_in, *, th, width, cin, cpad,
                     fuse_input_act, compute_dtype):
    n, nt, thp, wp, _ = x_tiles.shape
    kernel = _make_conv_stats_kernel(th, width, cin, cpad, fuse_input_act,
                                     compute_dtype)
    return pl.pallas_call(
        kernel,
        out_shape=(
            jax.ShapeDtypeStruct((n, nt, th, width, cpad), jnp.float32),
            jax.ShapeDtypeStruct((1, cpad), jnp.float32),
            jax.ShapeDtypeStruct((1, cpad), jnp.float32),
        ),
        grid=(n, nt),
        in_specs=[
            pl.BlockSpec((None, None, thp, wp, cin), lambda b, i: (b, i, 0, 0, 0)),
            pl.BlockSpec((9, cin, cpad), lambda b, i: (0, 0, 0)),
            pl.BlockSpec((1, cin), lambda b, i: (0, 0)),
            pl.BlockSpec((1, cin), lambda b, i: (0, 0)),
        ],
        out_specs=(
            pl.BlockSpec((None, None, th, width, cpad), lambda b, i: (b, i, 0, 0, 0)),
            pl.BlockSpec((1, cpad), lambda b, i: (0, 0)),
            pl.BlockSpec((1, cpad), lambda b, i: (0, 0)),
        ),
        compiler_params=pltpu.CompilerParams(
            # Both axes revisit the resident stats accumulators -> "arbitrary".
            dimension_semantics=("arbitrary", "arbitrary"),
            vmem_limit_bytes=VMEM_LIMIT_BYTES,
        ),
    )(x_tiles, w9, s_in, t_in)


# ----------------------------------------------------------------------------
# Pallas kernel 2: finalize -- z = relu(y * s + t), lane-dense row tiles.
# ----------------------------------------------------------------------------
def _bn_relu_kernel(y_ref, s_ref, t_ref, o_ref):
    o_ref[...] = jnp.maximum(y_ref[...] * s_ref[...] + t_ref[...],
                             0.0).astype(o_ref.dtype)


def _apply_bn_relu(y_flat, s, t):
    r, cpad = y_flat.shape
    tr = _pick_row_tile(r)
    return pl.pallas_call(
        _bn_relu_kernel,
        out_shape=jax.ShapeDtypeStruct((r, cpad), jnp.float32),
        grid=(r // tr,),
        in_specs=[
            pl.BlockSpec((tr, cpad), lambda b: (b, 0)),
            pl.BlockSpec((1, cpad), lambda b: (0, 0)),
            pl.BlockSpec((1, cpad), lambda b: (0, 0)),
        ],
        out_specs=pl.BlockSpec((tr, cpad), lambda b: (b, 0)),
        compiler_params=pltpu.CompilerParams(
            dimension_semantics=("parallel",),
            vmem_limit_bytes=VMEM_LIMIT_BYTES,
        ),
    )(y_flat, s, t)


# ----------------------------------------------------------------------------
# Glue (layout only): halo'd H-tiles, weight packing, BN fold.
# ----------------------------------------------------------------------------
def _halo_h_tiles(x_nhwc, th):
    """Zero-pad H/W by 1 and split H into tiles of `th` with a 1-row halo."""
    n, h, width, c = x_nhwc.shape
    nt = h // th
    xp = jnp.pad(x_nhwc, ((0, 0), (1, 1), (1, 1), (0, 0)))
    return jnp.stack([xp[:, i * th:i * th + th + 2] for i in range(nt)], axis=1)


def _pack_weights(w_hwio, cin_pad, cout_pad, dtype):
    """(3,3,Cin,Cout) HWIO -> zero-padded (9, Cin_pad, Cout_pad) compute dtype."""
    kh, kw, cin, cout = w_hwio.shape
    wp = jnp.pad(w_hwio, ((0, 0), (0, 0), (0, cin_pad - cin), (0, cout_pad - cout)))
    return wp.reshape(kh * kw, cin_pad, cout_pad).astype(dtype)


def _bn_scale_shift(csum, cssq, count, gamma_pad, beta_pad):
    """Fold training-mode BN into a single per-channel FMA: z = y*s + t."""
    mean = csum / count
    var = jnp.maximum(cssq / count - mean * mean, 0.0)   # biased variance, f32
    s = gamma_pad.reshape(1, -1) * lax.rsqrt(var + BN_EPS)
    t = beta_pad.reshape(1, -1) - mean * s
    return s.astype(jnp.float32), t.astype(jnp.float32)


# ----------------------------------------------------------------------------
# Conv_Block forward (NCHW in, NCHW out)
# ----------------------------------------------------------------------------
@functools.partial(jax.jit, static_argnames=("pool", "compute_dtype"))
def conv_block_forward(x_nchw, params, pool=False, compute_dtype=jnp.bfloat16):
    x = jnp.transpose(x_nchw, (0, 2, 3, 1)).astype(jnp.float32)   # NCHW -> NHWC
    if pool:
        # TODO(synk): MaxPool2d(2,2) kept as plain-JAX reshape+max glue; the
        # module's default (pool=None) path is fully handled by Pallas kernels.
        n0, h0, w0, c0 = x.shape
        x = x.reshape(n0, h0 // 2, 2, w0 // 2, 2, c0).max(axis=(2, 4))

    n, h, width, cin = x.shape
    cout = params["w1"].shape[-1]
    cpad = _round_up(max(cout, LANE), LANE)   # lane-dense channel axis
    count = n * h * width                     # BN statistics population size

    # ---- conv1: 3x3 conv + global BN statistics (conv bias omitted: cancels
    #      exactly under training-mode BatchNorm) -----------------------------
    th1 = _pick_tile_h(h, width, cin, cpad)
    x_tiles = _halo_h_tiles(x, th1).astype(compute_dtype)
    w1 = _pack_weights(params["w1"], cin, cpad, compute_dtype)
    s_id = jnp.ones((1, cin), jnp.float32)    # unused (fuse_input_act=False)
    t_id = jnp.zeros((1, cin), jnp.float32)
    y1, sum1, ssq1 = _conv_with_stats(
        x_tiles, w1, s_id, t_id, th=th1, width=width, cin=cin, cpad=cpad,
        fuse_input_act=False, compute_dtype=compute_dtype)
    s1, t1 = _bn_scale_shift(sum1, ssq1, count,
                             jnp.pad(params["g1"], (0, cpad - cout)),
                             jnp.pad(params["beta1"], (0, cpad - cout)))

    # ---- conv2: BN1+ReLU fused onto the raw conv1 tiles + 3x3 conv +
    #      global BN statistics -----------------------------------------------
    y1 = y1.reshape(n, h, width, cpad)
    th2 = _pick_tile_h(h, width, cpad, cpad)
    y1_tiles = _halo_h_tiles(y1, th2)                       # raw f32 conv1 out
    w2 = _pack_weights(params["w2"], cpad, cpad, compute_dtype)
    y2, sum2, ssq2 = _conv_with_stats(
        y1_tiles, w2, s1, t1, th=th2, width=width, cin=cpad, cpad=cpad,
        fuse_input_act=True, compute_dtype=compute_dtype)
    s2, t2 = _bn_scale_shift(sum2, ssq2, count,
                             jnp.pad(params["g2"], (0, cpad - cout)),
                             jnp.pad(params["beta2"], (0, cpad - cout)))

    # ---- finalize: BN2 + ReLU over lane-dense row tiles ----------------------
    out_flat = _apply_bn_relu(y2.reshape(count, cpad), s2, t2)
    out = out_flat.reshape(n, h, width, cpad)[..., :cout]
    return jnp.transpose(out, (0, 3, 1, 2))                 # NHWC -> NCHW


# ----------------------------------------------------------------------------
# Pure-JAX reference (for correctness check) -- includes the conv bias.
# ----------------------------------------------------------------------------
def reference_forward(x_nchw, params, pool=False):
    def conv(x, w_hwio, b):
        y = lax.conv_general_dilated(
            x, w_hwio, window_strides=(1, 1), padding="SAME",
            dimension_numbers=("NHWC", "HWIO", "NHWC"),
            precision=lax.Precision.HIGHEST)
        return y + b.reshape(1, 1, 1, -1)

    def bn(x, g, beta):
        m = x.mean(axis=(0, 1, 2), keepdims=True)
        v = x.var(axis=(0, 1, 2), keepdims=True)     # biased, training-mode BN
        return (x - m) / jnp.sqrt(v + BN_EPS) * g.reshape(1, 1, 1, -1) \
            + beta.reshape(1, 1, 1, -1)

    x = jnp.transpose(x_nchw, (0, 2, 3, 1))
    if pool:
        n, h, w, c = x.shape
        x = x.reshape(n, h // 2, 2, w // 2, 2, c).max(axis=(2, 4))
    x = jax.nn.relu(bn(conv(x, params["w1"], params["b1"]), params["g1"], params["beta1"]))
    x = jax.nn.relu(bn(conv(x, params["w2"], params["b2"]), params["g2"], params["beta2"]))
    return jnp.transpose(x, (0, 3, 1, 2))


def init_params(key, in_ch, out_ch):
    k1, k2, k3, k4 = jax.random.split(key, 4)
    return {
        # conv weights in HWIO; equivalent torch layout is (Cout, Cin, 3, 3)
        "w1": 0.1 * jax.random.normal(k1, (3, 3, in_ch, out_ch), jnp.float32),
        "b1": 0.1 * jax.random.normal(k2, (out_ch,), jnp.float32),
        "g1": jnp.ones((out_ch,), jnp.float32),
        "beta1": jnp.zeros((out_ch,), jnp.float32),
        "w2": 0.1 * jax.random.normal(k3, (3, 3, out_ch, out_ch), jnp.float32),
        "b2": 0.1 * jax.random.normal(k4, (out_ch,), jnp.float32),
        "g2": jnp.ones((out_ch,), jnp.float32),
        "beta2": jnp.zeros((out_ch,), jnp.float32),
    }


if __name__ == "__main__":
    key = jax.random.PRNGKey(0)
    kx, kp = jax.random.split(key)

    batch, in_ch, out_ch, spatial = 2, 4, 8, 16
    x = jax.random.normal(kx, (batch, in_ch, spatial, spatial), jnp.float32)  # NCHW
    params = init_params(kp, in_ch, out_ch)

    out = jax.block_until_ready(conv_block_forward(x, params, pool=False))
    assert out.shape == (batch, out_ch, spatial, spatial), out.shape

    ref = jax.block_until_ready(reference_forward(x, params, pool=False))
    max_err = float(jnp.max(jnp.abs(out - ref)))
    # bf16 MXU operands vs. an all-f32 HIGHEST-precision reference: tolerance
    # covers ~2^-9 operand quantization through two convs + two BatchNorms.
    assert np.isfinite(max_err) and max_err < 5e-2, f"mismatch vs reference: {max_err}"

    print("KERNEL_OK")
</pallas_src>

<mosaic_0001>
module attributes {stable_mosaic.version = 11 : i64} {
  func.func @kernel(%arg0: i32, %arg1: i32, %arg2: memref<1x1x18x18x4xbf16, #tpu.memory_space<vmem>>, %arg3: memref<9x4x128xbf16, #tpu.memory_space<vmem>>, %arg4: memref<1x4xf32, #tpu.memory_space<vmem>>, %arg5: memref<1x4xf32, #tpu.memory_space<vmem>>, %arg6: memref<1x1x16x16x128xf32, #tpu.memory_space<vmem>>, %arg7: memref<1x128xf32, #tpu.memory_space<vmem>>, %arg8: memref<1x128xf32, #tpu.memory_space<vmem>>) attributes {dimension_semantics = [#tpu.dimension_semantics<arbitrary>, #tpu.dimension_semantics<arbitrary>], iteration_bounds = array<i64: 2, 1>, scalar_prefetch = 0 : i64, scratch_operands = 0 : i64, tpu.core_type = #tpu.core_type<tc>, window_params = [{transform_indices = @transform_0, window_bounds = array<i64: 1, 1, 18, 18, 4>}, {pipeline_mode = #tpu.pipeline_mode<synchronous>, transform_indices = @transform_1, window_bounds = array<i64: 9, 4, 128>}, {pipeline_mode = #tpu.pipeline_mode<synchronous>, transform_indices = @transform_2, window_bounds = array<i64: 1, 4>}, {pipeline_mode = #tpu.pipeline_mode<synchronous>, transform_indices = @transform_3, window_bounds = array<i64: 1, 4>}, {transform_indices = @transform_4, window_bounds = array<i64: 1, 1, 16, 16, 128>}, {pipeline_mode = #tpu.pipeline_mode<synchronous>, transform_indices = @transform_5, window_bounds = array<i64: 1, 128>}, {pipeline_mode = #tpu.pipeline_mode<synchronous>, transform_indices = @transform_6, window_bounds = array<i64: 1, 128>}]} {
    %c0_i32 = arith.constant 0 : i32
    %0 = arith.cmpi eq, %arg0, %c0_i32 : i32
    %c0_i32_0 = arith.constant 0 : i32
    %1 = arith.cmpi eq, %arg1, %c0_i32_0 : i32
    %2 = arith.andi %0, %1 : i1
    %3 = arith.extui %2 : i1 to i32
    %c0_i32_1 = arith.constant 0 : i32
    %4 = arith.cmpi ne, %3, %c0_i32_1 : i32
    scf.if %4 {
      %cst_49 = arith.constant 0.000000e+00 : f32
      %87 = vector.broadcast %cst_49 : f32 to vector<1x128xf32>
      %c0_50 = arith.constant 0 : index
      %c0_51 = arith.constant 0 : index
      %88 = vector.load %arg7[%c0_50, %c0_51] : memref<1x128xf32, #tpu.memory_space<vmem>>, vector<1x128xf32>
      tpu.vector_store %arg7[%c0_50, %c0_51], %87 {strides = array<i32>} : memref<1x128xf32, #tpu.memory_space<vmem>>, vector<1x128xf32>,
      %cst_52 = arith.constant 0.000000e+00 : f32
      %89 = vector.broadcast %cst_52 : f32 to vector<1x128xf32>
      %c0_53 = arith.constant 0 : index
      %c0_54 = arith.constant 0 : index
      %90 = vector.load %arg8[%c0_53, %c0_54] : memref<1x128xf32, #tpu.memory_space<vmem>>, vector<1x128xf32>
      tpu.vector_store %arg8[%c0_53, %c0_54], %89 {strides = array<i32>} : memref<1x128xf32, #tpu.memory_space<vmem>>, vector<1x128xf32>,
    } else {
    }
    %c0 = arith.constant 0 : index
    %c0_2 = arith.constant 0 : index
    %c0_3 = arith.constant 0 : index
    %c0_4 = arith.constant 0 : index
    %c0_5 = arith.constant 0 : index
    %5 = vector.load %arg2[%c0, %c0_2, %c0_3, %c0_4, %c0_5] : memref<1x1x18x18x4xbf16, #tpu.memory_space<vmem>>, vector<1x1x18x18x4xbf16>
    %6 = vector.shape_cast %5 : vector<1x1x18x18x4xbf16> to vector<18x18x4xbf16>
    %7 = arith.extf %6 : vector<18x18x4xbf16> to vector<18x18x4xf32>
    %cst = arith.constant 0.000000e+00 : f32
    %8 = vector.broadcast %cst : f32 to vector<256x128xf32>
    %9 = vector.extract_strided_slice %7 {offsets = [0, 0, 0], sizes = [16, 16, 4], strides = [1, 1, 1]} : vector<18x18x4xf32> to vector<16x16x4xf32>
    %10 = vector.shape_cast %9 : vector<16x16x4xf32> to vector<256x4xf32>
    %11 = arith.truncf %10 : vector<256x4xf32> to vector<256x4xbf16>
    %c0_6 = arith.constant 0 : index
    %c0_7 = arith.constant 0 : index
    %c0_8 = arith.constant 0 : index
    %12 = vector.load %arg3[%c0_6, %c0_7, %c0_8] : memref<9x4x128xbf16, #tpu.memory_space<vmem>>, vector<1x4x128xbf16>
    %13 = vector.shape_cast %12 : vector<1x4x128xbf16> to vector<4x128xbf16>
    %cst_9 = arith.constant dense<0.000000e+00> : vector<256x128xf32>
    %14 = tpu.matmul %11, %13, %cst_9 {dimension_numbers = #tpu.dot_dimension_numbers<[1], [0], [0], [1], [0, 0, 1, 1], [], []>} : vector<256x4xbf16>, vector<4x128xbf16>, vector<256x128xf32> -> vector<256x128xf32>
    %15 = arith.addf %8, %14 : vector<256x128xf32>
    %16 = vector.extract_strided_slice %7 {offsets = [0, 1, 0], sizes = [16, 16, 4], strides = [1, 1, 1]} : vector<18x18x4xf32> to vector<16x16x4xf32>
    %17 = vector.shape_cast %16 : vector<16x16x4xf32> to vector<256x4xf32>
    %18 = arith.truncf %17 : vector<256x4xf32> to vector<256x4xbf16>
    %c1 = arith.constant 1 : index
    %c0_10 = arith.constant 0 : index
    %c0_11 = arith.constant 0 : index
    %19 = vector.load %arg3[%c1, %c0_10, %c0_11] : memref<9x4x128xbf16, #tpu.memory_space<vmem>>, vector<1x4x128xbf16>
    %20 = vector.shape_cast %19 : vector<1x4x128xbf16> to vector<4x128xbf16>
    %cst_12 = arith.constant dense<0.000000e+00> : vector<256x128xf32>
    %21 = tpu.matmul %18, %20, %cst_12 {dimension_numbers = #tpu.dot_dimension_numbers<[1], [0], [0], [1], [0, 0, 1, 1], [], []>} : vector<256x4xbf16>, vector<4x128xbf16>, vector<256x128xf32> -> vector<256x128xf32>
    %22 = arith.addf %15, %21 : vector<256x128xf32>
    %23 = vector.extract_strided_slice %7 {offsets = [0, 2, 0], sizes = [16, 16, 4], strides = [1, 1, 1]} : vector<18x18x4xf32> to vector<16x16x4xf32>
    %24 = vector.shape_cast %23 : vector<16x16x4xf32> to vector<256x4xf32>
    %25 = arith.truncf %24 : vector<256x4xf32> to vector<256x4xbf16>
    %c2 = arith.constant 2 : index
    %c0_13 = arith.constant 0 : index
    %c0_14 = arith.constant 0 : index
    %26 = vector.load %arg3[%c2, %c0_13, %c0_14] : memref<9x4x128xbf16, #tpu.memory_space<vmem>>, vector<1x4x128xbf16>
    %27 = vector.shape_cast %26 : vector<1x4x128xbf16> to vector<4x128xbf16>
    %cst_15 = arith.constant dense<0.000000e+00> : vector<256x128xf32>
    %28 = tpu.matmul %25, %27, %cst_15 {dimension_numbers = #tpu.dot_dimension_numbers<[1], [0], [0], [1], [0, 0, 1, 1], [], []>} : vector<256x4xbf16>, vector<4x128xbf16>, vector<256x128xf32> -> vector<256x128xf32>
    %29 = arith.addf %22, %28 : vector<256x128xf32>
    %30 = vector.extract_strided_slice %7 {offsets = [1, 0, 0], sizes = [16, 16, 4], strides = [1, 1, 1]} : vector<18x18x4xf32> to vector<16x16x4xf32>
    %31 = vector.shape_cast %30 : vector<16x16x4xf32> to vector<256x4xf32>
    %32 = arith.truncf %31 : vector<256x4xf32> to vector<256x4xbf16>
    %c3 = arith.constant 3 : index
    %c0_16 = arith.constant 0 : index
    %c0_17 = arith.constant 0 : index
    %33 = vector.load %arg3[%c3, %c0_16, %c0_17] : memref<9x4x128xbf16, #tpu.memory_space<vmem>>, vector<1x4x128xbf16>
    %34 = vector.shape_cast %33 : vector<1x4x128xbf16> to vector<4x128xbf16>
    %cst_18 = arith.constant dense<0.000000e+00> : vector<256x128xf32>
    %35 = tpu.matmul %32, %34, %cst_18 {dimension_numbers = #tpu.dot_dimension_numbers<[1], [0], [0], [1], [0, 0, 1, 1], [], []>} : vector<256x4xbf16>, vector<4x128xbf16>, vector<256x128xf32> -> vector<256x128xf32>
    %36 = arith.addf %29, %35 : vector<256x128xf32>
    %37 = vector.extract_strided_slice %7 {offsets = [1, 1, 0], sizes = [16, 16, 4], strides = [1, 1, 1]} : vector<18x18x4xf32> to vector<16x16x4xf32>
    %38 = vector.shape_cast %37 : vector<16x16x4xf32> to vector<256x4xf32>
    %39 = arith.truncf %38 : vector<256x4xf32> to vector<256x4xbf16>
    %c4 = arith.constant 4 : index
    %c0_19 = arith.constant 0 : index
    %c0_20 = arith.constant 0 : index
    %40 = vector.load %arg3[%c4, %c0_19, %c0_20] : memref<9x4x128xbf16, #tpu.memory_space<vmem>>, vector<1x4x128xbf16>
    %41 = vector.shape_cast %40 : vector<1x4x128xbf16> to vector<4x128xbf16>
    %cst_21 = arith.constant dense<0.000000e+00> : vector<256x128xf32>
    %42 = tpu.matmul %39, %41, %cst_21 {dimension_numbers = #tpu.dot_dimension_numbers<[1], [0], [0], [1], [0, 0, 1, 1], [], []>} : vector<256x4xbf16>, vector<4x128xbf16>, vector<256x128xf32> -> vector<256x128xf32>
    %43 = arith.addf %36, %42 : vector<256x128xf32>
    %44 = vector.extract_strided_slice %7 {offsets = [1, 2, 0], sizes = [16, 16, 4], strides = [1, 1, 1]} : vector<18x18x4xf32> to vector<16x16x4xf32>
    %45 = vector.shape_cast %44 : vector<16x16x4xf32> to vector<256x4xf32>
    %46 = arith.truncf %45 : vector<256x4xf32> to vector<256x4xbf16>
    %c5 = arith.constant 5 : index
    %c0_22 = arith.constant 0 : index
    %c0_23 = arith.constant 0 : index
    %47 = vector.load %arg3[%c5, %c0_22, %c0_23] : memref<9x4x128xbf16, #tpu.memory_space<vmem>>, vector<1x4x128xbf16>
    %48 = vector.shape_cast %47 : vector<1x4x128xbf16> to vector<4x128xbf16>
    %cst_24 = arith.constant dense<0.000000e+00> : vector<256x128xf32>
    %49 = tpu.matmul %46, %48, %cst_24 {dimension_numbers = #tpu.dot_dimension_numbers<[1], [0], [0], [1], [0, 0, 1, 1], [], []>} : vector<256x4xbf16>, vector<4x128xbf16>, vector<256x128xf32> -> vector<256x128xf32>
    %50 = arith.addf %43, %49 : vector<256x128xf32>
    %51 = vector.extract_strided_slice %7 {offsets = [2, 0, 0], sizes = [16, 16, 4], strides = [1, 1, 1]} : vector<18x18x4xf32> to vector<16x16x4xf32>
    %52 = vector.shape_cast %51 : vector<16x16x4xf32> to vector<256x4xf32>
    %53 = arith.truncf %52 : vector<256x4xf32> to vector<256x4xbf16>
    %c6 = arith.constant 6 : index
    %c0_25 = arith.constant 0 : index
    %c0_26 = arith.constant 0 : index
    %54 = vector.load %arg3[%c6, %c0_25, %c0_26] : memref<9x4x128xbf16, #tpu.memory_space<vmem>>, vector<1x4x128xbf16>
    %55 = vector.shape_cast %54 : vector<1x4x128xbf16> to vector<4x128xbf16>
    %cst_27 = arith.constant dense<0.000000e+00> : vector<256x128xf32>
    %56 = tpu.matmul %53, %55, %cst_27 {dimension_numbers = #tpu.dot_dimension_numbers<[1], [0], [0], [1], [0, 0, 1, 1], [], []>} : vector<256x4xbf16>, vector<4x128xbf16>, vector<256x128xf32> -> vector<256x128xf32>
    %57 = arith.addf %50, %56 : vector<256x128xf32>
    %58 = vector.extract_strided_slice %7 {offsets = [2, 1, 0], sizes = [16, 16, 4], strides = [1, 1, 1]} : vector<18x18x4xf32> to vector<16x16x4xf32>
    %59 = vector.shape_cast %58 : vector<16x16x4xf32> to vector<256x4xf32>
    %60 = arith.truncf %59 : vector<256x4xf32> to vector<256x4xbf16>
    %c7 = arith.constant 7 : index
    %c0_28 = arith.constant 0 : index
    %c0_29 = arith.constant 0 : index
    %61 = vector.load %arg3[%c7, %c0_28, %c0_29] : memref<9x4x128xbf16, #tpu.memory_space<vmem>>, vector<1x4x128xbf16>
    %62 = vector.shape_cast %61 : vector<1x4x128xbf16> to vector<4x128xbf16>
    %cst_30 = arith.constant dense<0.000000e+00> : vector<256x128xf32>
    %63 = tpu.matmul %60, %62, %cst_30 {dimension_numbers = #tpu.dot_dimension_numbers<[1], [0], [0], [1], [0, 0, 1, 1], [], []>} : vector<256x4xbf16>, vector<4x128xbf16>, vector<256x128xf32> -> vector<256x128xf32>
    %64 = arith.addf %57, %63 : vector<256x128xf32>
    %65 = vector.extract_strided_slice %7 {offsets = [2, 2, 0], sizes = [16, 16, 4], strides = [1, 1, 1]} : vector<18x18x4xf32> to vector<16x16x4xf32>
    %66 = vector.shape_cast %65 : vector<16x16x4xf32> to vector<256x4xf32>
    %67 = arith.truncf %66 : vector<256x4xf32> to vector<256x4xbf16>
    %c8 = arith.constant 8 : index
    %c0_31 = arith.constant 0 : index
    %c0_32 = arith.constant 0 : index
    %68 = vector.load %arg3[%c8, %c0_31, %c0_32] : memref<9x4x128xbf16, #tpu.memory_space<vmem>>, vector<1x4x128xbf16>
    %69 = vector.shape_cast %68 : vector<1x4x128xbf16> to vector<4x128xbf16>
    %cst_33 = arith.constant dense<0.000000e+00> : vector<256x128xf32>
    %70 = tpu.matmul %67, %69, %cst_33 {dimension_numbers = #tpu.dot_dimension_numbers<[1], [0], [0], [1], [0, 0, 1, 1], [], []>} : vector<256x4xbf16>, vector<4x128xbf16>, vector<256x128xf32> -> vector<256x128xf32>
    %71 = arith.addf %64, %70 : vector<256x128xf32>
    %72 = vector.shape_cast %71 : vector<256x128xf32> to vector<16x16x128xf32>
    %c0_34 = arith.constant 0 : index
    %c0_35 = arith.constant 0 : index
    %c0_36 = arith.constant 0 : index
    %c0_37 = arith.constant 0 : index
    %c0_38 = arith.constant 0 : index
    %73 = vector.load %arg6[%c0_34, %c0_35, %c0_36, %c0_37, %c0_38] : memref<1x1x16x16x128xf32, #tpu.memory_space<vmem>>, vector<1x1x16x16x128xf32>
    %74 = vector.shape_cast %73 : vector<1x1x16x16x128xf32> to vector<16x16x128xf32>
    %75 = vector.shape_cast %72 : vector<16x16x128xf32> to vector<1x1x16x16x128xf32>
    tpu.vector_store %arg6[%c0_34, %c0_35, %c0_36, %c0_37, %c0_38], %75 {strides = array<i32>} : memref<1x1x16x16x128xf32, #tpu.memory_space<vmem>>, vector<1x1x16x16x128xf32>,
    %c0_39 = arith.constant 0 : index
    %c0_40 = arith.constant 0 : index
    %76 = vector.load %arg7[%c0_39, %c0_40] : memref<1x128xf32, #tpu.memory_space<vmem>>, vector<1x128xf32>
    %cst_41 = arith.constant dense<0.000000e+00> : vector<128xf32>
    %77 = vector.multi_reduction <add>, %71, %cst_41 [0] : vector<256x128xf32> to vector<128xf32>
    %78 = vector.shape_cast %77 : vector<128xf32> to vector<1x128xf32>
    %79 = arith.addf %76, %78 : vector<1x128xf32>
    %c0_42 = arith.constant 0 : index
    %c0_43 = arith.constant 0 : index
    %80 = vector.load %arg7[%c0_42, %c0_43] : memref<1x128xf32, #tpu.memory_space<vmem>>, vector<1x128xf32>
    tpu.vector_store %arg7[%c0_42, %c0_43], %79 {strides = array<i32>} : memref<1x128xf32, #tpu.memory_space<vmem>>, vector<1x128xf32>,
    %c0_44 = arith.constant 0 : index
    %c0_45 = arith.constant 0 : index
    %81 = vector.load %arg8[%c0_44, %c0_45] : memref<1x128xf32, #tpu.memory_space<vmem>>, vector<1x128xf32>
    %82 = arith.mulf %71, %71 : vector<256x128xf32>
    %cst_46 = arith.constant dense<0.000000e+00> : vector<128xf32>
    %83 = vector.multi_reduction <add>, %82, %cst_46 [0] : vector<256x128xf32> to vector<128xf32>
    %84 = vector.shape_cast %83 : vector<128xf32> to vector<1x128xf32>
    %85 = arith.addf %81, %84 : vector<1x128xf32>
    %c0_47 = arith.constant 0 : index
    %c0_48 = arith.constant 0 : index
    %86 = vector.load %arg8[%c0_47, %c0_48] : memref<1x128xf32, #tpu.memory_space<vmem>>, vector<1x128xf32>
    tpu.vector_store %arg8[%c0_47, %c0_48], %85 {strides = array<i32>} : memref<1x128xf32, #tpu.memory_space<vmem>>, vector<1x128xf32>,
    return
  }
  func.func @transform_0(%arg0: i32, %arg1: i32) -> (i32, i32, i32, i32, i32) {
    %c0_i32 = arith.constant 0 : i32
    %c0_i32_0 = arith.constant 0 : i32
    %c0_i32_1 = arith.constant 0 : i32
    %c0_i32_2 = arith.constant 0 : i32
    return %arg0, %arg1, %c0_i32, %c0_i32_0, %c0_i32_1 : i32, i32, i32, i32, i32
  }
  func.func @transform_1(%arg0: i32, %arg1: i32) -> (i32, i32, i32) {
    %c0_i32 = arith.constant 0 : i32
    %c0_i32_0 = arith.constant 0 : i32
    %c0_i32_1 = arith.constant 0 : i32
    %c0_i32_2 = arith.constant 0 : i32
    return %c0_i32, %c0_i32_0, %c0_i32_1 : i32, i32, i32
  }
  func.func @transform_2(%arg0: i32, %arg1: i32) -> (i32, i32) {
    %c0_i32 = arith.constant 0 : i32
    %c0_i32_0 = arith.constant 0 : i32
    %c0_i32_1 = arith.constant 0 : i32
    return %c0_i32, %c0_i32_0 : i32, i32
  }
  func.func @transform_3(%arg0: i32, %arg1: i32) -> (i32, i32) {
    %c0_i32 = arith.constant 0 : i32
    %c0_i32_0 = arith.constant 0 : i32
    %c0_i32_1 = arith.constant 0 : i32
    return %c0_i32, %c0_i32_0 : i32, i32
  }
  func.func @transform_4(%arg0: i32, %arg1: i32) -> (i32, i32, i32, i32, i32) {
    %c0_i32 = arith.constant 0 : i32
    %c0_i32_0 = arith.constant 0 : i32
    %c0_i32_1 = arith.constant 0 : i32
    %c0_i32_2 = arith.constant 0 : i32
    return %arg0, %arg1, %c0_i32, %c0_i32_0, %c0_i32_1 : i32, i32, i32, i32, i32
  }
  func.func @transform_5(%arg0: i32, %arg1: i32) -> (i32, i32) {
    %c0_i32 = arith.constant 0 : i32
    %c0_i32_0 = arith.constant 0 : i32
    %c0_i32_1 = arith.constant 0 : i32
    return %c0_i32, %c0_i32_0 : i32, i32
  }
  func.func @transform_6(%arg0: i32, %arg1: i32) -> (i32, i32) {
    %c0_i32 = arith.constant 0 : i32
    %c0_i32_0 = arith.constant 0 : i32
    %c0_i32_1 = arith.constant 0 : i32
    return %c0_i32, %c0_i32_0 : i32, i32
  }
}

module attributes {stable_mosaic.version = 11 : i64} {
  func.func @kernel(%arg0: i32, %arg1: i32, %arg2: memref<1x1x18x18x128xf32, #tpu.memory_space<vmem>>, %arg3: memref<9x128x128xbf16, #tpu.memory_space<vmem>>, %arg4: memref<1x128xf32, #tpu.memory_space<vmem>>, %arg5: memref<1x128xf32, #tpu.memory_space<vmem>>, %arg6: memref<1x1x16x16x128xf32, #tpu.memory_space<vmem>>, %arg7: memref<1x128xf32, #tpu.memory_space<vmem>>, %arg8: memref<1x128xf32, #tpu.memory_space<vmem>>) attributes {dimension_semantics = [#tpu.dimension_semantics<arbitrary>, #tpu.dimension_semantics<arbitrary>], iteration_bounds = array<i64: 2, 1>, scalar_prefetch = 0 : i64, scratch_operands = 0 : i64, tpu.core_type = #tpu.core_type<tc>, window_params = [{transform_indices = @transform_0, window_bounds = array<i64: 1, 1, 18, 18, 128>}, {pipeline_mode = #tpu.pipeline_mode<synchronous>, transform_indices = @transform_1, window_bounds = array<i64: 9, 128, 128>}, {pipeline_mode = #tpu.pipeline_mode<synchronous>, transform_indices = @transform_2, window_bounds = array<i64: 1, 128>}, {pipeline_mode = #tpu.pipeline_mode<synchronous>, transform_indices = @transform_3, window_bounds = array<i64: 1, 128>}, {transform_indices = @transform_4, window_bounds = array<i64: 1, 1, 16, 16, 128>}, {pipeline_mode = #tpu.pipeline_mode<synchronous>, transform_indices = @transform_5, window_bounds = array<i64: 1, 128>}, {pipeline_mode = #tpu.pipeline_mode<synchronous>, transform_indices = @transform_6, window_bounds = array<i64: 1, 128>}]} {
    %c0_i32 = arith.constant 0 : i32
    %0 = arith.cmpi eq, %arg0, %c0_i32 : i32
    %c0_i32_0 = arith.constant 0 : i32
    %1 = arith.cmpi eq, %arg1, %c0_i32_0 : i32
    %2 = arith.andi %0, %1 : i1
    %3 = arith.extui %2 : i1 to i32
    %c0_i32_1 = arith.constant 0 : i32
    %4 = arith.cmpi ne, %3, %c0_i32_1 : i32
    scf.if %4 {
      %cst_59 = arith.constant 0.000000e+00 : f32
      %119 = vector.broadcast %cst_59 : f32 to vector<1x128xf32>
      %c0_60 = arith.constant 0 : index
      %c0_61 = arith.constant 0 : index
      %120 = vector.load %arg7[%c0_60, %c0_61] : memref<1x128xf32, #tpu.memory_space<vmem>>, vector<1x128xf32>
      tpu.vector_store %arg7[%c0_60, %c0_61], %119 {strides = array<i32>} : memref<1x128xf32, #tpu.memory_space<vmem>>, vector<1x128xf32>,
      %cst_62 = arith.constant 0.000000e+00 : f32
      %121 = vector.broadcast %cst_62 : f32 to vector<1x128xf32>
      %c0_63 = arith.constant 0 : index
      %c0_64 = arith.constant 0 : index
      %122 = vector.load %arg8[%c0_63, %c0_64] : memref<1x128xf32, #tpu.memory_space<vmem>>, vector<1x128xf32>
      tpu.vector_store %arg8[%c0_63, %c0_64], %121 {strides = array<i32>} : memref<1x128xf32, #tpu.memory_space<vmem>>, vector<1x128xf32>,
    } else {
    }
    %c0 = arith.constant 0 : index
    %c0_2 = arith.constant 0 : index
    %c0_3 = arith.constant 0 : index
    %c0_4 = arith.constant 0 : index
    %c0_5 = arith.constant 0 : index
    %5 = vector.load %arg2[%c0, %c0_2, %c0_3, %c0_4, %c0_5] : memref<1x1x18x18x128xf32, #tpu.memory_space<vmem>>, vector<1x1x18x18x128xf32>
    %6 = vector.shape_cast %5 : vector<1x1x18x18x128xf32> to vector<18x18x128xf32>
    %c0_6 = arith.constant 0 : index
    %c0_7 = arith.constant 0 : index
    %7 = vector.load %arg4[%c0_6, %c0_7] : memref<1x128xf32, #tpu.memory_space<vmem>>, vector<1x128xf32>
    %8 = vector.shape_cast %7 : vector<1x128xf32> to vector<1x1x128xf32>
    %9 = vector.broadcast %8 : vector<1x1x128xf32> to vector<18x18x128xf32>
    %10 = arith.mulf %6, %9 : vector<18x18x128xf32>
    %c0_8 = arith.constant 0 : index
    %c0_9 = arith.constant 0 : index
    %11 = vector.load %arg5[%c0_8, %c0_9] : memref<1x128xf32, #tpu.memory_space<vmem>>, vector<1x128xf32>
    %12 = vector.shape_cast %11 : vector<1x128xf32> to vector<1x1x128xf32>
    %13 = vector.broadcast %12 : vector<1x1x128xf32> to vector<18x18x128xf32>
    %14 = arith.addf %10, %13 : vector<18x18x128xf32>
    %cst = arith.constant 0.000000e+00 : f32
    %15 = vector.broadcast %cst : f32 to vector<18x18x128xf32>
    %16 = arith.maximumf %14, %15 : vector<18x18x128xf32>
    %17 = tpu.iota {dimensions = array<i32: 1>} : vector<18x18x1xi32>
    %18 = tpu.iota {dimensions = array<i32: 0>} : vector<18x18x1xi32>
    %c1_i32 = arith.constant 1 : i32
    %19 = vector.broadcast %c1_i32 : i32 to vector<18x18x1xi32>
    %20 = arith.cmpi sge, %17, %19 : vector<18x18x1xi32>
    %c16_i32 = arith.constant 16 : i32
    %21 = vector.broadcast %c16_i32 : i32 to vector<18x18x1xi32>
    %22 = arith.cmpi sle, %17, %21 : vector<18x18x1xi32>
    %23 = arith.andi %20, %22 : vector<18x18x1xi1>
    %c0_i32_10 = arith.constant 0 : i32
    %24 = arith.cmpi sgt, %arg1, %c0_i32_10 : i32
    %c1_i32_11 = arith.constant 1 : i32
    %25 = vector.broadcast %c1_i32_11 : i32 to vector<18x18x1xi32>
    %26 = arith.cmpi sge, %18, %25 : vector<18x18x1xi32>
    %27 = vector.broadcast %24 : i1 to vector<18x18x1xi1>
    %28 = arith.ori %27, %26 : vector<18x18x1xi1>
    %29 = arith.andi %23, %28 : vector<18x18x1xi1>
    %c0_i32_12 = arith.constant 0 : i32
    %30 = arith.cmpi slt, %arg1, %c0_i32_12 : i32
    %c16_i32_13 = arith.constant 16 : i32
    %31 = vector.broadcast %c16_i32_13 : i32 to vector<18x18x1xi32>
    %32 = arith.cmpi sle, %18, %31 : vector<18x18x1xi32>
    %33 = vector.broadcast %30 : i1 to vector<18x18x1xi1>
    %34 = arith.ori %33, %32 : vector<18x18x1xi1>
    %35 = arith.andi %29, %34 : vector<18x18x1xi1>
    %cst_14 = arith.constant 0.000000e+00 : f32
    %36 = vector.shape_cast %35 : vector<18x18x1xi1> to vector<18x18x1xi1>
    %37 = vector.broadcast %36 : vector<18x18x1xi1> to vector<18x18x128xi1>
    %38 = vector.broadcast %cst_14 : f32 to vector<18x18x128xf32>
    %39 = arith.select %37, %16, %38 : vector<18x18x128xi1>, vector<18x18x128xf32>
    %cst_15 = arith.constant 0.000000e+00 : f32
    %40 = vector.broadcast %cst_15 : f32 to vector<256x128xf32>
    %41 = vector.extract_strided_slice %39 {offsets = [0, 0, 0], sizes = [16, 16, 128], strides = [1, 1, 1]} : vector<18x18x128xf32> to vector<16x16x128xf32>
    %42 = vector.shape_cast %41 : vector<16x16x128xf32> to vector<256x128xf32>
    %43 = arith.truncf %42 : vector<256x128xf32> to vector<256x128xbf16>
    %c0_16 = arith.constant 0 : index
    %c0_17 = arith.constant 0 : index
    %c0_18 = arith.constant 0 : index
    %44 = vector.load %arg3[%c0_16, %c0_17, %c0_18] : memref<9x128x128xbf16, #tpu.memory_space<vmem>>, vector<1x128x128xbf16>
    %45 = vector.shape_cast %44 : vector<1x128x128xbf16> to vector<128x128xbf16>
    %cst_19 = arith.constant dense<0.000000e+00> : vector<256x128xf32>
    %46 = tpu.matmul %43, %45, %cst_19 {dimension_numbers = #tpu.dot_dimension_numbers<[1], [0], [0], [1], [0, 0, 1, 1], [], []>} : vector<256x128xbf16>, vector<128x128xbf16>, vector<256x128xf32> -> vector<256x128xf32>
    %47 = arith.addf %40, %46 : vector<256x128xf32>
    %48 = vector.extract_strided_slice %39 {offsets = [0, 1, 0], sizes = [16, 16, 128], strides = [1, 1, 1]} : vector<18x18x128xf32> to vector<16x16x128xf32>
    %49 = vector.shape_cast %48 : vector<16x16x128xf32> to vector<256x128xf32>
    %50 = arith.truncf %49 : vector<256x128xf32> to vector<256x128xbf16>
    %c1 = arith.constant 1 : index
    %c0_20 = arith.constant 0 : index
    %c0_21 = arith.constant 0 : index
    %51 = vector.load %arg3[%c1, %c0_20, %c0_21] : memref<9x128x128xbf16, #tpu.memory_space<vmem>>, vector<1x128x128xbf16>
    %52 = vector.shape_cast %51 : vector<1x128x128xbf16> to vector<128x128xbf16>
    %cst_22 = arith.constant dense<0.000000e+00> : vector<256x128xf32>
    %53 = tpu.matmul %50, %52, %cst_22 {dimension_numbers = #tpu.dot_dimension_numbers<[1], [0], [0], [1], [0, 0, 1, 1], [], []>} : vector<256x128xbf16>, vector<128x128xbf16>, vector<256x128xf32> -> vector<256x128xf32>
    %54 = arith.addf %47, %53 : vector<256x128xf32>
    %55 = vector.extract_strided_slice %39 {offsets = [0, 2, 0], sizes = [16, 16, 128], strides = [1, 1, 1]} : vector<18x18x128xf32> to vector<16x16x128xf32>
    %56 = vector.shape_cast %55 : vector<16x16x128xf32> to vector<256x128xf32>
    %57 = arith.truncf %56 : vector<256x128xf32> to vector<256x128xbf16>
    %c2 = arith.constant 2 : index
    %c0_23 = arith.constant 0 : index
    %c0_24 = arith.constant 0 : index
    %58 = vector.load %arg3[%c2, %c0_23, %c0_24] : memref<9x128x128xbf16, #tpu.memory_space<vmem>>, vector<1x128x128xbf16>
    %59 = vector.shape_cast %58 : vector<1x128x128xbf16> to vector<128x128xbf16>
    %cst_25 = arith.constant dense<0.000000e+00> : vector<256x128xf32>
    %60 = tpu.matmul %57, %59, %cst_25 {dimension_numbers = #tpu.dot_dimension_numbers<[1], [0], [0], [1], [0, 0, 1, 1], [], []>} : vector<256x128xbf16>, vector<128x128xbf16>, vector<256x128xf32> -> vector<256x128xf32>
    %61 = arith.addf %54, %60 : vector<256x128xf32>
    %62 = vector.extract_strided_slice %39 {offsets = [1, 0, 0], sizes = [16, 16, 128], strides = [1, 1, 1]} : vector<18x18x128xf32> to vector<16x16x128xf32>
    %63 = vector.shape_cast %62 : vector<16x16x128xf32> to vector<256x128xf32>
    %64 = arith.truncf %63 : vector<256x128xf32> to vector<256x128xbf16>
    %c3 = arith.constant 3 : index
    %c0_26 = arith.constant 0 : index
    %c0_27 = arith.constant 0 : index
    %65 = vector.load %arg3[%c3, %c0_26, %c0_27] : memref<9x128x128xbf16, #tpu.memory_space<vmem>>, vector<1x128x128xbf16>
    %66 = vector.shape_cast %65 : vector<1x128x128xbf16> to vector<128x128xbf16>
    %cst_28 = arith.constant dense<0.000000e+00> : vector<256x128xf32>
    %67 = tpu.matmul %64, %66, %cst_28 {dimension_numbers = #tpu.dot_dimension_numbers<[1], [0], [0], [1], [0, 0, 1, 1], [], []>} : vector<256x128xbf16>, vector<128x128xbf16>, vector<256x128xf32> -> vector<256x128xf32>
    %68 = arith.addf %61, %67 : vector<256x128xf32>
    %69 = vector.extract_strided_slice %39 {offsets = [1, 1, 0], sizes = [16, 16, 128], strides = [1, 1, 1]} : vector<18x18x128xf32> to vector<16x16x128xf32>
    %70 = vector.shape_cast %69 : vector<16x16x128xf32> to vector<256x128xf32>
    %71 = arith.truncf %70 : vector<256x128xf32> to vector<256x128xbf16>
    %c4 = arith.constant 4 : index
    %c0_29 = arith.constant 0 : index
    %c0_30 = arith.constant 0 : index
    %72 = vector.load %arg3[%c4, %c0_29, %c0_30] : memref<9x128x128xbf16, #tpu.memory_space<vmem>>, vector<1x128x128xbf16>
    %73 = vector.shape_cast %72 : vector<1x128x128xbf16> to vector<128x128xbf16>
    %cst_31 = arith.constant dense<0.000000e+00> : vector<256x128xf32>
    %74 = tpu.matmul %71, %73, %cst_31 {dimension_numbers = #tpu.dot_dimension_numbers<[1], [0], [0], [1], [0, 0, 1, 1], [], []>} : vector<256x128xbf16>, vector<128x128xbf16>, vector<256x128xf32> -> vector<256x128xf32>
    %75 = arith.addf %68, %74 : vector<256x128xf32>
    %76 = vector.extract_strided_slice %39 {offsets = [1, 2, 0], sizes = [16, 16, 128], strides = [1, 1, 1]} : vector<18x18x128xf32> to vector<16x16x128xf32>
    %77 = vector.shape_cast %76 : vector<16x16x128xf32> to vector<256x128xf32>
    %78 = arith.truncf %77 : vector<256x128xf32> to vector<256x128xbf16>
    %c5 = arith.constant 5 : index
    %c0_32 = arith.constant 0 : index
    %c0_33 = arith.constant 0 : index
    %79 = vector.load %arg3[%c5, %c0_32, %c0_33] : memref<9x128x128xbf16, #tpu.memory_space<vmem>>, vector<1x128x128xbf16>
    %80 = vector.shape_cast %79 : vector<1x128x128xbf16> to vector<128x128xbf16>
    %cst_34 = arith.constant dense<0.000000e+00> : vector<256x128xf32>
    %81 = tpu.matmul %78, %80, %cst_34 {dimension_numbers = #tpu.dot_dimension_numbers<[1], [0], [0], [1], [0, 0, 1, 1], [], []>} : vector<256x128xbf16>, vector<128x128xbf16>, vector<256x128xf32> -> vector<256x128xf32>
    %82 = arith.addf %75, %81 : vector<256x128xf32>
    %83 = vector.extract_strided_slice %39 {offsets = [2, 0, 0], sizes = [16, 16, 128], strides = [1, 1, 1]} : vector<18x18x128xf32> to vector<16x16x128xf32>
    %84 = vector.shape_cast %83 : vector<16x16x128xf32> to vector<256x128xf32>
    %85 = arith.truncf %84 : vector<256x128xf32> to vector<256x128xbf16>
    %c6 = arith.constant 6 : index
    %c0_35 = arith.constant 0 : index
    %c0_36 = arith.constant 0 : index
    %86 = vector.load %arg3[%c6, %c0_35, %c0_36] : memref<9x128x128xbf16, #tpu.memory_space<vmem>>, vector<1x128x128xbf16>
    %87 = vector.shape_cast %86 : vector<1x128x128xbf16> to vector<128x128xbf16>
    %cst_37 = arith.constant dense<0.000000e+00> : vector<256x128xf32>
    %88 = tpu.matmul %85, %87, %cst_37 {dimension_numbers = #tpu.dot_dimension_numbers<[1], [0], [0], [1], [0, 0, 1, 1], [], []>} : vector<256x128xbf16>, vector<128x128xbf16>, vector<256x128xf32> -> vector<256x128xf32>
    %89 = arith.addf %82, %88 : vector<256x128xf32>
    %90 = vector.extract_strided_slice %39 {offsets = [2, 1, 0], sizes = [16, 16, 128], strides = [1, 1, 1]} : vector<18x18x128xf32> to vector<16x16x128xf32>
    %91 = vector.shape_cast %90 : vector<16x16x128xf32> to vector<256x128xf32>
    %92 = arith.truncf %91 : vector<256x128xf32> to vector<256x128xbf16>
    %c7 = arith.constant 7 : index
    %c0_38 = arith.constant 0 : index
    %c0_39 = arith.constant 0 : index
    %93 = vector.load %arg3[%c7, %c0_38, %c0_39] : memref<9x128x128xbf16, #tpu.memory_space<vmem>>, vector<1x128x128xbf16>
    %94 = vector.shape_cast %93 : vector<1x128x128xbf16> to vector<128x128xbf16>
    %cst_40 = arith.constant dense<0.000000e+00> : vector<256x128xf32>
    %95 = tpu.matmul %92, %94, %cst_40 {dimension_numbers = #tpu.dot_dimension_numbers<[1], [0], [0], [1], [0, 0, 1, 1], [], []>} : vector<256x128xbf16>, vector<128x128xbf16>, vector<256x128xf32> -> vector<256x128xf32>
    %96 = arith.addf %89, %95 : vector<256x128xf32>
    %97 = vector.extract_strided_slice %39 {offsets = [2, 2, 0], sizes = [16, 16, 128], strides = [1, 1, 1]} : vector<18x18x128xf32> to vector<16x16x128xf32>
    %98 = vector.shape_cast %97 : vector<16x16x128xf32> to vector<256x128xf32>
    %99 = arith.truncf %98 : vector<256x128xf32> to vector<256x128xbf16>
    %c8 = arith.constant 8 : index
    %c0_41 = arith.constant 0 : index
    %c0_42 = arith.constant 0 : index
    %100 = vector.load %arg3[%c8, %c0_41, %c0_42] : memref<9x128x128xbf16, #tpu.memory_space<vmem>>, vector<1x128x128xbf16>
    %101 = vector.shape_cast %100 : vector<1x128x128xbf16> to vector<128x128xbf16>
    %cst_43 = arith.constant dense<0.000000e+00> : vector<256x128xf32>
    %102 = tpu.matmul %99, %101, %cst_43 {dimension_numbers = #tpu.dot_dimension_numbers<[1], [0], [0], [1], [0, 0, 1, 1], [], []>} : vector<256x128xbf16>, vector<128x128xbf16>, vector<256x128xf32> -> vector<256x128xf32>
    %103 = arith.addf %96, %102 : vector<256x128xf32>
    %104 = vector.shape_cast %103 : vector<256x128xf32> to vector<16x16x128xf32>
    %c0_44 = arith.constant 0 : index
    %c0_45 = arith.constant 0 : index
    %c0_46 = arith.constant 0 : index
    %c0_47 = arith.constant 0 : index
    %c0_48 = arith.constant 0 : index
    %105 = vector.load %arg6[%c0_44, %c0_45, %c0_46, %c0_47, %c0_48] : memref<1x1x16x16x128xf32, #tpu.memory_space<vmem>>, vector<1x1x16x16x128xf32>
    %106 = vector.shape_cast %105 : vector<1x1x16x16x128xf32> to vector<16x16x128xf32>
    %107 = vector.shape_cast %104 : vector<16x16x128xf32> to vector<1x1x16x16x128xf32>
    tpu.vector_store %arg6[%c0_44, %c0_45, %c0_46, %c0_47, %c0_48], %107 {strides = array<i32>} : memref<1x1x16x16x128xf32, #tpu.memory_space<vmem>>, vector<1x1x16x16x128xf32>,
    %c0_49 = arith.constant 0 : index
    %c0_50 = arith.constant 0 : index
    %108 = vector.load %arg7[%c0_49, %c0_50] : memref<1x128xf32, #tpu.memory_space<vmem>>, vector<1x128xf32>
    %cst_51 = arith.constant dense<0.000000e+00> : vector<128xf32>
    %109 = vector.multi_reduction <add>, %103, %cst_51 [0] : vector<256x128xf32> to vector<128xf32>
    %110 = vector.shape_cast %109 : vector<128xf32> to vector<1x128xf32>
    %111 = arith.addf %108, %110 : vector<1x128xf32>
    %c0_52 = arith.constant 0 : index
    %c0_53 = arith.constant 0 : index
    %112 = vector.load %arg7[%c0_52, %c0_53] : memref<1x128xf32, #tpu.memory_space<vmem>>, vector<1x128xf32>
    tpu.vector_store %arg7[%c0_52, %c0_53], %111 {strides = array<i32>} : memref<1x128xf32, #tpu.memory_space<vmem>>, vector<1x128xf32>,
    %c0_54 = arith.constant 0 : index
    %c0_55 = arith.constant 0 : index
    %113 = vector.load %arg8[%c0_54, %c0_55] : memref<1x128xf32, #tpu.memory_space<vmem>>, vector<1x128xf32>
    %114 = arith.mulf %103, %103 : vector<256x128xf32>
    %cst_56 = arith.constant dense<0.000000e+00> : vector<128xf32>
    %115 = vector.multi_reduction <add>, %114, %cst_56 [0] : vector<256x128xf32> to vector<128xf32>
    %116 = vector.shape_cast %115 : vector<128xf32> to vector<1x128xf32>
    %117 = arith.addf %113, %116 : vector<1x128xf32>
    %c0_57 = arith.constant 0 : index
    %c0_58 = arith.constant 0 : index
    %118 = vector.load %arg8[%c0_57, %c0_58] : memref<1x128xf32, #tpu.memory_space<vmem>>, vector<1x128xf32>
    tpu.vector_store %arg8[%c0_57, %c0_58], %117 {strides = array<i32>} : memref<1x128xf32, #tpu.memory_space<vmem>>, vector<1x128xf32>,
    return
  }
  func.func @transform_0(%arg0: i32, %arg1: i32) -> (i32, i32, i32, i32, i32) {
    %c0_i32 = arith.constant 0 : i32
    %c0_i32_0 = arith.constant 0 : i32
    %c0_i32_1 = arith.constant 0 : i32
    %c0_i32_2 = arith.constant 0 : i32
    return %arg0, %arg1, %c0_i32, %c0_i32_0, %c0_i32_1 : i32, i32, i32, i32, i32
  }
  func.func @transform_1(%arg0: i32, %arg1: i32) -> (i32, i32, i32) {
    %c0_i32 = arith.constant 0 : i32
    %c0_i32_0 = arith.constant 0 : i32
    %c0_i32_1 = arith.constant 0 : i32
    %c0_i32_2 = arith.constant 0 : i32
    return %c0_i32, %c0_i32_0, %c0_i32_1 : i32, i32, i32
  }
  func.func @transform_2(%arg0: i32, %arg1: i32) -> (i32, i32) {
    %c0_i32 = arith.constant 0 : i32
    %c0_i32_0 = arith.constant 0 : i32
    %c0_i32_1 = arith.constant 0 : i32
    return %c0_i32, %c0_i32_0 : i32, i32
  }
  func.func @transform_3(%arg0: i32, %arg1: i32) -> (i32, i32) {
    %c0_i32 = arith.constant 0 : i32
    %c0_i32_0 = arith.constant 0 : i32
    %c0_i32_1 = arith.constant 0 : i32
    return %c0_i32, %c0_i32_0 : i32, i32
  }
  func.func @transform_4(%arg0: i32, %arg1: i32) -> (i32, i32, i32, i32, i32) {
    %c0_i32 = arith.constant 0 : i32
    %c0_i32_0 = arith.constant 0 : i32
    %c0_i32_1 = arith.constant 0 : i32
    %c0_i32_2 = arith.constant 0 : i32
    return %arg0, %arg1, %c0_i32, %c0_i32_0, %c0_i32_1 : i32, i32, i32, i32, i32
  }
  func.func @transform_5(%arg0: i32, %arg1: i32) -> (i32, i32) {
    %c0_i32 = arith.constant 0 : i32
    %c0_i32_0 = arith.constant 0 : i32
    %c0_i32_1 = arith.constant 0 : i32
    return %c0_i32, %c0_i32_0 : i32, i32
  }
  func.func @transform_6(%arg0: i32, %arg1: i32) -> (i32, i32) {
    %c0_i32 = arith.constant 0 : i32
    %c0_i32_0 = arith.constant 0 : i32
    %c0_i32_1 = arith.constant 0 : i32
    return %c0_i32, %c0_i32_0 : i32, i32
  }
}

module attributes {stable_mosaic.version = 11 : i64} {
  func.func @_bn_relu_kernel(%arg0: i32, %arg1: memref<512x128xf32, #tpu.memory_space<vmem>>, %arg2: memref<1x128xf32, #tpu.memory_space<vmem>>, %arg3: memref<1x128xf32, #tpu.memory_space<vmem>>, %arg4: memref<512x128xf32, #tpu.memory_space<vmem>>) attributes {dimension_semantics = [#tpu.dimension_semantics<parallel>], iteration_bounds = array<i64: 1>, scalar_prefetch = 0 : i64, scratch_operands = 0 : i64, tpu.core_type = #tpu.core_type<tc>, window_params = [{transform_indices = @transform_0, window_bounds = array<i64: 512, 128>}, {pipeline_mode = #tpu.pipeline_mode<synchronous>, transform_indices = @transform_1, window_bounds = array<i64: 1, 128>}, {pipeline_mode = #tpu.pipeline_mode<synchronous>, transform_indices = @transform_2, window_bounds = array<i64: 1, 128>}, {transform_indices = @transform_3, window_bounds = array<i64: 512, 128>}]} {
    %c0 = arith.constant 0 : index
    %c0_0 = arith.constant 0 : index
    %0 = vector.load %arg1[%c0, %c0_0] : memref<512x128xf32, #tpu.memory_space<vmem>>, vector<512x128xf32>
    %c0_1 = arith.constant 0 : index
    %c0_2 = arith.constant 0 : index
    %1 = vector.load %arg2[%c0_1, %c0_2] : memref<1x128xf32, #tpu.memory_space<vmem>>, vector<1x128xf32>
    %2 = vector.broadcast %1 : vector<1x128xf32> to vector<512x128xf32>
    %3 = arith.mulf %0, %2 : vector<512x128xf32>
    %c0_3 = arith.constant 0 : index
    %c0_4 = arith.constant 0 : index
    %4 = vector.load %arg3[%c0_3, %c0_4] : memref<1x128xf32, #tpu.memory_space<vmem>>, vector<1x128xf32>
    %5 = vector.broadcast %4 : vector<1x128xf32> to vector<512x128xf32>
    %6 = arith.addf %3, %5 : vector<512x128xf32>
    %cst = arith.constant 0.000000e+00 : f32
    %7 = vector.broadcast %cst : f32 to vector<512x128xf32>
    %8 = arith.maximumf %6, %7 : vector<512x128xf32>
    %c0_5 = arith.constant 0 : index
    %c0_6 = arith.constant 0 : index
    %9 = vector.load %arg4[%c0_5, %c0_6] : memref<512x128xf32, #tpu.memory_space<vmem>>, vector<512x128xf32>
    tpu.vector_store %arg4[%c0_5, %c0_6], %8 {strides = array<i32>} : memref<512x128xf32, #tpu.memory_space<vmem>>, vector<512x128xf32>,
    return
  }
  func.func @transform_0(%arg0: i32) -> (i32, i32) {
    %c0_i32 = arith.constant 0 : i32
    %c0_i32_0 = arith.constant 0 : i32
    return %arg0, %c0_i32 : i32, i32
  }
  func.func @transform_1(%arg0: i32) -> (i32, i32) {
    %c0_i32 = arith.constant 0 : i32
    %c0_i32_0 = arith.constant 0 : i32
    %c0_i32_1 = arith.constant 0 : i32
    return %c0_i32, %c0_i32_0 : i32, i32
  }
  func.func @transform_2(%arg0: i32) -> (i32, i32) {
    %c0_i32 = arith.constant 0 : i32
    %c0_i32_0 = arith.constant 0 : i32
    %c0_i32_1 = arith.constant 0 : i32
    return %c0_i32, %c0_i32_0 : i32, i32
  }
  func.func @transform_3(%arg0: i32) -> (i32, i32) {
    %c0_i32 = arith.constant 0 : i32
    %c0_i32_0 = arith.constant 0 : i32
    return %arg0, %c0_i32 : i32, i32
  }
}

</mosaic_0001>

<llo_original>
// kernel: conv_block_forward.5
$region0: #{conv_block_forward.5}
  #allocation0 [shape = 'u32[]', space=smem, size = 0x4, offset = 0x4, fixed_abs, tag = 'smem constant byte address 0x4 - core index']
  #allocation1 [shape = 'u32[144,128]{1,0:T(1,128)}', space=vmem, size = 0x12000, scoped, tag = 'internal scratch']
  %s0 = inlined_call_operand.vmem [shape: f32[512,128], index: 0, kind: input, shape index: {}]
  %s1 = inlined_call_operand.vmem [shape: f32[1,128], index: 1, kind: input, shape index: {}]
  %s2 = inlined_call_operand.vmem [shape: f32[1,128], index: 2, kind: input, shape index: {}]
  %s3 = inlined_call_operand.vmem [shape: f32[512,128], index: 3, kind: output, shape index: {}]
  %s4 = sld [smem:[#allocation0]]
  $region22: #{conv_block_forward.5} parent=0
    _
  %s6 = ssub.s32 1, %s4
  %s7 = scalar_select 0, %s6, %s4
  // Predicated region
  $region2: #{conv_block_forward.5} parent=0 // pred_check
    _
  $region3: #{conv_block_forward.5} parent=0 // pred_check_branch
    %9 = sbr.rel (0) target = $region5
  $region4: #{conv_block_forward.5} parent=0 // pred_region
    _
  $region5: #{conv_block_forward.5} parent=0 // pred_fallthru
    _
  // Predicated region
  $region6: #{conv_block_forward.5} parent=0 // pred_check
    _
  $region7: #{conv_block_forward.5} parent=0 // pred_check_branch
    %11 = sbr.rel (0) target = $region9
  $region8: #{conv_block_forward.5} parent=0 // pred_region
    _
  $region9: #{conv_block_forward.5} parent=0 // pred_fallthru
    _
  // Predicated region
  $region10: #{conv_block_forward.5} parent=0 // pred_check
    _
  $region11: #{conv_block_forward.5} parent=0 // pred_check_branch
    %13 = sbr.rel (0) target = $region13
  $region12: #{conv_block_forward.5} parent=0 // pred_region
    _
  $region13: #{conv_block_forward.5} parent=0 // pred_fallthru
    _
  %v14 = vld [vmem:[%s0] sm:$0xff]
  %v15 = vld [vmem:[%s0 + $0x8] sm:$0xff]
  %v16 = vld [vmem:[%s0 + $0x10] sm:$0xff]
  %v17 = vld [vmem:[%s0 + $0x18] sm:$0xff]
  %v18 = vld [vmem:[%s0 + $0x20] sm:$0xff]
  %v19 = vld [vmem:[%s0 + $0x28] sm:$0xff]
  %v20 = vld [vmem:[%s0 + $0x30] sm:$0xff]
  %v21 = vld [vmem:[%s0 + $0x38] sm:$0xff]
  %v22 = vld [vmem:[%s0 + $0x40] sm:$0xff]
  %v23 = vld [vmem:[%s0 + $0x48] sm:$0xff]
  %v24 = vld [vmem:[%s0 + $0x50] sm:$0xff]
  %v25 = vld [vmem:[%s0 + $0x58] sm:$0xff]
  %v26 = vld [vmem:[%s0 + $0x60] sm:$0xff]
  %v27 = vld [vmem:[%s0 + $0x68] sm:$0xff]
  %v28 = vld [vmem:[%s0 + $0x70] sm:$0xff]
  %v29 = vld [vmem:[%s0 + $0x78] sm:$0xff]
  %v30 = vld [vmem:[%s0 + $0x80] sm:$0xff]
  %v31 = vld [vmem:[%s0 + $0x88] sm:$0xff]
  %v32 = vld [vmem:[%s0 + $0x90] sm:$0xff]
  %v33 = vld [vmem:[%s0 + $0x98] sm:$0xff]
  %v34 = vld [vmem:[%s0 + $0xa0] sm:$0xff]
  %v35 = vld [vmem:[%s0 + $0xa8] sm:$0xff]
  %v36 = vld [vmem:[%s0 + $0xb0] sm:$0xff]
  %v37 = vld [vmem:[%s0 + $0xb8] sm:$0xff]
  %v38 = vld [vmem:[%s0 + $0xc0] sm:$0xff]
  %v39 = vld [vmem:[%s0 + $0xc8] sm:$0xff]
  %v40 = vld [vmem:[%s0 + $0xd0] sm:$0xff]
  %v41 = vld [vmem:[%s0 + $0xd8] sm:$0xff]
  %v42 = vld [vmem:[%s0 + $0xe0] sm:$0xff]
  %v43 = vld [vmem:[%s0 + $0xe8] sm:$0xff]
  %v44 = vld [vmem:[%s0 + $0xf0] sm:$0xff]
  %v45 = vld [vmem:[%s0 + $0xf8] sm:$0xff]
  %v46 = vld [vmem:[%s0 + $0x100] sm:$0xff]
  %v47 = vld [vmem:[%s0 + $0x108] sm:$0xff]
  %v48 = vld [vmem:[%s0 + $0x110] sm:$0xff]
  %v49 = vld [vmem:[%s0 + $0x118] sm:$0xff]
  %v50 = vld [vmem:[%s0 + $0x120] sm:$0xff]
  %v51 = vld [vmem:[%s0 + $0x128] sm:$0xff]
  %v52 = vld [vmem:[%s0 + $0x130] sm:$0xff]
  %v53 = vld [vmem:[%s0 + $0x138] sm:$0xff]
  %v54 = vld [vmem:[%s0 + $0x140] sm:$0xff]
  %v55 = vld [vmem:[%s0 + $0x148] sm:$0xff]
  %v56 = vld [vmem:[%s0 + $0x150] sm:$0xff]
  %v57 = vld [vmem:[%s0 + $0x158] sm:$0xff]
  %v58 = vld [vmem:[%s0 + $0x160] sm:$0xff]
  %v59 = vld [vmem:[%s0 + $0x168] sm:$0xff]
  %v60 = vld [vmem:[%s0 + $0x170] sm:$0xff]
  %v61 = vld [vmem:[%s0 + $0x178] sm:$0xff]
  %v62 = vld [vmem:[%s0 + $0x180] sm:$0xff]
  %v63 = vld [vmem:[%s0 + $0x188] sm:$0xff]
  %v64 = vld [vmem:[%s0 + $0x190] sm:$0xff]
  %v65 = vld [vmem:[%s0 + $0x198] sm:$0xff]
  %v66 = vld [vmem:[%s0 + $0x1a0] sm:$0xff]
  %v67 = vld [vmem:[%s0 + $0x1a8] sm:$0xff]
  %v68 = vld [vmem:[%s0 + $0x1b0] sm:$0xff]
  %v69 = vld [vmem:[%s0 + $0x1b8] sm:$0xff]
  %v70 = vld [vmem:[%s0 + $0x1c0] sm:$0xff]
  %v71 = vld [vmem:[%s0 + $0x1c8] sm:$0xff]
  %v72 = vld [vmem:[%s0 + $0x1d0] sm:$0xff]
  %v73 = vld [vmem:[%s0 + $0x1d8] sm:$0xff]
  %v74 = vld [vmem:[%s0 + $0x1e0] sm:$0xff]
  %v75 = vld [vmem:[%s0 + $0x1e8] sm:$0xff]
  %v76 = vld [vmem:[%s0 + $0x1f0] sm:$0xff]
  %v77 = vld [vmem:[%s0 + $0x1f8] sm:$0xff]
  %v78 = vld [vmem:[%s1] sm:$0x1]
  %v80 = vlaneseq
  %v81 = vshrl.u32 %v80, 7
  %v82 = vsub.s32 0, %v81
  %v83 = vrot.slane %v78, %v82
  %v85 = vmul.f32 %v14, %v83
  %v86 = vmul.f32 %v15, %v83
  %v87 = vmul.f32 %v16, %v83
  %v88 = vmul.f32 %v17, %v83
  %v89 = vmul.f32 %v18, %v83
  %v90 = vmul.f32 %v19, %v83
  %v91 = vmul.f32 %v20, %v83
  %v92 = vmul.f32 %v21, %v83
  %v93 = vmul.f32 %v22, %v83
  %v94 = vmul.f32 %v23, %v83
  %v95 = vmul.f32 %v24, %v83
  %v96 = vmul.f32 %v25, %v83
  %v97 = vmul.f32 %v26, %v83
  %v98 = vmul.f32 %v27, %v83
  %v99 = vmul.f32 %v28, %v83
  %v100 = vmul.f32 %v29, %v83
  %v101 = vmul.f32 %v30, %v83
  %v102 = vmul.f32 %v31, %v83
  %v103 = vmul.f32 %v32, %v83
  %v104 = vmul.f32 %v33, %v83
  %v105 = vmul.f32 %v34, %v83
  %v106 = vmul.f32 %v35, %v83
  %v107 = vmul.f32 %v36, %v83
  %v108 = vmul.f32 %v37, %v83
  %v109 = vmul.f32 %v38, %v83
  %v110 = vmul.f32 %v39, %v83
  %v111 = vmul.f32 %v40, %v83
  %v112 = vmul.f32 %v41, %v83
  %v113 = vmul.f32 %v42, %v83
  %v114 = vmul.f32 %v43, %v83
  %v115 = vmul.f32 %v44, %v83
  %v116 = vmul.f32 %v45, %v83
  %v117 = vmul.f32 %v46, %v83
  %v118 = vmul.f32 %v47, %v83
  %v119 = vmul.f32 %v48, %v83
  %v120 = vmul.f32 %v49, %v83
  %v121 = vmul.f32 %v50, %v83
  %v122 = vmul.f32 %v51, %v83
  %v123 = vmul.f32 %v52, %v83
  %v124 = vmul.f32 %v53, %v83
  %v125 = vmul.f32 %v54, %v83
  %v126 = vmul.f32 %v55, %v83
  %v127 = vmul.f32 %v56, %v83
  %v128 = vmul.f32 %v57, %v83
  %v129 = vmul.f32 %v58, %v83
  %v130 = vmul.f32 %v59, %v83
  %v131 = vmul.f32 %v60, %v83
  %v132 = vmul.f32 %v61, %v83
  %v133 = vmul.f32 %v62, %v83
  %v134 = vmul.f32 %v63, %v83
  %v135 = vmul.f32 %v64, %v83
  %v136 = vmul.f32 %v65, %v83
  %v137 = vmul.f32 %v66, %v83
  %v138 = vmul.f32 %v67, %v83
  %v139 = vmul.f32 %v68, %v83
  %v140 = vmul.f32 %v69, %v83
  %v141 = vmul.f32 %v70, %v83
  %v142 = vmul.f32 %v71, %v83
  %v143 = vmul.f32 %v72, %v83
  %v144 = vmul.f32 %v73, %v83
  %v145 = vmul.f32 %v74, %v83
  %v146 = vmul.f32 %v75, %v83
  %v147 = vmul.f32 %v76, %v83
  %v148 = vmul.f32 %v77, %v83
  %v149 = vld [vmem:[%s2] sm:$0x1]
  %v151 = vlaneseq
  %v152 = vshrl.u32 %v151, 7
  %v153 = vsub.s32 0, %v152
  %v154 = vrot.slane %v149, %v153
  %v156 = vadd.f32 %v85, %v154
  %v157 = vadd.f32 %v86, %v154
  %v158 = vadd.f32 %v87, %v154
  %v159 = vadd.f32 %v88, %v154
  %v160 = vadd.f32 %v89, %v154
  %v161 = vadd.f32 %v90, %v154
  %v162 = vadd.f32 %v91, %v154
  %v163 = vadd.f32 %v92, %v154
  %v164 = vadd.f32 %v93, %v154
  %v165 = vadd.f32 %v94, %v154
  %v166 = vadd.f32 %v95, %v154
  %v167 = vadd.f32 %v96, %v154
  %v168 = vadd.f32 %v97, %v154
  %v169 = vadd.f32 %v98, %v154
  %v170 = vadd.f32 %v99, %v154
  %v171 = vadd.f32 %v100, %v154
  %v172 = vadd.f32 %v101, %v154
  %v173 = vadd.f32 %v102, %v154
  %v174 = vadd.f32 %v103, %v154
  %v175 = vadd.f32 %v104, %v154
  %v176 = vadd.f32 %v105, %v154
  %v177 = vadd.f32 %v106, %v154
  %v178 = vadd.f32 %v107, %v154
  %v179 = vadd.f32 %v108, %v154
  %v180 = vadd.f32 %v109, %v154
  %v181 = vadd.f32 %v110, %v154
  %v182 = vadd.f32 %v111, %v154
  %v183 = vadd.f32 %v112, %v154
  %v184 = vadd.f32 %v113, %v154
  %v185 = vadd.f32 %v114, %v154
  %v186 = vadd.f32 %v115, %v154
  %v187 = vadd.f32 %v116, %v154
  %v188 = vadd.f32 %v117, %v154
  %v189 = vadd.f32 %v118, %v154
  %v190 = vadd.f32 %v119, %v154
  %v191 = vadd.f32 %v120, %v154
  %v192 = vadd.f32 %v121, %v154
  %v193 = vadd.f32 %v122, %v154
  %v194 = vadd.f32 %v123, %v154
  %v195 = vadd.f32 %v124, %v154
  %v196 = vadd.f32 %v125, %v154
  %v197 = vadd.f32 %v126, %v154
  %v198 = vadd.f32 %v127, %v154
  %v199 = vadd.f32 %v128, %v154
  %v200 = vadd.f32 %v129, %v154
  %v201 = vadd.f32 %v130, %v154
  %v202 = vadd.f32 %v131, %v154
  %v203 = vadd.f32 %v132, %v154
  %v204 = vadd.f32 %v133, %v154
  %v205 = vadd.f32 %v134, %v154
  %v206 = vadd.f32 %v135, %v154
  %v207 = vadd.f32 %v136, %v154
  %v208 = vadd.f32 %v137, %v154
  %v209 = vadd.f32 %v138, %v154
  %v210 = vadd.f32 %v139, %v154
  %v211 = vadd.f32 %v140, %v154
  %v212 = vadd.f32 %v141, %v154
  %v213 = vadd.f32 %v142, %v154
  %v214 = vadd.f32 %v143, %v154
  %v215 = vadd.f32 %v144, %v154
  %v216 = vadd.f32 %v145, %v154
  %v217 = vadd.f32 %v146, %v154
  %v218 = vadd.f32 %v147, %v154
  %v219 = vadd.f32 %v148, %v154
  %v220 = vmax.f32 %v156, 0.0
  %v221 = vmax.f32 %v157, 0.0
  %v222 = vmax.f32 %v158, 0.0
  %v223 = vmax.f32 %v159, 0.0
  %v224 = vmax.f32 %v160, 0.0
  %v225 = vmax.f32 %v161, 0.0
  %v226 = vmax.f32 %v162, 0.0
  %v227 = vmax.f32 %v163, 0.0
  %v228 = vmax.f32 %v164, 0.0
  %v229 = vmax.f32 %v165, 0.0
  %v230 = vmax.f32 %v166, 0.0
  %v231 = vmax.f32 %v167, 0.0
  %v232 = vmax.f32 %v168, 0.0
  %v233 = vmax.f32 %v169, 0.0
  %v234 = vmax.f32 %v170, 0.0
  %v235 = vmax.f32 %v171, 0.0
  %v236 = vmax.f32 %v172, 0.0
  %v237 = vmax.f32 %v173, 0.0
  %v238 = vmax.f32 %v174, 0.0
  %v239 = vmax.f32 %v175, 0.0
  %v240 = vmax.f32 %v176, 0.0
  %v241 = vmax.f32 %v177, 0.0
  %v242 = vmax.f32 %v178, 0.0
  %v243 = vmax.f32 %v179, 0.0
  %v244 = vmax.f32 %v180, 0.0
  %v245 = vmax.f32 %v181, 0.0
  %v246 = vmax.f32 %v182, 0.0
  %v247 = vmax.f32 %v183, 0.0
  %v248 = vmax.f32 %v184, 0.0
  %v249 = vmax.f32 %v185, 0.0
  %v250 = vmax.f32 %v186, 0.0
  %v251 = vmax.f32 %v187, 0.0
  %v252 = vmax.f32 %v188, 0.0
  %v253 = vmax.f32 %v189, 0.0
  %v254 = vmax.f32 %v190, 0.0
  %v255 = vmax.f32 %v191, 0.0
  %v256 = vmax.f32 %v192, 0.0
  %v257 = vmax.f32 %v193, 0.0
  %v258 = vmax.f32 %v194, 0.0
  %v259 = vmax.f32 %v195, 0.0
  %v260 = vmax.f32 %v196, 0.0
  %v261 = vmax.f32 %v197, 0.0
  %v262 = vmax.f32 %v198, 0.0
  %v263 = vmax.f32 %v199, 0.0
  %v264 = vmax.f32 %v200, 0.0
  %v265 = vmax.f32 %v201, 0.0
  %v266 = vmax.f32 %v202, 0.0
  %v267 = vmax.f32 %v203, 0.0
  %v268 = vmax.f32 %v204, 0.0
  %v269 = vmax.f32 %v205, 0.0
  %v270 = vmax.f32 %v206, 0.0
  %v271 = vmax.f32 %v207, 0.0
  %v272 = vmax.f32 %v208, 0.0
  %v273 = vmax.f32 %v209, 0.0
  %v274 = vmax.f32 %v210, 0.0
  %v275 = vmax.f32 %v211, 0.0
  %v276 = vmax.f32 %v212, 0.0
  %v277 = vmax.f32 %v213, 0.0
  %v278 = vmax.f32 %v214, 0.0
  %v279 = vmax.f32 %v215, 0.0
  %v280 = vmax.f32 %v216, 0.0
  %v281 = vmax.f32 %v217, 0.0
  %v282 = vmax.f32 %v218, 0.0
  %v283 = vmax.f32 %v219, 0.0
  %284 = vst [vmem:[%s3] sm:$0xff] %v220
  %285 = vst [vmem:[%s3 + $0x8] sm:$0xff] %v221
  %286 = vst [vmem:[%s3 + $0x10] sm:$0xff] %v222
  %287 = vst [vmem:[%s3 + $0x18] sm:$0xff] %v223
  %288 = vst [vmem:[%s3 + $0x20] sm:$0xff] %v224
  %289 = vst [vmem:[%s3 + $0x28] sm:$0xff] %v225
  %290 = vst [vmem:[%s3 + $0x30] sm:$0xff] %v226
  %291 = vst [vmem:[%s3 + $0x38] sm:$0xff] %v227
  %292 = vst [vmem:[%s3 + $0x40] sm:$0xff] %v228
  %293 = vst [vmem:[%s3 + $0x48] sm:$0xff] %v229
  %294 = vst [vmem:[%s3 + $0x50] sm:$0xff] %v230
  %295 = vst [vmem:[%s3 + $0x58] sm:$0xff] %v231
  %296 = vst [vmem:[%s3 + $0x60] sm:$0xff] %v232
  %297 = vst [vmem:[%s3 + $0x68] sm:$0xff] %v233
  %298 = vst [vmem:[%s3 + $0x70] sm:$0xff] %v234
  %299 = vst [vmem:[%s3 + $0x78] sm:$0xff] %v235
  %300 = vst [vmem:[%s3 + $0x80] sm:$0xff] %v236
  %301 = vst [vmem:[%s3 + $0x88] sm:$0xff] %v237
  %302 = vst [vmem:[%s3 + $0x90] sm:$0xff] %v238
  %303 = vst [vmem:[%s3 + $0x98] sm:$0xff] %v239
  %304 = vst [vmem:[%s3 + $0xa0] sm:$0xff] %v240
  %305 = vst [vmem:[%s3 + $0xa8] sm:$0xff] %v241
  %306 = vst [vmem:[%s3 + $0xb0] sm:$0xff] %v242
  %307 = vst [vmem:[%s3 + $0xb8] sm:$0xff] %v243
  %308 = vst [vmem:[%s3 + $0xc0] sm:$0xff] %v244
  %309 = vst [vmem:[%s3 + $0xc8] sm:$0xff] %v245
  %310 = vst [vmem:[%s3 + $0xd0] sm:$0xff] %v246
  %311 = vst [vmem:[%s3 + $0xd8] sm:$0xff] %v247
  %312 = vst [vmem:[%s3 + $0xe0] sm:$0xff] %v248
  %313 = vst [vmem:[%s3 + $0xe8] sm:$0xff] %v249
  %314 = vst [vmem:[%s3 + $0xf0] sm:$0xff] %v250
  %315 = vst [vmem:[%s3 + $0xf8] sm:$0xff] %v251
  %316 = vst [vmem:[%s3 + $0x100] sm:$0xff] %v252
  %317 = vst [vmem:[%s3 + $0x108] sm:$0xff] %v253
  %318 = vst [vmem:[%s3 + $0x110] sm:$0xff] %v254
  %319 = vst [vmem:[%s3 + $0x118] sm:$0xff] %v255
  %320 = vst [vmem:[%s3 + $0x120] sm:$0xff] %v256
  %321 = vst [vmem:[%s3 + $0x128] sm:$0xff] %v257
  %322 = vst [vmem:[%s3 + $0x130] sm:$0xff] %v258
  %323 = vst [vmem:[%s3 + $0x138] sm:$0xff] %v259
  %324 = vst [vmem:[%s3 + $0x140] sm:$0xff] %v260
  %325 = vst [vmem:[%s3 + $0x148] sm:$0xff] %v261
  %326 = vst [vmem:[%s3 + $0x150] sm:$0xff] %v262
  %327 = vst [vmem:[%s3 + $0x158] sm:$0xff] %v263
  %328 = vst [vmem:[%s3 + $0x160] sm:$0xff] %v264
  %329 = vst [vmem:[%s3 + $0x168] sm:$0xff] %v265
  %330 = vst [vmem:[%s3 + $0x170] sm:$0xff] %v266
  %331 = vst [vmem:[%s3 + $0x178] sm:$0xff] %v267
  %332 = vst [vmem:[%s3 + $0x180] sm:$0xff] %v268
  %333 = vst [vmem:[%s3 + $0x188] sm:$0xff] %v269
  %334 = vst [vmem:[%s3 + $0x190] sm:$0xff] %v270
  %335 = vst [vmem:[%s3 + $0x198] sm:$0xff] %v271
  %336 = vst [vmem:[%s3 + $0x1a0] sm:$0xff] %v272
  %337 = vst [vmem:[%s3 + $0x1a8] sm:$0xff] %v273
  %338 = vst [vmem:[%s3 + $0x1b0] sm:$0xff] %v274
  %339 = vst [vmem:[%s3 + $0x1b8] sm:$0xff] %v275
  %340 = vst [vmem:[%s3 + $0x1c0] sm:$0xff] %v276
  %341 = vst [vmem:[%s3 + $0x1c8] sm:$0xff] %v277
  %342 = vst [vmem:[%s3 + $0x1d0] sm:$0xff] %v278
  %343 = vst [vmem:[%s3 + $0x1d8] sm:$0xff] %v279
  %344 = vst [vmem:[%s3 + $0x1e0] sm:$0xff] %v280
  %345 = vst [vmem:[%s3 + $0x1e8] sm:$0xff] %v281
  %346 = vst [vmem:[%s3 + $0x1f0] sm:$0xff] %v282
  %347 = vst [vmem:[%s3 + $0x1f8] sm:$0xff] %v283
  // Predicated region
  $region14: #{conv_block_forward.5} parent=0 // pred_check
    _
  $region15: #{conv_block_forward.5} parent=0 // pred_check_branch
    %349 = sbr.rel (0) target = $region17
  $region16: #{conv_block_forward.5} parent=0 // pred_region
    _
  $region17: #{conv_block_forward.5} parent=0 // pred_fallthru
    _
  // Predicated region
  $region18: #{conv_block_forward.5} parent=0 // pred_check
    _
  $region19: #{conv_block_forward.5} parent=0 // pred_check_branch
    %351 = sbr.rel (0) target = $region21
  $region20: #{conv_block_forward.5} parent=0 // pred_region
    _
  $region21: #{conv_block_forward.5} parent=0 // pred_fallthru
    _

// kernel: conv_block_forward.3
$region0: #{conv_block_forward.3}
  #allocation0 [shape = 'u32[]', space=smem, size = 0x4, offset = 0x4, fixed_abs, tag = 'smem constant byte address 0x4 - core index']
  #allocation1 [shape = 'u32[144,128]{1,0:T(1,128)}', space=vmem, size = 0x12000, scoped, tag = 'internal scratch']
  %s0 = inlined_call_operand.vmem [shape: bf16[2,1,18,18,4], index: 0, kind: input, shape index: {}]
  %s1 = inlined_call_operand.vmem [shape: bf16[9,4,128], index: 1, kind: input, shape index: {}]
  %s2 = inlined_call_operand.vmem [shape: f32[1,4], index: 2, kind: input, shape index: {}]
  %s3 = inlined_call_operand.vmem [shape: f32[1,4], index: 3, kind: input, shape index: {}]
  %s4 = inlined_call_operand.vmem [shape: f32[2,1,16,16,128], index: 4, kind: output, shape index: {0}]
  %s5 = inlined_call_operand.vmem [shape: f32[1,128], index: 5, kind: output, shape index: {1}]
  %s6 = inlined_call_operand.vmem [shape: f32[1,128], index: 6, kind: output, shape index: {2}]
  %7 = xla_tuple %s4, %s5, %s6
  %s8 = sld [smem:[#allocation0]]
  $region69: #{conv_block_forward.3} parent=0
    _
  %s10 = ssub.s32 1, %s8
  %s11 = scalar_select 0, %s10, %s8
  loop: start=0, step=1, limit=4
  $region2: #{conv_block_forward.3} parent=0 // loop_pre_header
    _
  $region3: #{conv_block_forward.3} parent=0 // loop_header
    %s13 = sphi 0, %s17
    %p14 = scmp.ge.s32.totalorder %s13, 4
    %s20 = sphi 0, %s32
    %s21 = sphi 0, %s28
    %s22 = sphi 0, %s20
    %s23 = sphi 0, %s21
    %s24 = sphi 0, %s22
    %s25 = sphi 0, %s23
    %s37 = sphi 0, %s39
    %s40 = sphi 0, %s37
    %s41 = sphi 0, %s40
    %s57 = sphi 0, %s41
    %s61 = sphi 0, %s61
    %s63 = sphi 0, %s61
    %s64 = sphi 0, %s63
    %s78 = sphi 0, %s64
    %s82 = sphi 0, %s82
    %s84 = sphi 0, %s82
    %s85 = sphi 0, %s84
    %s99 = sphi 0, %s85
    %s103 = sphi 0, %s103
    %s105 = sphi 0, %s103
    %s106 = sphi 0, %s105
    %s120 = sphi 0, %s106
    %s128 = sphi 0, %s130
    %s131 = sphi 0, %s128
    %s132 = sphi 0, %s131
    %s148 = sphi 0, %s132
    %s152 = sphi 0, %s152
    %s154 = sphi 0, %s152
    %s155 = sphi 0, %s154
    %s169 = sphi 0, %s155
    %s173 = sphi 0, %s173
    %s175 = sphi 0, %s173
    %s176 = sphi 0, %s175
    %s190 = sphi 0, %s176
  $region4: #{conv_block_forward.3} parent=0 // loop_header_branch
    %16 = sbr.rel (%p14) target = $region8
  $region5: #{conv_block_forward.3} parent=0 // loop_body
    %s18 = ssub.s32 %s13, 1
    %s19 = ssub.s32 %s13, 2
    %s26 = sadd.s32 1, %s21
    %p27 = scmp.ge.s32.totalorder %s26, 1
    %s28 = scalar_select %p27, 0, %s26
    %s29 = sadd.s32 1, %s20
    %s30 = scalar_select %p27, %s29, %s20
    %p31 = scmp.ge.s32.totalorder %s30, 2
    %s32 = scalar_select %p31, 0, %s30
    %s33 = ssub.s32 %s20, %s32
    %s34 = ssub.s32 %s21, %s28
    %s35 = sor.u32 %s33, %s34
    %p36 = scmp.eq.s32.totalorder %s35, 0
    %s38 = sadd.s32 %s37, 1
    %s39 = scalar_select %p36, %s37, %s38
    %p42 = pneg %p36
    %p43 = scmp.eq.s32.totalorder %s13, 1
    %p44 = por %p42, %p43
    %p45 = scmp.ne.s32.totalorder %s37, %s40
    %p46 = scmp.eq.s32.totalorder %s13, 0
    %p47 = por %p45, %p46
    %p48 = scmp.ne.s32.totalorder %s37, %s40
    %p49 = scmp.eq.s32.totalorder %s18, 1
    %p50 = por %p48, %p49
    %p51 = scmp.ne.s32.totalorder %s40, %s41
    %p52 = scmp.eq.s32.totalorder %s18, 0
    %p53 = por %p51, %p52
    %p54 = scmp.ne.s32.totalorder %s40, %s41
    %p55 = scmp.eq.s32.totalorder %s19, 1
    %p56 = por %p54, %p55
    %p58 = scmp.ne.s32.totalorder %s41, %s57
    %p59 = scmp.eq.s32.totalorder %s19, 0
    %p60 = por %p58, %p59
    %s62 = sadd.s32 %s61, 1
    %p65 = scmp.eq.s32.totalorder %s13, 1
    %p66 = scmp.ne.s32.totalorder %s61, %s63
    %p67 = scmp.eq.s32.totalorder %s13, 0
    %p68 = por %p66, %p67
    %p69 = scmp.ne.s32.totalorder %s61, %s63
    %p70 = scmp.eq.s32.totalorder %s18, 1
    %p71 = por %p69, %p70
    %p72 = scmp.ne.s32.totalorder %s63, %s64
    %p73 = scmp.eq.s32.totalorder %s18, 0
    %p74 = por %p72, %p73
    %p75 = scmp.ne.s32.totalorder %s63, %s64
    %p76 = scmp.eq.s32.totalorder %s19, 1
    %p77 = por %p75, %p76
    %p79 = scmp.ne.s32.totalorder %s64, %s78
    %p80 = scmp.eq.s32.totalorder %s19, 0
    %p81 = por %p79, %p80
    %s83 = sadd.s32 %s82, 1
    %p86 = scmp.eq.s32.totalorder %s13, 1
    %p87 = scmp.ne.s32.totalorder %s82, %s84
    %p88 = scmp.eq.s32.totalorder %s13, 0
    %p89 = por %p87, %p88
    %p90 = scmp.ne.s32.totalorder %s82, %s84
    %p91 = scmp.eq.s32.totalorder %s18, 1
    %p92 = por %p90, %p91
    %p93 = scmp.ne.s32.totalorder %s84, %s85
    %p94 = scmp.eq.s32.totalorder %s18, 0
    %p95 = por %p93, %p94
    %p96 = scmp.ne.s32.totalorder %s84, %s85
    %p97 = scmp.eq.s32.totalorder %s19, 1
    %p98 = por %p96, %p97
    %p100 = scmp.ne.s32.totalorder %s85, %s99
    %p101 = scmp.eq.s32.totalorder %s19, 0
    %p102 = por %p100, %p101
    %s104 = sadd.s32 %s103, 1
    %p107 = scmp.eq.s32.totalorder %s13, 1
    %p108 = scmp.ne.s32.totalorder %s103, %s105
    %p109 = scmp.eq.s32.totalorder %s13, 0
    %p110 = por %p108, %p109
    %p111 = scmp.ne.s32.totalorder %s103, %s105
    %p112 = scmp.eq.s32.totalorder %s18, 1
    %p113 = por %p111, %p112
    %p114 = scmp.ne.s32.totalorder %s105, %s106
    %p115 = scmp.eq.s32.totalorder %s18, 0
    %p116 = por %p114, %p115
    %p117 = scmp.ne.s32.totalorder %s105, %s106
    %p118 = scmp.eq.s32.totalorder %s19, 1
    %p119 = por %p117, %p118
    %p121 = scmp.ne.s32.totalorder %s106, %s120
    %p122 = scmp.eq.s32.totalorder %s19, 0
    %p123 = por %p121, %p122
    %s124 = ssub.s32 %s20, %s32
    %s125 = ssub.s32 %s21, %s28
    %s126 = sor.u32 %s124, %s125
    %p127 = scmp.eq.s32.totalorder %s126, 0
    %s129 = sadd.s32 %s128, 1
    %s130 = scalar_select %p127, %s128, %s129
    %p133 = pneg %p127
    %p134 = scmp.eq.s32.totalorder %s13, 1
    %p135 = por %p133, %p134
    %p136 = scmp.ne.s32.totalorder %s128, %s131
    %p137 = scmp.eq.s32.totalorder %s13, 0
    %p138 = por %p136, %p137
    %p139 = scmp.ne.s32.totalorder %s128, %s131
    %p140 = scmp.eq.s32.totalorder %s18, 1
    %p141 = por %p139, %p140
    %p142 = scmp.ne.s32.totalorder %s131, %s132
    %p143 = scmp.eq.s32.totalorder %s18, 0
    %p144 = por %p142, %p143
    %p145 = scmp.ne.s32.totalorder %s131, %s132
    %p146 = scmp.eq.s32.totalorder %s19, 1
    %p147 = por %p145, %p146
    %p149 = scmp.ne.s32.totalorder %s132, %s148
    %p150 = scmp.eq.s32.totalorder %s19, 0
    %p151 = por %p149, %p150
    %s153 = sadd.s32 %s152, 1
    %p156 = scmp.eq.s32.totalorder %s13, 1
    %p157 = scmp.ne.s32.totalorder %s152, %s154
    %p158 = scmp.eq.s32.totalorder %s13, 0
    %p159 = por %p157, %p158
    %p160 = scmp.ne.s32.totalorder %s152, %s154
    %p161 = scmp.eq.s32.totalorder %s18, 1
    %p162 = por %p160, %p161
    %p163 = scmp.ne.s32.totalorder %s154, %s155
    %p164 = scmp.eq.s32.totalorder %s18, 0
    %p165 = por %p163, %p164
    %p166 = scmp.ne.s32.totalorder %s154, %s155
    %p167 = scmp.eq.s32.totalorder %s19, 1
    %p168 = por %p166, %p167
    %p170 = scmp.ne.s32.totalorder %s155, %s169
    %p171 = scmp.eq.s32.totalorder %s19, 0
    %p172 = por %p170, %p171
    %s174 = sadd.s32 %s173, 1
    %p177 = scmp.eq.s32.totalorder %s13, 1
    %p178 = scmp.ne.s32.totalorder %s173, %s175
    %p179 = scmp.eq.s32.totalorder %s13, 0
    %p180 = por %p178, %p179
    %p181 = scmp.ne.s32.totalorder %s173, %s175
    %p182 = scmp.eq.s32.totalorder %s18, 1
    %p183 = por %p181, %p182
    %p184 = scmp.ne.s32.totalorder %s175, %s176
    %p185 = scmp.eq.s32.totalorder %s18, 0
    %p186 = por %p184, %p185
    %p187 = scmp.ne.s32.totalorder %s175, %s176
    %p188 = scmp.eq.s32.totalorder %s19, 1
    %p189 = por %p187, %p188
    %p191 = scmp.ne.s32.totalorder %s176, %s190
    %p192 = scmp.eq.s32.totalorder %s19, 0
    %p193 = por %p191, %p192
    %p194 = scmp.le.s32.totalorder 1, %s13
    %p195 = scmp.lt.s32.totalorder %s13, 3
    %p196 = pnand %p194, %p195
    %p197 = pneg %p196
    // Predicated region
    $region9: #{conv_block_forward.3} parent=5 // pred_check
      _
    $region10: #{conv_block_forward.3} parent=5 // pred_check_branch
      %199 = sbr.rel (%p196) target = $region12
    $region11: #{conv_block_forward.3} parent=5 // pred_region
      %s200 = ssub.s32 %s13, 1
      // Predicated region
      $region13: #{conv_block_forward.3} parent=11 // pred_check
        %p201 = pneg %p74
      $region14: #{conv_block_forward.3} parent=11 // pred_check_branch
        %203 = sbr.rel (%p201) target = $region16
      $region15: #{conv_block_forward.3} parent=11 // pred_region
        _
      $region16: #{conv_block_forward.3} parent=11 // pred_fallthru
        _
      // Predicated region
      $region17: #{conv_block_forward.3} parent=11 // pred_check
        %p204 = pneg %p95
      $region18: #{conv_block_forward.3} parent=11 // pred_check_branch
        %206 = sbr.rel (%p204) target = $region20
      $region19: #{conv_block_forward.3} parent=11 // pred_region
        _
      $region20: #{conv_block_forward.3} parent=11 // pred_fallthru
        _
      // Predicated region
      $region21: #{conv_block_forward.3} parent=11 // pred_check
        %p207 = pneg %p116
      $region22: #{conv_block_forward.3} parent=11 // pred_check_branch
        %209 = sbr.rel (%p207) target = $region24
      $region23: #{conv_block_forward.3} parent=11 // pred_region
        _
      $region24: #{conv_block_forward.3} parent=11 // pred_fallthru
        _
    $region12: #{conv_block_forward.3} parent=5 // pred_fallthru
      _
    %p210 = scmp.lt.s32.totalorder %s13, 2
    // Predicated region
    $region25: #{conv_block_forward.3} parent=5 // pred_check
      %p211 = pneg %p210
    $region26: #{conv_block_forward.3} parent=5 // pred_check_branch
      %213 = sbr.rel (%p211) target = $region28
    $region27: #{conv_block_forward.3} parent=5 // pred_region
      // Predicated region
      $region29: #{conv_block_forward.3} parent=27 // pred_check
        %p214 = pneg %p47
      $region30: #{conv_block_forward.3} parent=27 // pred_check_branch
        %216 = sbr.rel (%p214) target = $region32
      $region31: #{conv_block_forward.3} parent=27 // pred_region
        %p217 = scmp.lt.s32.totalorder %s20, 1
        %s218 = scalar_select %p217, %s20, 1
        %p219 = scmp.lt.s32.totalorder %s21, 0
        %s220 = scalar_select %p219, %s21, 0
        %s221 = smul.addr %s220, 54
        %s222 = smul.addr %s218, 54
        %s223 = sadd.s32 %s221, %s222
        %s224 = smul.addr %s223, 4
        %s225 = scalar_lea.vmem %s0, %s224
      $region32: #{conv_block_forward.3} parent=27 // pred_fallthru
        _
    $region28: #{conv_block_forward.3} parent=5 // pred_fallthru
      _
    %p226 = scmp.le.s32.totalorder 1, %s13
    %p227 = scmp.lt.s32.totalorder %s13, 3
    %p228 = pnand %p226, %p227
    %p229 = pneg %p228
    // Predicated region
    $region33: #{conv_block_forward.3} parent=5 // pred_check
      _
    $region34: #{conv_block_forward.3} parent=5 // pred_check_branch
      %231 = sbr.rel (%p228) target = $region36
    $region35: #{conv_block_forward.3} parent=5 // pred_region
      %s232 = ssub.s32 %s13, 1
      %p233 = scmp.lt.s32.totalorder %s22, 1
      %s234 = scalar_select %p233, %s22, 1
      %p235 = scmp.lt.s32.totalorder %s23, 0
      %s236 = scalar_select %p235, %s23, 0
      %s237 = smul.addr %s236, 54
      %s238 = smul.addr %s234, 54
      %s239 = sadd.s32 %s237, %s238
      %s240 = smul.addr %s239, 4
      %s241 = scalar_lea.vmem %s0, %s240
      %p242 = pneg %p53
      %p243 = pneg %p50
      %p244 = pneg %p74
      %p245 = pneg %p71
      %p246 = pneg %p95
      %p247 = pneg %p92
      %p248 = pneg %p116
      %p249 = pneg %p113
      %p250 = pneg %p144
      %p251 = pneg %p141
      %p252 = scmp.lt.s32.totalorder %s22, 1
      %s253 = scalar_select %p252, %s22, 1
      %p254 = scmp.lt.s32.totalorder %s23, 0
      %s255 = scalar_select %p254, %s23, 0
      %s256 = smul.addr %s255, 32
      %s257 = smul.addr %s253, 32
      %s258 = sadd.s32 %s256, %s257
      %s259 = smul.addr %s258, 8
      %s260 = scalar_lea.vmem %s4, %s259
      %p261 = pneg %p165
      %p262 = pneg %p162
      %p263 = pneg %p186
      %p264 = pneg %p183
      %p265 = scmp.lt.s32.totalorder %s22, 1
      %s266 = scalar_select %p265, %s22, 1
      %p267 = scmp.lt.s32.totalorder %s23, 0
      %s268 = scalar_select %p267, %s23, 0
      %s269 = smul.addr %s268, 54
      %s270 = smul.addr %s266, 54
      %s271 = sadd.s32 %s269, %s270
      %s272 = smul.addr %s271, 4
      %s273 = scalar_lea.vmem %s0, %s272
      %p274 = scmp.lt.s32.totalorder %s22, 1
      %s275 = scalar_select %p274, %s22, 1
      %p276 = scmp.lt.s32.totalorder %s23, 0
      %s277 = scalar_select %p276, %s23, 0
      %s278 = smul.addr %s277, 32
      %s279 = smul.addr %s275, 32
      %s280 = sadd.s32 %s278, %s279
      %s281 = smul.addr %s280, 8
      %s282 = scalar_lea.vmem %s4, %s281
      %p284 = scmp.eq.s32.totalorder %s22, 0
      %p285 = scmp.eq.s32.totalorder %s23, 0
      %p286 = pnand %p284, %p285
      %p287 = pneg %p286
      // Predicated region
      $region37: #{conv_block_forward.3} parent=35 // pred_check
        _
      $region38: #{conv_block_forward.3} parent=35 // pred_check_branch
        %289 = sbr.rel (%p286) target = $region40
      $region39: #{conv_block_forward.3} parent=35 // pred_region
        %290 = vst [vmem:[%s5] sm:$0x1] 0.0
        %291 = vst [vmem:[%s6] sm:$0x1] 0.0
      $region40: #{conv_block_forward.3} parent=35 // pred_fallthru
        _
      %v292 = vld [vmem:[%s273] sm:$0xf]
      %v293 = vld [vmem:[%s273 + $0x4] sm:$0xf]
      %v294 = vld [vmem:[%s273 + $0x8] sm:$0x1]
      %v295 = vld [vmem:[%s273 + $0xc] sm:$0xf]
      %v296 = vld [vmem:[%s273 + $0x10] sm:$0xf]
      %v297 = vld [vmem:[%s273 + $0x14] sm:$0x1]
      %v298 = vld [vmem:[%s273 + $0x18] sm:$0xf]
      %v299 = vld [vmem:[%s273 + $0x1c] sm:$0xf]
      %v300 = vld [vmem:[%s273 + $0x20] sm:$0x1]
      %v301 = vld [vmem:[%s273 + $0x24] sm:$0xf]
      %v302 = vld [vmem:[%s273 + $0x28] sm:$0xf]
      %v303 = vld [vmem:[%s273 + $0x2c] sm:$0x1]
      %v304 = vld [vmem:[%s273 + $0x30] sm:$0xf]
      %v305 = vld [vmem:[%s273 + $0x34] sm:$0xf]
      %v306 = vld [vmem:[%s273 + $0x38] sm:$0x1]
      %v307 = vld [vmem:[%s273 + $0x3c] sm:$0xf]
      %v308 = vld [vmem:[%s273 + $0x40] sm:$0xf]
      %v309 = vld [vmem:[%s273 + $0x44] sm:$0x1]
      %v310 = vld [vmem:[%s273 + $0x48] sm:$0xf]
      %v311 = vld [vmem:[%s273 + $0x4c] sm:$0xf]
      %v312 = vld [vmem:[%s273 + $0x50] sm:$0x1]
      %v313 = vld [vmem:[%s273 + $0x54] sm:$0xf]
      %v314 = vld [vmem:[%s273 + $0x58] sm:$0xf]
      %v315 = vld [vmem:[%s273 + $0x5c] sm:$0x1]
      %v316 = vld [vmem:[%s273 + $0x60] sm:$0xf]
      %v317 = vld [vmem:[%s273 + $0x64] sm:$0xf]
      %v318 = vld [vmem:[%s273 + $0x68] sm:$0x1]
      %v319 = vld [vmem:[%s273 + $0x6c] sm:$0xf]
      %v320 = vld [vmem:[%s273 + $0x70] sm:$0xf]
      %v321 = vld [vmem:[%s273 + $0x74] sm:$0x1]
      %v322 = vld [vmem:[%s273 + $0x78] sm:$0xf]
      %v323 = vld [vmem:[%s273 + $0x7c] sm:$0xf]
      %v324 = vld [vmem:[%s273 + $0x80] sm:$0x1]
      %v325 = vld [vmem:[%s273 + $0x84] sm:$0xf]
      %v326 = vld [vmem:[%s273 + $0x88] sm:$0xf]
      %v327 = vld [vmem:[%s273 + $0x8c] sm:$0x1]
      %v328 = vld [vmem:[%s273 + $0x90] sm:$0xf]
      %v329 = vld [vmem:[%s273 + $0x94] sm:$0xf]
      %v330 = vld [vmem:[%s273 + $0x98] sm:$0x1]
      %v331 = vld [vmem:[%s273 + $0x9c] sm:$0xf]
      %v332 = vld [vmem:[%s273 + $0xa0] sm:$0xf]
      %v333 = vld [vmem:[%s273 + $0xa4] sm:$0x1]
      %v334 = vld [vmem:[%s273 + $0xa8] sm:$0xf]
      %v335 = vld [vmem:[%s273 + $0xac] sm:$0xf]
      %v336 = vld [vmem:[%s273 + $0xb0] sm:$0x1]
      %v337 = vld [vmem:[%s273 + $0xb4] sm:$0xf]
      %v338 = vld [vmem:[%s273 + $0xb8] sm:$0xf]
      %v339 = vld [vmem:[%s273 + $0xbc] sm:$0x1]
      %v340 = vld [vmem:[%s273 + $0xc0] sm:$0xf]
      %v341 = vld [vmem:[%s273 + $0xc4] sm:$0xf]
      %v342 = vld [vmem:[%s273 + $0xc8] sm:$0x1]
      %v343 = vld [vmem:[%s273 + $0xcc] sm:$0xf]
      %v344 = vld [vmem:[%s273 + $0xd0] sm:$0xf]
      %v345 = vld [vmem:[%s273 + $0xd4] sm:$0x1]
      %v346 = vunpack.c.l.bf16 %v292
      %v347 = vunpack.c.l.bf16 %v293
      %v348 = vunpack.c.l.bf16 %v294
      %v349 = vunpack.c.l.bf16 %v295
      %v350 = vunpack.c.l.bf16 %v296
      %v351 = vunpack.c.l.bf16 %v297
      %v352 = vunpack.c.l.bf16 %v298
      %v353 = vunpack.c.l.bf16 %v299
      %v354 = vunpack.c.l.bf16 %v300
      %v355 = vunpack.c.l.bf16 %v301
      %v356 = vunpack.c.l.bf16 %v302
      %v357 = vunpack.c.l.bf16 %v303
      %v358 = vunpack.c.l.bf16 %v304
      %v359 = vunpack.c.l.bf16 %v305
      %v360 = vunpack.c.l.bf16 %v306
      %v361 = vunpack.c.l.bf16 %v307
      %v362 = vunpack.c.l.bf16 %v308
      %v363 = vunpack.c.l.bf16 %v309
      %v364 = vunpack.c.l.bf16 %v310
      %v365 = vunpack.c.l.bf16 %v311
      %v366 = vunpack.c.l.bf16 %v312
      %v367 = vunpack.c.l.bf16 %v313
      %v368 = vunpack.c.l.bf16 %v314
      %v369 = vunpack.c.l.bf16 %v315
      %v370 = vunpack.c.l.bf16 %v316
      %v371 = vunpack.c.l.bf16 %v317
      %v372 = vunpack.c.l.bf16 %v318
      %v373 = vunpack.c.l.bf16 %v319
      %v374 = vunpack.c.l.bf16 %v320
      %v375 = vunpack.c.l.bf16 %v321
      %v376 = vunpack.c.l.bf16 %v322
      %v377 = vunpack.c.l.bf16 %v323
      %v378 = vunpack.c.l.bf16 %v324
      %v379 = vunpack.c.l.bf16 %v325
      %v380 = vunpack.c.l.bf16 %v326
      %v381 = vunpack.c.l.bf16 %v327
      %v382 = vunpack.c.l.bf16 %v328
      %v383 = vunpack.c.l.bf16 %v329
      %v384 = vunpack.c.l.bf16 %v330
      %v385 = vunpack.c.l.bf16 %v331
      %v386 = vunpack.c.l.bf16 %v332
      %v387 = vunpack.c.l.bf16 %v333
      %v388 = vunpack.c.l.bf16 %v334
      %v389 = vunpack.c.l.bf16 %v335
      %v390 = vunpack.c.l.bf16 %v336
      %v391 = vunpack.c.l.bf16 %v337
      %v392 = vunpack.c.l.bf16 %v338
      %v393 = vunpack.c.l.bf16 %v339
      %v394 = vunpack.c.l.bf16 %v340
      %v395 = vunpack.c.l.bf16 %v341
      %v396 = vunpack.c.l.bf16 %v342
      %v397 = vunpack.c.l.bf16 %v343
      %v398 = vunpack.c.l.bf16 %v344
      %v399 = vunpack.c.l.bf16 %v345
      %v400 = vpack.c.bf16 %v347, %v346
      %v401 = vpack.c.bf16 %v350, %v349
      %v402 = vpack.c.bf16 %v353, %v352
      %v403 = vpack.c.bf16 %v356, %v355
      %v404 = vpack.c.bf16 %v359, %v358
      %v405 = vpack.c.bf16 %v362, %v361
      %v406 = vpack.c.bf16 %v365, %v364
      %v407 = vpack.c.bf16 %v368, %v367
      %v408 = vpack.c.bf16 %v371, %v370
      %v409 = vpack.c.bf16 %v374, %v373
      %v410 = vpack.c.bf16 %v377, %v376
      %v411 = vpack.c.bf16 %v380, %v379
      %v412 = vpack.c.bf16 %v383, %v382
      %v413 = vpack.c.bf16 %v386, %v385
      %v414 = vpack.c.bf16 %v389, %v388
      %v415 = vpack.c.bf16 %v392, %v391
      %v416 = vld [vmem:[%s1] sm:$0x3]
      %vm465 = vcmask 1046528
      %v466 = vrot.slane %v346, 1
      %v467 = vrot.slane %v347, 1
      %v468 = vsel %vm465, %v466, %v467
      %v469 = vrot.slane %v348, 1
      %v470 = vsel %vm465, %v467, %v469
      %v471 = vrot.slane %v349, 1
      %v472 = vrot.slane %v350, 1
      %v473 = vsel %vm465, %v471, %v472
      %v474 = vrot.slane %v351, 1
      %v475 = vsel %vm465, %v472, %v474
      %v476 = vrot.slane %v352, 1
      %v477 = vrot.slane %v353, 1
      %v478 = vsel %vm465, %v476, %v477
      %v479 = vrot.slane %v354, 1
      %v480 = vsel %vm465, %v477, %v479
      %v481 = vrot.slane %v355, 1
      %v482 = vrot.slane %v356, 1
      %v483 = vsel %vm465, %v481, %v482
      %v484 = vrot.slane %v357, 1
      %v485 = vsel %vm465, %v482, %v484
      %v486 = vrot.slane %v358, 1
      %v487 = vrot.slane %v359, 1
      %v488 = vsel %vm465, %v486, %v487
      %v489 = vrot.slane %v360, 1
      %v490 = vsel %vm465, %v487, %v489
      %v491 = vrot.slane %v361, 1
      %v492 = vrot.slane %v362, 1
      %v493 = vsel %vm465, %v491, %v492
      %v494 = vrot.slane %v363, 1
      %v495 = vsel %vm465, %v492, %v494
      %v496 = vrot.slane %v364, 1
      %v497 = vrot.slane %v365, 1
      %v498 = vsel %vm465, %v496, %v497
      %v499 = vrot.slane %v366, 1
      %v500 = vsel %vm465, %v497, %v499
      %v501 = vrot.slane %v367, 1
      %v502 = vrot.slane %v368, 1
      %v503 = vsel %vm465, %v501, %v502
      %v504 = vrot.slane %v369, 1
      %v505 = vsel %vm465, %v502, %v504
      %v506 = vrot.slane %v370, 1
      %v507 = vrot.slane %v371, 1
      %v508 = vsel %vm465, %v506, %v507
      %v509 = vrot.slane %v372, 1
      %v510 = vsel %vm465, %v507, %v509
      %v511 = vrot.slane %v373, 1
      %v512 = vrot.slane %v374, 1
      %v513 = vsel %vm465, %v511, %v512
      %v514 = vrot.slane %v375, 1
      %v515 = vsel %vm465, %v512, %v514
      %v516 = vrot.slane %v376, 1
      %v517 = vrot.slane %v377, 1
      %v518 = vsel %vm465, %v516, %v517
      %v519 = vrot.slane %v378, 1
      %v520 = vsel %vm465, %v517, %v519
      %v521 = vrot.slane %v379, 1
      %v522 = vrot.slane %v380, 1
      %v523 = vsel %vm465, %v521, %v522
      %v524 = vrot.slane %v381, 1
      %v525 = vsel %vm465, %v522, %v524
      %v526 = vrot.slane %v382, 1
      %v527 = vrot.slane %v383, 1
      %v528 = vsel %vm465, %v526, %v527
      %v529 = vrot.slane %v384, 1
      %v530 = vsel %vm465, %v527, %v529
      %v531 = vrot.slane %v385, 1
      %v532 = vrot.slane %v386, 1
      %v533 = vsel %vm465, %v531, %v532
      %v534 = vrot.slane %v387, 1
      %v535 = vsel %vm465, %v532, %v534
      %v536 = vrot.slane %v388, 1
      %v537 = vrot.slane %v389, 1
      %v538 = vsel %vm465, %v536, %v537
      %v539 = vrot.slane %v390, 1
      %v540 = vsel %vm465, %v537, %v539
      %v541 = vrot.slane %v391, 1
      %v542 = vrot.slane %v392, 1
      %v543 = vsel %vm465, %v541, %v542
      %v544 = vrot.slane %v393, 1
      %v545 = vsel %vm465, %v542, %v544
      %v578 = vpack.c.bf16 %v470, %v468
      %v579 = vpack.c.bf16 %v475, %v473
      %v580 = vpack.c.bf16 %v480, %v478
      %v581 = vpack.c.bf16 %v485, %v483
      %v582 = vpack.c.bf16 %v490, %v488
      %v583 = vpack.c.bf16 %v495, %v493
      %v584 = vpack.c.bf16 %v500, %v498
      %v585 = vpack.c.bf16 %v505, %v503
      %v586 = vpack.c.bf16 %v510, %v508
      %v587 = vpack.c.bf16 %v515, %v513
      %v588 = vpack.c.bf16 %v520, %v518
      %v589 = vpack.c.bf16 %v525, %v523
      %v590 = vpack.c.bf16 %v530, %v528
      %v591 = vpack.c.bf16 %v535, %v533
      %v592 = vpack.c.bf16 %v540, %v538
      %v593 = vpack.c.bf16 %v545, %v543
      %s594 = scalar_lea.vmem %s1, 2
      %v595 = vld [vmem:[%s594] sm:$0x3]
      %vm596 = vcmask 31744
      %v598 = vsel %vm596, %v578, 0
      %v601 = vsel %vm596, %v579, 0
      %v604 = vsel %vm596, %v580, 0
      %v607 = vsel %vm596, %v581, 0
      %v610 = vsel %vm596, %v582, 0
      %v613 = vsel %vm596, %v583, 0
      %v616 = vsel %vm596, %v584, 0
      %v619 = vsel %vm596, %v585, 0
      %v622 = vsel %vm596, %v586, 0
      %v625 = vsel %vm596, %v587, 0
      %v628 = vsel %vm596, %v588, 0
      %v631 = vsel %vm596, %v589, 0
      %v634 = vsel %vm596, %v590, 0
      %v637 = vsel %vm596, %v591, 0
      %v640 = vsel %vm596, %v592, 0
      %v643 = vsel %vm596, %v593, 0
      %vm645 = vcmask 1041408
      %v647 = vsel %vm645, %v595, 0
      %649 = vmatprep.subr.bf16.mxu0 0
      %650 = vmatpush1.bf16.msra.mxu0 0
      %651 = vmatprep.subr.bf16.mxu0 0
      %652 = vmatpush1.bf16.msra.mxu0 0
      %653 = vmatprep.subr.bf16.mxu0 0
      %654 = vmatpush1.bf16.msra.mxu0 0
      %655 = vmatprep.subr.bf16.mxu0 0
      %656 = vmatpush1.bf16.msra.mxu0 0
      %657 = vmatprep.subr.bf16.mxu0 0
      %658 = vmatpush1.bf16.msra.mxu0 0
      %659 = vmatprep.subr.bf16.mxu0 0
      %660 = vmatpush1.bf16.msra.mxu0 0
      %661 = vmatprep.subr.bf16.mxu0 0
      %662 = vmatpush1.bf16.msra.mxu0 0
      %663 = vmatprep.subr.bf16.mxu0 0
      %664 = vmatpush1.bf16.msra.mxu0 %v647
      %665 = vmatprep.subr.bf16.mxu0 0
      %666 = vmatpush2.bf16.msra.mxu0 0
      %667 = vmatprep.subr.bf16.mxu0 0
      %668 = vmatpush2.bf16.msra.mxu0 0
      %669 = vmatprep.subr.bf16.mxu0 0
      %670 = vmatpush2.bf16.msra.mxu0 0
      %671 = vmatprep.subr.bf16.mxu0 0
      %672 = vmatpush2.bf16.msra.mxu0 0
      %673 = vmatprep.subr.bf16.mxu0 0
      %674 = vmatpush2.bf16.msra.mxu0 0
      %675 = vmatprep.subr.bf16.mxu0 0
      %676 = vmatpush2.bf16.msra.mxu0 0
      %677 = vmatprep.subr.bf16.mxu0 0
      %678 = vmatpush2.bf16.msra.mxu0 0
      %679 = vmatprep.subr.bf16.mxu0 0
      %680 = vmatpush2.bf16.msra.mxu0 0
      %681 = vmatprep.mubr.bf16.mxu0 0
      %682 = vmatmul.mubr.bf16.gmra.mxu0 %v598
      %v683 = vpop.f32.mrf.mxu0
      %v684 = vadd.f32 0.0, %v683
      %v685 = vpop.f32.mrf.mxu0
      %v686 = vpop.f32.mrf.mxu0
      %v687 = vadd.f32 0.0, %v686
      %v688 = vpop.f32.mrf.mxu0
      %689 = vmatprep.mubr.bf16.mxu0 0
      %690 = vmatmul.mubr.bf16.gmra.mxu0 %v601
      %v691 = vpop.f32.mrf.mxu0
      %v692 = vadd.f32 0.0, %v691
      %v693 = vpop.f32.mrf.mxu0
      %v694 = vpop.f32.mrf.mxu0
      %v695 = vadd.f32 0.0, %v694
      %v696 = vpop.f32.mrf.mxu0
      %697 = vmatprep.mubr.bf16.mxu0 0
      %698 = vmatmul.mubr.bf16.gmra.mxu0 %v604
      %v699 = vpop.f32.mrf.mxu0
      %v700 = vadd.f32 0.0, %v699
      %v701 = vpop.f32.mrf.mxu0
      %v702 = vpop.f32.mrf.mxu0
      %v703 = vadd.f32 0.0, %v702
      %v704 = vpop.f32.mrf.mxu0
      %705 = vmatprep.mubr.bf16.mxu0 0
      %706 = vmatmul.mubr.bf16.gmra.mxu0 %v607
      %v707 = vpop.f32.mrf.mxu0
      %v708 = vadd.f32 0.0, %v707
      %v709 = vpop.f32.mrf.mxu0
      %v710 = vpop.f32.mrf.mxu0
      %v711 = vadd.f32 0.0, %v710
      %v712 = vpop.f32.mrf.mxu0
      %713 = vmatprep.mubr.bf16.mxu0 0
      %714 = vmatmul.mubr.bf16.gmra.mxu0 %v610
      %v715 = vpop.f32.mrf.mxu0
      %v716 = vadd.f32 0.0, %v715
      %v717 = vpop.f32.mrf.mxu0
      %v718 = vpop.f32.mrf.mxu0
      %v719 = vadd.f32 0.0, %v718
      %v720 = vpop.f32.mrf.mxu0
      %721 = vmatprep.mubr.bf16.mxu0 0
      %722 = vmatmul.mubr.bf16.gmra.mxu0 %v613
      %v723 = vpop.f32.mrf.mxu0
      %v724 = vadd.f32 0.0, %v723
      %v725 = vpop.f32.mrf.mxu0
      %v726 = vpop.f32.mrf.mxu0
      %v727 = vadd.f32 0.0, %v726
      %v728 = vpop.f32.mrf.mxu0
      %729 = vmatprep.mubr.bf16.mxu0 0
      %730 = vmatmul.mubr.bf16.gmra.mxu0 %v616
      %v731 = vpop.f32.mrf.mxu0
      %v732 = vadd.f32 0.0, %v731
      %v733 = vpop.f32.mrf.mxu0
      %v734 = vpop.f32.mrf.mxu0
      %v735 = vadd.f32 0.0, %v734
      %v736 = vpop.f32.mrf.mxu0
      %737 = vmatprep.mubr.bf16.mxu0 0
      %738 = vmatmul.mubr.bf16.gmra.mxu0 %v619
      %v739 = vpop.f32.mrf.mxu0
      %v740 = vadd.f32 0.0, %v739
      %v741 = vpop.f32.mrf.mxu0
      %v742 = vpop.f32.mrf.mxu0
      %v743 = vadd.f32 0.0, %v742
      %v744 = vpop.f32.mrf.mxu0
      %745 = vmatprep.mubr.bf16.mxu0 0
      %746 = vmatmul.mubr.bf16.gmra.mxu0 %v622
      %v747 = vpop.f32.mrf.mxu0
      %v748 = vadd.f32 0.0, %v747
      %v749 = vpop.f32.mrf.mxu0
      %v750 = vpop.f32.mrf.mxu0
      %v751 = vadd.f32 0.0, %v750
      %v752 = vpop.f32.mrf.mxu0
      %753 = vmatprep.mubr.bf16.mxu0 0
      %754 = vmatmul.mubr.bf16.gmra.mxu0 %v625
      %v755 = vpop.f32.mrf.mxu0
      %v756 = vadd.f32 0.0, %v755
      %v757 = vpop.f32.mrf.mxu0
      %v758 = vpop.f32.mrf.mxu0
      %v759 = vadd.f32 0.0, %v758
      %v760 = vpop.f32.mrf.mxu0
      %761 = vmatprep.mubr.bf16.mxu0 0
      %762 = vmatmul.mubr.bf16.gmra.mxu0 %v628
      %v763 = vpop.f32.mrf.mxu0
      %v764 = vadd.f32 0.0, %v763
      %v765 = vpop.f32.mrf.mxu0
      %v766 = vpop.f32.mrf.mxu0
      %v767 = vadd.f32 0.0, %v766
      %v768 = vpop.f32.mrf.mxu0
      %769 = vmatprep.mubr.bf16.mxu0 0
      %770 = vmatmul.mubr.bf16.gmra.mxu0 %v631
      %v771 = vpop.f32.mrf.mxu0
      %v772 = vadd.f32 0.0, %v771
      %v773 = vpop.f32.mrf.mxu0
      %v774 = vpop.f32.mrf.mxu0
      %v775 = vadd.f32 0.0, %v774
      %v776 = vpop.f32.mrf.mxu0
      %777 = vmatprep.mubr.bf16.mxu0 0
      %778 = vmatmul.mubr.bf16.gmra.mxu0 %v634
      %v779 = vpop.f32.mrf.mxu0
      %v780 = vadd.f32 0.0, %v779
      %v781 = vpop.f32.mrf.mxu0
      %v782 = vpop.f32.mrf.mxu0
      %v783 = vadd.f32 0.0, %v782
      %v784 = vpop.f32.mrf.mxu0
      %785 = vmatprep.mubr.bf16.mxu0 0
      %786 = vmatmul.mubr.bf16.gmra.mxu0 %v637
      %v787 = vpop.f32.mrf.mxu0
      %v788 = vadd.f32 0.0, %v787
      %v789 = vpop.f32.mrf.mxu0
      %v790 = vpop.f32.mrf.mxu0
      %v791 = vadd.f32 0.0, %v790
      %v792 = vpop.f32.mrf.mxu0
      %793 = vmatprep.mubr.bf16.mxu0 0
      %794 = vmatmul.mubr.bf16.gmra.mxu0 %v640
      %v795 = vpop.f32.mrf.mxu0
      %v796 = vadd.f32 0.0, %v795
      %v797 = vpop.f32.mrf.mxu0
      %v798 = vpop.f32.mrf.mxu0
      %v799 = vadd.f32 0.0, %v798
      %v800 = vpop.f32.mrf.mxu0
      %801 = vmatprep.mubr.bf16.mxu0 0
      %802 = vmatmul.mubr.bf16.gmra.mxu0 %v643
      %v803 = vpop.f32.mrf.mxu0
      %v804 = vadd.f32 0.0, %v803
      %v805 = vpop.f32.mrf.mxu0
      %v806 = vpop.f32.mrf.mxu0
      %v807 = vadd.f32 0.0, %v806
      %v808 = vpop.f32.mrf.mxu0
      %809 = vdwg.mxu0
      %v811 = vsel %vm596, %v400, 0
      %v814 = vsel %vm596, %v401, 0
      %v817 = vsel %vm596, %v402, 0
      %v820 = vsel %vm596, %v403, 0
      %v823 = vsel %vm596, %v404, 0
      %v826 = vsel %vm596, %v405, 0
      %v829 = vsel %vm596, %v406, 0
      %v832 = vsel %vm596, %v407, 0
      %v835 = vsel %vm596, %v408, 0
      %v838 = vsel %vm596, %v409, 0
      %v841 = vsel %vm596, %v410, 0
      %v844 = vsel %vm596, %v411, 0
      %v847 = vsel %vm596, %v412, 0
      %v850 = vsel %vm596, %v413, 0
      %v853 = vsel %vm596, %v414, 0
      %v856 = vsel %vm596, %v415, 0
      %v859 = vsel %vm645, %v416, 0
      %861 = vmatprep.subr.bf16.mxu0 0
      %862 = vmatpush1.bf16.msra.mxu0 0
      %863 = vmatprep.subr.bf16.mxu0 0
      %864 = vmatpush1.bf16.msra.mxu0 0
      %865 = vmatprep.subr.bf16.mxu0 0
      %866 = vmatpush1.bf16.msra.mxu0 0
      %867 = vmatprep.subr.bf16.mxu0 0
      %868 = vmatpush1.bf16.msra.mxu0 0
      %869 = vmatprep.subr.bf16.mxu0 0
      %870 = vmatpush1.bf16.msra.mxu0 0
      %871 = vmatprep.subr.bf16.mxu0 0
      %872 = vmatpush1.bf16.msra.mxu0 0
      %873 = vmatprep.subr.bf16.mxu0 0
      %874 = vmatpush1.bf16.msra.mxu0 0
      %875 = vmatprep.subr.bf16.mxu0 0
      %876 = vmatpush1.bf16.msra.mxu0 %v859
      %877 = vmatprep.subr.bf16.mxu0 0
      %878 = vmatpush2.bf16.msra.mxu0 0
      %879 = vmatprep.subr.bf16.mxu0 0
      %880 = vmatpush2.bf16.msra.mxu0 0
      %881 = vmatprep.subr.bf16.mxu0 0
      %882 = vmatpush2.bf16.msra.mxu0 0
      %883 = vmatprep.subr.bf16.mxu0 0
      %884 = vmatpush2.bf16.msra.mxu0 0
      %885 = vmatprep.subr.bf16.mxu0 0
      %886 = vmatpush2.bf16.msra.mxu0 0
      %887 = vmatprep.subr.bf16.mxu0 0
      %888 = vmatpush2.bf16.msra.mxu0 0
      %889 = vmatprep.subr.bf16.mxu0 0
      %890 = vmatpush2.bf16.msra.mxu0 0
      %891 = vmatprep.subr.bf16.mxu0 0
      %892 = vmatpush2.bf16.msra.mxu0 0
      %893 = vmatprep.mubr.bf16.mxu0 0
      %894 = vmatmul.mubr.bf16.gmra.mxu0 %v811
      %v895 = vpop.f32.mrf.mxu0
      %v896 = vadd.f32 %v684, %v895
      %v897 = vpop.f32.mrf.mxu0
      %v898 = vpop.f32.mrf.mxu0
      %v899 = vadd.f32 %v687, %v898
      %v900 = vpop.f32.mrf.mxu0
      %901 = vmatprep.mubr.bf16.mxu0 0
      %902 = vmatmul.mubr.bf16.gmra.mxu0 %v814
      %v903 = vpop.f32.mrf.mxu0
      %v904 = vadd.f32 %v692, %v903
      %v905 = vpop.f32.mrf.mxu0
      %v906 = vpop.f32.mrf.mxu0
      %v907 = vadd.f32 %v695, %v906
      %v908 = vpop.f32.mrf.mxu0
      %909 = vmatprep.mubr.bf16.mxu0 0
      %910 = vmatmul.mubr.bf16.gmra.mxu0 %v817
      %v911 = vpop.f32.mrf.mxu0
      %v912 = vadd.f32 %v700, %v911
      %v913 = vpop.f32.mrf.mxu0
      %v914 = vpop.f32.mrf.mxu0
      %v915 = vadd.f32 %v703, %v914
      %v916 = vpop.f32.mrf.mxu0
      %917 = vmatprep.mubr.bf16.mxu0 0
      %918 = vmatmul.mubr.bf16.gmra.mxu0 %v820
      %v919 = vpop.f32.mrf.mxu0
      %v920 = vadd.f32 %v708, %v919
      %v921 = vpop.f32.mrf.mxu0
      %v922 = vpop.f32.mrf.mxu0
      %v923 = vadd.f32 %v711, %v922
      %v924 = vpop.f32.mrf.mxu0
      %925 = vmatprep.mubr.bf16.mxu0 0
      %926 = vmatmul.mubr.bf16.gmra.mxu0 %v823
      %v927 = vpop.f32.mrf.mxu0
      %v928 = vadd.f32 %v716, %v927
      %v929 = vpop.f32.mrf.mxu0
      %v930 = vpop.f32.mrf.mxu0
      %v931 = vadd.f32 %v719, %v930
      %v932 = vpop.f32.mrf.mxu0
      %933 = vmatprep.mubr.bf16.mxu0 0
      %934 = vmatmul.mubr.bf16.gmra.mxu0 %v826
      %v935 = vpop.f32.mrf.mxu0
      %v936 = vadd.f32 %v724, %v935
      %v937 = vpop.f32.mrf.mxu0
      %v938 = vpop.f32.mrf.mxu0
      %v939 = vadd.f32 %v727, %v938
      %v940 = vpop.f32.mrf.mxu0
      %941 = vmatprep.mubr.bf16.mxu0 0
      %942 = vmatmul.mubr.bf16.gmra.mxu0 %v829
      %v943 = vpop.f32.mrf.mxu0
      %v944 = vadd.f32 %v732, %v943
      %v945 = vpop.f32.mrf.mxu0
      %v946 = vpop.f32.mrf.mxu0
      %v947 = vadd.f32 %v735, %v946
      %v948 = vpop.f32.mrf.mxu0
      %949 = vmatprep.mubr.bf16.mxu0 0
      %950 = vmatmul.mubr.bf16.gmra.mxu0 %v832
      %v951 = vpop.f32.mrf.mxu0
      %v952 = vadd.f32 %v740, %v951
      %v953 = vpop.f32.mrf.mxu0
      %v954 = vpop.f32.mrf.mxu0
      %v955 = vadd.f32 %v743, %v954
      %v956 = vpop.f32.mrf.mxu0
      %957 = vmatprep.mubr.bf16.mxu0 0
      %958 = vmatmul.mubr.bf16.gmra.mxu0 %v835
      %v959 = vpop.f32.mrf.mxu0
      %v960 = vadd.f32 %v748, %v959
      %v961 = vpop.f32.mrf.mxu0
      %v962 = vpop.f32.mrf.mxu0
      %v963 = vadd.f32 %v751, %v962
      %v964 = vpop.f32.mrf.mxu0
      %965 = vmatprep.mubr.bf16.mxu0 0
      %966 = vmatmul.mubr.bf16.gmra.mxu0 %v838
      %v967 = vpop.f32.mrf.mxu0
      %v968 = vadd.f32 %v756, %v967
      %v969 = vpop.f32.mrf.mxu0
      %v970 = vpop.f32.mrf.mxu0
      %v971 = vadd.f32 %v759, %v970
      %v972 = vpop.f32.mrf.mxu0
      %973 = vmatprep.mubr.bf16.mxu0 0
      %974 = vmatmul.mubr.bf16.gmra.mxu0 %v841
      %v975 = vpop.f32.mrf.mxu0
      %v976 = vadd.f32 %v764, %v975
      %v977 = vpop.f32.mrf.mxu0
      %v978 = vpop.f32.mrf.mxu0
      %v979 = vadd.f32 %v767, %v978
      %v980 = vpop.f32.mrf.mxu0
      %981 = vmatprep.mubr.bf16.mxu0 0
      %982 = vmatmul.mubr.bf16.gmra.mxu0 %v844
      %v983 = vpop.f32.mrf.mxu0
      %v984 = vadd.f32 %v772, %v983
      %v985 = vpop.f32.mrf.mxu0
      %v986 = vpop.f32.mrf.mxu0
      %v987 = vadd.f32 %v775, %v986
      %v988 = vpop.f32.mrf.mxu0
      %989 = vmatprep.mubr.bf16.mxu0 0
      %990 = vmatmul.mubr.bf16.gmra.mxu0 %v847
      %v991 = vpop.f32.mrf.mxu0
      %v992 = vadd.f32 %v780, %v991
      %v993 = vpop.f32.mrf.mxu0
      %v994 = vpop.f32.mrf.mxu0
      %v995 = vadd.f32 %v783, %v994
      %v996 = vpop.f32.mrf.mxu0
      %997 = vmatprep.mubr.bf16.mxu0 0
      %998 = vmatmul.mubr.bf16.gmra.mxu0 %v850
      %v999 = vpop.f32.mrf.mxu0
      %v1000 = vadd.f32 %v788, %v999
      %v1001 = vpop.f32.mrf.mxu0
      %v1002 = vpop.f32.mrf.mxu0
      %v1003 = vadd.f32 %v791, %v1002
      %v1004 = vpop.f32.mrf.mxu0
      %1005 = vmatprep.mubr.bf16.mxu0 0
      %1006 = vmatmul.mubr.bf16.gmra.mxu0 %v853
      %v1007 = vpop.f32.mrf.mxu0
      %v1008 = vadd.f32 %v796, %v1007
      %v1009 = vpop.f32.mrf.mxu0
      %v1010 = vpop.f32.mrf.mxu0
      %v1011 = vadd.f32 %v799, %v1010
      %v1012 = vpop.f32.mrf.mxu0
      %1013 = vmatprep.mubr.bf16.mxu0 0
      %1014 = vmatmul.mubr.bf16.gmra.mxu0 %v856
      %v1015 = vpop.f32.mrf.mxu0
      %v1016 = vadd.f32 %v804, %v1015
      %v1017 = vpop.f32.mrf.mxu0
      %v1018 = vpop.f32.mrf.mxu0
      %v1019 = vadd.f32 %v807, %v1018
      %v1020 = vpop.f32.mrf.mxu0
      %1021 = vdwg.mxu0
      %vm1022 = vcmask 1045504
      %v1023 = vrot.slane %v346, 2
      %v1024 = vrot.slane %v347, 2
      %v1025 = vsel %vm1022, %v1023, %v1024
      %v1026 = vrot.slane %v348, 2
      %v1027 = vsel %vm1022, %v1024, %v1026
      %v1028 = vrot.slane %v349, 2
      %v1029 = vrot.slane %v350, 2
      %v1030 = vsel %vm1022, %v1028, %v1029
      %v1031 = vrot.slane %v351, 2
      %v1032 = vsel %vm1022, %v1029, %v1031
      %v1033 = vrot.slane %v352, 2
      %v1034 = vrot.slane %v353, 2
      %v1035 = vsel %vm1022, %v1033, %v1034
      %v1036 = vrot.slane %v354, 2
      %v1037 = vsel %vm1022, %v1034, %v1036
      %v1038 = vrot.slane %v355, 2
      %v1039 = vrot.slane %v356, 2
      %v1040 = vsel %vm1022, %v1038, %v1039
      %v1041 = vrot.slane %v357, 2
      %v1042 = vsel %vm1022, %v1039, %v1041
      %v1043 = vrot.slane %v358, 2
      %v1044 = vrot.slane %v359, 2
      %v1045 = vsel %vm1022, %v1043, %v1044
      %v1046 = vrot.slane %v360, 2
      %v1047 = vsel %vm1022, %v1044, %v1046
      %v1048 = vrot.slane %v361, 2
      %v1049 = vrot.slane %v362, 2
      %v1050 = vsel %vm1022, %v1048, %v1049
      %v1051 = vrot.slane %v363, 2
      %v1052 = vsel %vm1022, %v1049, %v1051
      %v1053 = vrot.slane %v364, 2
      %v1054 = vrot.slane %v365, 2
      %v1055 = vsel %vm1022, %v1053, %v1054
      %v1056 = vrot.slane %v366, 2
      %v1057 = vsel %vm1022, %v1054, %v1056
      %v1058 = vrot.slane %v367, 2
      %v1059 = vrot.slane %v368, 2
      %v1060 = vsel %vm1022, %v1058, %v1059
      %v1061 = vrot.slane %v369, 2
      %v1062 = vsel %vm1022, %v1059, %v1061
      %v1063 = vrot.slane %v370, 2
      %v1064 = vrot.slane %v371, 2
      %v1065 = vsel %vm1022, %v1063, %v1064
      %v1066 = vrot.slane %v372, 2
      %v1067 = vsel %vm1022, %v1064, %v1066
      %v1068 = vrot.slane %v373, 2
      %v1069 = vrot.slane %v374, 2
      %v1070 = vsel %vm1022, %v1068, %v1069
      %v1071 = vrot.slane %v375, 2
      %v1072 = vsel %vm1022, %v1069, %v1071
      %v1073 = vrot.slane %v376, 2
      %v1074 = vrot.slane %v377, 2
      %v1075 = vsel %vm1022, %v1073, %v1074
      %v1076 = vrot.slane %v378, 2
      %v1077 = vsel %vm1022, %v1074, %v1076
      %v1078 = vrot.slane %v379, 2
      %v1079 = vrot.slane %v380, 2
      %v1080 = vsel %vm1022, %v1078, %v1079
      %v1081 = vrot.slane %v381, 2
      %v1082 = vsel %vm1022, %v1079, %v1081
      %v1083 = vrot.slane %v382, 2
      %v1084 = vrot.slane %v383, 2
      %v1085 = vsel %vm1022, %v1083, %v1084
      %v1086 = vrot.slane %v384, 2
      %v1087 = vsel %vm1022, %v1084, %v1086
      %v1088 = vrot.slane %v385, 2
      %v1089 = vrot.slane %v386, 2
      %v1090 = vsel %vm1022, %v1088, %v1089
      %v1091 = vrot.slane %v387, 2
      %v1092 = vsel %vm1022, %v1089, %v1091
      %v1093 = vrot.slane %v388, 2
      %v1094 = vrot.slane %v389, 2
      %v1095 = vsel %vm1022, %v1093, %v1094
      %v1096 = vrot.slane %v390, 2
      %v1097 = vsel %vm1022, %v1094, %v1096
      %v1098 = vrot.slane %v391, 2
      %v1099 = vrot.slane %v392, 2
      %v1100 = vsel %vm1022, %v1098, %v1099
      %v1101 = vrot.slane %v393, 2
      %v1102 = vsel %vm1022, %v1099, %v1101
      %v1135 = vpack.c.bf16 %v1027, %v1025
      %v1136 = vpack.c.bf16 %v1032, %v1030
      %v1137 = vpack.c.bf16 %v1037, %v1035
      %v1138 = vpack.c.bf16 %v1042, %v1040
      %v1139 = vpack.c.bf16 %v1047, %v1045
      %v1140 = vpack.c.bf16 %v1052, %v1050
      %v1141 = vpack.c.bf16 %v1057, %v1055
      %v1142 = vpack.c.bf16 %v1062, %v1060
      %v1143 = vpack.c.bf16 %v1067, %v1065
      %v1144 = vpack.c.bf16 %v1072, %v1070
      %v1145 = vpack.c.bf16 %v1077, %v1075
      %v1146 = vpack.c.bf16 %v1082, %v1080
      %v1147 = vpack.c.bf16 %v1087, %v1085
      %v1148 = vpack.c.bf16 %v1092, %v1090
      %v1149 = vpack.c.bf16 %v1097, %v1095
      %v1150 = vpack.c.bf16 %v1102, %v1100
      %s1151 = scalar_lea.vmem %s1, 4
      %v1152 = vld [vmem:[%s1151] sm:$0x3]
      %v1154 = vsel %vm596, %v1135, 0
      %v1157 = vsel %vm596, %v1136, 0
      %v1160 = vsel %vm596, %v1137, 0
      %v1163 = vsel %vm596, %v1138, 0
      %v1166 = vsel %vm596, %v1139, 0
      %v1169 = vsel %vm596, %v1140, 0
      %v1172 = vsel %vm596, %v1141, 0
      %v1175 = vsel %vm596, %v1142, 0
      %v1178 = vsel %vm596, %v1143, 0
      %v1181 = vsel %vm596, %v1144, 0
      %v1184 = vsel %vm596, %v1145, 0
      %v1187 = vsel %vm596, %v1146, 0
      %v1190 = vsel %vm596, %v1147, 0
      %v1193 = vsel %vm596, %v1148, 0
      %v1196 = vsel %vm596, %v1149, 0
      %v1199 = vsel %vm596, %v1150, 0
      %v1202 = vsel %vm645, %v1152, 0
      %1204 = vmatprep.subr.bf16.mxu0 0
      %1205 = vmatpush1.bf16.msra.mxu0 0
      %1206 = vmatprep.subr.bf16.mxu0 0
      %1207 = vmatpush1.bf16.msra.mxu0 0
      %1208 = vmatprep.subr.bf16.mxu0 0
      %1209 = vmatpush1.bf16.msra.mxu0 0
      %1210 = vmatprep.subr.bf16.mxu0 0
      %1211 = vmatpush1.bf16.msra.mxu0 0
      %1212 = vmatprep.subr.bf16.mxu0 0
      %1213 = vmatpush1.bf16.msra.mxu0 0
      %1214 = vmatprep.subr.bf16.mxu0 0
      %1215 = vmatpush1.bf16.msra.mxu0 0
      %1216 = vmatprep.subr.bf16.mxu0 0
      %1217 = vmatpush1.bf16.msra.mxu0 0
      %1218 = vmatprep.subr.bf16.mxu0 0
      %1219 = vmatpush1.bf16.msra.mxu0 %v1202
      %1220 = vmatprep.subr.bf16.mxu0 0
      %1221 = vmatpush2.bf16.msra.mxu0 0
      %1222 = vmatprep.subr.bf16.mxu0 0
      %1223 = vmatpush2.bf16.msra.mxu0 0
      %1224 = vmatprep.subr.bf16.mxu0 0
      %1225 = vmatpush2.bf16.msra.mxu0 0
      %1226 = vmatprep.subr.bf16.mxu0 0
      %1227 = vmatpush2.bf16.msra.mxu0 0
      %1228 = vmatprep.subr.bf16.mxu0 0
      %1229 = vmatpush2.bf16.msra.mxu0 0
      %1230 = vmatprep.subr.bf16.mxu0 0
      %1231 = vmatpush2.bf16.msra.mxu0 0
      %1232 = vmatprep.subr.bf16.mxu0 0
      %1233 = vmatpush2.bf16.msra.mxu0 0
      %1234 = vmatprep.subr.bf16.mxu0 0
      %1235 = vmatpush2.bf16.msra.mxu0 0
      %1236 = vmatprep.mubr.bf16.mxu0 0
      %1237 = vmatmul.mubr.bf16.gmra.mxu0 %v1154
      %v1238 = vpop.f32.mrf.mxu0
      %v1239 = vadd.f32 0.0, %v1238
      %v1240 = vpop.f32.mrf.mxu0
      %v1241 = vpop.f32.mrf.mxu0
      %v1242 = vadd.f32 0.0, %v1241
      %v1243 = vpop.f32.mrf.mxu0
      %1244 = vmatprep.mubr.bf16.mxu0 0
      %1245 = vmatmul.mubr.bf16.gmra.mxu0 %v1157
      %v1246 = vpop.f32.mrf.mxu0
      %v1247 = vadd.f32 0.0, %v1246
      %v1248 = vpop.f32.mrf.mxu0
      %v1249 = vpop.f32.mrf.mxu0
      %v1250 = vadd.f32 0.0, %v1249
      %v1251 = vpop.f32.mrf.mxu0
      %1252 = vmatprep.mubr.bf16.mxu0 0
      %1253 = vmatmul.mubr.bf16.gmra.mxu0 %v1160
      %v1254 = vpop.f32.mrf.mxu0
      %v1255 = vadd.f32 0.0, %v1254
      %v1256 = vpop.f32.mrf.mxu0
      %v1257 = vpop.f32.mrf.mxu0
      %v1258 = vadd.f32 0.0, %v1257
      %v1259 = vpop.f32.mrf.mxu0
      %1260 = vmatprep.mubr.bf16.mxu0 0
      %1261 = vmatmul.mubr.bf16.gmra.mxu0 %v1163
      %v1262 = vpop.f32.mrf.mxu0
      %v1263 = vadd.f32 0.0, %v1262
      %v1264 = vpop.f32.mrf.mxu0
      %v1265 = vpop.f32.mrf.mxu0
      %v1266 = vadd.f32 0.0, %v1265
      %v1267 = vpop.f32.mrf.mxu0
      %1268 = vmatprep.mubr.bf16.mxu0 0
      %1269 = vmatmul.mubr.bf16.gmra.mxu0 %v1166
      %v1270 = vpop.f32.mrf.mxu0
      %v1271 = vadd.f32 0.0, %v1270
      %v1272 = vpop.f32.mrf.mxu0
      %v1273 = vpop.f32.mrf.mxu0
      %v1274 = vadd.f32 0.0, %v1273
      %v1275 = vpop.f32.mrf.mxu0
      %1276 = vmatprep.mubr.bf16.mxu0 0
      %1277 = vmatmul.mubr.bf16.gmra.mxu0 %v1169
      %v1278 = vpop.f32.mrf.mxu0
      %v1279 = vadd.f32 0.0, %v1278
      %v1280 = vpop.f32.mrf.mxu0
      %v1281 = vpop.f32.mrf.mxu0
      %v1282 = vadd.f32 0.0, %v1281
      %v1283 = vpop.f32.mrf.mxu0
      %1284 = vmatprep.mubr.bf16.mxu0 0
      %1285 = vmatmul.mubr.bf16.gmra.mxu0 %v1172
      %v1286 = vpop.f32.mrf.mxu0
      %v1287 = vadd.f32 0.0, %v1286
      %v1288 = vpop.f32.mrf.mxu0
      %v1289 = vpop.f32.mrf.mxu0
      %v1290 = vadd.f32 0.0, %v1289
      %v1291 = vpop.f32.mrf.mxu0
      %1292 = vmatprep.mubr.bf16.mxu0 0
      %1293 = vmatmul.mubr.bf16.gmra.mxu0 %v1175
      %v1294 = vpop.f32.mrf.mxu0
      %v1295 = vadd.f32 0.0, %v1294
      %v1296 = vpop.f32.mrf.mxu0
      %v1297 = vpop.f32.mrf.mxu0
      %v1298 = vadd.f32 0.0, %v1297
      %v1299 = vpop.f32.mrf.mxu0
      %1300 = vmatprep.mubr.bf16.mxu0 0
      %1301 = vmatmul.mubr.bf16.gmra.mxu0 %v1178
      %v1302 = vpop.f32.mrf.mxu0
      %v1303 = vadd.f32 0.0, %v1302
      %v1304 = vpop.f32.mrf.mxu0
      %v1305 = vpop.f32.mrf.mxu0
      %v1306 = vadd.f32 0.0, %v1305
      %v1307 = vpop.f32.mrf.mxu0
      %1308 = vmatprep.mubr.bf16.mxu0 0
      %1309 = vmatmul.mubr.bf16.gmra.mxu0 %v1181
      %v1310 = vpop.f32.mrf.mxu0
      %v1311 = vadd.f32 0.0, %v1310
      %v1312 = vpop.f32.mrf.mxu0
      %v1313 = vpop.f32.mrf.mxu0
      %v1314 = vadd.f32 0.0, %v1313
      %v1315 = vpop.f32.mrf.mxu0
      %1316 = vmatprep.mubr.bf16.mxu0 0
      %1317 = vmatmul.mubr.bf16.gmra.mxu0 %v1184
      %v1318 = vpop.f32.mrf.mxu0
      %v1319 = vadd.f32 0.0, %v1318
      %v1320 = vpop.f32.mrf.mxu0
      %v1321 = vpop.f32.mrf.mxu0
      %v1322 = vadd.f32 0.0, %v1321
      %v1323 = vpop.f32.mrf.mxu0
      %1324 = vmatprep.mubr.bf16.mxu0 0
      %1325 = vmatmul.mubr.bf16.gmra.mxu0 %v1187
      %v1326 = vpop.f32.mrf.mxu0
      %v1327 = vadd.f32 0.0, %v1326
      %v1328 = vpop.f32.mrf.mxu0
      %v1329 = vpop.f32.mrf.mxu0
      %v1330 = vadd.f32 0.0, %v1329
      %v1331 = vpop.f32.mrf.mxu0
      %1332 = vmatprep.mubr.bf16.mxu0 0
      %1333 = vmatmul.mubr.bf16.gmra.mxu0 %v1190
      %v1334 = vpop.f32.mrf.mxu0
      %v1335 = vadd.f32 0.0, %v1334
      %v1336 = vpop.f32.mrf.mxu0
      %v1337 = vpop.f32.mrf.mxu0
      %v1338 = vadd.f32 0.0, %v1337
      %v1339 = vpop.f32.mrf.mxu0
      %1340 = vmatprep.mubr.bf16.mxu0 0
      %1341 = vmatmul.mubr.bf16.gmra.mxu0 %v1193
      %v1342 = vpop.f32.mrf.mxu0
      %v1343 = vadd.f32 0.0, %v1342
      %v1344 = vpop.f32.mrf.mxu0
      %v1345 = vpop.f32.mrf.mxu0
      %v1346 = vadd.f32 0.0, %v1345
      %v1347 = vpop.f32.mrf.mxu0
      %1348 = vmatprep.mubr.bf16.mxu0 0
      %1349 = vmatmul.mubr.bf16.gmra.mxu0 %v1196
      %v1350 = vpop.f32.mrf.mxu0
      %v1351 = vadd.f32 0.0, %v1350
      %v1352 = vpop.f32.mrf.mxu0
      %v1353 = vpop.f32.mrf.mxu0
      %v1354 = vadd.f32 0.0, %v1353
      %v1355 = vpop.f32.mrf.mxu0
      %1356 = vmatprep.mubr.bf16.mxu0 0
      %1357 = vmatmul.mubr.bf16.gmra.mxu0 %v1199
      %v1358 = vpop.f32.mrf.mxu0
      %v1359 = vadd.f32 0.0, %v1358
      %v1360 = vpop.f32.mrf.mxu0
      %v1361 = vpop.f32.mrf.mxu0
      %v1362 = vadd.f32 0.0, %v1361
      %v1363 = vpop.f32.mrf.mxu0
      %1364 = vdwg.mxu0
      %v1365 = vadd.f32 %v896, %v1239
      %v1366 = vadd.f32 %v899, %v1242
      %v1367 = vadd.f32 %v904, %v1247
      %v1368 = vadd.f32 %v907, %v1250
      %v1369 = vadd.f32 %v912, %v1255
      %v1370 = vadd.f32 %v915, %v1258
      %v1371 = vadd.f32 %v920, %v1263
      %v1372 = vadd.f32 %v923, %v1266
      %v1373 = vadd.f32 %v928, %v1271
      %v1374 = vadd.f32 %v931, %v1274
      %v1375 = vadd.f32 %v936, %v1279
      %v1376 = vadd.f32 %v939, %v1282
      %v1377 = vadd.f32 %v944, %v1287
      %v1378 = vadd.f32 %v947, %v1290
      %v1379 = vadd.f32 %v952, %v1295
      %v1380 = vadd.f32 %v955, %v1298
      %v1381 = vadd.f32 %v960, %v1303
      %v1382 = vadd.f32 %v963, %v1306
      %v1383 = vadd.f32 %v968, %v1311
      %v1384 = vadd.f32 %v971, %v1314
      %v1385 = vadd.f32 %v976, %v1319
      %v1386 = vadd.f32 %v979, %v1322
      %v1387 = vadd.f32 %v984, %v1327
      %v1388 = vadd.f32 %v987, %v1330
      %v1389 = vadd.f32 %v992, %v1335
      %v1390 = vadd.f32 %v995, %v1338
      %v1391 = vadd.f32 %v1000, %v1343
      %v1392 = vadd.f32 %v1003, %v1346
      %v1393 = vadd.f32 %v1008, %v1351
      %v1394 = vadd.f32 %v1011, %v1354
      %v1395 = vadd.f32 %v1016, %v1359
      %v1396 = vadd.f32 %v1019, %v1362
      %v1397 = vpack.c.bf16 %v395, %v394
      %s1398 = scalar_lea.vmem %s1, 6
      %v1399 = vld [vmem:[%s1398] sm:$0x3]
      %v1401 = vsel %vm596, %v1397, 0
      %v1404 = vsel %vm645, %v1399, 0
      %1406 = vmatprep.subr.bf16.mxu0 0
      %1407 = vmatpush1.bf16.msra.mxu0 0
      %1408 = vmatprep.subr.bf16.mxu0 0
      %1409 = vmatpush1.bf16.msra.mxu0 0
      %1410 = vmatprep.subr.bf16.mxu0 0
      %1411 = vmatpush1.bf16.msra.mxu0 0
      %1412 = vmatprep.subr.bf16.mxu0 0
      %1413 = vmatpush1.bf16.msra.mxu0 0
      %1414 = vmatprep.subr.bf16.mxu0 0
      %1415 = vmatpush1.bf16.msra.mxu0 0
      %1416 = vmatprep.subr.bf16.mxu0 0
      %1417 = vmatpush1.bf16.msra.mxu0 0
      %1418 = vmatprep.subr.bf16.mxu0 0
      %1419 = vmatpush1.bf16.msra.mxu0 0
      %1420 = vmatprep.subr.bf16.mxu0 0
      %1421 = vmatpush1.bf16.msra.mxu0 %v1404
      %1422 = vmatprep.subr.bf16.mxu0 0
      %1423 = vmatpush2.bf16.msra.mxu0 0
      %1424 = vmatprep.subr.bf16.mxu0 0
      %1425 = vmatpush2.bf16.msra.mxu0 0
      %1426 = vmatprep.subr.bf16.mxu0 0
      %1427 = vmatpush2.bf16.msra.mxu0 0
      %1428 = vmatprep.subr.bf16.mxu0 0
      %1429 = vmatpush2.bf16.msra.mxu0 0
      %1430 = vmatprep.subr.bf16.mxu0 0
      %1431 = vmatpush2.bf16.msra.mxu0 0
      %1432 = vmatprep.subr.bf16.mxu0 0
      %1433 = vmatpush2.bf16.msra.mxu0 0
      %1434 = vmatprep.subr.bf16.mxu0 0
      %1435 = vmatpush2.bf16.msra.mxu0 0
      %1436 = vmatprep.subr.bf16.mxu0 0
      %1437 = vmatpush2.bf16.msra.mxu0 0
      %1438 = vmatprep.mubr.bf16.mxu0 0
      %1439 = vmatmul.mubr.bf16.gmra.mxu0 %v814
      %v1440 = vpop.f32.mrf.mxu0
      %v1441 = vadd.f32 0.0, %v1440
      %v1442 = vpop.f32.mrf.mxu0
      %v1443 = vpop.f32.mrf.mxu0
      %v1444 = vadd.f32 0.0, %v1443
      %v1445 = vpop.f32.mrf.mxu0
      %1446 = vmatprep.mubr.bf16.mxu0 0
      %1447 = vmatmul.mubr.bf16.gmra.mxu0 %v817
      %v1448 = vpop.f32.mrf.mxu0
      %v1449 = vadd.f32 0.0, %v1448
      %v1450 = vpop.f32.mrf.mxu0
      %v1451 = vpop.f32.mrf.mxu0
      %v1452 = vadd.f32 0.0, %v1451
      %v1453 = vpop.f32.mrf.mxu0
      %1454 = vmatprep.mubr.bf16.mxu0 0
      %1455 = vmatmul.mubr.bf16.gmra.mxu0 %v820
      %v1456 = vpop.f32.mrf.mxu0
      %v1457 = vadd.f32 0.0, %v1456
      %v1458 = vpop.f32.mrf.mxu0
      %v1459 = vpop.f32.mrf.mxu0
      %v1460 = vadd.f32 0.0, %v1459
      %v1461 = vpop.f32.mrf.mxu0
      %1462 = vmatprep.mubr.bf16.mxu0 0
      %1463 = vmatmul.mubr.bf16.gmra.mxu0 %v823
      %v1464 = vpop.f32.mrf.mxu0
      %v1465 = vadd.f32 0.0, %v1464
      %v1466 = vpop.f32.mrf.mxu0
      %v1467 = vpop.f32.mrf.mxu0
      %v1468 = vadd.f32 0.0, %v1467
      %v1469 = vpop.f32.mrf.mxu0
      %1470 = vmatprep.mubr.bf16.mxu0 0
      %1471 = vmatmul.mubr.bf16.gmra.mxu0 %v826
      %v1472 = vpop.f32.mrf.mxu0
      %v1473 = vadd.f32 0.0, %v1472
      %v1474 = vpop.f32.mrf.mxu0
      %v1475 = vpop.f32.mrf.mxu0
      %v1476 = vadd.f32 0.0, %v1475
      %v1477 = vpop.f32.mrf.mxu0
      %1478 = vmatprep.mubr.bf16.mxu0 0
      %1479 = vmatmul.mubr.bf16.gmra.mxu0 %v829
      %v1480 = vpop.f32.mrf.mxu0
      %v1481 = vadd.f32 0.0, %v1480
      %v1482 = vpop.f32.mrf.mxu0
      %v1483 = vpop.f32.mrf.mxu0
      %v1484 = vadd.f32 0.0, %v1483
      %v1485 = vpop.f32.mrf.mxu0
      %1486 = vmatprep.mubr.bf16.mxu0 0
      %1487 = vmatmul.mubr.bf16.gmra.mxu0 %v832
      %v1488 = vpop.f32.mrf.mxu0
      %v1489 = vadd.f32 0.0, %v1488
      %v1490 = vpop.f32.mrf.mxu0
      %v1491 = vpop.f32.mrf.mxu0
      %v1492 = vadd.f32 0.0, %v1491
      %v1493 = vpop.f32.mrf.mxu0
      %1494 = vmatprep.mubr.bf16.mxu0 0
      %1495 = vmatmul.mubr.bf16.gmra.mxu0 %v835
      %v1496 = vpop.f32.mrf.mxu0
      %v1497 = vadd.f32 0.0, %v1496
      %v1498 = vpop.f32.mrf.mxu0
      %v1499 = vpop.f32.mrf.mxu0
      %v1500 = vadd.f32 0.0, %v1499
      %v1501 = vpop.f32.mrf.mxu0
      %1502 = vmatprep.mubr.bf16.mxu0 0
      %1503 = vmatmul.mubr.bf16.gmra.mxu0 %v838
      %v1504 = vpop.f32.mrf.mxu0
      %v1505 = vadd.f32 0.0, %v1504
      %v1506 = vpop.f32.mrf.mxu0
      %v1507 = vpop.f32.mrf.mxu0
      %v1508 = vadd.f32 0.0, %v1507
      %v1509 = vpop.f32.mrf.mxu0
      %1510 = vmatprep.mubr.bf16.mxu0 0
      %1511 = vmatmul.mubr.bf16.gmra.mxu0 %v841
      %v1512 = vpop.f32.mrf.mxu0
      %v1513 = vadd.f32 0.0, %v1512
      %v1514 = vpop.f32.mrf.mxu0
      %v1515 = vpop.f32.mrf.mxu0
      %v1516 = vadd.f32 0.0, %v1515
      %v1517 = vpop.f32.mrf.mxu0
      %1518 = vmatprep.mubr.bf16.mxu0 0
      %1519 = vmatmul.mubr.bf16.gmra.mxu0 %v844
      %v1520 = vpop.f32.mrf.mxu0
      %v1521 = vadd.f32 0.0, %v1520
      %v1522 = vpop.f32.mrf.mxu0
      %v1523 = vpop.f32.mrf.mxu0
      %v1524 = vadd.f32 0.0, %v1523
      %v1525 = vpop.f32.mrf.mxu0
      %1526 = vmatprep.mubr.bf16.mxu0 0
      %1527 = vmatmul.mubr.bf16.gmra.mxu0 %v847
      %v1528 = vpop.f32.mrf.mxu0
      %v1529 = vadd.f32 0.0, %v1528
      %v1530 = vpop.f32.mrf.mxu0
      %v1531 = vpop.f32.mrf.mxu0
      %v1532 = vadd.f32 0.0, %v1531
      %v1533 = vpop.f32.mrf.mxu0
      %1534 = vmatprep.mubr.bf16.mxu0 0
      %1535 = vmatmul.mubr.bf16.gmra.mxu0 %v850
      %v1536 = vpop.f32.mrf.mxu0
      %v1537 = vadd.f32 0.0, %v1536
      %v1538 = vpop.f32.mrf.mxu0
      %v1539 = vpop.f32.mrf.mxu0
      %v1540 = vadd.f32 0.0, %v1539
      %v1541 = vpop.f32.mrf.mxu0
      %1542 = vmatprep.mubr.bf16.mxu0 0
      %1543 = vmatmul.mubr.bf16.gmra.mxu0 %v853
      %v1544 = vpop.f32.mrf.mxu0
      %v1545 = vadd.f32 0.0, %v1544
      %v1546 = vpop.f32.mrf.mxu0
      %v1547 = vpop.f32.mrf.mxu0
      %v1548 = vadd.f32 0.0, %v1547
      %v1549 = vpop.f32.mrf.mxu0
      %1550 = vmatprep.mubr.bf16.mxu0 0
      %1551 = vmatmul.mubr.bf16.gmra.mxu0 %v856
      %v1552 = vpop.f32.mrf.mxu0
      %v1553 = vadd.f32 0.0, %v1552
      %v1554 = vpop.f32.mrf.mxu0
      %v1555 = vpop.f32.mrf.mxu0
      %v1556 = vadd.f32 0.0, %v1555
      %v1557 = vpop.f32.mrf.mxu0
      %1558 = vmatprep.mubr.bf16.mxu0 0
      %1559 = vmatmul.mubr.bf16.gmra.mxu0 %v1401
      %v1560 = vpop.f32.mrf.mxu0
      %v1561 = vadd.f32 0.0, %v1560
      %v1562 = vpop.f32.mrf.mxu0
      %v1563 = vpop.f32.mrf.mxu0
      %v1564 = vadd.f32 0.0, %v1563
      %v1565 = vpop.f32.mrf.mxu0
      %1566 = vdwg.mxu0
      %v1567 = vadd.f32 %v1365, %v1441
      %v1568 = vadd.f32 %v1366, %v1444
      %v1569 = vadd.f32 %v1367, %v1449
      %v1570 = vadd.f32 %v1368, %v1452
      %v1571 = vadd.f32 %v1369, %v1457
      %v1572 = vadd.f32 %v1370, %v1460
      %v1573 = vadd.f32 %v1371, %v1465
      %v1574 = vadd.f32 %v1372, %v1468
      %v1575 = vadd.f32 %v1373, %v1473
      %v1576 = vadd.f32 %v1374, %v1476
      %v1577 = vadd.f32 %v1375, %v1481
      %v1578 = vadd.f32 %v1376, %v1484
      %v1579 = vadd.f32 %v1377, %v1489
      %v1580 = vadd.f32 %v1378, %v1492
      %v1581 = vadd.f32 %v1379, %v1497
      %v1582 = vadd.f32 %v1380, %v1500
      %v1583 = vadd.f32 %v1381, %v1505
      %v1584 = vadd.f32 %v1382, %v1508
      %v1585 = vadd.f32 %v1383, %v1513
      %v1586 = vadd.f32 %v1384, %v1516
      %v1587 = vadd.f32 %v1385, %v1521
      %v1588 = vadd.f32 %v1386, %v1524
      %v1589 = vadd.f32 %v1387, %v1529
      %v1590 = vadd.f32 %v1388, %v1532
      %v1591 = vadd.f32 %v1389, %v1537
      %v1592 = vadd.f32 %v1390, %v1540
      %v1593 = vadd.f32 %v1391, %v1545
      %v1594 = vadd.f32 %v1392, %v1548
      %v1595 = vadd.f32 %v1393, %v1553
      %v1596 = vadd.f32 %v1394, %v1556
      %v1597 = vadd.f32 %v1395, %v1561
      %v1598 = vadd.f32 %v1396, %v1564
      %v1602 = vrot.slane %v394, 1
      %v1603 = vrot.slane %v395, 1
      %v1604 = vsel %vm465, %v1602, %v1603
      %v1605 = vrot.slane %v396, 1
      %v1606 = vsel %vm465, %v1603, %v1605
      %v1609 = vpack.c.bf16 %v1606, %v1604
      %s1610 = scalar_lea.vmem %s1, 8
      %v1611 = vld [vmem:[%s1610] sm:$0x3]
      %v1613 = vsel %vm596, %v1609, 0
      %v1616 = vsel %vm645, %v1611, 0
      %1618 = vmatprep.subr.bf16.mxu0 0
      %1619 = vmatpush1.bf16.msra.mxu0 0
      %1620 = vmatprep.subr.bf16.mxu0 0
      %1621 = vmatpush1.bf16.msra.mxu0 0
      %1622 = vmatprep.subr.bf16.mxu0 0
      %1623 = vmatpush1.bf16.msra.mxu0 0
      %1624 = vmatprep.subr.bf16.mxu0 0
      %1625 = vmatpush1.bf16.msra.mxu0 0
      %1626 = vmatprep.subr.bf16.mxu0 0
      %1627 = vmatpush1.bf16.msra.mxu0 0
      %1628 = vmatprep.subr.bf16.mxu0 0
      %1629 = vmatpush1.bf16.msra.mxu0 0
      %1630 = vmatprep.subr.bf16.mxu0 0
      %1631 = vmatpush1.bf16.msra.mxu0 0
      %1632 = vmatprep.subr.bf16.mxu0 0
      %1633 = vmatpush1.bf16.msra.mxu0 %v1616
      %1634 = vmatprep.subr.bf16.mxu0 0
      %1635 = vmatpush2.bf16.msra.mxu0 0
      %1636 = vmatprep.subr.bf16.mxu0 0
      %1637 = vmatpush2.bf16.msra.mxu0 0
      %1638 = vmatprep.subr.bf16.mxu0 0
      %1639 = vmatpush2.bf16.msra.mxu0 0
      %1640 = vmatprep.subr.bf16.mxu0 0
      %1641 = vmatpush2.bf16.msra.mxu0 0
      %1642 = vmatprep.subr.bf16.mxu0 0
      %1643 = vmatpush2.bf16.msra.mxu0 0
      %1644 = vmatprep.subr.bf16.mxu0 0
      %1645 = vmatpush2.bf16.msra.mxu0 0
      %1646 = vmatprep.subr.bf16.mxu0 0
      %1647 = vmatpush2.bf16.msra.mxu0 0
      %1648 = vmatprep.subr.bf16.mxu0 0
      %1649 = vmatpush2.bf16.msra.mxu0 0
      %1650 = vmatprep.mubr.bf16.mxu0 0
      %1651 = vmatmul.mubr.bf16.gmra.mxu0 %v601
      %v1652 = vpop.f32.mrf.mxu0
      %v1653 = vadd.f32 0.0, %v1652
      %v1654 = vpop.f32.mrf.mxu0
      %v1655 = vpop.f32.mrf.mxu0
      %v1656 = vadd.f32 0.0, %v1655
      %v1657 = vpop.f32.mrf.mxu0
      %1658 = vmatprep.mubr.bf16.mxu0 0
      %1659 = vmatmul.mubr.bf16.gmra.mxu0 %v604
      %v1660 = vpop.f32.mrf.mxu0
      %v1661 = vadd.f32 0.0, %v1660
      %v1662 = vpop.f32.mrf.mxu0
      %v1663 = vpop.f32.mrf.mxu0
      %v1664 = vadd.f32 0.0, %v1663
      %v1665 = vpop.f32.mrf.mxu0
      %1666 = vmatprep.mubr.bf16.mxu0 0
      %1667 = vmatmul.mubr.bf16.gmra.mxu0 %v607
      %v1668 = vpop.f32.mrf.mxu0
      %v1669 = vadd.f32 0.0, %v1668
      %v1670 = vpop.f32.mrf.mxu0
      %v1671 = vpop.f32.mrf.mxu0
      %v1672 = vadd.f32 0.0, %v1671
      %v1673 = vpop.f32.mrf.mxu0
      %1674 = vmatprep.mubr.bf16.mxu0 0
      %1675 = vmatmul.mubr.bf16.gmra.mxu0 %v610
      %v1676 = vpop.f32.mrf.mxu0
      %v1677 = vadd.f32 0.0, %v1676
      %v1678 = vpop.f32.mrf.mxu0
      %v1679 = vpop.f32.mrf.mxu0
      %v1680 = vadd.f32 0.0, %v1679
      %v1681 = vpop.f32.mrf.mxu0
      %1682 = vmatprep.mubr.bf16.mxu0 0
      %1683 = vmatmul.mubr.bf16.gmra.mxu0 %v613
      %v1684 = vpop.f32.mrf.mxu0
      %v1685 = vadd.f32 0.0, %v1684
      %v1686 = vpop.f32.mrf.mxu0
      %v1687 = vpop.f32.mrf.mxu0
      %v1688 = vadd.f32 0.0, %v1687
      %v1689 = vpop.f32.mrf.mxu0
      %1690 = vmatprep.mubr.bf16.mxu0 0
      %1691 = vmatmul.mubr.bf16.gmra.mxu0 %v616
      %v1692 = vpop.f32.mrf.mxu0
      %v1693 = vadd.f32 0.0, %v1692
      %v1694 = vpop.f32.mrf.mxu0
      %v1695 = vpop.f32.mrf.mxu0
      %v1696 = vadd.f32 0.0, %v1695
      %v1697 = vpop.f32.mrf.mxu0
      %1698 = vmatprep.mubr.bf16.mxu0 0
      %1699 = vmatmul.mubr.bf16.gmra.mxu0 %v619
      %v1700 = vpop.f32.mrf.mxu0
      %v1701 = vadd.f32 0.0, %v1700
      %v1702 = vpop.f32.mrf.mxu0
      %v1703 = vpop.f32.mrf.mxu0
      %v1704 = vadd.f32 0.0, %v1703
      %v1705 = vpop.f32.mrf.mxu0
      %1706 = vmatprep.mubr.bf16.mxu0 0
      %1707 = vmatmul.mubr.bf16.gmra.mxu0 %v622
      %v1708 = vpop.f32.mrf.mxu0
      %v1709 = vadd.f32 0.0, %v1708
      %v1710 = vpop.f32.mrf.mxu0
      %v1711 = vpop.f32.mrf.mxu0
      %v1712 = vadd.f32 0.0, %v1711
      %v1713 = vpop.f32.mrf.mxu0
      %1714 = vmatprep.mubr.bf16.mxu0 0
      %1715 = vmatmul.mubr.bf16.gmra.mxu0 %v625
      %v1716 = vpop.f32.mrf.mxu0
      %v1717 = vadd.f32 0.0, %v1716
      %v1718 = vpop.f32.mrf.mxu0
      %v1719 = vpop.f32.mrf.mxu0
      %v1720 = vadd.f32 0.0, %v1719
      %v1721 = vpop.f32.mrf.mxu0
      %1722 = vmatprep.mubr.bf16.mxu0 0
      %1723 = vmatmul.mubr.bf16.gmra.mxu0 %v628
      %v1724 = vpop.f32.mrf.mxu0
      %v1725 = vadd.f32 0.0, %v1724
      %v1726 = vpop.f32.mrf.mxu0
      %v1727 = vpop.f32.mrf.mxu0
      %v1728 = vadd.f32 0.0, %v1727
      %v1729 = vpop.f32.mrf.mxu0
      %1730 = vmatprep.mubr.bf16.mxu0 0
      %1731 = vmatmul.mubr.bf16.gmra.mxu0 %v631
      %v1732 = vpop.f32.mrf.mxu0
      %v1733 = vadd.f32 0.0, %v1732
      %v1734 = vpop.f32.mrf.mxu0
      %v1735 = vpop.f32.mrf.mxu0
      %v1736 = vadd.f32 0.0, %v1735
      %v1737 = vpop.f32.mrf.mxu0
      %1738 = vmatprep.mubr.bf16.mxu0 0
      %1739 = vmatmul.mubr.bf16.gmra.mxu0 %v634
      %v1740 = vpop.f32.mrf.mxu0
      %v1741 = vadd.f32 0.0, %v1740
      %v1742 = vpop.f32.mrf.mxu0
      %v1743 = vpop.f32.mrf.mxu0
      %v1744 = vadd.f32 0.0, %v1743
      %v1745 = vpop.f32.mrf.mxu0
      %1746 = vmatprep.mubr.bf16.mxu0 0
      %1747 = vmatmul.mubr.bf16.gmra.mxu0 %v637
      %v1748 = vpop.f32.mrf.mxu0
      %v1749 = vadd.f32 0.0, %v1748
      %v1750 = vpop.f32.mrf.mxu0
      %v1751 = vpop.f32.mrf.mxu0
      %v1752 = vadd.f32 0.0, %v1751
      %v1753 = vpop.f32.mrf.mxu0
      %1754 = vmatprep.mubr.bf16.mxu0 0
      %1755 = vmatmul.mubr.bf16.gmra.mxu0 %v640
      %v1756 = vpop.f32.mrf.mxu0
      %v1757 = vadd.f32 0.0, %v1756
      %v1758 = vpop.f32.mrf.mxu0
      %v1759 = vpop.f32.mrf.mxu0
      %v1760 = vadd.f32 0.0, %v1759
      %v1761 = vpop.f32.mrf.mxu0
      %1762 = vmatprep.mubr.bf16.mxu0 0
      %1763 = vmatmul.mubr.bf16.gmra.mxu0 %v643
      %v1764 = vpop.f32.mrf.mxu0
      %v1765 = vadd.f32 0.0, %v1764
      %v1766 = vpop.f32.mrf.mxu0
      %v1767 = vpop.f32.mrf.mxu0
      %v1768 = vadd.f32 0.0, %v1767
      %v1769 = vpop.f32.mrf.mxu0
      %1770 = vmatprep.mubr.bf16.mxu0 0
      %1771 = vmatmul.mubr.bf16.gmra.mxu0 %v1613
      %v1772 = vpop.f32.mrf.mxu0
      %v1773 = vadd.f32 0.0, %v1772
      %v1774 = vpop.f32.mrf.mxu0
      %v1775 = vpop.f32.mrf.mxu0
      %v1776 = vadd.f32 0.0, %v1775
      %v1777 = vpop.f32.mrf.mxu0
      %1778 = vdwg.mxu0
      %v1779 = vadd.f32 %v1567, %v1653
      %v1780 = vadd.f32 %v1568, %v1656
      %v1781 = vadd.f32 %v1569, %v1661
      %v1782 = vadd.f32 %v1570, %v1664
      %v1783 = vadd.f32 %v1571, %v1669
      %v1784 = vadd.f32 %v1572, %v1672
      %v1785 = vadd.f32 %v1573, %v1677
      %v1786 = vadd.f32 %v1574, %v1680
      %v1787 = vadd.f32 %v1575, %v1685
      %v1788 = vadd.f32 %v1576, %v1688
      %v1789 = vadd.f32 %v1577, %v1693
      %v1790 = vadd.f32 %v1578, %v1696
      %v1791 = vadd.f32 %v1579, %v1701
      %v1792 = vadd.f32 %v1580, %v1704
      %v1793 = vadd.f32 %v1581, %v1709
      %v1794 = vadd.f32 %v1582, %v1712
      %v1795 = vadd.f32 %v1583, %v1717
      %v1796 = vadd.f32 %v1584, %v1720
      %v1797 = vadd.f32 %v1585, %v1725
      %v1798 = vadd.f32 %v1586, %v1728
      %v1799 = vadd.f32 %v1587, %v1733
      %v1800 = vadd.f32 %v1588, %v1736
      %v1801 = vadd.f32 %v1589, %v1741
      %v1802 = vadd.f32 %v1590, %v1744
      %v1803 = vadd.f32 %v1591, %v1749
      %v1804 = vadd.f32 %v1592, %v1752
      %v1805 = vadd.f32 %v1593, %v1757
      %v1806 = vadd.f32 %v1594, %v1760
      %v1807 = vadd.f32 %v1595, %v1765
      %v1808 = vadd.f32 %v1596, %v1768
      %v1809 = vadd.f32 %v1597, %v1773
      %v1810 = vadd.f32 %v1598, %v1776
      %v1811 = vrot.slane %v394, 2
      %v1812 = vrot.slane %v395, 2
      %v1813 = vsel %vm1022, %v1811, %v1812
      %v1814 = vrot.slane %v396, 2
      %v1815 = vsel %vm1022, %v1812, %v1814
      %v1818 = vpack.c.bf16 %v1815, %v1813
      %s1819 = scalar_lea.vmem %s1, 10
      %v1820 = vld [vmem:[%s1819] sm:$0x3]
      %v1822 = vsel %vm596, %v1818, 0
      %v1825 = vsel %vm645, %v1820, 0
      %1827 = vmatprep.subr.bf16.mxu0 0
      %1828 = vmatpush1.bf16.msra.mxu0 0
      %1829 = vmatprep.subr.bf16.mxu0 0
      %1830 = vmatpush1.bf16.msra.mxu0 0
      %1831 = vmatprep.subr.bf16.mxu0 0
      %1832 = vmatpush1.bf16.msra.mxu0 0
      %1833 = vmatprep.subr.bf16.mxu0 0
      %1834 = vmatpush1.bf16.msra.mxu0 0
      %1835 = vmatprep.subr.bf16.mxu0 0
      %1836 = vmatpush1.bf16.msra.mxu0 0
      %1837 = vmatprep.subr.bf16.mxu0 0
      %1838 = vmatpush1.bf16.msra.mxu0 0
      %1839 = vmatprep.subr.bf16.mxu0 0
      %1840 = vmatpush1.bf16.msra.mxu0 0
      %1841 = vmatprep.subr.bf16.mxu0 0
      %1842 = vmatpush1.bf16.msra.mxu0 %v1825
      %1843 = vmatprep.subr.bf16.mxu0 0
      %1844 = vmatpush2.bf16.msra.mxu0 0
      %1845 = vmatprep.subr.bf16.mxu0 0
      %1846 = vmatpush2.bf16.msra.mxu0 0
      %1847 = vmatprep.subr.bf16.mxu0 0
      %1848 = vmatpush2.bf16.msra.mxu0 0
      %1849 = vmatprep.subr.bf16.mxu0 0
      %1850 = vmatpush2.bf16.msra.mxu0 0
      %1851 = vmatprep.subr.bf16.mxu0 0
      %1852 = vmatpush2.bf16.msra.mxu0 0
      %1853 = vmatprep.subr.bf16.mxu0 0
      %1854 = vmatpush2.bf16.msra.mxu0 0
      %1855 = vmatprep.subr.bf16.mxu0 0
      %1856 = vmatpush2.bf16.msra.mxu0 0
      %1857 = vmatprep.subr.bf16.mxu0 0
      %1858 = vmatpush2.bf16.msra.mxu0 0
      %1859 = vmatprep.mubr.bf16.mxu0 0
      %1860 = vmatmul.mubr.bf16.gmra.mxu0 %v1157
      %v1861 = vpop.f32.mrf.mxu0
      %v1862 = vadd.f32 0.0, %v1861
      %v1863 = vpop.f32.mrf.mxu0
      %v1864 = vpop.f32.mrf.mxu0
      %v1865 = vadd.f32 0.0, %v1864
      %v1866 = vpop.f32.mrf.mxu0
      %1867 = vmatprep.mubr.bf16.mxu0 0
      %1868 = vmatmul.mubr.bf16.gmra.mxu0 %v1160
      %v1869 = vpop.f32.mrf.mxu0
      %v1870 = vadd.f32 0.0, %v1869
      %v1871 = vpop.f32.mrf.mxu0
      %v1872 = vpop.f32.mrf.mxu0
      %v1873 = vadd.f32 0.0, %v1872
      %v1874 = vpop.f32.mrf.mxu0
      %1875 = vmatprep.mubr.bf16.mxu0 0
      %1876 = vmatmul.mubr.bf16.gmra.mxu0 %v1163
      %v1877 = vpop.f32.mrf.mxu0
      %v1878 = vadd.f32 0.0, %v1877
      %v1879 = vpop.f32.mrf.mxu0
      %v1880 = vpop.f32.mrf.mxu0
      %v1881 = vadd.f32 0.0, %v1880
      %v1882 = vpop.f32.mrf.mxu0
      %1883 = vmatprep.mubr.bf16.mxu0 0
      %1884 = vmatmul.mubr.bf16.gmra.mxu0 %v1166
      %v1885 = vpop.f32.mrf.mxu0
      %v1886 = vadd.f32 0.0, %v1885
      %v1887 = vpop.f32.mrf.mxu0
      %v1888 = vpop.f32.mrf.mxu0
      %v1889 = vadd.f32 0.0, %v1888
      %v1890 = vpop.f32.mrf.mxu0
      %1891 = vmatprep.mubr.bf16.mxu0 0
      %1892 = vmatmul.mubr.bf16.gmra.mxu0 %v1169
      %v1893 = vpop.f32.mrf.mxu0
      %v1894 = vadd.f32 0.0, %v1893
      %v1895 = vpop.f32.mrf.mxu0
      %v1896 = vpop.f32.mrf.mxu0
      %v1897 = vadd.f32 0.0, %v1896
      %v1898 = vpop.f32.mrf.mxu0
      %1899 = vmatprep.mubr.bf16.mxu0 0
      %1900 = vmatmul.mubr.bf16.gmra.mxu0 %v1172
      %v1901 = vpop.f32.mrf.mxu0
      %v1902 = vadd.f32 0.0, %v1901
      %v1903 = vpop.f32.mrf.mxu0
      %v1904 = vpop.f32.mrf.mxu0
      %v1905 = vadd.f32 0.0, %v1904
      %v1906 = vpop.f32.mrf.mxu0
      %1907 = vmatprep.mubr.bf16.mxu0 0
      %1908 = vmatmul.mubr.bf16.gmra.mxu0 %v1175
      %v1909 = vpop.f32.mrf.mxu0
      %v1910 = vadd.f32 0.0, %v1909
      %v1911 = vpop.f32.mrf.mxu0
      %v1912 = vpop.f32.mrf.mxu0
      %v1913 = vadd.f32 0.0, %v1912
      %v1914 = vpop.f32.mrf.mxu0
      %1915 = vmatprep.mubr.bf16.mxu0 0
      %1916 = vmatmul.mubr.bf16.gmra.mxu0 %v1178
      %v1917 = vpop.f32.mrf.mxu0
      %v1918 = vadd.f32 0.0, %v1917
      %v1919 = vpop.f32.mrf.mxu0
      %v1920 = vpop.f32.mrf.mxu0
      %v1921 = vadd.f32 0.0, %v1920
      %v1922 = vpop.f32.mrf.mxu0
      %1923 = vmatprep.mubr.bf16.mxu0 0
      %1924 = vmatmul.mubr.bf16.gmra.mxu0 %v1181
      %v1925 = vpop.f32.mrf.mxu0
      %v1926 = vadd.f32 0.0, %v1925
      %v1927 = vpop.f32.mrf.mxu0
      %v1928 = vpop.f32.mrf.mxu0
      %v1929 = vadd.f32 0.0, %v1928
      %v1930 = vpop.f32.mrf.mxu0
      %1931 = vmatprep.mubr.bf16.mxu0 0
      %1932 = vmatmul.mubr.bf16.gmra.mxu0 %v1184
      %v1933 = vpop.f32.mrf.mxu0
      %v1934 = vadd.f32 0.0, %v1933
      %v1935 = vpop.f32.mrf.mxu0
      %v1936 = vpop.f32.mrf.mxu0
      %v1937 = vadd.f32 0.0, %v1936
      %v1938 = vpop.f32.mrf.mxu0
      %1939 = vmatprep.mubr.bf16.mxu0 0
      %1940 = vmatmul.mubr.bf16.gmra.mxu0 %v1187
      %v1941 = vpop.f32.mrf.mxu0
      %v1942 = vadd.f32 0.0, %v1941
      %v1943 = vpop.f32.mrf.mxu0
      %v1944 = vpop.f32.mrf.mxu0
      %v1945 = vadd.f32 0.0, %v1944
      %v1946 = vpop.f32.mrf.mxu0
      %1947 = vmatprep.mubr.bf16.mxu0 0
      %1948 = vmatmul.mubr.bf16.gmra.mxu0 %v1190
      %v1949 = vpop.f32.mrf.mxu0
      %v1950 = vadd.f32 0.0, %v1949
      %v1951 = vpop.f32.mrf.mxu0
      %v1952 = vpop.f32.mrf.mxu0
      %v1953 = vadd.f32 0.0, %v1952
      %v1954 = vpop.f32.mrf.mxu0
      %1955 = vmatprep.mubr.bf16.mxu0 0
      %1956 = vmatmul.mubr.bf16.gmra.mxu0 %v1193
      %v1957 = vpop.f32.mrf.mxu0
      %v1958 = vadd.f32 0.0, %v1957
      %v1959 = vpop.f32.mrf.mxu0
      %v1960 = vpop.f32.mrf.mxu0
      %v1961 = vadd.f32 0.0, %v1960
      %v1962 = vpop.f32.mrf.mxu0
      %1963 = vmatprep.mubr.bf16.mxu0 0
      %1964 = vmatmul.mubr.bf16.gmra.mxu0 %v1196
      %v1965 = vpop.f32.mrf.mxu0
      %v1966 = vadd.f32 0.0, %v1965
      %v1967 = vpop.f32.mrf.mxu0
      %v1968 = vpop.f32.mrf.mxu0
      %v1969 = vadd.f32 0.0, %v1968
      %v1970 = vpop.f32.mrf.mxu0
      %1971 = vmatprep.mubr.bf16.mxu0 0
      %1972 = vmatmul.mubr.bf16.gmra.mxu0 %v1199
      %v1973 = vpop.f32.mrf.mxu0
      %v1974 = vadd.f32 0.0, %v1973
      %v1975 = vpop.f32.mrf.mxu0
      %v1976 = vpop.f32.mrf.mxu0
      %v1977 = vadd.f32 0.0, %v1976
      %v1978 = vpop.f32.mrf.mxu0
      %1979 = vmatprep.mubr.bf16.mxu0 0
      %1980 = vmatmul.mubr.bf16.gmra.mxu0 %v1822
      %v1981 = vpop.f32.mrf.mxu0
      %v1982 = vadd.f32 0.0, %v1981
      %v1983 = vpop.f32.mrf.mxu0
      %v1984 = vpop.f32.mrf.mxu0
      %v1985 = vadd.f32 0.0, %v1984
      %v1986 = vpop.f32.mrf.mxu0
      %1987 = vdwg.mxu0
      %v1988 = vadd.f32 %v1779, %v1862
      %v1989 = vadd.f32 %v1780, %v1865
      %v1990 = vadd.f32 %v1781, %v1870
      %v1991 = vadd.f32 %v1782, %v1873
      %v1992 = vadd.f32 %v1783, %v1878
      %v1993 = vadd.f32 %v1784, %v1881
      %v1994 = vadd.f32 %v1785, %v1886
      %v1995 = vadd.f32 %v1786, %v1889
      %v1996 = vadd.f32 %v1787, %v1894
      %v1997 = vadd.f32 %v1788, %v1897
      %v1998 = vadd.f32 %v1789, %v1902
      %v1999 = vadd.f32 %v1790, %v1905
      %v2000 = vadd.f32 %v1791, %v1910
      %v2001 = vadd.f32 %v1792, %v1913
      %v2002 = vadd.f32 %v1793, %v1918
      %v2003 = vadd.f32 %v1794, %v1921
      %v2004 = vadd.f32 %v1795, %v1926
      %v2005 = vadd.f32 %v1796, %v1929
      %v2006 = vadd.f32 %v1797, %v1934
      %v2007 = vadd.f32 %v1798, %v1937
      %v2008 = vadd.f32 %v1799, %v1942
      %v2009 = vadd.f32 %v1800, %v1945
      %v2010 = vadd.f32 %v1801, %v1950
      %v2011 = vadd.f32 %v1802, %v1953
      %v2012 = vadd.f32 %v1803, %v1958
      %v2013 = vadd.f32 %v1804, %v1961
      %v2014 = vadd.f32 %v1805, %v1966
      %v2015 = vadd.f32 %v1806, %v1969
      %v2016 = vadd.f32 %v1807, %v1974
      %v2017 = vadd.f32 %v1808, %v1977
      %v2018 = vadd.f32 %v1809, %v1982
      %v2019 = vadd.f32 %v1810, %v1985
      %v2020 = vpack.c.bf16 %v398, %v397
      %s2021 = scalar_lea.vmem %s1, 12
      %v2022 = vld [vmem:[%s2021] sm:$0x3]
      %v2024 = vsel %vm596, %v2020, 0
      %v2027 = vsel %vm645, %v2022, 0
      %2029 = vmatprep.subr.bf16.mxu0 0
      %2030 = vmatpush1.bf16.msra.mxu0 0
      %2031 = vmatprep.subr.bf16.mxu0 0
      %2032 = vmatpush1.bf16.msra.mxu0 0
      %2033 = vmatprep.subr.bf16.mxu0 0
      %2034 = vmatpush1.bf16.msra.mxu0 0
      %2035 = vmatprep.subr.bf16.mxu0 0
      %2036 = vmatpush1.bf16.msra.mxu0 0
      %2037 = vmatprep.subr.bf16.mxu0 0
      %2038 = vmatpush1.bf16.msra.mxu0 0
      %2039 = vmatprep.subr.bf16.mxu0 0
      %2040 = vmatpush1.bf16.msra.mxu0 0
      %2041 = vmatprep.subr.bf16.mxu0 0
      %2042 = vmatpush1.bf16.msra.mxu0 0
      %2043 = vmatprep.subr.bf16.mxu0 0
      %2044 = vmatpush1.bf16.msra.mxu0 %v2027
      %2045 = vmatprep.subr.bf16.mxu0 0
      %2046 = vmatpush2.bf16.msra.mxu0 0
      %2047 = vmatprep.subr.bf16.mxu0 0
      %2048 = vmatpush2.bf16.msra.mxu0 0
      %2049 = vmatprep.subr.bf16.mxu0 0
      %2050 = vmatpush2.bf16.msra.mxu0 0
      %2051 = vmatprep.subr.bf16.mxu0 0
      %2052 = vmatpush2.bf16.msra.mxu0 0
      %2053 = vmatprep.subr.bf16.mxu0 0
      %2054 = vmatpush2.bf16.msra.mxu0 0
      %2055 = vmatprep.subr.bf16.mxu0 0
      %2056 = vmatpush2.bf16.msra.mxu0 0
      %2057 = vmatprep.subr.bf16.mxu0 0
      %2058 = vmatpush2.bf16.msra.mxu0 0
      %2059 = vmatprep.subr.bf16.mxu0 0
      %2060 = vmatpush2.bf16.msra.mxu0 0
      %2061 = vmatprep.mubr.bf16.mxu0 0
      %2062 = vmatmul.mubr.bf16.gmra.mxu0 %v817
      %v2063 = vpop.f32.mrf.mxu0
      %v2064 = vadd.f32 0.0, %v2063
      %v2065 = vpop.f32.mrf.mxu0
      %v2066 = vpop.f32.mrf.mxu0
      %v2067 = vadd.f32 0.0, %v2066
      %v2068 = vpop.f32.mrf.mxu0
      %2069 = vmatprep.mubr.bf16.mxu0 0
      %2070 = vmatmul.mubr.bf16.gmra.mxu0 %v820
      %v2071 = vpop.f32.mrf.mxu0
      %v2072 = vadd.f32 0.0, %v2071
      %v2073 = vpop.f32.mrf.mxu0
      %v2074 = vpop.f32.mrf.mxu0
      %v2075 = vadd.f32 0.0, %v2074
      %v2076 = vpop.f32.mrf.mxu0
      %2077 = vmatprep.mubr.bf16.mxu0 0
      %2078 = vmatmul.mubr.bf16.gmra.mxu0 %v823
      %v2079 = vpop.f32.mrf.mxu0
      %v2080 = vadd.f32 0.0, %v2079
      %v2081 = vpop.f32.mrf.mxu0
      %v2082 = vpop.f32.mrf.mxu0
      %v2083 = vadd.f32 0.0, %v2082
      %v2084 = vpop.f32.mrf.mxu0
      %2085 = vmatprep.mubr.bf16.mxu0 0
      %2086 = vmatmul.mubr.bf16.gmra.mxu0 %v826
      %v2087 = vpop.f32.mrf.mxu0
      %v2088 = vadd.f32 0.0, %v2087
      %v2089 = vpop.f32.mrf.mxu0
      %v2090 = vpop.f32.mrf.mxu0
      %v2091 = vadd.f32 0.0, %v2090
      %v2092 = vpop.f32.mrf.mxu0
      %2093 = vmatprep.mubr.bf16.mxu0 0
      %2094 = vmatmul.mubr.bf16.gmra.mxu0 %v829
      %v2095 = vpop.f32.mrf.mxu0
      %v2096 = vadd.f32 0.0, %v2095
      %v2097 = vpop.f32.mrf.mxu0
      %v2098 = vpop.f32.mrf.mxu0
      %v2099 = vadd.f32 0.0, %v2098
      %v2100 = vpop.f32.mrf.mxu0
      %2101 = vmatprep.mubr.bf16.mxu0 0
      %2102 = vmatmul.mubr.bf16.gmra.mxu0 %v832
      %v2103 = vpop.f32.mrf.mxu0
      %v2104 = vadd.f32 0.0, %v2103
      %v2105 = vpop.f32.mrf.mxu0
      %v2106 = vpop.f32.mrf.mxu0
      %v2107 = vadd.f32 0.0, %v2106
      %v2108 = vpop.f32.mrf.mxu0
      %2109 = vmatprep.mubr.bf16.mxu0 0
      %2110 = vmatmul.mubr.bf16.gmra.mxu0 %v835
      %v2111 = vpop.f32.mrf.mxu0
      %v2112 = vadd.f32 0.0, %v2111
      %v2113 = vpop.f32.mrf.mxu0
      %v2114 = vpop.f32.mrf.mxu0
      %v2115 = vadd.f32 0.0, %v2114
      %v2116 = vpop.f32.mrf.mxu0
      %2117 = vmatprep.mubr.bf16.mxu0 0
      %2118 = vmatmul.mubr.bf16.gmra.mxu0 %v838
      %v2119 = vpop.f32.mrf.mxu0
      %v2120 = vadd.f32 0.0, %v2119
      %v2121 = vpop.f32.mrf.mxu0
      %v2122 = vpop.f32.mrf.mxu0
      %v2123 = vadd.f32 0.0, %v2122
      %v2124 = vpop.f32.mrf.mxu0
      %2125 = vmatprep.mubr.bf16.mxu0 0
      %2126 = vmatmul.mubr.bf16.gmra.mxu0 %v841
      %v2127 = vpop.f32.mrf.mxu0
      %v2128 = vadd.f32 0.0, %v2127
      %v2129 = vpop.f32.mrf.mxu0
      %v2130 = vpop.f32.mrf.mxu0
      %v2131 = vadd.f32 0.0, %v2130
      %v2132 = vpop.f32.mrf.mxu0
      %2133 = vmatprep.mubr.bf16.mxu0 0
      %2134 = vmatmul.mubr.bf16.gmra.mxu0 %v844
      %v2135 = vpop.f32.mrf.mxu0
      %v2136 = vadd.f32 0.0, %v2135
      %v2137 = vpop.f32.mrf.mxu0
      %v2138 = vpop.f32.mrf.mxu0
      %v2139 = vadd.f32 0.0, %v2138
      %v2140 = vpop.f32.mrf.mxu0
      %2141 = vmatprep.mubr.bf16.mxu0 0
      %2142 = vmatmul.mubr.bf16.gmra.mxu0 %v847
      %v2143 = vpop.f32.mrf.mxu0
      %v2144 = vadd.f32 0.0, %v2143
      %v2145 = vpop.f32.mrf.mxu0
      %v2146 = vpop.f32.mrf.mxu0
      %v2147 = vadd.f32 0.0, %v2146
      %v2148 = vpop.f32.mrf.mxu0
      %2149 = vmatprep.mubr.bf16.mxu0 0
      %2150 = vmatmul.mubr.bf16.gmra.mxu0 %v850
      %v2151 = vpop.f32.mrf.mxu0
      %v2152 = vadd.f32 0.0, %v2151
      %v2153 = vpop.f32.mrf.mxu0
      %v2154 = vpop.f32.mrf.mxu0
      %v2155 = vadd.f32 0.0, %v2154
      %v2156 = vpop.f32.mrf.mxu0
      %2157 = vmatprep.mubr.bf16.mxu0 0
      %2158 = vmatmul.mubr.bf16.gmra.mxu0 %v853
      %v2159 = vpop.f32.mrf.mxu0
      %v2160 = vadd.f32 0.0, %v2159
      %v2161 = vpop.f32.mrf.mxu0
      %v2162 = vpop.f32.mrf.mxu0
      %v2163 = vadd.f32 0.0, %v2162
      %v2164 = vpop.f32.mrf.mxu0
      %2165 = vmatprep.mubr.bf16.mxu0 0
      %2166 = vmatmul.mubr.bf16.gmra.mxu0 %v856
      %v2167 = vpop.f32.mrf.mxu0
      %v2168 = vadd.f32 0.0, %v2167
      %v2169 = vpop.f32.mrf.mxu0
      %v2170 = vpop.f32.mrf.mxu0
      %v2171 = vadd.f32 0.0, %v2170
      %v2172 = vpop.f32.mrf.mxu0
      %2173 = vmatprep.mubr.bf16.mxu0 0
      %2174 = vmatmul.mubr.bf16.gmra.mxu0 %v1401
      %v2175 = vpop.f32.mrf.mxu0
      %v2176 = vadd.f32 0.0, %v2175
      %v2177 = vpop.f32.mrf.mxu0
      %v2178 = vpop.f32.mrf.mxu0
      %v2179 = vadd.f32 0.0, %v2178
      %v2180 = vpop.f32.mrf.mxu0
      %2181 = vmatprep.mubr.bf16.mxu0 0
      %2182 = vmatmul.mubr.bf16.gmra.mxu0 %v2024
      %v2183 = vpop.f32.mrf.mxu0
      %v2184 = vadd.f32 0.0, %v2183
      %v2185 = vpop.f32.mrf.mxu0
      %v2186 = vpop.f32.mrf.mxu0
      %v2187 = vadd.f32 0.0, %v2186
      %v2188 = vpop.f32.mrf.mxu0
      %2189 = vdwg.mxu0
      %v2190 = vadd.f32 %v1988, %v2064
      %v2191 = vadd.f32 %v1989, %v2067
      %v2192 = vadd.f32 %v1990, %v2072
      %v2193 = vadd.f32 %v1991, %v2075
      %v2194 = vadd.f32 %v1992, %v2080
      %v2195 = vadd.f32 %v1993, %v2083
      %v2196 = vadd.f32 %v1994, %v2088
      %v2197 = vadd.f32 %v1995, %v2091
      %v2198 = vadd.f32 %v1996, %v2096
      %v2199 = vadd.f32 %v1997, %v2099
      %v2200 = vadd.f32 %v1998, %v2104
      %v2201 = vadd.f32 %v1999, %v2107
      %v2202 = vadd.f32 %v2000, %v2112
      %v2203 = vadd.f32 %v2001, %v2115
      %v2204 = vadd.f32 %v2002, %v2120
      %v2205 = vadd.f32 %v2003, %v2123
      %v2206 = vadd.f32 %v2004, %v2128
      %v2207 = vadd.f32 %v2005, %v2131
      %v2208 = vadd.f32 %v2006, %v2136
      %v2209 = vadd.f32 %v2007, %v2139
      %v2210 = vadd.f32 %v2008, %v2144
      %v2211 = vadd.f32 %v2009, %v2147
      %v2212 = vadd.f32 %v2010, %v2152
      %v2213 = vadd.f32 %v2011, %v2155
      %v2214 = vadd.f32 %v2012, %v2160
      %v2215 = vadd.f32 %v2013, %v2163
      %v2216 = vadd.f32 %v2014, %v2168
      %v2217 = vadd.f32 %v2015, %v2171
      %v2218 = vadd.f32 %v2016, %v2176
      %v2219 = vadd.f32 %v2017, %v2179
      %v2220 = vadd.f32 %v2018, %v2184
      %v2221 = vadd.f32 %v2019, %v2187
      %v2225 = vrot.slane %v397, 1
      %v2226 = vrot.slane %v398, 1
      %v2227 = vsel %vm465, %v2225, %v2226
      %v2228 = vrot.slane %v399, 1
      %v2229 = vsel %vm465, %v2226, %v2228
      %v2232 = vpack.c.bf16 %v2229, %v2227
      %s2233 = scalar_lea.vmem %s1, 14
      %v2234 = vld [vmem:[%s2233] sm:$0x3]
      %v2236 = vsel %vm596, %v2232, 0
      %v2239 = vsel %vm645, %v2234, 0
      %2241 = vmatprep.subr.bf16.mxu0 0
      %2242 = vmatpush1.bf16.msra.mxu0 0
      %2243 = vmatprep.subr.bf16.mxu0 0
      %2244 = vmatpush1.bf16.msra.mxu0 0
      %2245 = vmatprep.subr.bf16.mxu0 0
      %2246 = vmatpush1.bf16.msra.mxu0 0
      %2247 = vmatprep.subr.bf16.mxu0 0
      %2248 = vmatpush1.bf16.msra.mxu0 0
      %2249 = vmatprep.subr.bf16.mxu0 0
      %2250 = vmatpush1.bf16.msra.mxu0 0
      %2251 = vmatprep.subr.bf16.mxu0 0
      %2252 = vmatpush1.bf16.msra.mxu0 0
      %2253 = vmatprep.subr.bf16.mxu0 0
      %2254 = vmatpush1.bf16.msra.mxu0 0
      %2255 = vmatprep.subr.bf16.mxu0 0
      %2256 = vmatpush1.bf16.msra.mxu0 %v2239
      %2257 = vmatprep.subr.bf16.mxu0 0
      %2258 = vmatpush2.bf16.msra.mxu0 0
      %2259 = vmatprep.subr.bf16.mxu0 0
      %2260 = vmatpush2.bf16.msra.mxu0 0
      %2261 = vmatprep.subr.bf16.mxu0 0
      %2262 = vmatpush2.bf16.msra.mxu0 0
      %2263 = vmatprep.subr.bf16.mxu0 0
      %2264 = vmatpush2.bf16.msra.mxu0 0
      %2265 = vmatprep.subr.bf16.mxu0 0
      %2266 = vmatpush2.bf16.msra.mxu0 0
      %2267 = vmatprep.subr.bf16.mxu0 0
      %2268 = vmatpush2.bf16.msra.mxu0 0
      %2269 = vmatprep.subr.bf16.mxu0 0
      %2270 = vmatpush2.bf16.msra.mxu0 0
      %2271 = vmatprep.subr.bf16.mxu0 0
      %2272 = vmatpush2.bf16.msra.mxu0 0
      %2273 = vmatprep.mubr.bf16.mxu0 0
      %2274 = vmatmul.mubr.bf16.gmra.mxu0 %v604
      %v2275 = vpop.f32.mrf.mxu0
      %v2276 = vadd.f32 0.0, %v2275
      %v2277 = vpop.f32.mrf.mxu0
      %v2278 = vpop.f32.mrf.mxu0
      %v2279 = vadd.f32 0.0, %v2278
      %v2280 = vpop.f32.mrf.mxu0
      %2281 = vmatprep.mubr.bf16.mxu0 0
      %2282 = vmatmul.mubr.bf16.gmra.mxu0 %v607
      %v2283 = vpop.f32.mrf.mxu0
      %v2284 = vadd.f32 0.0, %v2283
      %v2285 = vpop.f32.mrf.mxu0
      %v2286 = vpop.f32.mrf.mxu0
      %v2287 = vadd.f32 0.0, %v2286
      %v2288 = vpop.f32.mrf.mxu0
      %2289 = vmatprep.mubr.bf16.mxu0 0
      %2290 = vmatmul.mubr.bf16.gmra.mxu0 %v610
      %v2291 = vpop.f32.mrf.mxu0
      %v2292 = vadd.f32 0.0, %v2291
      %v2293 = vpop.f32.mrf.mxu0
      %v2294 = vpop.f32.mrf.mxu0
      %v2295 = vadd.f32 0.0, %v2294
      %v2296 = vpop.f32.mrf.mxu0
      %2297 = vmatprep.mubr.bf16.mxu0 0
      %2298 = vmatmul.mubr.bf16.gmra.mxu0 %v613
      %v2299 = vpop.f32.mrf.mxu0
      %v2300 = vadd.f32 0.0, %v2299
      %v2301 = vpop.f32.mrf.mxu0
      %v2302 = vpop.f32.mrf.mxu0
      %v2303 = vadd.f32 0.0, %v2302
      %v2304 = vpop.f32.mrf.mxu0
      %2305 = vmatprep.mubr.bf16.mxu0 0
      %2306 = vmatmul.mubr.bf16.gmra.mxu0 %v616
      %v2307 = vpop.f32.mrf.mxu0
      %v2308 = vadd.f32 0.0, %v2307
      %v2309 = vpop.f32.mrf.mxu0
      %v2310 = vpop.f32.mrf.mxu0
      %v2311 = vadd.f32 0.0, %v2310
      %v2312 = vpop.f32.mrf.mxu0
      %2313 = vmatprep.mubr.bf16.mxu0 0
      %2314 = vmatmul.mubr.bf16.gmra.mxu0 %v619
      %v2315 = vpop.f32.mrf.mxu0
      %v2316 = vadd.f32 0.0, %v2315
      %v2317 = vpop.f32.mrf.mxu0
      %v2318 = vpop.f32.mrf.mxu0
      %v2319 = vadd.f32 0.0, %v2318
      %v2320 = vpop.f32.mrf.mxu0
      %2321 = vmatprep.mubr.bf16.mxu0 0
      %2322 = vmatmul.mubr.bf16.gmra.mxu0 %v622
      %v2323 = vpop.f32.mrf.mxu0
      %v2324 = vadd.f32 0.0, %v2323
      %v2325 = vpop.f32.mrf.mxu0
      %v2326 = vpop.f32.mrf.mxu0
      %v2327 = vadd.f32 0.0, %v2326
      %v2328 = vpop.f32.mrf.mxu0
      %2329 = vmatprep.mubr.bf16.mxu0 0
      %2330 = vmatmul.mubr.bf16.gmra.mxu0 %v625
      %v2331 = vpop.f32.mrf.mxu0
      %v2332 = vadd.f32 0.0, %v2331
      %v2333 = vpop.f32.mrf.mxu0
      %v2334 = vpop.f32.mrf.mxu0
      %v2335 = vadd.f32 0.0, %v2334
      %v2336 = vpop.f32.mrf.mxu0
      %2337 = vmatprep.mubr.bf16.mxu0 0
      %2338 = vmatmul.mubr.bf16.gmra.mxu0 %v628
      %v2339 = vpop.f32.mrf.mxu0
      %v2340 = vadd.f32 0.0, %v2339
      %v2341 = vpop.f32.mrf.mxu0
      %v2342 = vpop.f32.mrf.mxu0
      %v2343 = vadd.f32 0.0, %v2342
      %v2344 = vpop.f32.mrf.mxu0
      %2345 = vmatprep.mubr.bf16.mxu0 0
      %2346 = vmatmul.mubr.bf16.gmra.mxu0 %v631
      %v2347 = vpop.f32.mrf.mxu0
      %v2348 = vadd.f32 0.0, %v2347
      %v2349 = vpop.f32.mrf.mxu0
      %v2350 = vpop.f32.mrf.mxu0
      %v2351 = vadd.f32 0.0, %v2350
      %v2352 = vpop.f32.mrf.mxu0
      %2353 = vmatprep.mubr.bf16.mxu0 0
      %2354 = vmatmul.mubr.bf16.gmra.mxu0 %v634
      %v2355 = vpop.f32.mrf.mxu0
      %v2356 = vadd.f32 0.0, %v2355
      %v2357 = vpop.f32.mrf.mxu0
      %v2358 = vpop.f32.mrf.mxu0
      %v2359 = vadd.f32 0.0, %v2358
      %v2360 = vpop.f32.mrf.mxu0
      %2361 = vmatprep.mubr.bf16.mxu0 0
      %2362 = vmatmul.mubr.bf16.gmra.mxu0 %v637
      %v2363 = vpop.f32.mrf.mxu0
      %v2364 = vadd.f32 0.0, %v2363
      %v2365 = vpop.f32.mrf.mxu0
      %v2366 = vpop.f32.mrf.mxu0
      %v2367 = vadd.f32 0.0, %v2366
      %v2368 = vpop.f32.mrf.mxu0
      %2369 = vmatprep.mubr.bf16.mxu0 0
      %2370 = vmatmul.mubr.bf16.gmra.mxu0 %v640
      %v2371 = vpop.f32.mrf.mxu0
      %v2372 = vadd.f32 0.0, %v2371
      %v2373 = vpop.f32.mrf.mxu0
      %v2374 = vpop.f32.mrf.mxu0
      %v2375 = vadd.f32 0.0, %v2374
      %v2376 = vpop.f32.mrf.mxu0
      %2377 = vmatprep.mubr.bf16.mxu0 0
      %2378 = vmatmul.mubr.bf16.gmra.mxu0 %v643
      %v2379 = vpop.f32.mrf.mxu0
      %v2380 = vadd.f32 0.0, %v2379
      %v2381 = vpop.f32.mrf.mxu0
      %v2382 = vpop.f32.mrf.mxu0
      %v2383 = vadd.f32 0.0, %v2382
      %v2384 = vpop.f32.mrf.mxu0
      %2385 = vmatprep.mubr.bf16.mxu0 0
      %2386 = vmatmul.mubr.bf16.gmra.mxu0 %v1613
      %v2387 = vpop.f32.mrf.mxu0
      %v2388 = vadd.f32 0.0, %v2387
      %v2389 = vpop.f32.mrf.mxu0
      %v2390 = vpop.f32.mrf.mxu0
      %v2391 = vadd.f32 0.0, %v2390
      %v2392 = vpop.f32.mrf.mxu0
      %2393 = vmatprep.mubr.bf16.mxu0 0
      %2394 = vmatmul.mubr.bf16.gmra.mxu0 %v2236
      %v2395 = vpop.f32.mrf.mxu0
      %v2396 = vadd.f32 0.0, %v2395
      %v2397 = vpop.f32.mrf.mxu0
      %v2398 = vpop.f32.mrf.mxu0
      %v2399 = vadd.f32 0.0, %v2398
      %v2400 = vpop.f32.mrf.mxu0
      %2401 = vdwg.mxu0
      %v2402 = vadd.f32 %v2190, %v2276
      %v2403 = vadd.f32 %v2191, %v2279
      %v2404 = vadd.f32 %v2192, %v2284
      %v2405 = vadd.f32 %v2193, %v2287
      %v2406 = vadd.f32 %v2194, %v2292
      %v2407 = vadd.f32 %v2195, %v2295
      %v2408 = vadd.f32 %v2196, %v2300
      %v2409 = vadd.f32 %v2197, %v2303
      %v2410 = vadd.f32 %v2198, %v2308
      %v2411 = vadd.f32 %v2199, %v2311
      %v2412 = vadd.f32 %v2200, %v2316
      %v2413 = vadd.f32 %v2201, %v2319
      %v2414 = vadd.f32 %v2202, %v2324
      %v2415 = vadd.f32 %v2203, %v2327
      %v2416 = vadd.f32 %v2204, %v2332
      %v2417 = vadd.f32 %v2205, %v2335
      %v2418 = vadd.f32 %v2206, %v2340
      %v2419 = vadd.f32 %v2207, %v2343
      %v2420 = vadd.f32 %v2208, %v2348
      %v2421 = vadd.f32 %v2209, %v2351
      %v2422 = vadd.f32 %v2210, %v2356
      %v2423 = vadd.f32 %v2211, %v2359
      %v2424 = vadd.f32 %v2212, %v2364
      %v2425 = vadd.f32 %v2213, %v2367
      %v2426 = vadd.f32 %v2214, %v2372
      %v2427 = vadd.f32 %v2215, %v2375
      %v2428 = vadd.f32 %v2216, %v2380
      %v2429 = vadd.f32 %v2217, %v2383
      %v2430 = vadd.f32 %v2218, %v2388
      %v2431 = vadd.f32 %v2219, %v2391
      %v2432 = vadd.f32 %v2220, %v2396
      %v2433 = vadd.f32 %v2221, %v2399
      %v2434 = vrot.slane %v397, 2
      %v2435 = vrot.slane %v398, 2
      %v2436 = vsel %vm1022, %v2434, %v2435
      %v2437 = vrot.slane %v399, 2
      %v2438 = vsel %vm1022, %v2435, %v2437
      %v2441 = vpack.c.bf16 %v2438, %v2436
      %s2442 = scalar_lea.vmem %s1, 16
      %v2443 = vld [vmem:[%s2442] sm:$0x3]
      %v2445 = vsel %vm596, %v2441, 0
      %v2448 = vsel %vm645, %v2443, 0
      %2450 = vmatprep.subr.bf16.mxu0 0
      %2451 = vmatpush1.bf16.msra.mxu0 0
      %2452 = vmatprep.subr.bf16.mxu0 0
      %2453 = vmatpush1.bf16.msra.mxu0 0
      %2454 = vmatprep.subr.bf16.mxu0 0
      %2455 = vmatpush1.bf16.msra.mxu0 0
      %2456 = vmatprep.subr.bf16.mxu0 0
      %2457 = vmatpush1.bf16.msra.mxu0 0
      %2458 = vmatprep.subr.bf16.mxu0 0
      %2459 = vmatpush1.bf16.msra.mxu0 0
      %2460 = vmatprep.subr.bf16.mxu0 0
      %2461 = vmatpush1.bf16.msra.mxu0 0
      %2462 = vmatprep.subr.bf16.mxu0 0
      %2463 = vmatpush1.bf16.msra.mxu0 0
      %2464 = vmatprep.subr.bf16.mxu0 0
      %2465 = vmatpush1.bf16.msra.mxu0 %v2448
      %2466 = vmatprep.subr.bf16.mxu0 0
      %2467 = vmatpush2.bf16.msra.mxu0 0
      %2468 = vmatprep.subr.bf16.mxu0 0
      %2469 = vmatpush2.bf16.msra.mxu0 0
      %2470 = vmatprep.subr.bf16.mxu0 0
      %2471 = vmatpush2.bf16.msra.mxu0 0
      %2472 = vmatprep.subr.bf16.mxu0 0
      %2473 = vmatpush2.bf16.msra.mxu0 0
      %2474 = vmatprep.subr.bf16.mxu0 0
      %2475 = vmatpush2.bf16.msra.mxu0 0
      %2476 = vmatprep.subr.bf16.mxu0 0
      %2477 = vmatpush2.bf16.msra.mxu0 0
      %2478 = vmatprep.subr.bf16.mxu0 0
      %2479 = vmatpush2.bf16.msra.mxu0 0
      %2480 = vmatprep.subr.bf16.mxu0 0
      %2481 = vmatpush2.bf16.msra.mxu0 0
      %2482 = vmatprep.mubr.bf16.mxu0 0
      %2483 = vmatmul.mubr.bf16.gmra.mxu0 %v1160
      %v2484 = vpop.f32.mrf.mxu0
      %v2485 = vadd.f32 0.0, %v2484
      %v2486 = vpop.f32.mrf.mxu0
      %v2487 = vpop.f32.mrf.mxu0
      %v2488 = vadd.f32 0.0, %v2487
      %v2489 = vpop.f32.mrf.mxu0
      %2490 = vmatprep.mubr.bf16.mxu0 0
      %2491 = vmatmul.mubr.bf16.gmra.mxu0 %v1163
      %v2492 = vpop.f32.mrf.mxu0
      %v2493 = vadd.f32 0.0, %v2492
      %v2494 = vpop.f32.mrf.mxu0
      %v2495 = vpop.f32.mrf.mxu0
      %v2496 = vadd.f32 0.0, %v2495
      %v2497 = vpop.f32.mrf.mxu0
      %2498 = vmatprep.mubr.bf16.mxu0 0
      %2499 = vmatmul.mubr.bf16.gmra.mxu0 %v1166
      %v2500 = vpop.f32.mrf.mxu0
      %v2501 = vadd.f32 0.0, %v2500
      %v2502 = vpop.f32.mrf.mxu0
      %v2503 = vpop.f32.mrf.mxu0
      %v2504 = vadd.f32 0.0, %v2503
      %v2505 = vpop.f32.mrf.mxu0
      %2506 = vmatprep.mubr.bf16.mxu0 0
      %2507 = vmatmul.mubr.bf16.gmra.mxu0 %v1169
      %v2508 = vpop.f32.mrf.mxu0
      %v2509 = vadd.f32 0.0, %v2508
      %v2510 = vpop.f32.mrf.mxu0
      %v2511 = vpop.f32.mrf.mxu0
      %v2512 = vadd.f32 0.0, %v2511
      %v2513 = vpop.f32.mrf.mxu0
      %2514 = vmatprep.mubr.bf16.mxu0 0
      %2515 = vmatmul.mubr.bf16.gmra.mxu0 %v1172
      %v2516 = vpop.f32.mrf.mxu0
      %v2517 = vadd.f32 0.0, %v2516
      %v2518 = vpop.f32.mrf.mxu0
      %v2519 = vpop.f32.mrf.mxu0
      %v2520 = vadd.f32 0.0, %v2519
      %v2521 = vpop.f32.mrf.mxu0
      %2522 = vmatprep.mubr.bf16.mxu0 0
      %2523 = vmatmul.mubr.bf16.gmra.mxu0 %v1175
      %v2524 = vpop.f32.mrf.mxu0
      %v2525 = vadd.f32 0.0, %v2524
      %v2526 = vpop.f32.mrf.mxu0
      %v2527 = vpop.f32.mrf.mxu0
      %v2528 = vadd.f32 0.0, %v2527
      %v2529 = vpop.f32.mrf.mxu0
      %2530 = vmatprep.mubr.bf16.mxu0 0
      %2531 = vmatmul.mubr.bf16.gmra.mxu0 %v1178
      %v2532 = vpop.f32.mrf.mxu0
      %v2533 = vadd.f32 0.0, %v2532
      %v2534 = vpop.f32.mrf.mxu0
      %v2535 = vpop.f32.mrf.mxu0
      %v2536 = vadd.f32 0.0, %v2535
      %v2537 = vpop.f32.mrf.mxu0
      %2538 = vmatprep.mubr.bf16.mxu0 0
      %2539 = vmatmul.mubr.bf16.gmra.mxu0 %v1181
      %v2540 = vpop.f32.mrf.mxu0
      %v2541 = vadd.f32 0.0, %v2540
      %v2542 = vpop.f32.mrf.mxu0
      %v2543 = vpop.f32.mrf.mxu0
      %v2544 = vadd.f32 0.0, %v2543
      %v2545 = vpop.f32.mrf.mxu0
      %2546 = vmatprep.mubr.bf16.mxu0 0
      %2547 = vmatmul.mubr.bf16.gmra.mxu0 %v1184
      %v2548 = vpop.f32.mrf.mxu0
      %v2549 = vadd.f32 0.0, %v2548
      %v2550 = vpop.f32.mrf.mxu0
      %v2551 = vpop.f32.mrf.mxu0
      %v2552 = vadd.f32 0.0, %v2551
      %v2553 = vpop.f32.mrf.mxu0
      %2554 = vmatprep.mubr.bf16.mxu0 0
      %2555 = vmatmul.mubr.bf16.gmra.mxu0 %v1187
      %v2556 = vpop.f32.mrf.mxu0
      %v2557 = vadd.f32 0.0, %v2556
      %v2558 = vpop.f32.mrf.mxu0
      %v2559 = vpop.f32.mrf.mxu0
      %v2560 = vadd.f32 0.0, %v2559
      %v2561 = vpop.f32.mrf.mxu0
      %2562 = vmatprep.mubr.bf16.mxu0 0
      %2563 = vmatmul.mubr.bf16.gmra.mxu0 %v1190
      %v2564 = vpop.f32.mrf.mxu0
      %v2565 = vadd.f32 0.0, %v2564
      %v2566 = vpop.f32.mrf.mxu0
      %v2567 = vpop.f32.mrf.mxu0
      %v2568 = vadd.f32 0.0, %v2567
      %v2569 = vpop.f32.mrf.mxu0
      %2570 = vmatprep.mubr.bf16.mxu0 0
      %2571 = vmatmul.mubr.bf16.gmra.mxu0 %v1193
      %v2572 = vpop.f32.mrf.mxu0
      %v2573 = vadd.f32 0.0, %v2572
      %v2574 = vpop.f32.mrf.mxu0
      %v2575 = vpop.f32.mrf.mxu0
      %v2576 = vadd.f32 0.0, %v2575
      %v2577 = vpop.f32.mrf.mxu0
      %2578 = vmatprep.mubr.bf16.mxu0 0
      %2579 = vmatmul.mubr.bf16.gmra.mxu0 %v1196
      %v2580 = vpop.f32.mrf.mxu0
      %v2581 = vadd.f32 0.0, %v2580
      %v2582 = vpop.f32.mrf.mxu0
      %v2583 = vpop.f32.mrf.mxu0
      %v2584 = vadd.f32 0.0, %v2583
      %v2585 = vpop.f32.mrf.mxu0
      %2586 = vmatprep.mubr.bf16.mxu0 0
      %2587 = vmatmul.mubr.bf16.gmra.mxu0 %v1199
      %v2588 = vpop.f32.mrf.mxu0
      %v2589 = vadd.f32 0.0, %v2588
      %v2590 = vpop.f32.mrf.mxu0
      %v2591 = vpop.f32.mrf.mxu0
      %v2592 = vadd.f32 0.0, %v2591
      %v2593 = vpop.f32.mrf.mxu0
      %2594 = vmatprep.mubr.bf16.mxu0 0
      %2595 = vmatmul.mubr.bf16.gmra.mxu0 %v1822
      %v2596 = vpop.f32.mrf.mxu0
      %v2597 = vadd.f32 0.0, %v2596
      %v2598 = vpop.f32.mrf.mxu0
      %v2599 = vpop.f32.mrf.mxu0
      %v2600 = vadd.f32 0.0, %v2599
      %v2601 = vpop.f32.mrf.mxu0
      %2602 = vmatprep.mubr.bf16.mxu0 0
      %2603 = vmatmul.mubr.bf16.gmra.mxu0 %v2445
      %v2604 = vpop.f32.mrf.mxu0
      %v2605 = vadd.f32 0.0, %v2604
      %v2606 = vpop.f32.mrf.mxu0
      %v2607 = vpop.f32.mrf.mxu0
      %v2608 = vadd.f32 0.0, %v2607
      %v2609 = vpop.f32.mrf.mxu0
      %2610 = vdwg.mxu0
      %v2611 = vadd.f32 %v2402, %v2485
      %v2612 = vadd.f32 %v2403, %v2488
      %v2613 = vadd.f32 %v2404, %v2493
      %v2614 = vadd.f32 %v2405, %v2496
      %v2615 = vadd.f32 %v2406, %v2501
      %v2616 = vadd.f32 %v2407, %v2504
      %v2617 = vadd.f32 %v2408, %v2509
      %v2618 = vadd.f32 %v2409, %v2512
      %v2619 = vadd.f32 %v2410, %v2517
      %v2620 = vadd.f32 %v2411, %v2520
      %v2621 = vadd.f32 %v2412, %v2525
      %v2622 = vadd.f32 %v2413, %v2528
      %v2623 = vadd.f32 %v2414, %v2533
      %v2624 = vadd.f32 %v2415, %v2536
      %v2625 = vadd.f32 %v2416, %v2541
      %v2626 = vadd.f32 %v2417, %v2544
      %v2627 = vadd.f32 %v2418, %v2549
      %v2628 = vadd.f32 %v2419, %v2552
      %v2629 = vadd.f32 %v2420, %v2557
      %v2630 = vadd.f32 %v2421, %v2560
      %v2631 = vadd.f32 %v2422, %v2565
      %v2632 = vadd.f32 %v2423, %v2568
      %v2633 = vadd.f32 %v2424, %v2573
      %v2634 = vadd.f32 %v2425, %v2576
      %v2635 = vadd.f32 %v2426, %v2581
      %v2636 = vadd.f32 %v2427, %v2584
      %v2637 = vadd.f32 %v2428, %v2589
      %v2638 = vadd.f32 %v2429, %v2592
      %v2639 = vadd.f32 %v2430, %v2597
      %v2640 = vadd.f32 %v2431, %v2600
      %v2641 = vadd.f32 %v2432, %v2605
      %v2642 = vadd.f32 %v2433, %v2608
      %2643 = vst [vmem:[%s282] sm:$0xff] %v2611
      %2644 = vst [vmem:[%s282 + $0x8] sm:$0xff] %v2612
      %2645 = vst [vmem:[%s282 + $0x10] sm:$0xff] %v2613
      %2646 = vst [vmem:[%s282 + $0x18] sm:$0xff] %v2614
      %2647 = vst [vmem:[%s282 + $0x20] sm:$0xff] %v2615
      %2648 = vst [vmem:[%s282 + $0x28] sm:$0xff] %v2616
      %2649 = vst [vmem:[%s282 + $0x30] sm:$0xff] %v2617
      %2650 = vst [vmem:[%s282 + $0x38] sm:$0xff] %v2618
      %2651 = vst [vmem:[%s282 + $0x40] sm:$0xff] %v2619
      %2652 = vst [vmem:[%s282 + $0x48] sm:$0xff] %v2620
      %2653 = vst [vmem:[%s282 + $0x50] sm:$0xff] %v2621
      %2654 = vst [vmem:[%s282 + $0x58] sm:$0xff] %v2622
      %2655 = vst [vmem:[%s282 + $0x60] sm:$0xff] %v2623
      %2656 = vst [vmem:[%s282 + $0x68] sm:$0xff] %v2624
      %2657 = vst [vmem:[%s282 + $0x70] sm:$0xff] %v2625
      %2658 = vst [vmem:[%s282 + $0x78] sm:$0xff] %v2626
      %2659 = vst [vmem:[%s282 + $0x80] sm:$0xff] %v2627
      %2660 = vst [vmem:[%s282 + $0x88] sm:$0xff] %v2628
      %2661 = vst [vmem:[%s282 + $0x90] sm:$0xff] %v2629
      %2662 = vst [vmem:[%s282 + $0x98] sm:$0xff] %v2630
      %2663 = vst [vmem:[%s282 + $0xa0] sm:$0xff] %v2631
      %2664 = vst [vmem:[%s282 + $0xa8] sm:$0xff] %v2632
      %2665 = vst [vmem:[%s282 + $0xb0] sm:$0xff] %v2633
      %2666 = vst [vmem:[%s282 + $0xb8] sm:$0xff] %v2634
      %2667 = vst [vmem:[%s282 + $0xc0] sm:$0xff] %v2635
      %2668 = vst [vmem:[%s282 + $0xc8] sm:$0xff] %v2636
      %2669 = vst [vmem:[%s282 + $0xd0] sm:$0xff] %v2637
      %2670 = vst [vmem:[%s282 + $0xd8] sm:$0xff] %v2638
      %2671 = vst [vmem:[%s282 + $0xe0] sm:$0xff] %v2639
      %2672 = vst [vmem:[%s282 + $0xe8] sm:$0xff] %v2640
      %2673 = vst [vmem:[%s282 + $0xf0] sm:$0xff] %v2641
      %2674 = vst [vmem:[%s282 + $0xf8] sm:$0xff] %v2642
      %v2675 = vld [vmem:[%s5] sm:$0x1]
      %v2676 = vadd.f32 %v2611, %v2612
      %v2677 = vadd.f32 %v2676, %v2613
      %v2678 = vadd.f32 %v2677, %v2614
      %v2679 = vadd.f32 %v2678, %v2615
      %v2680 = vadd.f32 %v2679, %v2616
      %v2681 = vadd.f32 %v2680, %v2617
      %v2682 = vadd.f32 %v2681, %v2618
      %v2683 = vadd.f32 %v2682, %v2619
      %v2684 = vadd.f32 %v2683, %v2620
      %v2685 = vadd.f32 %v2684, %v2621
      %v2686 = vadd.f32 %v2685, %v2622
      %v2687 = vadd.f32 %v2686, %v2623
      %v2688 = vadd.f32 %v2687, %v2624
      %v2689 = vadd.f32 %v2688, %v2625
      %v2690 = vadd.f32 %v2689, %v2626
      %v2691 = vadd.f32 %v2690, %v2627
      %v2692 = vadd.f32 %v2691, %v2628
      %v2693 = vadd.f32 %v2692, %v2629
      %v2694 = vadd.f32 %v2693, %v2630
      %v2695 = vadd.f32 %v2694, %v2631
      %v2696 = vadd.f32 %v2695, %v2632
      %v2697 = vadd.f32 %v2696, %v2633
      %v2698 = vadd.f32 %v2697, %v2634
      %v2699 = vadd.f32 %v2698, %v2635
      %v2700 = vadd.f32 %v2699, %v2636
      %v2701 = vadd.f32 %v2700, %v2637
      %v2702 = vadd.f32 %v2701, %v2638
      %v2703 = vadd.f32 %v2702, %v2639
      %v2704 = vadd.f32 %v2703, %v2640
      %v2705 = vadd.f32 %v2704, %v2641
      %v2706 = vadd.f32 %v2705, %v2642
      %v2707 = vrot.slane %v2706, 4
      %v2708 = vadd.f32 %v2706, %v2707
      %v2709 = vrot.slane %v2708, 2
      %v2710 = vadd.f32 %v2708, %v2709
      %v2711 = vrot.slane %v2710, 1
      %v2712 = vadd.f32 %v2710, %v2711
      %v2713 = vadd.f32 %v2675, %v2712
      %2714 = vst [vmem:[%s5] sm:$0x1] %v2713
      %v2715 = vld [vmem:[%s6] sm:$0x1]
      %v2716 = vmul.f32 %v2611, %v2611
      %v2717 = vmul.f32 %v2612, %v2612
      %v2718 = vmul.f32 %v2613, %v2613
      %v2719 = vmul.f32 %v2614, %v2614
      %v2720 = vmul.f32 %v2615, %v2615
      %v2721 = vmul.f32 %v2616, %v2616
      %v2722 = vmul.f32 %v2617, %v2617
      %v2723 = vmul.f32 %v2618, %v2618
      %v2724 = vmul.f32 %v2619, %v2619
      %v2725 = vmul.f32 %v2620, %v2620
      %v2726 = vmul.f32 %v2621, %v2621
      %v2727 = vmul.f32 %v2622, %v2622
      %v2728 = vmul.f32 %v2623, %v2623
      %v2729 = vmul.f32 %v2624, %v2624
      %v2730 = vmul.f32 %v2625, %v2625
      %v2731 = vmul.f32 %v2626, %v2626
      %v2732 = vmul.f32 %v2627, %v2627
      %v2733 = vmul.f32 %v2628, %v2628
      %v2734 = vmul.f32 %v2629, %v2629
      %v2735 = vmul.f32 %v2630, %v2630
      %v2736 = vmul.f32 %v2631, %v2631
      %v2737 = vmul.f32 %v2632, %v2632
      %v2738 = vmul.f32 %v2633, %v2633
      %v2739 = vmul.f32 %v2634, %v2634
      %v2740 = vmul.f32 %v2635, %v2635
      %v2741 = vmul.f32 %v2636, %v2636
      %v2742 = vmul.f32 %v2637, %v2637
      %v2743 = vmul.f32 %v2638, %v2638
      %v2744 = vmul.f32 %v2639, %v2639
      %v2745 = vmul.f32 %v2640, %v2640
      %v2746 = vmul.f32 %v2641, %v2641
      %v2747 = vmul.f32 %v2642, %v2642
      %v2748 = vadd.f32 %v2716, %v2717
      %v2749 = vadd.f32 %v2748, %v2718
      %v2750 = vadd.f32 %v2749, %v2719
      %v2751 = vadd.f32 %v2750, %v2720
      %v2752 = vadd.f32 %v2751, %v2721
      %v2753 = vadd.f32 %v2752, %v2722
      %v2754 = vadd.f32 %v2753, %v2723
      %v2755 = vadd.f32 %v2754, %v2724
      %v2756 = vadd.f32 %v2755, %v2725
      %v2757 = vadd.f32 %v2756, %v2726
      %v2758 = vadd.f32 %v2757, %v2727
      %v2759 = vadd.f32 %v2758, %v2728
      %v2760 = vadd.f32 %v2759, %v2729
      %v2761 = vadd.f32 %v2760, %v2730
      %v2762 = vadd.f32 %v2761, %v2731
      %v2763 = vadd.f32 %v2762, %v2732
      %v2764 = vadd.f32 %v2763, %v2733
      %v2765 = vadd.f32 %v2764, %v2734
      %v2766 = vadd.f32 %v2765, %v2735
      %v2767 = vadd.f32 %v2766, %v2736
      %v2768 = vadd.f32 %v2767, %v2737
      %v2769 = vadd.f32 %v2768, %v2738
      %v2770 = vadd.f32 %v2769, %v2739
      %v2771 = vadd.f32 %v2770, %v2740
      %v2772 = vadd.f32 %v2771, %v2741
      %v2773 = vadd.f32 %v2772, %v2742
      %v2774 = vadd.f32 %v2773, %v2743
      %v2775 = vadd.f32 %v2774, %v2744
      %v2776 = vadd.f32 %v2775, %v2745
      %v2777 = vadd.f32 %v2776, %v2746
      %v2778 = vadd.f32 %v2777, %v2747
      %v2779 = vrot.slane %v2778, 4
      %v2780 = vadd.f32 %v2778, %v2779
      %v2781 = vrot.slane %v2780, 2
      %v2782 = vadd.f32 %v2780, %v2781
      %v2783 = vrot.slane %v2782, 1
      %v2784 = vadd.f32 %v2782, %v2783
      %v2785 = vadd.f32 %v2715, %v2784
      %2786 = vst [vmem:[%s6] sm:$0x1] %v2785
      %p2787 = scmp.lt.s32.totalorder %s22, 1
      %s2788 = scalar_select %p2787, %s22, 1
      %p2789 = scmp.lt.s32.totalorder %s23, 0
      %s2790 = scalar_select %p2789, %s23, 0
      %s2791 = smul.addr %s2790, 32
      %s2792 = smul.addr %s2788, 32
      %s2793 = sadd.s32 %s2791, %s2792
      %s2794 = smul.addr %s2793, 8
      %s2795 = scalar_lea.vmem %s4, %s2794
      // Predicated region
      $region41: #{conv_block_forward.3} parent=35 // pred_check
        %p2796 = pneg %p141
      $region42: #{conv_block_forward.3} parent=35 // pred_check_branch
        %2798 = sbr.rel (%p2796) target = $region44
      $region43: #{conv_block_forward.3} parent=35 // pred_region
        _
      $region44: #{conv_block_forward.3} parent=35 // pred_fallthru
        _
      // Predicated region
      $region45: #{conv_block_forward.3} parent=35 // pred_check
        %p2799 = pneg %p162
      $region46: #{conv_block_forward.3} parent=35 // pred_check_branch
        %2801 = sbr.rel (%p2799) target = $region48
      $region47: #{conv_block_forward.3} parent=35 // pred_region
        _
      $region48: #{conv_block_forward.3} parent=35 // pred_fallthru
        _
      // Predicated region
      $region49: #{conv_block_forward.3} parent=35 // pred_check
        %p2802 = pneg %p183
      $region50: #{conv_block_forward.3} parent=35 // pred_check_branch
        %2804 = sbr.rel (%p2802) target = $region52
      $region51: #{conv_block_forward.3} parent=35 // pred_region
        _
      $region52: #{conv_block_forward.3} parent=35 // pred_fallthru
        _
      // Predicated region
      $region53: #{conv_block_forward.3} parent=35 // pred_check
        %p2805 = pneg %p162
      $region54: #{conv_block_forward.3} parent=35 // pred_check_branch
        %2807 = sbr.rel (%p2805) target = $region56
      $region55: #{conv_block_forward.3} parent=35 // pred_region
        _
      $region56: #{conv_block_forward.3} parent=35 // pred_fallthru
        _
      // Predicated region
      $region57: #{conv_block_forward.3} parent=35 // pred_check
        %p2808 = pneg %p183
      $region58: #{conv_block_forward.3} parent=35 // pred_check_branch
        %2810 = sbr.rel (%p2808) target = $region60
      $region59: #{conv_block_forward.3} parent=35 // pred_region
        _
      $region60: #{conv_block_forward.3} parent=35 // pred_fallthru
        _
    $region36: #{conv_block_forward.3} parent=5 // pred_fallthru
      _
    %p2811 = scmp.le.s32.totalorder 2, %s13
    // Predicated region
    $region61: #{conv_block_forward.3} parent=5 // pred_check
      %p2812 = pneg %p2811
    $region62: #{conv_block_forward.3} parent=5 // pred_check_branch
      %2814 = sbr.rel (%p2812) target = $region64
    $region63: #{conv_block_forward.3} parent=5 // pred_region
      %s2815 = ssub.s32 %s13, 2
      // Predicated region
      $region65: #{conv_block_forward.3} parent=63 // pred_check
        %p2816 = pneg %p147
      $region66: #{conv_block_forward.3} parent=63 // pred_check_branch
        %2818 = sbr.rel (%p2816) target = $region68
      $region67: #{conv_block_forward.3} parent=63 // pred_region
        %p2819 = scmp.lt.s32.totalorder %s24, 1
        %s2820 = scalar_select %p2819, %s24, 1
        %p2821 = scmp.lt.s32.totalorder %s25, 0
        %s2822 = scalar_select %p2821, %s25, 0
        %s2823 = smul.addr %s2822, 32
        %s2824 = smul.addr %s2820, 32
        %s2825 = sadd.s32 %s2823, %s2824
        %s2826 = smul.addr %s2825, 8
        %s2827 = scalar_lea.vmem %s4, %s2826
      $region68: #{conv_block_forward.3} parent=63 // pred_fallthru
        _
    $region64: #{conv_block_forward.3} parent=5 // pred_fallthru
      _
  $region6: #{conv_block_forward.3} parent=0 // loop_footer
    %s17 = sadd.s32 1, %s13
  $region7: #{conv_block_forward.3} parent=0 // loop_footer_branch
    %12 = sbr.rel target = $region3
  $region8: #{conv_block_forward.3} parent=0 // loop_exit
    _

// kernel: conv_block_forward.4
$region0: #{conv_block_forward.4}
  #allocation0 [shape = 'u32[]', space=smem, size = 0x4, offset = 0x4, fixed_abs, tag = 'smem constant byte address 0x4 - core index']
  #allocation1 [shape = 'u32[144,128]{1,0:T(1,128)}', space=vmem, size = 0x12000, scoped, tag = 'internal scratch']
  %s0 = inlined_call_operand.vmem [shape: f32[2,1,18,18,128], index: 0, kind: input, shape index: {}]
  %s1 = inlined_call_operand.vmem [shape: bf16[9,128,128], index: 1, kind: input, shape index: {}]
  %s2 = inlined_call_operand.vmem [shape: f32[1,128], index: 2, kind: input, shape index: {}]
  %s3 = inlined_call_operand.vmem [shape: f32[1,128], index: 3, kind: input, shape index: {}]
  %s4 = inlined_call_operand.vmem [shape: f32[2,1,16,16,128], index: 4, kind: output, shape index: {0}]
  %s5 = inlined_call_operand.vmem [shape: f32[1,128], index: 5, kind: output, shape index: {1}]
  %s6 = inlined_call_operand.vmem [shape: f32[1,128], index: 6, kind: output, shape index: {2}]
  %7 = xla_tuple %s4, %s5, %s6
  %s8 = sld [smem:[#allocation0]]
  $region69: #{conv_block_forward.4} parent=0
    _
  %s10 = ssub.s32 1, %s8
  %s11 = scalar_select 0, %s10, %s8
  loop: start=0, step=1, limit=4
  $region2: #{conv_block_forward.4} parent=0 // loop_pre_header
    _
  $region3: #{conv_block_forward.4} parent=0 // loop_header
    %s13 = sphi 0, %s17
    %p14 = scmp.ge.s32.totalorder %s13, 4
    %s20 = sphi 0, %s32
    %s21 = sphi 0, %s28
    %s22 = sphi 0, %s20
    %s23 = sphi 0, %s21
    %s24 = sphi 0, %s22
    %s25 = sphi 0, %s23
    %s37 = sphi 0, %s39
    %s40 = sphi 0, %s37
    %s41 = sphi 0, %s40
    %s57 = sphi 0, %s41
    %s61 = sphi 0, %s61
    %s63 = sphi 0, %s61
    %s64 = sphi 0, %s63
    %s78 = sphi 0, %s64
    %s82 = sphi 0, %s82
    %s84 = sphi 0, %s82
    %s85 = sphi 0, %s84
    %s99 = sphi 0, %s85
    %s103 = sphi 0, %s103
    %s105 = sphi 0, %s103
    %s106 = sphi 0, %s105
    %s120 = sphi 0, %s106
    %s128 = sphi 0, %s130
    %s131 = sphi 0, %s128
    %s132 = sphi 0, %s131
    %s148 = sphi 0, %s132
    %s152 = sphi 0, %s152
    %s154 = sphi 0, %s152
    %s155 = sphi 0, %s154
    %s169 = sphi 0, %s155
    %s173 = sphi 0, %s173
    %s175 = sphi 0, %s173
    %s176 = sphi 0, %s175
    %s190 = sphi 0, %s176
  $region4: #{conv_block_forward.4} parent=0 // loop_header_branch
    %16 = sbr.rel (%p14) target = $region8
  $region5: #{conv_block_forward.4} parent=0 // loop_body
    %s18 = ssub.s32 %s13, 1
    %s19 = ssub.s32 %s13, 2
    %s26 = sadd.s32 1, %s21
    %p27 = scmp.ge.s32.totalorder %s26, 1
    %s28 = scalar_select %p27, 0, %s26
    %s29 = sadd.s32 1, %s20
    %s30 = scalar_select %p27, %s29, %s20
    %p31 = scmp.ge.s32.totalorder %s30, 2
    %s32 = scalar_select %p31, 0, %s30
    %s33 = ssub.s32 %s20, %s32
    %s34 = ssub.s32 %s21, %s28
    %s35 = sor.u32 %s33, %s34
    %p36 = scmp.eq.s32.totalorder %s35, 0
    %s38 = sadd.s32 %s37, 1
    %s39 = scalar_select %p36, %s37, %s38
    %p42 = pneg %p36
    %p43 = scmp.eq.s32.totalorder %s13, 1
    %p44 = por %p42, %p43
    %p45 = scmp.ne.s32.totalorder %s37, %s40
    %p46 = scmp.eq.s32.totalorder %s13, 0
    %p47 = por %p45, %p46
    %p48 = scmp.ne.s32.totalorder %s37, %s40
    %p49 = scmp.eq.s32.totalorder %s18, 1
    %p50 = por %p48, %p49
    %p51 = scmp.ne.s32.totalorder %s40, %s41
    %p52 = scmp.eq.s32.totalorder %s18, 0
    %p53 = por %p51, %p52
    %p54 = scmp.ne.s32.totalorder %s40, %s41
    %p55 = scmp.eq.s32.totalorder %s19, 1
    %p56 = por %p54, %p55
    %p58 = scmp.ne.s32.totalorder %s41, %s57
    %p59 = scmp.eq.s32.totalorder %s19, 0
    %p60 = por %p58, %p59
    %s62 = sadd.s32 %s61, 1
    %p65 = scmp.eq.s32.totalorder %s13, 1
    %p66 = scmp.ne.s32.totalorder %s61, %s63
    %p67 = scmp.eq.s32.totalorder %s13, 0
    %p68 = por %p66, %p67
    %p69 = scmp.ne.s32.totalorder %s61, %s63
    %p70 = scmp.eq.s32.totalorder %s18, 1
    %p71 = por %p69, %p70
    %p72 = scmp.ne.s32.totalorder %s63, %s64
    %p73 = scmp.eq.s32.totalorder %s18, 0
    %p74 = por %p72, %p73
    %p75 = scmp.ne.s32.totalorder %s63, %s64
    %p76 = scmp.eq.s32.totalorder %s19, 1
    %p77 = por %p75, %p76
    %p79 = scmp.ne.s32.totalorder %s64, %s78
    %p80 = scmp.eq.s32.totalorder %s19, 0
    %p81 = por %p79, %p80
    %s83 = sadd.s32 %s82, 1
    %p86 = scmp.eq.s32.totalorder %s13, 1
    %p87 = scmp.ne.s32.totalorder %s82, %s84
    %p88 = scmp.eq.s32.totalorder %s13, 0
    %p89 = por %p87, %p88
    %p90 = scmp.ne.s32.totalorder %s82, %s84
    %p91 = scmp.eq.s32.totalorder %s18, 1
    %p92 = por %p90, %p91
    %p93 = scmp.ne.s32.totalorder %s84, %s85
    %p94 = scmp.eq.s32.totalorder %s18, 0
    %p95 = por %p93, %p94
    %p96 = scmp.ne.s32.totalorder %s84, %s85
    %p97 = scmp.eq.s32.totalorder %s19, 1
    %p98 = por %p96, %p97
    %p100 = scmp.ne.s32.totalorder %s85, %s99
    %p101 = scmp.eq.s32.totalorder %s19, 0
    %p102 = por %p100, %p101
    %s104 = sadd.s32 %s103, 1
    %p107 = scmp.eq.s32.totalorder %s13, 1
    %p108 = scmp.ne.s32.totalorder %s103, %s105
    %p109 = scmp.eq.s32.totalorder %s13, 0
    %p110 = por %p108, %p109
    %p111 = scmp.ne.s32.totalorder %s103, %s105
    %p112 = scmp.eq.s32.totalorder %s18, 1
    %p113 = por %p111, %p112
    %p114 = scmp.ne.s32.totalorder %s105, %s106
    %p115 = scmp.eq.s32.totalorder %s18, 0
    %p116 = por %p114, %p115
    %p117 = scmp.ne.s32.totalorder %s105, %s106
    %p118 = scmp.eq.s32.totalorder %s19, 1
    %p119 = por %p117, %p118
    %p121 = scmp.ne.s32.totalorder %s106, %s120
    %p122 = scmp.eq.s32.totalorder %s19, 0
    %p123 = por %p121, %p122
    %s124 = ssub.s32 %s20, %s32
    %s125 = ssub.s32 %s21, %s28
    %s126 = sor.u32 %s124, %s125
    %p127 = scmp.eq.s32.totalorder %s126, 0
    %s129 = sadd.s32 %s128, 1
    %s130 = scalar_select %p127, %s128, %s129
    %p133 = pneg %p127
    %p134 = scmp.eq.s32.totalorder %s13, 1
    %p135 = por %p133, %p134
    %p136 = scmp.ne.s32.totalorder %s128, %s131
    %p137 = scmp.eq.s32.totalorder %s13, 0
    %p138 = por %p136, %p137
    %p139 = scmp.ne.s32.totalorder %s128, %s131
    %p140 = scmp.eq.s32.totalorder %s18, 1
    %p141 = por %p139, %p140
    %p142 = scmp.ne.s32.totalorder %s131, %s132
    %p143 = scmp.eq.s32.totalorder %s18, 0
    %p144 = por %p142, %p143
    %p145 = scmp.ne.s32.totalorder %s131, %s132
    %p146 = scmp.eq.s32.totalorder %s19, 1
    %p147 = por %p145, %p146
    %p149 = scmp.ne.s32.totalorder %s132, %s148
    %p150 = scmp.eq.s32.totalorder %s19, 0
    %p151 = por %p149, %p150
    %s153 = sadd.s32 %s152, 1
    %p156 = scmp.eq.s32.totalorder %s13, 1
    %p157 = scmp.ne.s32.totalorder %s152, %s154
    %p158 = scmp.eq.s32.totalorder %s13, 0
    %p159 = por %p157, %p158
    %p160 = scmp.ne.s32.totalorder %s152, %s154
    %p161 = scmp.eq.s32.totalorder %s18, 1
    %p162 = por %p160, %p161
    %p163 = scmp.ne.s32.totalorder %s154, %s155
    %p164 = scmp.eq.s32.totalorder %s18, 0
    %p165 = por %p163, %p164
    %p166 = scmp.ne.s32.totalorder %s154, %s155
    %p167 = scmp.eq.s32.totalorder %s19, 1
    %p168 = por %p166, %p167
    %p170 = scmp.ne.s32.totalorder %s155, %s169
    %p171 = scmp.eq.s32.totalorder %s19, 0
    %p172 = por %p170, %p171
    %s174 = sadd.s32 %s173, 1
    %p177 = scmp.eq.s32.totalorder %s13, 1
    %p178 = scmp.ne.s32.totalorder %s173, %s175
    %p179 = scmp.eq.s32.totalorder %s13, 0
    %p180 = por %p178, %p179
    %p181 = scmp.ne.s32.totalorder %s173, %s175
    %p182 = scmp.eq.s32.totalorder %s18, 1
    %p183 = por %p181, %p182
    %p184 = scmp.ne.s32.totalorder %s175, %s176
    %p185 = scmp.eq.s32.totalorder %s18, 0
    %p186 = por %p184, %p185
    %p187 = scmp.ne.s32.totalorder %s175, %s176
    %p188 = scmp.eq.s32.totalorder %s19, 1
    %p189 = por %p187, %p188
    %p191 = scmp.ne.s32.totalorder %s176, %s190
    %p192 = scmp.eq.s32.totalorder %s19, 0
    %p193 = por %p191, %p192
    %p194 = scmp.le.s32.totalorder 1, %s13
    %p195 = scmp.lt.s32.totalorder %s13, 3
    %p196 = pnand %p194, %p195
    %p197 = pneg %p196
    // Predicated region
    $region9: #{conv_block_forward.4} parent=5 // pred_check
      _
    $region10: #{conv_block_forward.4} parent=5 // pred_check_branch
      %199 = sbr.rel (%p196) target = $region12
    $region11: #{conv_block_forward.4} parent=5 // pred_region
      %s200 = ssub.s32 %s13, 1
      // Predicated region
      $region13: #{conv_block_forward.4} parent=11 // pred_check
        %p201 = pneg %p74
      $region14: #{conv_block_forward.4} parent=11 // pred_check_branch
        %203 = sbr.rel (%p201) target = $region16
      $region15: #{conv_block_forward.4} parent=11 // pred_region
        _
      $region16: #{conv_block_forward.4} parent=11 // pred_fallthru
        _
      // Predicated region
      $region17: #{conv_block_forward.4} parent=11 // pred_check
        %p204 = pneg %p95
      $region18: #{conv_block_forward.4} parent=11 // pred_check_branch
        %206 = sbr.rel (%p204) target = $region20
      $region19: #{conv_block_forward.4} parent=11 // pred_region
        _
      $region20: #{conv_block_forward.4} parent=11 // pred_fallthru
        _
      // Predicated region
      $region21: #{conv_block_forward.4} parent=11 // pred_check
        %p207 = pneg %p116
      $region22: #{conv_block_forward.4} parent=11 // pred_check_branch
        %209 = sbr.rel (%p207) target = $region24
      $region23: #{conv_block_forward.4} parent=11 // pred_region
        _
      $region24: #{conv_block_forward.4} parent=11 // pred_fallthru
        _
    $region12: #{conv_block_forward.4} parent=5 // pred_fallthru
      _
    %p210 = scmp.lt.s32.totalorder %s13, 2
    // Predicated region
    $region25: #{conv_block_forward.4} parent=5 // pred_check
      %p211 = pneg %p210
    $region26: #{conv_block_forward.4} parent=5 // pred_check_branch
      %213 = sbr.rel (%p211) target = $region28
    $region27: #{conv_block_forward.4} parent=5 // pred_region
      // Predicated region
      $region29: #{conv_block_forward.4} parent=27 // pred_check
        %p214 = pneg %p47
      $region30: #{conv_block_forward.4} parent=27 // pred_check_branch
        %216 = sbr.rel (%p214) target = $region32
      $region31: #{conv_block_forward.4} parent=27 // pred_region
        %p217 = scmp.lt.s32.totalorder %s20, 1
        %s218 = scalar_select %p217, %s20, 1
        %p219 = scmp.lt.s32.totalorder %s21, 0
        %s220 = scalar_select %p219, %s21, 0
        %s221 = smul.addr %s220, 54
        %s222 = smul.addr %s218, 54
        %s223 = sadd.s32 %s221, %s222
        %s224 = smul.addr %s223, 8
        %s225 = scalar_lea.vmem %s0, %s224
      $region32: #{conv_block_forward.4} parent=27 // pred_fallthru
        _
    $region28: #{conv_block_forward.4} parent=5 // pred_fallthru
      _
    %p226 = scmp.le.s32.totalorder 1, %s13
    %p227 = scmp.lt.s32.totalorder %s13, 3
    %p228 = pnand %p226, %p227
    %p229 = pneg %p228
    // Predicated region
    $region33: #{conv_block_forward.4} parent=5 // pred_check
      _
    $region34: #{conv_block_forward.4} parent=5 // pred_check_branch
      %231 = sbr.rel (%p228) target = $region36
    $region35: #{conv_block_forward.4} parent=5 // pred_region
      %s232 = ssub.s32 %s13, 1
      %p233 = scmp.lt.s32.totalorder %s22, 1
      %s234 = scalar_select %p233, %s22, 1
      %p235 = scmp.lt.s32.totalorder %s23, 0
      %s236 = scalar_select %p235, %s23, 0
      %s237 = smul.addr %s236, 54
      %s238 = smul.addr %s234, 54
      %s239 = sadd.s32 %s237, %s238
      %s240 = smul.addr %s239, 8
      %s241 = scalar_lea.vmem %s0, %s240
      %p242 = pneg %p53
      %p243 = pneg %p50
      %p244 = pneg %p74
      %p245 = pneg %p71
      %p246 = pneg %p95
      %p247 = pneg %p92
      %p248 = pneg %p116
      %p249 = pneg %p113
      %p250 = pneg %p144
      %p251 = pneg %p141
      %p252 = scmp.lt.s32.totalorder %s22, 1
      %s253 = scalar_select %p252, %s22, 1
      %p254 = scmp.lt.s32.totalorder %s23, 0
      %s255 = scalar_select %p254, %s23, 0
      %s256 = smul.addr %s255, 32
      %s257 = smul.addr %s253, 32
      %s258 = sadd.s32 %s256, %s257
      %s259 = smul.addr %s258, 8
      %s260 = scalar_lea.vmem %s4, %s259
      %p261 = pneg %p165
      %p262 = pneg %p162
      %p263 = pneg %p186
      %p264 = pneg %p183
      %p265 = scmp.lt.s32.totalorder %s22, 1
      %s266 = scalar_select %p265, %s22, 1
      %p267 = scmp.lt.s32.totalorder %s23, 0
      %s268 = scalar_select %p267, %s23, 0
      %s269 = smul.addr %s268, 54
      %s270 = smul.addr %s266, 54
      %s271 = sadd.s32 %s269, %s270
      %s272 = smul.addr %s271, 8
      %s273 = scalar_lea.vmem %s0, %s272
      %p274 = scmp.lt.s32.totalorder %s22, 1
      %s275 = scalar_select %p274, %s22, 1
      %p276 = scmp.lt.s32.totalorder %s23, 0
      %s277 = scalar_select %p276, %s23, 0
      %s278 = smul.addr %s277, 32
      %s279 = smul.addr %s275, 32
      %s280 = sadd.s32 %s278, %s279
      %s281 = smul.addr %s280, 8
      %s282 = scalar_lea.vmem %s4, %s281
      %p284 = scmp.eq.s32.totalorder %s22, 0
      %p285 = scmp.eq.s32.totalorder %s23, 0
      %p286 = pnand %p284, %p285
      %p287 = pneg %p286
      // Predicated region
      $region37: #{conv_block_forward.4} parent=35 // pred_check
        _
      $region38: #{conv_block_forward.4} parent=35 // pred_check_branch
        %289 = sbr.rel (%p286) target = $region40
      $region39: #{conv_block_forward.4} parent=35 // pred_region
        %290 = vst [vmem:[%s5] sm:$0x1] 0.0
        %291 = vst [vmem:[%s6] sm:$0x1] 0.0
      $region40: #{conv_block_forward.4} parent=35 // pred_fallthru
        _
      %v292 = vld [vmem:[%s273] sm:$0xff]
      %v293 = vld [vmem:[%s273 + $0x8] sm:$0xff]
      %v294 = vld [vmem:[%s273 + $0x10] sm:$0x3]
      %v295 = vld [vmem:[%s273 + $0x18] sm:$0xff]
      %v296 = vld [vmem:[%s273 + $0x20] sm:$0xff]
      %v297 = vld [vmem:[%s273 + $0x28] sm:$0x3]
      %v298 = vld [vmem:[%s273 + $0x30] sm:$0xff]
      %v299 = vld [vmem:[%s273 + $0x38] sm:$0xff]
      %v300 = vld [vmem:[%s273 + $0x40] sm:$0x3]
      %v301 = vld [vmem:[%s273 + $0x48] sm:$0xff]
      %v302 = vld [vmem:[%s273 + $0x50] sm:$0xff]
      %v303 = vld [vmem:[%s273 + $0x58] sm:$0x3]
      %v304 = vld [vmem:[%s273 + $0x60] sm:$0xff]
      %v305 = vld [vmem:[%s273 + $0x68] sm:$0xff]
      %v306 = vld [vmem:[%s273 + $0x70] sm:$0x3]
      %v307 = vld [vmem:[%s273 + $0x78] sm:$0xff]
      %v308 = vld [vmem:[%s273 + $0x80] sm:$0xff]
      %v309 = vld [vmem:[%s273 + $0x88] sm:$0x3]
      %v310 = vld [vmem:[%s273 + $0x90] sm:$0xff]
      %v311 = vld [vmem:[%s273 + $0x98] sm:$0xff]
      %v312 = vld [vmem:[%s273 + $0xa0] sm:$0x3]
      %v313 = vld [vmem:[%s273 + $0xa8] sm:$0xff]
      %v314 = vld [vmem:[%s273 + $0xb0] sm:$0xff]
      %v315 = vld [vmem:[%s273 + $0xb8] sm:$0x3]
      %v316 = vld [vmem:[%s273 + $0xc0] sm:$0xff]
      %v317 = vld [vmem:[%s273 + $0xc8] sm:$0xff]
      %v318 = vld [vmem:[%s273 + $0xd0] sm:$0x3]
      %v319 = vld [vmem:[%s273 + $0xd8] sm:$0xff]
      %v320 = vld [vmem:[%s273 + $0xe0] sm:$0xff]
      %v321 = vld [vmem:[%s273 + $0xe8] sm:$0x3]
      %v322 = vld [vmem:[%s273 + $0xf0] sm:$0xff]
      %v323 = vld [vmem:[%s273 + $0xf8] sm:$0xff]
      %v324 = vld [vmem:[%s273 + $0x100] sm:$0x3]
      %v325 = vld [vmem:[%s273 + $0x108] sm:$0xff]
      %v326 = vld [vmem:[%s273 + $0x110] sm:$0xff]
      %v327 = vld [vmem:[%s273 + $0x118] sm:$0x3]
      %v328 = vld [vmem:[%s273 + $0x120] sm:$0xff]
      %v329 = vld [vmem:[%s273 + $0x128] sm:$0xff]
      %v330 = vld [vmem:[%s273 + $0x130] sm:$0x3]
      %v331 = vld [vmem:[%s273 + $0x138] sm:$0xff]
      %v332 = vld [vmem:[%s273 + $0x140] sm:$0xff]
      %v333 = vld [vmem:[%s273 + $0x148] sm:$0x3]
      %v334 = vld [vmem:[%s273 + $0x150] sm:$0xff]
      %v335 = vld [vmem:[%s273 + $0x158] sm:$0xff]
      %v336 = vld [vmem:[%s273 + $0x160] sm:$0x3]
      %v337 = vld [vmem:[%s273 + $0x168] sm:$0xff]
      %v338 = vld [vmem:[%s273 + $0x170] sm:$0xff]
      %v339 = vld [vmem:[%s273 + $0x178] sm:$0x3]
      %v340 = vld [vmem:[%s273 + $0x180] sm:$0xff]
      %v341 = vld [vmem:[%s273 + $0x188] sm:$0xff]
      %v342 = vld [vmem:[%s273 + $0x190] sm:$0x3]
      %v343 = vld [vmem:[%s273 + $0x198] sm:$0xff]
      %v344 = vld [vmem:[%s273 + $0x1a0] sm:$0xff]
      %v345 = vld [vmem:[%s273 + $0x1a8] sm:$0x3]
      %v346 = vld [vmem:[%s2] sm:$0x1]
      %v348 = vlaneseq
      %v349 = vshrl.u32 %v348, 7
      %v350 = vsub.s32 0, %v349
      %v351 = vrot.slane %v346, %v350
      %v353 = vmul.f32 %v292, %v351
      %v354 = vmul.f32 %v293, %v351
      %v355 = vmul.f32 %v294, %v351
      %v356 = vmul.f32 %v295, %v351
      %v357 = vmul.f32 %v296, %v351
      %v358 = vmul.f32 %v297, %v351
      %v359 = vmul.f32 %v298, %v351
      %v360 = vmul.f32 %v299, %v351
      %v361 = vmul.f32 %v300, %v351
      %v362 = vmul.f32 %v301, %v351
      %v363 = vmul.f32 %v302, %v351
      %v364 = vmul.f32 %v303, %v351
      %v365 = vmul.f32 %v304, %v351
      %v366 = vmul.f32 %v305, %v351
      %v367 = vmul.f32 %v306, %v351
      %v368 = vmul.f32 %v307, %v351
      %v369 = vmul.f32 %v308, %v351
      %v370 = vmul.f32 %v309, %v351
      %v371 = vmul.f32 %v310, %v351
      %v372 = vmul.f32 %v311, %v351
      %v373 = vmul.f32 %v312, %v351
      %v374 = vmul.f32 %v313, %v351
      %v375 = vmul.f32 %v314, %v351
      %v376 = vmul.f32 %v315, %v351
      %v377 = vmul.f32 %v316, %v351
      %v378 = vmul.f32 %v317, %v351
      %v379 = vmul.f32 %v318, %v351
      %v380 = vmul.f32 %v319, %v351
      %v381 = vmul.f32 %v320, %v351
      %v382 = vmul.f32 %v321, %v351
      %v383 = vmul.f32 %v322, %v351
      %v384 = vmul.f32 %v323, %v351
      %v385 = vmul.f32 %v324, %v351
      %v386 = vmul.f32 %v325, %v351
      %v387 = vmul.f32 %v326, %v351
      %v388 = vmul.f32 %v327, %v351
      %v389 = vmul.f32 %v328, %v351
      %v390 = vmul.f32 %v329, %v351
      %v391 = vmul.f32 %v330, %v351
      %v392 = vmul.f32 %v331, %v351
      %v393 = vmul.f32 %v332, %v351
      %v394 = vmul.f32 %v333, %v351
      %v395 = vmul.f32 %v334, %v351
      %v396 = vmul.f32 %v335, %v351
      %v397 = vmul.f32 %v336, %v351
      %v398 = vmul.f32 %v337, %v351
      %v399 = vmul.f32 %v338, %v351
      %v400 = vmul.f32 %v339, %v351
      %v401 = vmul.f32 %v340, %v351
      %v402 = vmul.f32 %v341, %v351
      %v403 = vmul.f32 %v342, %v351
      %v404 = vmul.f32 %v343, %v351
      %v405 = vmul.f32 %v344, %v351
      %v406 = vmul.f32 %v345, %v351
      %v407 = vld [vmem:[%s3] sm:$0x1]
      %v409 = vlaneseq
      %v410 = vshrl.u32 %v409, 7
      %v411 = vsub.s32 0, %v410
      %v412 = vrot.slane %v407, %v411
      %v414 = vadd.f32 %v353, %v412
      %v415 = vadd.f32 %v354, %v412
      %v416 = vadd.f32 %v355, %v412
      %v417 = vadd.f32 %v356, %v412
      %v418 = vadd.f32 %v357, %v412
      %v419 = vadd.f32 %v358, %v412
      %v420 = vadd.f32 %v359, %v412
      %v421 = vadd.f32 %v360, %v412
      %v422 = vadd.f32 %v361, %v412
      %v423 = vadd.f32 %v362, %v412
      %v424 = vadd.f32 %v363, %v412
      %v425 = vadd.f32 %v364, %v412
      %v426 = vadd.f32 %v365, %v412
      %v427 = vadd.f32 %v366, %v412
      %v428 = vadd.f32 %v367, %v412
      %v429 = vadd.f32 %v368, %v412
      %v430 = vadd.f32 %v369, %v412
      %v431 = vadd.f32 %v370, %v412
      %v432 = vadd.f32 %v371, %v412
      %v433 = vadd.f32 %v372, %v412
      %v434 = vadd.f32 %v373, %v412
      %v435 = vadd.f32 %v374, %v412
      %v436 = vadd.f32 %v375, %v412
      %v437 = vadd.f32 %v376, %v412
      %v438 = vadd.f32 %v377, %v412
      %v439 = vadd.f32 %v378, %v412
      %v440 = vadd.f32 %v379, %v412
      %v441 = vadd.f32 %v380, %v412
      %v442 = vadd.f32 %v381, %v412
      %v443 = vadd.f32 %v382, %v412
      %v444 = vadd.f32 %v383, %v412
      %v445 = vadd.f32 %v384, %v412
      %v446 = vadd.f32 %v385, %v412
      %v447 = vadd.f32 %v386, %v412
      %v448 = vadd.f32 %v387, %v412
      %v449 = vadd.f32 %v388, %v412
      %v450 = vadd.f32 %v389, %v412
      %v451 = vadd.f32 %v390, %v412
      %v452 = vadd.f32 %v391, %v412
      %v453 = vadd.f32 %v392, %v412
      %v454 = vadd.f32 %v393, %v412
      %v455 = vadd.f32 %v394, %v412
      %v456 = vadd.f32 %v395, %v412
      %v457 = vadd.f32 %v396, %v412
      %v458 = vadd.f32 %v397, %v412
      %v459 = vadd.f32 %v398, %v412
      %v460 = vadd.f32 %v399, %v412
      %v461 = vadd.f32 %v400, %v412
      %v462 = vadd.f32 %v401, %v412
      %v463 = vadd.f32 %v402, %v412
      %v464 = vadd.f32 %v403, %v412
      %v465 = vadd.f32 %v404, %v412
      %v466 = vadd.f32 %v405, %v412
      %v467 = vadd.f32 %v406, %v412
      %v468 = vmax.f32 %v414, 0.0
      %v469 = vmax.f32 %v415, 0.0
      %v470 = vmax.f32 %v416, 0.0
      %v471 = vmax.f32 %v417, 0.0
      %v472 = vmax.f32 %v418, 0.0
      %v473 = vmax.f32 %v419, 0.0
      %v474 = vmax.f32 %v420, 0.0
      %v475 = vmax.f32 %v421, 0.0
      %v476 = vmax.f32 %v422, 0.0
      %v477 = vmax.f32 %v423, 0.0
      %v478 = vmax.f32 %v424, 0.0
      %v479 = vmax.f32 %v425, 0.0
      %v480 = vmax.f32 %v426, 0.0
      %v481 = vmax.f32 %v427, 0.0
      %v482 = vmax.f32 %v428, 0.0
      %v483 = vmax.f32 %v429, 0.0
      %v484 = vmax.f32 %v430, 0.0
      %v485 = vmax.f32 %v431, 0.0
      %v486 = vmax.f32 %v432, 0.0
      %v487 = vmax.f32 %v433, 0.0
      %v488 = vmax.f32 %v434, 0.0
      %v489 = vmax.f32 %v435, 0.0
      %v490 = vmax.f32 %v436, 0.0
      %v491 = vmax.f32 %v437, 0.0
      %v492 = vmax.f32 %v438, 0.0
      %v493 = vmax.f32 %v439, 0.0
      %v494 = vmax.f32 %v440, 0.0
      %v495 = vmax.f32 %v441, 0.0
      %v496 = vmax.f32 %v442, 0.0
      %v497 = vmax.f32 %v443, 0.0
      %v498 = vmax.f32 %v444, 0.0
      %v499 = vmax.f32 %v445, 0.0
      %v500 = vmax.f32 %v446, 0.0
      %v501 = vmax.f32 %v447, 0.0
      %v502 = vmax.f32 %v448, 0.0
      %v503 = vmax.f32 %v449, 0.0
      %v504 = vmax.f32 %v450, 0.0
      %v505 = vmax.f32 %v451, 0.0
      %v506 = vmax.f32 %v452, 0.0
      %v507 = vmax.f32 %v453, 0.0
      %v508 = vmax.f32 %v454, 0.0
      %v509 = vmax.f32 %v455, 0.0
      %v510 = vmax.f32 %v456, 0.0
      %v511 = vmax.f32 %v457, 0.0
      %v512 = vmax.f32 %v458, 0.0
      %v513 = vmax.f32 %v459, 0.0
      %v514 = vmax.f32 %v460, 0.0
      %v515 = vmax.f32 %v461, 0.0
      %v516 = vmax.f32 %v462, 0.0
      %v517 = vmax.f32 %v463, 0.0
      %v518 = vmax.f32 %v464, 0.0
      %v519 = vmax.f32 %v465, 0.0
      %v520 = vmax.f32 %v466, 0.0
      %v521 = vmax.f32 %v467, 0.0
      %v522 = vlaneseq
      %v523 = vshrl.u32 %v522, 7
      %v524 = vadd.s32 %v523, 8
      %v525 = vadd.s32 %v523, 16
      %vm526 = vcmp.ge.s32.totalorder %v523, 1
      %vm527 = vcmp.ge.s32.totalorder %v524, 1
      %vm528 = vcmp.ge.s32.totalorder %v525, 1
      %vm529 = vcmp.le.s32.totalorder %v523, 16
      %vm530 = vcmp.le.s32.totalorder %v524, 16
      %vm531 = vcmp.le.s32.totalorder %v525, 16
      %vm532 = vmand %vm526, %vm529
      %vm533 = vmand %vm527, %vm530
      %vm534 = vmand %vm528, %vm531
      %p535 = scmp.gt.s32.totalorder %s23, 0
      %s536 = scalar_select %p535, 1, 0
      %v537 = vstv %s536
      %vm538 = vcmp.eq.s32.totalorder %v537, 1
      %vm539 = vmand %vm532, %vm538
      %vm540 = vmand %vm533, %vm538
      %vm541 = vmand %vm534, %vm538
      %vm542 = vmand %vm532, 1
      %vm543 = vmand %vm533, 1
      %vm544 = vmand %vm534, 1
      %p545 = scmp.lt.s32.totalorder %s23, 0
      %s546 = scalar_select %p545, 1, 0
      %v547 = vstv %s546
      %vm548 = vcmp.eq.s32.totalorder %v547, 1
      %vm549 = vmand %vm539, 1
      %vm550 = vmand %vm540, 1
      %vm551 = vmand %vm541, 1
      %vm552 = vmand %vm542, %vm548
      %vm553 = vmand %vm543, %vm548
      %vm554 = vmand %vm544, %vm548
      %v555 = vsel %vm549, 1, 0
      %v556 = vsel %vm550, 1, 0
      %v557 = vsel %vm551, 1, 0
      %v558 = vsel %vm542, 1, 0
      %v559 = vsel %vm543, 1, 0
      %v560 = vsel %vm544, 1, 0
      %v561 = vsel %vm552, 1, 0
      %v562 = vsel %vm553, 1, 0
      %v563 = vsel %vm554, 1, 0
      %vm564 = vcmp.eq.s32.totalorder %v555, 1
      %vm565 = vcmp.eq.s32.totalorder %v556, 1
      %vm566 = vcmp.eq.s32.totalorder %v557, 1
      %vm567 = vcmp.eq.s32.totalorder %v558, 1
      %vm568 = vcmp.eq.s32.totalorder %v559, 1
      %vm569 = vcmp.eq.s32.totalorder %v560, 1
      %vm570 = vcmp.eq.s32.totalorder %v561, 1
      %vm571 = vcmp.eq.s32.totalorder %v562, 1
      %vm572 = vcmp.eq.s32.totalorder %v563, 1
      %v573 = vsel %vm564, %v468, 0.0
      %v574 = vsel %vm565, %v469, 0.0
      %v575 = vsel %vm566, %v470, 0.0
      %v576 = vsel %vm567, %v471, 0.0
      %v577 = vsel %vm568, %v472, 0.0
      %v578 = vsel %vm569, %v473, 0.0
      %v579 = vsel %vm567, %v474, 0.0
      %v580 = vsel %vm568, %v475, 0.0
      %v581 = vsel %vm569, %v476, 0.0
      %v582 = vsel %vm567, %v477, 0.0
      %v583 = vsel %vm568, %v478, 0.0
      %v584 = vsel %vm569, %v479, 0.0
      %v585 = vsel %vm567, %v480, 0.0
      %v586 = vsel %vm568, %v481, 0.0
      %v587 = vsel %vm569, %v482, 0.0
      %v588 = vsel %vm567, %v483, 0.0
      %v589 = vsel %vm568, %v484, 0.0
      %v590 = vsel %vm569, %v485, 0.0
      %v591 = vsel %vm567, %v486, 0.0
      %v592 = vsel %vm568, %v487, 0.0
      %v593 = vsel %vm569, %v488, 0.0
      %v594 = vsel %vm567, %v489, 0.0
      %v595 = vsel %vm568, %v490, 0.0
      %v596 = vsel %vm569, %v491, 0.0
      %v597 = vsel %vm567, %v492, 0.0
      %v598 = vsel %vm568, %v493, 0.0
      %v599 = vsel %vm569, %v494, 0.0
      %v600 = vsel %vm567, %v495, 0.0
      %v601 = vsel %vm568, %v496, 0.0
      %v602 = vsel %vm569, %v497, 0.0
      %v603 = vsel %vm567, %v498, 0.0
      %v604 = vsel %vm568, %v499, 0.0
      %v605 = vsel %vm569, %v500, 0.0
      %v606 = vsel %vm567, %v501, 0.0
      %v607 = vsel %vm568, %v502, 0.0
      %v608 = vsel %vm569, %v503, 0.0
      %v609 = vsel %vm567, %v504, 0.0
      %v610 = vsel %vm568, %v505, 0.0
      %v611 = vsel %vm569, %v506, 0.0
      %v612 = vsel %vm567, %v507, 0.0
      %v613 = vsel %vm568, %v508, 0.0
      %v614 = vsel %vm569, %v509, 0.0
      %v615 = vsel %vm567, %v510, 0.0
      %v616 = vsel %vm568, %v511, 0.0
      %v617 = vsel %vm569, %v512, 0.0
      %v618 = vsel %vm567, %v513, 0.0
      %v619 = vsel %vm568, %v514, 0.0
      %v620 = vsel %vm569, %v515, 0.0
      %v621 = vsel %vm567, %v516, 0.0
      %v622 = vsel %vm568, %v517, 0.0
      %v623 = vsel %vm569, %v518, 0.0
      %v624 = vsel %vm570, %v519, 0.0
      %v625 = vsel %vm571, %v520, 0.0
      %v626 = vsel %vm572, %v521, 0.0
      %v627 = vpack.c.bf16 %v574, %v573
      %v628 = vpack.c.bf16 %v577, %v576
      %v629 = vpack.c.bf16 %v580, %v579
      %v630 = vpack.c.bf16 %v583, %v582
      %v631 = vpack.c.bf16 %v586, %v585
      %v632 = vpack.c.bf16 %v589, %v588
      %v633 = vpack.c.bf16 %v592, %v591
      %v634 = vpack.c.bf16 %v595, %v594
      %v635 = vpack.c.bf16 %v598, %v597
      %v636 = vpack.c.bf16 %v601, %v600
      %v637 = vpack.c.bf16 %v604, %v603
      %v638 = vpack.c.bf16 %v607, %v606
      %v639 = vpack.c.bf16 %v610, %v609
      %v640 = vpack.c.bf16 %v613, %v612
      %v641 = vpack.c.bf16 %v616, %v615
      %v642 = vpack.c.bf16 %v619, %v618
      %v643 = vld [vmem:[%s1] sm:$0xf]
      %v644 = vld [vmem:[%s1 + $0x4] sm:$0xf]
      %v645 = vld [vmem:[%s1 + $0x8] sm:$0xf]
      %v646 = vld [vmem:[%s1 + $0xc] sm:$0xf]
      %v647 = vld [vmem:[%s1 + $0x10] sm:$0xf]
      %v648 = vld [vmem:[%s1 + $0x14] sm:$0xf]
      %v649 = vld [vmem:[%s1 + $0x18] sm:$0xf]
      %v650 = vld [vmem:[%s1 + $0x1c] sm:$0xf]
      %v651 = vld [vmem:[%s1 + $0x20] sm:$0xf]
      %v652 = vld [vmem:[%s1 + $0x24] sm:$0xf]
      %v653 = vld [vmem:[%s1 + $0x28] sm:$0xf]
      %v654 = vld [vmem:[%s1 + $0x2c] sm:$0xf]
      %v655 = vld [vmem:[%s1 + $0x30] sm:$0xf]
      %v656 = vld [vmem:[%s1 + $0x34] sm:$0xf]
      %v657 = vld [vmem:[%s1 + $0x38] sm:$0xf]
      %v658 = vld [vmem:[%s1 + $0x3c] sm:$0xf]
      %vm707 = vcmask 1046528
      %v708 = vrot.slane %v573, 1
      %v709 = vrot.slane %v574, 1
      %v710 = vsel %vm707, %v708, %v709
      %v711 = vrot.slane %v575, 1
      %v712 = vsel %vm707, %v709, %v711
      %v713 = vrot.slane %v576, 1
      %v714 = vrot.slane %v577, 1
      %v715 = vsel %vm707, %v713, %v714
      %v716 = vrot.slane %v578, 1
      %v717 = vsel %vm707, %v714, %v716
      %v718 = vrot.slane %v579, 1
      %v719 = vrot.slane %v580, 1
      %v720 = vsel %vm707, %v718, %v719
      %v721 = vrot.slane %v581, 1
      %v722 = vsel %vm707, %v719, %v721
      %v723 = vrot.slane %v582, 1
      %v724 = vrot.slane %v583, 1
      %v725 = vsel %vm707, %v723, %v724
      %v726 = vrot.slane %v584, 1
      %v727 = vsel %vm707, %v724, %v726
      %v728 = vrot.slane %v585, 1
      %v729 = vrot.slane %v586, 1
      %v730 = vsel %vm707, %v728, %v729
      %v731 = vrot.slane %v587, 1
      %v732 = vsel %vm707, %v729, %v731
      %v733 = vrot.slane %v588, 1
      %v734 = vrot.slane %v589, 1
      %v735 = vsel %vm707, %v733, %v734
      %v736 = vrot.slane %v590, 1
      %v737 = vsel %vm707, %v734, %v736
      %v738 = vrot.slane %v591, 1
      %v739 = vrot.slane %v592, 1
      %v740 = vsel %vm707, %v738, %v739
      %v741 = vrot.slane %v593, 1
      %v742 = vsel %vm707, %v739, %v741
      %v743 = vrot.slane %v594, 1
      %v744 = vrot.slane %v595, 1
      %v745 = vsel %vm707, %v743, %v744
      %v746 = vrot.slane %v596, 1
      %v747 = vsel %vm707, %v744, %v746
      %v748 = vrot.slane %v597, 1
      %v749 = vrot.slane %v598, 1
      %v750 = vsel %vm707, %v748, %v749
      %v751 = vrot.slane %v599, 1
      %v752 = vsel %vm707, %v749, %v751
      %v753 = vrot.slane %v600, 1
      %v754 = vrot.slane %v601, 1
      %v755 = vsel %vm707, %v753, %v754
      %v756 = vrot.slane %v602, 1
      %v757 = vsel %vm707, %v754, %v756
      %v758 = vrot.slane %v603, 1
      %v759 = vrot.slane %v604, 1
      %v760 = vsel %vm707, %v758, %v759
      %v761 = vrot.slane %v605, 1
      %v762 = vsel %vm707, %v759, %v761
      %v763 = vrot.slane %v606, 1
      %v764 = vrot.slane %v607, 1
      %v765 = vsel %vm707, %v763, %v764
      %v766 = vrot.slane %v608, 1
      %v767 = vsel %vm707, %v764, %v766
      %v768 = vrot.slane %v609, 1
      %v769 = vrot.slane %v610, 1
      %v770 = vsel %vm707, %v768, %v769
      %v771 = vrot.slane %v611, 1
      %v772 = vsel %vm707, %v769, %v771
      %v773 = vrot.slane %v612, 1
      %v774 = vrot.slane %v613, 1
      %v775 = vsel %vm707, %v773, %v774
      %v776 = vrot.slane %v614, 1
      %v777 = vsel %vm707, %v774, %v776
      %v778 = vrot.slane %v615, 1
      %v779 = vrot.slane %v616, 1
      %v780 = vsel %vm707, %v778, %v779
      %v781 = vrot.slane %v617, 1
      %v782 = vsel %vm707, %v779, %v781
      %v783 = vrot.slane %v618, 1
      %v784 = vrot.slane %v619, 1
      %v785 = vsel %vm707, %v783, %v784
      %v786 = vrot.slane %v620, 1
      %v787 = vsel %vm707, %v784, %v786
      %v820 = vpack.c.bf16 %v712, %v710
      %v821 = vpack.c.bf16 %v717, %v715
      %v822 = vpack.c.bf16 %v722, %v720
      %v823 = vpack.c.bf16 %v727, %v725
      %v824 = vpack.c.bf16 %v732, %v730
      %v825 = vpack.c.bf16 %v737, %v735
      %v826 = vpack.c.bf16 %v742, %v740
      %v827 = vpack.c.bf16 %v747, %v745
      %v828 = vpack.c.bf16 %v752, %v750
      %v829 = vpack.c.bf16 %v757, %v755
      %v830 = vpack.c.bf16 %v762, %v760
      %v831 = vpack.c.bf16 %v767, %v765
      %v832 = vpack.c.bf16 %v772, %v770
      %v833 = vpack.c.bf16 %v777, %v775
      %v834 = vpack.c.bf16 %v782, %v780
      %v835 = vpack.c.bf16 %v787, %v785
      %s836 = scalar_lea.vmem %s1, 64
      %v837 = vld [vmem:[%s836] sm:$0xf]
      %v838 = vld [vmem:[%s836 + $0x4] sm:$0xf]
      %v839 = vld [vmem:[%s836 + $0x8] sm:$0xf]
      %v840 = vld [vmem:[%s836 + $0xc] sm:$0xf]
      %v841 = vld [vmem:[%s836 + $0x10] sm:$0xf]
      %v842 = vld [vmem:[%s836 + $0x14] sm:$0xf]
      %v843 = vld [vmem:[%s836 + $0x18] sm:$0xf]
      %v844 = vld [vmem:[%s836 + $0x1c] sm:$0xf]
      %v845 = vld [vmem:[%s836 + $0x20] sm:$0xf]
      %v846 = vld [vmem:[%s836 + $0x24] sm:$0xf]
      %v847 = vld [vmem:[%s836 + $0x28] sm:$0xf]
      %v848 = vld [vmem:[%s836 + $0x2c] sm:$0xf]
      %v849 = vld [vmem:[%s836 + $0x30] sm:$0xf]
      %v850 = vld [vmem:[%s836 + $0x34] sm:$0xf]
      %v851 = vld [vmem:[%s836 + $0x38] sm:$0xf]
      %v852 = vld [vmem:[%s836 + $0x3c] sm:$0xf]
      %v869 = vunpack.c.l.b16 %v837
      %v870 = vunpack.c.l.b16 %v838
      %v871 = vunpack.c.l.b16 %v839
      %v872 = vunpack.c.l.b16 %v840
      %v873 = vunpack.c.l.b16 %v841
      %v874 = vunpack.c.l.b16 %v842
      %v875 = vunpack.c.l.b16 %v843
      %v876 = vunpack.c.l.b16 %v844
      %v877 = vunpack.c.l.b16 %v845
      %v878 = vunpack.c.l.b16 %v846
      %v879 = vunpack.c.l.b16 %v847
      %v880 = vunpack.c.l.b16 %v848
      %v881 = vunpack.c.l.b16 %v849
      %v882 = vunpack.c.l.b16 %v850
      %v883 = vunpack.c.l.b16 %v851
      %v884 = vunpack.c.l.b16 %v852
      %v885 = vpack.c.b16 %v870, %v869
      %v886 = vpack.c.b16 %v872, %v871
      %v887 = vpack.c.b16 %v874, %v873
      %v888 = vpack.c.b16 %v876, %v875
      %v889 = vpack.c.b16 %v878, %v877
      %v890 = vpack.c.b16 %v880, %v879
      %v891 = vpack.c.b16 %v882, %v881
      %v892 = vpack.c.b16 %v884, %v883
      %901 = vmatprep.subr.bf16.mxu0 0
      %902 = vmatpush1.bf16.msra.mxu0 %v892
      %903 = vmatprep.subr.bf16.mxu0 0
      %904 = vmatpush1.bf16.msra.mxu0 %v891
      %905 = vmatprep.subr.bf16.mxu0 0
      %906 = vmatpush1.bf16.msra.mxu0 %v890
      %907 = vmatprep.subr.bf16.mxu0 0
      %908 = vmatpush1.bf16.msra.mxu0 %v889
      %909 = vmatprep.subr.bf16.mxu0 0
      %910 = vmatpush1.bf16.msra.mxu0 %v888
      %911 = vmatprep.subr.bf16.mxu0 0
      %912 = vmatpush1.bf16.msra.mxu0 %v887
      %913 = vmatprep.subr.bf16.mxu0 0
      %914 = vmatpush1.bf16.msra.mxu0 %v886
      %915 = vmatprep.subr.bf16.mxu0 0
      %916 = vmatpush1.bf16.msra.mxu0 %v885
      %917 = vmatprep.subr.bf16.mxu0 0
      %918 = vmatpush2.bf16.msra.mxu0 0
      %919 = vmatprep.subr.bf16.mxu0 0
      %920 = vmatpush2.bf16.msra.mxu0 0
      %921 = vmatprep.subr.bf16.mxu0 0
      %922 = vmatpush2.bf16.msra.mxu0 0
      %923 = vmatprep.subr.bf16.mxu0 0
      %924 = vmatpush2.bf16.msra.mxu0 0
      %925 = vmatprep.subr.bf16.mxu0 0
      %926 = vmatpush2.bf16.msra.mxu0 0
      %927 = vmatprep.subr.bf16.mxu0 0
      %928 = vmatpush2.bf16.msra.mxu0 0
      %929 = vmatprep.subr.bf16.mxu0 0
      %930 = vmatpush2.bf16.msra.mxu0 0
      %931 = vmatprep.subr.bf16.mxu0 0
      %932 = vmatpush2.bf16.msra.mxu0 0
      %933 = vmatprep.mubr.bf16.mxu0 0
      %934 = vmatmul.mubr.bf16.gmra.mxu0 %v820
      %v935 = vpop.f32.mrf.mxu0
      %v936 = vadd.f32 0.0, %v935
      %v937 = vpop.f32.mrf.mxu0
      %v938 = vpop.f32.mrf.mxu0
      %v939 = vadd.f32 0.0, %v938
      %v940 = vpop.f32.mrf.mxu0
      %941 = vmatprep.mubr.bf16.mxu0 0
      %942 = vmatmul.mubr.bf16.gmra.mxu0 %v821
      %v943 = vpop.f32.mrf.mxu0
      %v944 = vadd.f32 0.0, %v943
      %v945 = vpop.f32.mrf.mxu0
      %v946 = vpop.f32.mrf.mxu0
      %v947 = vadd.f32 0.0, %v946
      %v948 = vpop.f32.mrf.mxu0
      %949 = vmatprep.mubr.bf16.mxu0 0
      %950 = vmatmul.mubr.bf16.gmra.mxu0 %v822
      %v951 = vpop.f32.mrf.mxu0
      %v952 = vadd.f32 0.0, %v951
      %v953 = vpop.f32.mrf.mxu0
      %v954 = vpop.f32.mrf.mxu0
      %v955 = vadd.f32 0.0, %v954
      %v956 = vpop.f32.mrf.mxu0
      %957 = vmatprep.mubr.bf16.mxu0 0
      %958 = vmatmul.mubr.bf16.gmra.mxu0 %v823
      %v959 = vpop.f32.mrf.mxu0
      %v960 = vadd.f32 0.0, %v959
      %v961 = vpop.f32.mrf.mxu0
      %v962 = vpop.f32.mrf.mxu0
      %v963 = vadd.f32 0.0, %v962
      %v964 = vpop.f32.mrf.mxu0
      %965 = vmatprep.mubr.bf16.mxu0 0
      %966 = vmatmul.mubr.bf16.gmra.mxu0 %v824
      %v967 = vpop.f32.mrf.mxu0
      %v968 = vadd.f32 0.0, %v967
      %v969 = vpop.f32.mrf.mxu0
      %v970 = vpop.f32.mrf.mxu0
      %v971 = vadd.f32 0.0, %v970
      %v972 = vpop.f32.mrf.mxu0
      %973 = vmatprep.mubr.bf16.mxu0 0
      %974 = vmatmul.mubr.bf16.gmra.mxu0 %v825
      %v975 = vpop.f32.mrf.mxu0
      %v976 = vadd.f32 0.0, %v975
      %v977 = vpop.f32.mrf.mxu0
      %v978 = vpop.f32.mrf.mxu0
      %v979 = vadd.f32 0.0, %v978
      %v980 = vpop.f32.mrf.mxu0
      %981 = vmatprep.mubr.bf16.mxu0 0
      %982 = vmatmul.mubr.bf16.gmra.mxu0 %v826
      %v983 = vpop.f32.mrf.mxu0
      %v984 = vadd.f32 0.0, %v983
      %v985 = vpop.f32.mrf.mxu0
      %v986 = vpop.f32.mrf.mxu0
      %v987 = vadd.f32 0.0, %v986
      %v988 = vpop.f32.mrf.mxu0
      %989 = vmatprep.mubr.bf16.mxu0 0
      %990 = vmatmul.mubr.bf16.gmra.mxu0 %v827
      %v991 = vpop.f32.mrf.mxu0
      %v992 = vadd.f32 0.0, %v991
      %v993 = vpop.f32.mrf.mxu0
      %v994 = vpop.f32.mrf.mxu0
      %v995 = vadd.f32 0.0, %v994
      %v996 = vpop.f32.mrf.mxu0
      %997 = vmatprep.mubr.bf16.mxu0 0
      %998 = vmatmul.mubr.bf16.gmra.mxu0 %v828
      %v999 = vpop.f32.mrf.mxu0
      %v1000 = vadd.f32 0.0, %v999
      %v1001 = vpop.f32.mrf.mxu0
      %v1002 = vpop.f32.mrf.mxu0
      %v1003 = vadd.f32 0.0, %v1002
      %v1004 = vpop.f32.mrf.mxu0
      %1005 = vmatprep.mubr.bf16.mxu0 0
      %1006 = vmatmul.mubr.bf16.gmra.mxu0 %v829
      %v1007 = vpop.f32.mrf.mxu0
      %v1008 = vadd.f32 0.0, %v1007
      %v1009 = vpop.f32.mrf.mxu0
      %v1010 = vpop.f32.mrf.mxu0
      %v1011 = vadd.f32 0.0, %v1010
      %v1012 = vpop.f32.mrf.mxu0
      %1013 = vmatprep.mubr.bf16.mxu0 0
      %1014 = vmatmul.mubr.bf16.gmra.mxu0 %v830
      %v1015 = vpop.f32.mrf.mxu0
      %v1016 = vadd.f32 0.0, %v1015
      %v1017 = vpop.f32.mrf.mxu0
      %v1018 = vpop.f32.mrf.mxu0
      %v1019 = vadd.f32 0.0, %v1018
      %v1020 = vpop.f32.mrf.mxu0
      %1021 = vmatprep.mubr.bf16.mxu0 0
      %1022 = vmatmul.mubr.bf16.gmra.mxu0 %v831
      %v1023 = vpop.f32.mrf.mxu0
      %v1024 = vadd.f32 0.0, %v1023
      %v1025 = vpop.f32.mrf.mxu0
      %v1026 = vpop.f32.mrf.mxu0
      %v1027 = vadd.f32 0.0, %v1026
      %v1028 = vpop.f32.mrf.mxu0
      %1029 = vmatprep.mubr.bf16.mxu0 0
      %1030 = vmatmul.mubr.bf16.gmra.mxu0 %v832
      %v1031 = vpop.f32.mrf.mxu0
      %v1032 = vadd.f32 0.0, %v1031
      %v1033 = vpop.f32.mrf.mxu0
      %v1034 = vpop.f32.mrf.mxu0
      %v1035 = vadd.f32 0.0, %v1034
      %v1036 = vpop.f32.mrf.mxu0
      %1037 = vmatprep.mubr.bf16.mxu0 0
      %1038 = vmatmul.mubr.bf16.gmra.mxu0 %v833
      %v1039 = vpop.f32.mrf.mxu0
      %v1040 = vadd.f32 0.0, %v1039
      %v1041 = vpop.f32.mrf.mxu0
      %v1042 = vpop.f32.mrf.mxu0
      %v1043 = vadd.f32 0.0, %v1042
      %v1044 = vpop.f32.mrf.mxu0
      %1045 = vmatprep.mubr.bf16.mxu0 0
      %1046 = vmatmul.mubr.bf16.gmra.mxu0 %v834
      %v1047 = vpop.f32.mrf.mxu0
      %v1048 = vadd.f32 0.0, %v1047
      %v1049 = vpop.f32.mrf.mxu0
      %v1050 = vpop.f32.mrf.mxu0
      %v1051 = vadd.f32 0.0, %v1050
      %v1052 = vpop.f32.mrf.mxu0
      %1053 = vmatprep.mubr.bf16.mxu0 0
      %1054 = vmatmul.mubr.bf16.gmra.mxu0 %v835
      %v1055 = vpop.f32.mrf.mxu0
      %v1056 = vadd.f32 0.0, %v1055
      %v1057 = vpop.f32.mrf.mxu0
      %v1058 = vpop.f32.mrf.mxu0
      %v1059 = vadd.f32 0.0, %v1058
      %v1060 = vpop.f32.mrf.mxu0
      %1061 = vdwg.mxu0
      %v1078 = vunpack.c.l.b16 %v643
      %v1079 = vunpack.c.l.b16 %v644
      %v1080 = vunpack.c.l.b16 %v645
      %v1081 = vunpack.c.l.b16 %v646
      %v1082 = vunpack.c.l.b16 %v647
      %v1083 = vunpack.c.l.b16 %v648
      %v1084 = vunpack.c.l.b16 %v649
      %v1085 = vunpack.c.l.b16 %v650
      %v1086 = vunpack.c.l.b16 %v651
      %v1087 = vunpack.c.l.b16 %v652
      %v1088 = vunpack.c.l.b16 %v653
      %v1089 = vunpack.c.l.b16 %v654
      %v1090 = vunpack.c.l.b16 %v655
      %v1091 = vunpack.c.l.b16 %v656
      %v1092 = vunpack.c.l.b16 %v657
      %v1093 = vunpack.c.l.b16 %v658
      %v1094 = vpack.c.b16 %v1079, %v1078
      %v1095 = vpack.c.b16 %v1081, %v1080
      %v1096 = vpack.c.b16 %v1083, %v1082
      %v1097 = vpack.c.b16 %v1085, %v1084
      %v1098 = vpack.c.b16 %v1087, %v1086
      %v1099 = vpack.c.b16 %v1089, %v1088
      %v1100 = vpack.c.b16 %v1091, %v1090
      %v1101 = vpack.c.b16 %v1093, %v1092
      %1110 = vmatprep.subr.bf16.mxu0 0
      %1111 = vmatpush1.bf16.msra.mxu0 %v1101
      %1112 = vmatprep.subr.bf16.mxu0 0
      %1113 = vmatpush1.bf16.msra.mxu0 %v1100
      %1114 = vmatprep.subr.bf16.mxu0 0
      %1115 = vmatpush1.bf16.msra.mxu0 %v1099
      %1116 = vmatprep.subr.bf16.mxu0 0
      %1117 = vmatpush1.bf16.msra.mxu0 %v1098
      %1118 = vmatprep.subr.bf16.mxu0 0
      %1119 = vmatpush1.bf16.msra.mxu0 %v1097
      %1120 = vmatprep.subr.bf16.mxu0 0
      %1121 = vmatpush1.bf16.msra.mxu0 %v1096
      %1122 = vmatprep.subr.bf16.mxu0 0
      %1123 = vmatpush1.bf16.msra.mxu0 %v1095
      %1124 = vmatprep.subr.bf16.mxu0 0
      %1125 = vmatpush1.bf16.msra.mxu0 %v1094
      %1126 = vmatprep.subr.bf16.mxu0 0
      %1127 = vmatpush2.bf16.msra.mxu0 0
      %1128 = vmatprep.subr.bf16.mxu0 0
      %1129 = vmatpush2.bf16.msra.mxu0 0
      %1130 = vmatprep.subr.bf16.mxu0 0
      %1131 = vmatpush2.bf16.msra.mxu0 0
      %1132 = vmatprep.subr.bf16.mxu0 0
      %1133 = vmatpush2.bf16.msra.mxu0 0
      %1134 = vmatprep.subr.bf16.mxu0 0
      %1135 = vmatpush2.bf16.msra.mxu0 0
      %1136 = vmatprep.subr.bf16.mxu0 0
      %1137 = vmatpush2.bf16.msra.mxu0 0
      %1138 = vmatprep.subr.bf16.mxu0 0
      %1139 = vmatpush2.bf16.msra.mxu0 0
      %1140 = vmatprep.subr.bf16.mxu0 0
      %1141 = vmatpush2.bf16.msra.mxu0 0
      %1142 = vmatprep.mubr.bf16.mxu0 0
      %1143 = vmatmul.mubr.bf16.gmra.mxu0 %v627
      %v1144 = vpop.f32.mrf.mxu0
      %v1145 = vadd.f32 %v936, %v1144
      %v1146 = vpop.f32.mrf.mxu0
      %v1147 = vpop.f32.mrf.mxu0
      %v1148 = vadd.f32 %v939, %v1147
      %v1149 = vpop.f32.mrf.mxu0
      %1150 = vmatprep.mubr.bf16.mxu0 0
      %1151 = vmatmul.mubr.bf16.gmra.mxu0 %v628
      %v1152 = vpop.f32.mrf.mxu0
      %v1153 = vadd.f32 %v944, %v1152
      %v1154 = vpop.f32.mrf.mxu0
      %v1155 = vpop.f32.mrf.mxu0
      %v1156 = vadd.f32 %v947, %v1155
      %v1157 = vpop.f32.mrf.mxu0
      %1158 = vmatprep.mubr.bf16.mxu0 0
      %1159 = vmatmul.mubr.bf16.gmra.mxu0 %v629
      %v1160 = vpop.f32.mrf.mxu0
      %v1161 = vadd.f32 %v952, %v1160
      %v1162 = vpop.f32.mrf.mxu0
      %v1163 = vpop.f32.mrf.mxu0
      %v1164 = vadd.f32 %v955, %v1163
      %v1165 = vpop.f32.mrf.mxu0
      %1166 = vmatprep.mubr.bf16.mxu0 0
      %1167 = vmatmul.mubr.bf16.gmra.mxu0 %v630
      %v1168 = vpop.f32.mrf.mxu0
      %v1169 = vadd.f32 %v960, %v1168
      %v1170 = vpop.f32.mrf.mxu0
      %v1171 = vpop.f32.mrf.mxu0
      %v1172 = vadd.f32 %v963, %v1171
      %v1173 = vpop.f32.mrf.mxu0
      %1174 = vmatprep.mubr.bf16.mxu0 0
      %1175 = vmatmul.mubr.bf16.gmra.mxu0 %v631
      %v1176 = vpop.f32.mrf.mxu0
      %v1177 = vadd.f32 %v968, %v1176
      %v1178 = vpop.f32.mrf.mxu0
      %v1179 = vpop.f32.mrf.mxu0
      %v1180 = vadd.f32 %v971, %v1179
      %v1181 = vpop.f32.mrf.mxu0
      %1182 = vmatprep.mubr.bf16.mxu0 0
      %1183 = vmatmul.mubr.bf16.gmra.mxu0 %v632
      %v1184 = vpop.f32.mrf.mxu0
      %v1185 = vadd.f32 %v976, %v1184
      %v1186 = vpop.f32.mrf.mxu0
      %v1187 = vpop.f32.mrf.mxu0
      %v1188 = vadd.f32 %v979, %v1187
      %v1189 = vpop.f32.mrf.mxu0
      %1190 = vmatprep.mubr.bf16.mxu0 0
      %1191 = vmatmul.mubr.bf16.gmra.mxu0 %v633
      %v1192 = vpop.f32.mrf.mxu0
      %v1193 = vadd.f32 %v984, %v1192
      %v1194 = vpop.f32.mrf.mxu0
      %v1195 = vpop.f32.mrf.mxu0
      %v1196 = vadd.f32 %v987, %v1195
      %v1197 = vpop.f32.mrf.mxu0
      %1198 = vmatprep.mubr.bf16.mxu0 0
      %1199 = vmatmul.mubr.bf16.gmra.mxu0 %v634
      %v1200 = vpop.f32.mrf.mxu0
      %v1201 = vadd.f32 %v992, %v1200
      %v1202 = vpop.f32.mrf.mxu0
      %v1203 = vpop.f32.mrf.mxu0
      %v1204 = vadd.f32 %v995, %v1203
      %v1205 = vpop.f32.mrf.mxu0
      %1206 = vmatprep.mubr.bf16.mxu0 0
      %1207 = vmatmul.mubr.bf16.gmra.mxu0 %v635
      %v1208 = vpop.f32.mrf.mxu0
      %v1209 = vadd.f32 %v1000, %v1208
      %v1210 = vpop.f32.mrf.mxu0
      %v1211 = vpop.f32.mrf.mxu0
      %v1212 = vadd.f32 %v1003, %v1211
      %v1213 = vpop.f32.mrf.mxu0
      %1214 = vmatprep.mubr.bf16.mxu0 0
      %1215 = vmatmul.mubr.bf16.gmra.mxu0 %v636
      %v1216 = vpop.f32.mrf.mxu0
      %v1217 = vadd.f32 %v1008, %v1216
      %v1218 = vpop.f32.mrf.mxu0
      %v1219 = vpop.f32.mrf.mxu0
      %v1220 = vadd.f32 %v1011, %v1219
      %v1221 = vpop.f32.mrf.mxu0
      %1222 = vmatprep.mubr.bf16.mxu0 0
      %1223 = vmatmul.mubr.bf16.gmra.mxu0 %v637
      %v1224 = vpop.f32.mrf.mxu0
      %v1225 = vadd.f32 %v1016, %v1224
      %v1226 = vpop.f32.mrf.mxu0
      %v1227 = vpop.f32.mrf.mxu0
      %v1228 = vadd.f32 %v1019, %v1227
      %v1229 = vpop.f32.mrf.mxu0
      %1230 = vmatprep.mubr.bf16.mxu0 0
      %1231 = vmatmul.mubr.bf16.gmra.mxu0 %v638
      %v1232 = vpop.f32.mrf.mxu0
      %v1233 = vadd.f32 %v1024, %v1232
      %v1234 = vpop.f32.mrf.mxu0
      %v1235 = vpop.f32.mrf.mxu0
      %v1236 = vadd.f32 %v1027, %v1235
      %v1237 = vpop.f32.mrf.mxu0
      %1238 = vmatprep.mubr.bf16.mxu0 0
      %1239 = vmatmul.mubr.bf16.gmra.mxu0 %v639
      %v1240 = vpop.f32.mrf.mxu0
      %v1241 = vadd.f32 %v1032, %v1240
      %v1242 = vpop.f32.mrf.mxu0
      %v1243 = vpop.f32.mrf.mxu0
      %v1244 = vadd.f32 %v1035, %v1243
      %v1245 = vpop.f32.mrf.mxu0
      %1246 = vmatprep.mubr.bf16.mxu0 0
      %1247 = vmatmul.mubr.bf16.gmra.mxu0 %v640
      %v1248 = vpop.f32.mrf.mxu0
      %v1249 = vadd.f32 %v1040, %v1248
      %v1250 = vpop.f32.mrf.mxu0
      %v1251 = vpop.f32.mrf.mxu0
      %v1252 = vadd.f32 %v1043, %v1251
      %v1253 = vpop.f32.mrf.mxu0
      %1254 = vmatprep.mubr.bf16.mxu0 0
      %1255 = vmatmul.mubr.bf16.gmra.mxu0 %v641
      %v1256 = vpop.f32.mrf.mxu0
      %v1257 = vadd.f32 %v1048, %v1256
      %v1258 = vpop.f32.mrf.mxu0
      %v1259 = vpop.f32.mrf.mxu0
      %v1260 = vadd.f32 %v1051, %v1259
      %v1261 = vpop.f32.mrf.mxu0
      %1262 = vmatprep.mubr.bf16.mxu0 0
      %1263 = vmatmul.mubr.bf16.gmra.mxu0 %v642
      %v1264 = vpop.f32.mrf.mxu0
      %v1265 = vadd.f32 %v1056, %v1264
      %v1266 = vpop.f32.mrf.mxu0
      %v1267 = vpop.f32.mrf.mxu0
      %v1268 = vadd.f32 %v1059, %v1267
      %v1269 = vpop.f32.mrf.mxu0
      %1270 = vdwg.mxu0
      %vm1271 = vcmask 1045504
      %v1272 = vrot.slane %v573, 2
      %v1273 = vrot.slane %v574, 2
      %v1274 = vsel %vm1271, %v1272, %v1273
      %v1275 = vrot.slane %v575, 2
      %v1276 = vsel %vm1271, %v1273, %v1275
      %v1277 = vrot.slane %v576, 2
      %v1278 = vrot.slane %v577, 2
      %v1279 = vsel %vm1271, %v1277, %v1278
      %v1280 = vrot.slane %v578, 2
      %v1281 = vsel %vm1271, %v1278, %v1280
      %v1282 = vrot.slane %v579, 2
      %v1283 = vrot.slane %v580, 2
      %v1284 = vsel %vm1271, %v1282, %v1283
      %v1285 = vrot.slane %v581, 2
      %v1286 = vsel %vm1271, %v1283, %v1285
      %v1287 = vrot.slane %v582, 2
      %v1288 = vrot.slane %v583, 2
      %v1289 = vsel %vm1271, %v1287, %v1288
      %v1290 = vrot.slane %v584, 2
      %v1291 = vsel %vm1271, %v1288, %v1290
      %v1292 = vrot.slane %v585, 2
      %v1293 = vrot.slane %v586, 2
      %v1294 = vsel %vm1271, %v1292, %v1293
      %v1295 = vrot.slane %v587, 2
      %v1296 = vsel %vm1271, %v1293, %v1295
      %v1297 = vrot.slane %v588, 2
      %v1298 = vrot.slane %v589, 2
      %v1299 = vsel %vm1271, %v1297, %v1298
      %v1300 = vrot.slane %v590, 2
      %v1301 = vsel %vm1271, %v1298, %v1300
      %v1302 = vrot.slane %v591, 2
      %v1303 = vrot.slane %v592, 2
      %v1304 = vsel %vm1271, %v1302, %v1303
      %v1305 = vrot.slane %v593, 2
      %v1306 = vsel %vm1271, %v1303, %v1305
      %v1307 = vrot.slane %v594, 2
      %v1308 = vrot.slane %v595, 2
      %v1309 = vsel %vm1271, %v1307, %v1308
      %v1310 = vrot.slane %v596, 2
      %v1311 = vsel %vm1271, %v1308, %v1310
      %v1312 = vrot.slane %v597, 2
      %v1313 = vrot.slane %v598, 2
      %v1314 = vsel %vm1271, %v1312, %v1313
      %v1315 = vrot.slane %v599, 2
      %v1316 = vsel %vm1271, %v1313, %v1315
      %v1317 = vrot.slane %v600, 2
      %v1318 = vrot.slane %v601, 2
      %v1319 = vsel %vm1271, %v1317, %v1318
      %v1320 = vrot.slane %v602, 2
      %v1321 = vsel %vm1271, %v1318, %v1320
      %v1322 = vrot.slane %v603, 2
      %v1323 = vrot.slane %v604, 2
      %v1324 = vsel %vm1271, %v1322, %v1323
      %v1325 = vrot.slane %v605, 2
      %v1326 = vsel %vm1271, %v1323, %v1325
      %v1327 = vrot.slane %v606, 2
      %v1328 = vrot.slane %v607, 2
      %v1329 = vsel %vm1271, %v1327, %v1328
      %v1330 = vrot.slane %v608, 2
      %v1331 = vsel %vm1271, %v1328, %v1330
      %v1332 = vrot.slane %v609, 2
      %v1333 = vrot.slane %v610, 2
      %v1334 = vsel %vm1271, %v1332, %v1333
      %v1335 = vrot.slane %v611, 2
      %v1336 = vsel %vm1271, %v1333, %v1335
      %v1337 = vrot.slane %v612, 2
      %v1338 = vrot.slane %v613, 2
      %v1339 = vsel %vm1271, %v1337, %v1338
      %v1340 = vrot.slane %v614, 2
      %v1341 = vsel %vm1271, %v1338, %v1340
      %v1342 = vrot.slane %v615, 2
      %v1343 = vrot.slane %v616, 2
      %v1344 = vsel %vm1271, %v1342, %v1343
      %v1345 = vrot.slane %v617, 2
      %v1346 = vsel %vm1271, %v1343, %v1345
      %v1347 = vrot.slane %v618, 2
      %v1348 = vrot.slane %v619, 2
      %v1349 = vsel %vm1271, %v1347, %v1348
      %v1350 = vrot.slane %v620, 2
      %v1351 = vsel %vm1271, %v1348, %v1350
      %v1384 = vpack.c.bf16 %v1276, %v1274
      %v1385 = vpack.c.bf16 %v1281, %v1279
      %v1386 = vpack.c.bf16 %v1286, %v1284
      %v1387 = vpack.c.bf16 %v1291, %v1289
      %v1388 = vpack.c.bf16 %v1296, %v1294
      %v1389 = vpack.c.bf16 %v1301, %v1299
      %v1390 = vpack.c.bf16 %v1306, %v1304
      %v1391 = vpack.c.bf16 %v1311, %v1309
      %v1392 = vpack.c.bf16 %v1316, %v1314
      %v1393 = vpack.c.bf16 %v1321, %v1319
      %v1394 = vpack.c.bf16 %v1326, %v1324
      %v1395 = vpack.c.bf16 %v1331, %v1329
      %v1396 = vpack.c.bf16 %v1336, %v1334
      %v1397 = vpack.c.bf16 %v1341, %v1339
      %v1398 = vpack.c.bf16 %v1346, %v1344
      %v1399 = vpack.c.bf16 %v1351, %v1349
      %s1400 = scalar_lea.vmem %s1, 128
      %v1401 = vld [vmem:[%s1400] sm:$0xf]
      %v1402 = vld [vmem:[%s1400 + $0x4] sm:$0xf]
      %v1403 = vld [vmem:[%s1400 + $0x8] sm:$0xf]
      %v1404 = vld [vmem:[%s1400 + $0xc] sm:$0xf]
      %v1405 = vld [vmem:[%s1400 + $0x10] sm:$0xf]
      %v1406 = vld [vmem:[%s1400 + $0x14] sm:$0xf]
      %v1407 = vld [vmem:[%s1400 + $0x18] sm:$0xf]
      %v1408 = vld [vmem:[%s1400 + $0x1c] sm:$0xf]
      %v1409 = vld [vmem:[%s1400 + $0x20] sm:$0xf]
      %v1410 = vld [vmem:[%s1400 + $0x24] sm:$0xf]
      %v1411 = vld [vmem:[%s1400 + $0x28] sm:$0xf]
      %v1412 = vld [vmem:[%s1400 + $0x2c] sm:$0xf]
      %v1413 = vld [vmem:[%s1400 + $0x30] sm:$0xf]
      %v1414 = vld [vmem:[%s1400 + $0x34] sm:$0xf]
      %v1415 = vld [vmem:[%s1400 + $0x38] sm:$0xf]
      %v1416 = vld [vmem:[%s1400 + $0x3c] sm:$0xf]
      %v1433 = vunpack.c.l.b16 %v1401
      %v1434 = vunpack.c.l.b16 %v1402
      %v1435 = vunpack.c.l.b16 %v1403
      %v1436 = vunpack.c.l.b16 %v1404
      %v1437 = vunpack.c.l.b16 %v1405
      %v1438 = vunpack.c.l.b16 %v1406
      %v1439 = vunpack.c.l.b16 %v1407
      %v1440 = vunpack.c.l.b16 %v1408
      %v1441 = vunpack.c.l.b16 %v1409
      %v1442 = vunpack.c.l.b16 %v1410
      %v1443 = vunpack.c.l.b16 %v1411
      %v1444 = vunpack.c.l.b16 %v1412
      %v1445 = vunpack.c.l.b16 %v1413
      %v1446 = vunpack.c.l.b16 %v1414
      %v1447 = vunpack.c.l.b16 %v1415
      %v1448 = vunpack.c.l.b16 %v1416
      %v1449 = vpack.c.b16 %v1434, %v1433
      %v1450 = vpack.c.b16 %v1436, %v1435
      %v1451 = vpack.c.b16 %v1438, %v1437
      %v1452 = vpack.c.b16 %v1440, %v1439
      %v1453 = vpack.c.b16 %v1442, %v1441
      %v1454 = vpack.c.b16 %v1444, %v1443
      %v1455 = vpack.c.b16 %v1446, %v1445
      %v1456 = vpack.c.b16 %v1448, %v1447
      %1465 = vmatprep.subr.bf16.mxu0 0
      %1466 = vmatpush1.bf16.msra.mxu0 %v1456
      %1467 = vmatprep.subr.bf16.mxu0 0
      %1468 = vmatpush1.bf16.msra.mxu0 %v1455
      %1469 = vmatprep.subr.bf16.mxu0 0
      %1470 = vmatpush1.bf16.msra.mxu0 %v1454
      %1471 = vmatprep.subr.bf16.mxu0 0
      %1472 = vmatpush1.bf16.msra.mxu0 %v1453
      %1473 = vmatprep.subr.bf16.mxu0 0
      %1474 = vmatpush1.bf16.msra.mxu0 %v1452
      %1475 = vmatprep.subr.bf16.mxu0 0
      %1476 = vmatpush1.bf16.msra.mxu0 %v1451
      %1477 = vmatprep.subr.bf16.mxu0 0
      %1478 = vmatpush1.bf16.msra.mxu0 %v1450
      %1479 = vmatprep.subr.bf16.mxu0 0
      %1480 = vmatpush1.bf16.msra.mxu0 %v1449
      %1481 = vmatprep.subr.bf16.mxu0 0
      %1482 = vmatpush2.bf16.msra.mxu0 0
      %1483 = vmatprep.subr.bf16.mxu0 0
      %1484 = vmatpush2.bf16.msra.mxu0 0
      %1485 = vmatprep.subr.bf16.mxu0 0
      %1486 = vmatpush2.bf16.msra.mxu0 0
      %1487 = vmatprep.subr.bf16.mxu0 0
      %1488 = vmatpush2.bf16.msra.mxu0 0
      %1489 = vmatprep.subr.bf16.mxu0 0
      %1490 = vmatpush2.bf16.msra.mxu0 0
      %1491 = vmatprep.subr.bf16.mxu0 0
      %1492 = vmatpush2.bf16.msra.mxu0 0
      %1493 = vmatprep.subr.bf16.mxu0 0
      %1494 = vmatpush2.bf16.msra.mxu0 0
      %1495 = vmatprep.subr.bf16.mxu0 0
      %1496 = vmatpush2.bf16.msra.mxu0 0
      %1497 = vmatprep.mubr.bf16.mxu0 0
      %1498 = vmatmul.mubr.bf16.gmra.mxu0 %v1384
      %v1499 = vpop.f32.mrf.mxu0
      %v1500 = vadd.f32 0.0, %v1499
      %v1501 = vpop.f32.mrf.mxu0
      %v1502 = vpop.f32.mrf.mxu0
      %v1503 = vadd.f32 0.0, %v1502
      %v1504 = vpop.f32.mrf.mxu0
      %1505 = vmatprep.mubr.bf16.mxu0 0
      %1506 = vmatmul.mubr.bf16.gmra.mxu0 %v1385
      %v1507 = vpop.f32.mrf.mxu0
      %v1508 = vadd.f32 0.0, %v1507
      %v1509 = vpop.f32.mrf.mxu0
      %v1510 = vpop.f32.mrf.mxu0
      %v1511 = vadd.f32 0.0, %v1510
      %v1512 = vpop.f32.mrf.mxu0
      %1513 = vmatprep.mubr.bf16.mxu0 0
      %1514 = vmatmul.mubr.bf16.gmra.mxu0 %v1386
      %v1515 = vpop.f32.mrf.mxu0
      %v1516 = vadd.f32 0.0, %v1515
      %v1517 = vpop.f32.mrf.mxu0
      %v1518 = vpop.f32.mrf.mxu0
      %v1519 = vadd.f32 0.0, %v1518
      %v1520 = vpop.f32.mrf.mxu0
      %1521 = vmatprep.mubr.bf16.mxu0 0
      %1522 = vmatmul.mubr.bf16.gmra.mxu0 %v1387
      %v1523 = vpop.f32.mrf.mxu0
      %v1524 = vadd.f32 0.0, %v1523
      %v1525 = vpop.f32.mrf.mxu0
      %v1526 = vpop.f32.mrf.mxu0
      %v1527 = vadd.f32 0.0, %v1526
      %v1528 = vpop.f32.mrf.mxu0
      %1529 = vmatprep.mubr.bf16.mxu0 0
      %1530 = vmatmul.mubr.bf16.gmra.mxu0 %v1388
      %v1531 = vpop.f32.mrf.mxu0
      %v1532 = vadd.f32 0.0, %v1531
      %v1533 = vpop.f32.mrf.mxu0
      %v1534 = vpop.f32.mrf.mxu0
      %v1535 = vadd.f32 0.0, %v1534
      %v1536 = vpop.f32.mrf.mxu0
      %1537 = vmatprep.mubr.bf16.mxu0 0
      %1538 = vmatmul.mubr.bf16.gmra.mxu0 %v1389
      %v1539 = vpop.f32.mrf.mxu0
      %v1540 = vadd.f32 0.0, %v1539
      %v1541 = vpop.f32.mrf.mxu0
      %v1542 = vpop.f32.mrf.mxu0
      %v1543 = vadd.f32 0.0, %v1542
      %v1544 = vpop.f32.mrf.mxu0
      %1545 = vmatprep.mubr.bf16.mxu0 0
      %1546 = vmatmul.mubr.bf16.gmra.mxu0 %v1390
      %v1547 = vpop.f32.mrf.mxu0
      %v1548 = vadd.f32 0.0, %v1547
      %v1549 = vpop.f32.mrf.mxu0
      %v1550 = vpop.f32.mrf.mxu0
      %v1551 = vadd.f32 0.0, %v1550
      %v1552 = vpop.f32.mrf.mxu0
      %1553 = vmatprep.mubr.bf16.mxu0 0
      %1554 = vmatmul.mubr.bf16.gmra.mxu0 %v1391
      %v1555 = vpop.f32.mrf.mxu0
      %v1556 = vadd.f32 0.0, %v1555
      %v1557 = vpop.f32.mrf.mxu0
      %v1558 = vpop.f32.mrf.mxu0
      %v1559 = vadd.f32 0.0, %v1558
      %v1560 = vpop.f32.mrf.mxu0
      %1561 = vmatprep.mubr.bf16.mxu0 0
      %1562 = vmatmul.mubr.bf16.gmra.mxu0 %v1392
      %v1563 = vpop.f32.mrf.mxu0
      %v1564 = vadd.f32 0.0, %v1563
      %v1565 = vpop.f32.mrf.mxu0
      %v1566 = vpop.f32.mrf.mxu0
      %v1567 = vadd.f32 0.0, %v1566
      %v1568 = vpop.f32.mrf.mxu0
      %1569 = vmatprep.mubr.bf16.mxu0 0
      %1570 = vmatmul.mubr.bf16.gmra.mxu0 %v1393
      %v1571 = vpop.f32.mrf.mxu0
      %v1572 = vadd.f32 0.0, %v1571
      %v1573 = vpop.f32.mrf.mxu0
      %v1574 = vpop.f32.mrf.mxu0
      %v1575 = vadd.f32 0.0, %v1574
      %v1576 = vpop.f32.mrf.mxu0
      %1577 = vmatprep.mubr.bf16.mxu0 0
      %1578 = vmatmul.mubr.bf16.gmra.mxu0 %v1394
      %v1579 = vpop.f32.mrf.mxu0
      %v1580 = vadd.f32 0.0, %v1579
      %v1581 = vpop.f32.mrf.mxu0
      %v1582 = vpop.f32.mrf.mxu0
      %v1583 = vadd.f32 0.0, %v1582
      %v1584 = vpop.f32.mrf.mxu0
      %1585 = vmatprep.mubr.bf16.mxu0 0
      %1586 = vmatmul.mubr.bf16.gmra.mxu0 %v1395
      %v1587 = vpop.f32.mrf.mxu0
      %v1588 = vadd.f32 0.0, %v1587
      %v1589 = vpop.f32.mrf.mxu0
      %v1590 = vpop.f32.mrf.mxu0
      %v1591 = vadd.f32 0.0, %v1590
      %v1592 = vpop.f32.mrf.mxu0
      %1593 = vmatprep.mubr.bf16.mxu0 0
      %1594 = vmatmul.mubr.bf16.gmra.mxu0 %v1396
      %v1595 = vpop.f32.mrf.mxu0
      %v1596 = vadd.f32 0.0, %v1595
      %v1597 = vpop.f32.mrf.mxu0
      %v1598 = vpop.f32.mrf.mxu0
      %v1599 = vadd.f32 0.0, %v1598
      %v1600 = vpop.f32.mrf.mxu0
      %1601 = vmatprep.mubr.bf16.mxu0 0
      %1602 = vmatmul.mubr.bf16.gmra.mxu0 %v1397
      %v1603 = vpop.f32.mrf.mxu0
      %v1604 = vadd.f32 0.0, %v1603
      %v1605 = vpop.f32.mrf.mxu0
      %v1606 = vpop.f32.mrf.mxu0
      %v1607 = vadd.f32 0.0, %v1606
      %v1608 = vpop.f32.mrf.mxu0
      %1609 = vmatprep.mubr.bf16.mxu0 0
      %1610 = vmatmul.mubr.bf16.gmra.mxu0 %v1398
      %v1611 = vpop.f32.mrf.mxu0
      %v1612 = vadd.f32 0.0, %v1611
      %v1613 = vpop.f32.mrf.mxu0
      %v1614 = vpop.f32.mrf.mxu0
      %v1615 = vadd.f32 0.0, %v1614
      %v1616 = vpop.f32.mrf.mxu0
      %1617 = vmatprep.mubr.bf16.mxu0 0
      %1618 = vmatmul.mubr.bf16.gmra.mxu0 %v1399
      %v1619 = vpop.f32.mrf.mxu0
      %v1620 = vadd.f32 0.0, %v1619
      %v1621 = vpop.f32.mrf.mxu0
      %v1622 = vpop.f32.mrf.mxu0
      %v1623 = vadd.f32 0.0, %v1622
      %v1624 = vpop.f32.mrf.mxu0
      %1625 = vdwg.mxu0
      %v1626 = vadd.f32 %v1145, %v1500
      %v1627 = vadd.f32 %v1148, %v1503
      %v1628 = vadd.f32 %v1153, %v1508
      %v1629 = vadd.f32 %v1156, %v1511
      %v1630 = vadd.f32 %v1161, %v1516
      %v1631 = vadd.f32 %v1164, %v1519
      %v1632 = vadd.f32 %v1169, %v1524
      %v1633 = vadd.f32 %v1172, %v1527
      %v1634 = vadd.f32 %v1177, %v1532
      %v1635 = vadd.f32 %v1180, %v1535
      %v1636 = vadd.f32 %v1185, %v1540
      %v1637 = vadd.f32 %v1188, %v1543
      %v1638 = vadd.f32 %v1193, %v1548
      %v1639 = vadd.f32 %v1196, %v1551
      %v1640 = vadd.f32 %v1201, %v1556
      %v1641 = vadd.f32 %v1204, %v1559
      %v1642 = vadd.f32 %v1209, %v1564
      %v1643 = vadd.f32 %v1212, %v1567
      %v1644 = vadd.f32 %v1217, %v1572
      %v1645 = vadd.f32 %v1220, %v1575
      %v1646 = vadd.f32 %v1225, %v1580
      %v1647 = vadd.f32 %v1228, %v1583
      %v1648 = vadd.f32 %v1233, %v1588
      %v1649 = vadd.f32 %v1236, %v1591
      %v1650 = vadd.f32 %v1241, %v1596
      %v1651 = vadd.f32 %v1244, %v1599
      %v1652 = vadd.f32 %v1249, %v1604
      %v1653 = vadd.f32 %v1252, %v1607
      %v1654 = vadd.f32 %v1257, %v1612
      %v1655 = vadd.f32 %v1260, %v1615
      %v1656 = vadd.f32 %v1265, %v1620
      %v1657 = vadd.f32 %v1268, %v1623
      %v1658 = vpack.c.bf16 %v622, %v621
      %s1659 = scalar_lea.vmem %s1, 192
      %v1660 = vld [vmem:[%s1659] sm:$0xf]
      %v1661 = vld [vmem:[%s1659 + $0x4] sm:$0xf]
      %v1662 = vld [vmem:[%s1659 + $0x8] sm:$0xf]
      %v1663 = vld [vmem:[%s1659 + $0xc] sm:$0xf]
      %v1664 = vld [vmem:[%s1659 + $0x10] sm:$0xf]
      %v1665 = vld [vmem:[%s1659 + $0x14] sm:$0xf]
      %v1666 = vld [vmem:[%s1659 + $0x18] sm:$0xf]
      %v1667 = vld [vmem:[%s1659 + $0x1c] sm:$0xf]
      %v1668 = vld [vmem:[%s1659 + $0x20] sm:$0xf]
      %v1669 = vld [vmem:[%s1659 + $0x24] sm:$0xf]
      %v1670 = vld [vmem:[%s1659 + $0x28] sm:$0xf]
      %v1671 = vld [vmem:[%s1659 + $0x2c] sm:$0xf]
      %v1672 = vld [vmem:[%s1659 + $0x30] sm:$0xf]
      %v1673 = vld [vmem:[%s1659 + $0x34] sm:$0xf]
      %v1674 = vld [vmem:[%s1659 + $0x38] sm:$0xf]
      %v1675 = vld [vmem:[%s1659 + $0x3c] sm:$0xf]
      %v1692 = vunpack.c.l.b16 %v1660
      %v1693 = vunpack.c.l.b16 %v1661
      %v1694 = vunpack.c.l.b16 %v1662
      %v1695 = vunpack.c.l.b16 %v1663
      %v1696 = vunpack.c.l.b16 %v1664
      %v1697 = vunpack.c.l.b16 %v1665
      %v1698 = vunpack.c.l.b16 %v1666
      %v1699 = vunpack.c.l.b16 %v1667
      %v1700 = vunpack.c.l.b16 %v1668
      %v1701 = vunpack.c.l.b16 %v1669
      %v1702 = vunpack.c.l.b16 %v1670
      %v1703 = vunpack.c.l.b16 %v1671
      %v1704 = vunpack.c.l.b16 %v1672
      %v1705 = vunpack.c.l.b16 %v1673
      %v1706 = vunpack.c.l.b16 %v1674
      %v1707 = vunpack.c.l.b16 %v1675
      %v1708 = vpack.c.b16 %v1693, %v1692
      %v1709 = vpack.c.b16 %v1695, %v1694
      %v1710 = vpack.c.b16 %v1697, %v1696
      %v1711 = vpack.c.b16 %v1699, %v1698
      %v1712 = vpack.c.b16 %v1701, %v1700
      %v1713 = vpack.c.b16 %v1703, %v1702
      %v1714 = vpack.c.b16 %v1705, %v1704
      %v1715 = vpack.c.b16 %v1707, %v1706
      %1724 = vmatprep.subr.bf16.mxu0 0
      %1725 = vmatpush1.bf16.msra.mxu0 %v1715
      %1726 = vmatprep.subr.bf16.mxu0 0
      %1727 = vmatpush1.bf16.msra.mxu0 %v1714
      %1728 = vmatprep.subr.bf16.mxu0 0
      %1729 = vmatpush1.bf16.msra.mxu0 %v1713
      %1730 = vmatprep.subr.bf16.mxu0 0
      %1731 = vmatpush1.bf16.msra.mxu0 %v1712
      %1732 = vmatprep.subr.bf16.mxu0 0
      %1733 = vmatpush1.bf16.msra.mxu0 %v1711
      %1734 = vmatprep.subr.bf16.mxu0 0
      %1735 = vmatpush1.bf16.msra.mxu0 %v1710
      %1736 = vmatprep.subr.bf16.mxu0 0
      %1737 = vmatpush1.bf16.msra.mxu0 %v1709
      %1738 = vmatprep.subr.bf16.mxu0 0
      %1739 = vmatpush1.bf16.msra.mxu0 %v1708
      %1740 = vmatprep.subr.bf16.mxu0 0
      %1741 = vmatpush2.bf16.msra.mxu0 0
      %1742 = vmatprep.subr.bf16.mxu0 0
      %1743 = vmatpush2.bf16.msra.mxu0 0
      %1744 = vmatprep.subr.bf16.mxu0 0
      %1745 = vmatpush2.bf16.msra.mxu0 0
      %1746 = vmatprep.subr.bf16.mxu0 0
      %1747 = vmatpush2.bf16.msra.mxu0 0
      %1748 = vmatprep.subr.bf16.mxu0 0
      %1749 = vmatpush2.bf16.msra.mxu0 0
      %1750 = vmatprep.subr.bf16.mxu0 0
      %1751 = vmatpush2.bf16.msra.mxu0 0
      %1752 = vmatprep.subr.bf16.mxu0 0
      %1753 = vmatpush2.bf16.msra.mxu0 0
      %1754 = vmatprep.subr.bf16.mxu0 0
      %1755 = vmatpush2.bf16.msra.mxu0 0
      %1756 = vmatprep.mubr.bf16.mxu0 0
      %1757 = vmatmul.mubr.bf16.gmra.mxu0 %v628
      %v1758 = vpop.f32.mrf.mxu0
      %v1759 = vadd.f32 0.0, %v1758
      %v1760 = vpop.f32.mrf.mxu0
      %v1761 = vpop.f32.mrf.mxu0
      %v1762 = vadd.f32 0.0, %v1761
      %v1763 = vpop.f32.mrf.mxu0
      %1764 = vmatprep.mubr.bf16.mxu0 0
      %1765 = vmatmul.mubr.bf16.gmra.mxu0 %v629
      %v1766 = vpop.f32.mrf.mxu0
      %v1767 = vadd.f32 0.0, %v1766
      %v1768 = vpop.f32.mrf.mxu0
      %v1769 = vpop.f32.mrf.mxu0
      %v1770 = vadd.f32 0.0, %v1769
      %v1771 = vpop.f32.mrf.mxu0
      %1772 = vmatprep.mubr.bf16.mxu0 0
      %1773 = vmatmul.mubr.bf16.gmra.mxu0 %v630
      %v1774 = vpop.f32.mrf.mxu0
      %v1775 = vadd.f32 0.0, %v1774
      %v1776 = vpop.f32.mrf.mxu0
      %v1777 = vpop.f32.mrf.mxu0
      %v1778 = vadd.f32 0.0, %v1777
      %v1779 = vpop.f32.mrf.mxu0
      %1780 = vmatprep.mubr.bf16.mxu0 0
      %1781 = vmatmul.mubr.bf16.gmra.mxu0 %v631
      %v1782 = vpop.f32.mrf.mxu0
      %v1783 = vadd.f32 0.0, %v1782
      %v1784 = vpop.f32.mrf.mxu0
      %v1785 = vpop.f32.mrf.mxu0
      %v1786 = vadd.f32 0.0, %v1785
      %v1787 = vpop.f32.mrf.mxu0
      %1788 = vmatprep.mubr.bf16.mxu0 0
      %1789 = vmatmul.mubr.bf16.gmra.mxu0 %v632
      %v1790 = vpop.f32.mrf.mxu0
      %v1791 = vadd.f32 0.0, %v1790
      %v1792 = vpop.f32.mrf.mxu0
      %v1793 = vpop.f32.mrf.mxu0
      %v1794 = vadd.f32 0.0, %v1793
      %v1795 = vpop.f32.mrf.mxu0
      %1796 = vmatprep.mubr.bf16.mxu0 0
      %1797 = vmatmul.mubr.bf16.gmra.mxu0 %v633
      %v1798 = vpop.f32.mrf.mxu0
      %v1799 = vadd.f32 0.0, %v1798
      %v1800 = vpop.f32.mrf.mxu0
      %v1801 = vpop.f32.mrf.mxu0
      %v1802 = vadd.f32 0.0, %v1801
      %v1803 = vpop.f32.mrf.mxu0
      %1804 = vmatprep.mubr.bf16.mxu0 0
      %1805 = vmatmul.mubr.bf16.gmra.mxu0 %v634
      %v1806 = vpop.f32.mrf.mxu0
      %v1807 = vadd.f32 0.0, %v1806
      %v1808 = vpop.f32.mrf.mxu0
      %v1809 = vpop.f32.mrf.mxu0
      %v1810 = vadd.f32 0.0, %v1809
      %v1811 = vpop.f32.mrf.mxu0
      %1812 = vmatprep.mubr.bf16.mxu0 0
      %1813 = vmatmul.mubr.bf16.gmra.mxu0 %v635
      %v1814 = vpop.f32.mrf.mxu0
      %v1815 = vadd.f32 0.0, %v1814
      %v1816 = vpop.f32.mrf.mxu0
      %v1817 = vpop.f32.mrf.mxu0
      %v1818 = vadd.f32 0.0, %v1817
      %v1819 = vpop.f32.mrf.mxu0
      %1820 = vmatprep.mubr.bf16.mxu0 0
      %1821 = vmatmul.mubr.bf16.gmra.mxu0 %v636
      %v1822 = vpop.f32.mrf.mxu0
      %v1823 = vadd.f32 0.0, %v1822
      %v1824 = vpop.f32.mrf.mxu0
      %v1825 = vpop.f32.mrf.mxu0
      %v1826 = vadd.f32 0.0, %v1825
      %v1827 = vpop.f32.mrf.mxu0
      %1828 = vmatprep.mubr.bf16.mxu0 0
      %1829 = vmatmul.mubr.bf16.gmra.mxu0 %v637
      %v1830 = vpop.f32.mrf.mxu0
      %v1831 = vadd.f32 0.0, %v1830
      %v1832 = vpop.f32.mrf.mxu0
      %v1833 = vpop.f32.mrf.mxu0
      %v1834 = vadd.f32 0.0, %v1833
      %v1835 = vpop.f32.mrf.mxu0
      %1836 = vmatprep.mubr.bf16.mxu0 0
      %1837 = vmatmul.mubr.bf16.gmra.mxu0 %v638
      %v1838 = vpop.f32.mrf.mxu0
      %v1839 = vadd.f32 0.0, %v1838
      %v1840 = vpop.f32.mrf.mxu0
      %v1841 = vpop.f32.mrf.mxu0
      %v1842 = vadd.f32 0.0, %v1841
      %v1843 = vpop.f32.mrf.mxu0
      %1844 = vmatprep.mubr.bf16.mxu0 0
      %1845 = vmatmul.mubr.bf16.gmra.mxu0 %v639
      %v1846 = vpop.f32.mrf.mxu0
      %v1847 = vadd.f32 0.0, %v1846
      %v1848 = vpop.f32.mrf.mxu0
      %v1849 = vpop.f32.mrf.mxu0
      %v1850 = vadd.f32 0.0, %v1849
      %v1851 = vpop.f32.mrf.mxu0
      %1852 = vmatprep.mubr.bf16.mxu0 0
      %1853 = vmatmul.mubr.bf16.gmra.mxu0 %v640
      %v1854 = vpop.f32.mrf.mxu0
      %v1855 = vadd.f32 0.0, %v1854
      %v1856 = vpop.f32.mrf.mxu0
      %v1857 = vpop.f32.mrf.mxu0
      %v1858 = vadd.f32 0.0, %v1857
      %v1859 = vpop.f32.mrf.mxu0
      %1860 = vmatprep.mubr.bf16.mxu0 0
      %1861 = vmatmul.mubr.bf16.gmra.mxu0 %v641
      %v1862 = vpop.f32.mrf.mxu0
      %v1863 = vadd.f32 0.0, %v1862
      %v1864 = vpop.f32.mrf.mxu0
      %v1865 = vpop.f32.mrf.mxu0
      %v1866 = vadd.f32 0.0, %v1865
      %v1867 = vpop.f32.mrf.mxu0
      %1868 = vmatprep.mubr.bf16.mxu0 0
      %1869 = vmatmul.mubr.bf16.gmra.mxu0 %v642
      %v1870 = vpop.f32.mrf.mxu0
      %v1871 = vadd.f32 0.0, %v1870
      %v1872 = vpop.f32.mrf.mxu0
      %v1873 = vpop.f32.mrf.mxu0
      %v1874 = vadd.f32 0.0, %v1873
      %v1875 = vpop.f32.mrf.mxu0
      %1876 = vmatprep.mubr.bf16.mxu0 0
      %1877 = vmatmul.mubr.bf16.gmra.mxu0 %v1658
      %v1878 = vpop.f32.mrf.mxu0
      %v1879 = vadd.f32 0.0, %v1878
      %v1880 = vpop.f32.mrf.mxu0
      %v1881 = vpop.f32.mrf.mxu0
      %v1882 = vadd.f32 0.0, %v1881
      %v1883 = vpop.f32.mrf.mxu0
      %1884 = vdwg.mxu0
      %v1885 = vadd.f32 %v1626, %v1759
      %v1886 = vadd.f32 %v1627, %v1762
      %v1887 = vadd.f32 %v1628, %v1767
      %v1888 = vadd.f32 %v1629, %v1770
      %v1889 = vadd.f32 %v1630, %v1775
      %v1890 = vadd.f32 %v1631, %v1778
      %v1891 = vadd.f32 %v1632, %v1783
      %v1892 = vadd.f32 %v1633, %v1786
      %v1893 = vadd.f32 %v1634, %v1791
      %v1894 = vadd.f32 %v1635, %v1794
      %v1895 = vadd.f32 %v1636, %v1799
      %v1896 = vadd.f32 %v1637, %v1802
      %v1897 = vadd.f32 %v1638, %v1807
      %v1898 = vadd.f32 %v1639, %v1810
      %v1899 = vadd.f32 %v1640, %v1815
      %v1900 = vadd.f32 %v1641, %v1818
      %v1901 = vadd.f32 %v1642, %v1823
      %v1902 = vadd.f32 %v1643, %v1826
      %v1903 = vadd.f32 %v1644, %v1831
      %v1904 = vadd.f32 %v1645, %v1834
      %v1905 = vadd.f32 %v1646, %v1839
      %v1906 = vadd.f32 %v1647, %v1842
      %v1907 = vadd.f32 %v1648, %v1847
      %v1908 = vadd.f32 %v1649, %v1850
      %v1909 = vadd.f32 %v1650, %v1855
      %v1910 = vadd.f32 %v1651, %v1858
      %v1911 = vadd.f32 %v1652, %v1863
      %v1912 = vadd.f32 %v1653, %v1866
      %v1913 = vadd.f32 %v1654, %v1871
      %v1914 = vadd.f32 %v1655, %v1874
      %v1915 = vadd.f32 %v1656, %v1879
      %v1916 = vadd.f32 %v1657, %v1882
      %v1920 = vrot.slane %v621, 1
      %v1921 = vrot.slane %v622, 1
      %v1922 = vsel %vm707, %v1920, %v1921
      %v1923 = vrot.slane %v623, 1
      %v1924 = vsel %vm707, %v1921, %v1923
      %v1927 = vpack.c.bf16 %v1924, %v1922
      %s1928 = scalar_lea.vmem %s1, 256
      %v1929 = vld [vmem:[%s1928] sm:$0xf]
      %v1930 = vld [vmem:[%s1928 + $0x4] sm:$0xf]
      %v1931 = vld [vmem:[%s1928 + $0x8] sm:$0xf]
      %v1932 = vld [vmem:[%s1928 + $0xc] sm:$0xf]
      %v1933 = vld [vmem:[%s1928 + $0x10] sm:$0xf]
      %v1934 = vld [vmem:[%s1928 + $0x14] sm:$0xf]
      %v1935 = vld [vmem:[%s1928 + $0x18] sm:$0xf]
      %v1936 = vld [vmem:[%s1928 + $0x1c] sm:$0xf]
      %v1937 = vld [vmem:[%s1928 + $0x20] sm:$0xf]
      %v1938 = vld [vmem:[%s1928 + $0x24] sm:$0xf]
      %v1939 = vld [vmem:[%s1928 + $0x28] sm:$0xf]
      %v1940 = vld [vmem:[%s1928 + $0x2c] sm:$0xf]
      %v1941 = vld [vmem:[%s1928 + $0x30] sm:$0xf]
      %v1942 = vld [vmem:[%s1928 + $0x34] sm:$0xf]
      %v1943 = vld [vmem:[%s1928 + $0x38] sm:$0xf]
      %v1944 = vld [vmem:[%s1928 + $0x3c] sm:$0xf]
      %v1961 = vunpack.c.l.b16 %v1929
      %v1962 = vunpack.c.l.b16 %v1930
      %v1963 = vunpack.c.l.b16 %v1931
      %v1964 = vunpack.c.l.b16 %v1932
      %v1965 = vunpack.c.l.b16 %v1933
      %v1966 = vunpack.c.l.b16 %v1934
      %v1967 = vunpack.c.l.b16 %v1935
      %v1968 = vunpack.c.l.b16 %v1936
      %v1969 = vunpack.c.l.b16 %v1937
      %v1970 = vunpack.c.l.b16 %v1938
      %v1971 = vunpack.c.l.b16 %v1939
      %v1972 = vunpack.c.l.b16 %v1940
      %v1973 = vunpack.c.l.b16 %v1941
      %v1974 = vunpack.c.l.b16 %v1942
      %v1975 = vunpack.c.l.b16 %v1943
      %v1976 = vunpack.c.l.b16 %v1944
      %v1977 = vpack.c.b16 %v1962, %v1961
      %v1978 = vpack.c.b16 %v1964, %v1963
      %v1979 = vpack.c.b16 %v1966, %v1965
      %v1980 = vpack.c.b16 %v1968, %v1967
      %v1981 = vpack.c.b16 %v1970, %v1969
      %v1982 = vpack.c.b16 %v1972, %v1971
      %v1983 = vpack.c.b16 %v1974, %v1973
      %v1984 = vpack.c.b16 %v1976, %v1975
      %1993 = vmatprep.subr.bf16.mxu0 0
      %1994 = vmatpush1.bf16.msra.mxu0 %v1984
      %1995 = vmatprep.subr.bf16.mxu0 0
      %1996 = vmatpush1.bf16.msra.mxu0 %v1983
      %1997 = vmatprep.subr.bf16.mxu0 0
      %1998 = vmatpush1.bf16.msra.mxu0 %v1982
      %1999 = vmatprep.subr.bf16.mxu0 0
      %2000 = vmatpush1.bf16.msra.mxu0 %v1981
      %2001 = vmatprep.subr.bf16.mxu0 0
      %2002 = vmatpush1.bf16.msra.mxu0 %v1980
      %2003 = vmatprep.subr.bf16.mxu0 0
      %2004 = vmatpush1.bf16.msra.mxu0 %v1979
      %2005 = vmatprep.subr.bf16.mxu0 0
      %2006 = vmatpush1.bf16.msra.mxu0 %v1978
      %2007 = vmatprep.subr.bf16.mxu0 0
      %2008 = vmatpush1.bf16.msra.mxu0 %v1977
      %2009 = vmatprep.subr.bf16.mxu0 0
      %2010 = vmatpush2.bf16.msra.mxu0 0
      %2011 = vmatprep.subr.bf16.mxu0 0
      %2012 = vmatpush2.bf16.msra.mxu0 0
      %2013 = vmatprep.subr.bf16.mxu0 0
      %2014 = vmatpush2.bf16.msra.mxu0 0
      %2015 = vmatprep.subr.bf16.mxu0 0
      %2016 = vmatpush2.bf16.msra.mxu0 0
      %2017 = vmatprep.subr.bf16.mxu0 0
      %2018 = vmatpush2.bf16.msra.mxu0 0
      %2019 = vmatprep.subr.bf16.mxu0 0
      %2020 = vmatpush2.bf16.msra.mxu0 0
      %2021 = vmatprep.subr.bf16.mxu0 0
      %2022 = vmatpush2.bf16.msra.mxu0 0
      %2023 = vmatprep.subr.bf16.mxu0 0
      %2024 = vmatpush2.bf16.msra.mxu0 0
      %2025 = vmatprep.mubr.bf16.mxu0 0
      %2026 = vmatmul.mubr.bf16.gmra.mxu0 %v821
      %v2027 = vpop.f32.mrf.mxu0
      %v2028 = vadd.f32 0.0, %v2027
      %v2029 = vpop.f32.mrf.mxu0
      %v2030 = vpop.f32.mrf.mxu0
      %v2031 = vadd.f32 0.0, %v2030
      %v2032 = vpop.f32.mrf.mxu0
      %2033 = vmatprep.mubr.bf16.mxu0 0
      %2034 = vmatmul.mubr.bf16.gmra.mxu0 %v822
      %v2035 = vpop.f32.mrf.mxu0
      %v2036 = vadd.f32 0.0, %v2035
      %v2037 = vpop.f32.mrf.mxu0
      %v2038 = vpop.f32.mrf.mxu0
      %v2039 = vadd.f32 0.0, %v2038
      %v2040 = vpop.f32.mrf.mxu0
      %2041 = vmatprep.mubr.bf16.mxu0 0
      %2042 = vmatmul.mubr.bf16.gmra.mxu0 %v823
      %v2043 = vpop.f32.mrf.mxu0
      %v2044 = vadd.f32 0.0, %v2043
      %v2045 = vpop.f32.mrf.mxu0
      %v2046 = vpop.f32.mrf.mxu0
      %v2047 = vadd.f32 0.0, %v2046
      %v2048 = vpop.f32.mrf.mxu0
      %2049 = vmatprep.mubr.bf16.mxu0 0
      %2050 = vmatmul.mubr.bf16.gmra.mxu0 %v824
      %v2051 = vpop.f32.mrf.mxu0
      %v2052 = vadd.f32 0.0, %v2051
      %v2053 = vpop.f32.mrf.mxu0
      %v2054 = vpop.f32.mrf.mxu0
      %v2055 = vadd.f32 0.0, %v2054
      %v2056 = vpop.f32.mrf.mxu0
      %2057 = vmatprep.mubr.bf16.mxu0 0
      %2058 = vmatmul.mubr.bf16.gmra.mxu0 %v825
      %v2059 = vpop.f32.mrf.mxu0
      %v2060 = vadd.f32 0.0, %v2059
      %v2061 = vpop.f32.mrf.mxu0
      %v2062 = vpop.f32.mrf.mxu0
      %v2063 = vadd.f32 0.0, %v2062
      %v2064 = vpop.f32.mrf.mxu0
      %2065 = vmatprep.mubr.bf16.mxu0 0
      %2066 = vmatmul.mubr.bf16.gmra.mxu0 %v826
      %v2067 = vpop.f32.mrf.mxu0
      %v2068 = vadd.f32 0.0, %v2067
      %v2069 = vpop.f32.mrf.mxu0
      %v2070 = vpop.f32.mrf.mxu0
      %v2071 = vadd.f32 0.0, %v2070
      %v2072 = vpop.f32.mrf.mxu0
      %2073 = vmatprep.mubr.bf16.mxu0 0
      %2074 = vmatmul.mubr.bf16.gmra.mxu0 %v827
      %v2075 = vpop.f32.mrf.mxu0
      %v2076 = vadd.f32 0.0, %v2075
      %v2077 = vpop.f32.mrf.mxu0
      %v2078 = vpop.f32.mrf.mxu0
      %v2079 = vadd.f32 0.0, %v2078
      %v2080 = vpop.f32.mrf.mxu0
      %2081 = vmatprep.mubr.bf16.mxu0 0
      %2082 = vmatmul.mubr.bf16.gmra.mxu0 %v828
      %v2083 = vpop.f32.mrf.mxu0
      %v2084 = vadd.f32 0.0, %v2083
      %v2085 = vpop.f32.mrf.mxu0
      %v2086 = vpop.f32.mrf.mxu0
      %v2087 = vadd.f32 0.0, %v2086
      %v2088 = vpop.f32.mrf.mxu0
      %2089 = vmatprep.mubr.bf16.mxu0 0
      %2090 = vmatmul.mubr.bf16.gmra.mxu0 %v829
      %v2091 = vpop.f32.mrf.mxu0
      %v2092 = vadd.f32 0.0, %v2091
      %v2093 = vpop.f32.mrf.mxu0
      %v2094 = vpop.f32.mrf.mxu0
      %v2095 = vadd.f32 0.0, %v2094
      %v2096 = vpop.f32.mrf.mxu0
      %2097 = vmatprep.mubr.bf16.mxu0 0
      %2098 = vmatmul.mubr.bf16.gmra.mxu0 %v830
      %v2099 = vpop.f32.mrf.mxu0
      %v2100 = vadd.f32 0.0, %v2099
      %v2101 = vpop.f32.mrf.mxu0
      %v2102 = vpop.f32.mrf.mxu0
      %v2103 = vadd.f32 0.0, %v2102
      %v2104 = vpop.f32.mrf.mxu0
      %2105 = vmatprep.mubr.bf16.mxu0 0
      %2106 = vmatmul.mubr.bf16.gmra.mxu0 %v831
      %v2107 = vpop.f32.mrf.mxu0
      %v2108 = vadd.f32 0.0, %v2107
      %v2109 = vpop.f32.mrf.mxu0
      %v2110 = vpop.f32.mrf.mxu0
      %v2111 = vadd.f32 0.0, %v2110
      %v2112 = vpop.f32.mrf.mxu0
      %2113 = vmatprep.mubr.bf16.mxu0 0
      %2114 = vmatmul.mubr.bf16.gmra.mxu0 %v832
      %v2115 = vpop.f32.mrf.mxu0
      %v2116 = vadd.f32 0.0, %v2115
      %v2117 = vpop.f32.mrf.mxu0
      %v2118 = vpop.f32.mrf.mxu0
      %v2119 = vadd.f32 0.0, %v2118
      %v2120 = vpop.f32.mrf.mxu0
      %2121 = vmatprep.mubr.bf16.mxu0 0
      %2122 = vmatmul.mubr.bf16.gmra.mxu0 %v833
      %v2123 = vpop.f32.mrf.mxu0
      %v2124 = vadd.f32 0.0, %v2123
      %v2125 = vpop.f32.mrf.mxu0
      %v2126 = vpop.f32.mrf.mxu0
      %v2127 = vadd.f32 0.0, %v2126
      %v2128 = vpop.f32.mrf.mxu0
      %2129 = vmatprep.mubr.bf16.mxu0 0
      %2130 = vmatmul.mubr.bf16.gmra.mxu0 %v834
      %v2131 = vpop.f32.mrf.mxu0
      %v2132 = vadd.f32 0.0, %v2131
      %v2133 = vpop.f32.mrf.mxu0
      %v2134 = vpop.f32.mrf.mxu0
      %v2135 = vadd.f32 0.0, %v2134
      %v2136 = vpop.f32.mrf.mxu0
      %2137 = vmatprep.mubr.bf16.mxu0 0
      %2138 = vmatmul.mubr.bf16.gmra.mxu0 %v835
      %v2139 = vpop.f32.mrf.mxu0
      %v2140 = vadd.f32 0.0, %v2139
      %v2141 = vpop.f32.mrf.mxu0
      %v2142 = vpop.f32.mrf.mxu0
      %v2143 = vadd.f32 0.0, %v2142
      %v2144 = vpop.f32.mrf.mxu0
      %2145 = vmatprep.mubr.bf16.mxu0 0
      %2146 = vmatmul.mubr.bf16.gmra.mxu0 %v1927
      %v2147 = vpop.f32.mrf.mxu0
      %v2148 = vadd.f32 0.0, %v2147
      %v2149 = vpop.f32.mrf.mxu0
      %v2150 = vpop.f32.mrf.mxu0
      %v2151 = vadd.f32 0.0, %v2150
      %v2152 = vpop.f32.mrf.mxu0
      %2153 = vdwg.mxu0
      %v2154 = vadd.f32 %v1885, %v2028
      %v2155 = vadd.f32 %v1886, %v2031
      %v2156 = vadd.f32 %v1887, %v2036
      %v2157 = vadd.f32 %v1888, %v2039
      %v2158 = vadd.f32 %v1889, %v2044
      %v2159 = vadd.f32 %v1890, %v2047
      %v2160 = vadd.f32 %v1891, %v2052
      %v2161 = vadd.f32 %v1892, %v2055
      %v2162 = vadd.f32 %v1893, %v2060
      %v2163 = vadd.f32 %v1894, %v2063
      %v2164 = vadd.f32 %v1895, %v2068
      %v2165 = vadd.f32 %v1896, %v2071
      %v2166 = vadd.f32 %v1897, %v2076
      %v2167 = vadd.f32 %v1898, %v2079
      %v2168 = vadd.f32 %v1899, %v2084
      %v2169 = vadd.f32 %v1900, %v2087
      %v2170 = vadd.f32 %v1901, %v2092
      %v2171 = vadd.f32 %v1902, %v2095
      %v2172 = vadd.f32 %v1903, %v2100
      %v2173 = vadd.f32 %v1904, %v2103
      %v2174 = vadd.f32 %v1905, %v2108
      %v2175 = vadd.f32 %v1906, %v2111
      %v2176 = vadd.f32 %v1907, %v2116
      %v2177 = vadd.f32 %v1908, %v2119
      %v2178 = vadd.f32 %v1909, %v2124
      %v2179 = vadd.f32 %v1910, %v2127
      %v2180 = vadd.f32 %v1911, %v2132
      %v2181 = vadd.f32 %v1912, %v2135
      %v2182 = vadd.f32 %v1913, %v2140
      %v2183 = vadd.f32 %v1914, %v2143
      %v2184 = vadd.f32 %v1915, %v2148
      %v2185 = vadd.f32 %v1916, %v2151
      %v2186 = vrot.slane %v621, 2
      %v2187 = vrot.slane %v622, 2
      %v2188 = vsel %vm1271, %v2186, %v2187
      %v2189 = vrot.slane %v623, 2
      %v2190 = vsel %vm1271, %v2187, %v2189
      %v2193 = vpack.c.bf16 %v2190, %v2188
      %s2194 = scalar_lea.vmem %s1, 320
      %v2195 = vld [vmem:[%s2194] sm:$0xf]
      %v2196 = vld [vmem:[%s2194 + $0x4] sm:$0xf]
      %v2197 = vld [vmem:[%s2194 + $0x8] sm:$0xf]
      %v2198 = vld [vmem:[%s2194 + $0xc] sm:$0xf]
      %v2199 = vld [vmem:[%s2194 + $0x10] sm:$0xf]
      %v2200 = vld [vmem:[%s2194 + $0x14] sm:$0xf]
      %v2201 = vld [vmem:[%s2194 + $0x18] sm:$0xf]
      %v2202 = vld [vmem:[%s2194 + $0x1c] sm:$0xf]
      %v2203 = vld [vmem:[%s2194 + $0x20] sm:$0xf]
      %v2204 = vld [vmem:[%s2194 + $0x24] sm:$0xf]
      %v2205 = vld [vmem:[%s2194 + $0x28] sm:$0xf]
      %v2206 = vld [vmem:[%s2194 + $0x2c] sm:$0xf]
      %v2207 = vld [vmem:[%s2194 + $0x30] sm:$0xf]
      %v2208 = vld [vmem:[%s2194 + $0x34] sm:$0xf]
      %v2209 = vld [vmem:[%s2194 + $0x38] sm:$0xf]
      %v2210 = vld [vmem:[%s2194 + $0x3c] sm:$0xf]
      %v2227 = vunpack.c.l.b16 %v2195
      %v2228 = vunpack.c.l.b16 %v2196
      %v2229 = vunpack.c.l.b16 %v2197
      %v2230 = vunpack.c.l.b16 %v2198
      %v2231 = vunpack.c.l.b16 %v2199
      %v2232 = vunpack.c.l.b16 %v2200
      %v2233 = vunpack.c.l.b16 %v2201
      %v2234 = vunpack.c.l.b16 %v2202
      %v2235 = vunpack.c.l.b16 %v2203
      %v2236 = vunpack.c.l.b16 %v2204
      %v2237 = vunpack.c.l.b16 %v2205
      %v2238 = vunpack.c.l.b16 %v2206
      %v2239 = vunpack.c.l.b16 %v2207
      %v2240 = vunpack.c.l.b16 %v2208
      %v2241 = vunpack.c.l.b16 %v2209
      %v2242 = vunpack.c.l.b16 %v2210
      %v2243 = vpack.c.b16 %v2228, %v2227
      %v2244 = vpack.c.b16 %v2230, %v2229
      %v2245 = vpack.c.b16 %v2232, %v2231
      %v2246 = vpack.c.b16 %v2234, %v2233
      %v2247 = vpack.c.b16 %v2236, %v2235
      %v2248 = vpack.c.b16 %v2238, %v2237
      %v2249 = vpack.c.b16 %v2240, %v2239
      %v2250 = vpack.c.b16 %v2242, %v2241
      %2259 = vmatprep.subr.bf16.mxu0 0
      %2260 = vmatpush1.bf16.msra.mxu0 %v2250
      %2261 = vmatprep.subr.bf16.mxu0 0
      %2262 = vmatpush1.bf16.msra.mxu0 %v2249
      %2263 = vmatprep.subr.bf16.mxu0 0
      %2264 = vmatpush1.bf16.msra.mxu0 %v2248
      %2265 = vmatprep.subr.bf16.mxu0 0
      %2266 = vmatpush1.bf16.msra.mxu0 %v2247
      %2267 = vmatprep.subr.bf16.mxu0 0
      %2268 = vmatpush1.bf16.msra.mxu0 %v2246
      %2269 = vmatprep.subr.bf16.mxu0 0
      %2270 = vmatpush1.bf16.msra.mxu0 %v2245
      %2271 = vmatprep.subr.bf16.mxu0 0
      %2272 = vmatpush1.bf16.msra.mxu0 %v2244
      %2273 = vmatprep.subr.bf16.mxu0 0
      %2274 = vmatpush1.bf16.msra.mxu0 %v2243
      %2275 = vmatprep.subr.bf16.mxu0 0
      %2276 = vmatpush2.bf16.msra.mxu0 0
      %2277 = vmatprep.subr.bf16.mxu0 0
      %2278 = vmatpush2.bf16.msra.mxu0 0
      %2279 = vmatprep.subr.bf16.mxu0 0
      %2280 = vmatpush2.bf16.msra.mxu0 0
      %2281 = vmatprep.subr.bf16.mxu0 0
      %2282 = vmatpush2.bf16.msra.mxu0 0
      %2283 = vmatprep.subr.bf16.mxu0 0
      %2284 = vmatpush2.bf16.msra.mxu0 0
      %2285 = vmatprep.subr.bf16.mxu0 0
      %2286 = vmatpush2.bf16.msra.mxu0 0
      %2287 = vmatprep.subr.bf16.mxu0 0
      %2288 = vmatpush2.bf16.msra.mxu0 0
      %2289 = vmatprep.subr.bf16.mxu0 0
      %2290 = vmatpush2.bf16.msra.mxu0 0
      %2291 = vmatprep.mubr.bf16.mxu0 0
      %2292 = vmatmul.mubr.bf16.gmra.mxu0 %v1385
      %v2293 = vpop.f32.mrf.mxu0
      %v2294 = vadd.f32 0.0, %v2293
      %v2295 = vpop.f32.mrf.mxu0
      %v2296 = vpop.f32.mrf.mxu0
      %v2297 = vadd.f32 0.0, %v2296
      %v2298 = vpop.f32.mrf.mxu0
      %2299 = vmatprep.mubr.bf16.mxu0 0
      %2300 = vmatmul.mubr.bf16.gmra.mxu0 %v1386
      %v2301 = vpop.f32.mrf.mxu0
      %v2302 = vadd.f32 0.0, %v2301
      %v2303 = vpop.f32.mrf.mxu0
      %v2304 = vpop.f32.mrf.mxu0
      %v2305 = vadd.f32 0.0, %v2304
      %v2306 = vpop.f32.mrf.mxu0
      %2307 = vmatprep.mubr.bf16.mxu0 0
      %2308 = vmatmul.mubr.bf16.gmra.mxu0 %v1387
      %v2309 = vpop.f32.mrf.mxu0
      %v2310 = vadd.f32 0.0, %v2309
      %v2311 = vpop.f32.mrf.mxu0
      %v2312 = vpop.f32.mrf.mxu0
      %v2313 = vadd.f32 0.0, %v2312
      %v2314 = vpop.f32.mrf.mxu0
      %2315 = vmatprep.mubr.bf16.mxu0 0
      %2316 = vmatmul.mubr.bf16.gmra.mxu0 %v1388
      %v2317 = vpop.f32.mrf.mxu0
      %v2318 = vadd.f32 0.0, %v2317
      %v2319 = vpop.f32.mrf.mxu0
      %v2320 = vpop.f32.mrf.mxu0
      %v2321 = vadd.f32 0.0, %v2320
      %v2322 = vpop.f32.mrf.mxu0
      %2323 = vmatprep.mubr.bf16.mxu0 0
      %2324 = vmatmul.mubr.bf16.gmra.mxu0 %v1389
      %v2325 = vpop.f32.mrf.mxu0
      %v2326 = vadd.f32 0.0, %v2325
      %v2327 = vpop.f32.mrf.mxu0
      %v2328 = vpop.f32.mrf.mxu0
      %v2329 = vadd.f32 0.0, %v2328
      %v2330 = vpop.f32.mrf.mxu0
      %2331 = vmatprep.mubr.bf16.mxu0 0
      %2332 = vmatmul.mubr.bf16.gmra.mxu0 %v1390
      %v2333 = vpop.f32.mrf.mxu0
      %v2334 = vadd.f32 0.0, %v2333
      %v2335 = vpop.f32.mrf.mxu0
      %v2336 = vpop.f32.mrf.mxu0
      %v2337 = vadd.f32 0.0, %v2336
      %v2338 = vpop.f32.mrf.mxu0
      %2339 = vmatprep.mubr.bf16.mxu0 0
      %2340 = vmatmul.mubr.bf16.gmra.mxu0 %v1391
      %v2341 = vpop.f32.mrf.mxu0
      %v2342 = vadd.f32 0.0, %v2341
      %v2343 = vpop.f32.mrf.mxu0
      %v2344 = vpop.f32.mrf.mxu0
      %v2345 = vadd.f32 0.0, %v2344
      %v2346 = vpop.f32.mrf.mxu0
      %2347 = vmatprep.mubr.bf16.mxu0 0
      %2348 = vmatmul.mubr.bf16.gmra.mxu0 %v1392
      %v2349 = vpop.f32.mrf.mxu0
      %v2350 = vadd.f32 0.0, %v2349
      %v2351 = vpop.f32.mrf.mxu0
      %v2352 = vpop.f32.mrf.mxu0
      %v2353 = vadd.f32 0.0, %v2352
      %v2354 = vpop.f32.mrf.mxu0
      %2355 = vmatprep.mubr.bf16.mxu0 0
      %2356 = vmatmul.mubr.bf16.gmra.mxu0 %v1393
      %v2357 = vpop.f32.mrf.mxu0
      %v2358 = vadd.f32 0.0, %v2357
      %v2359 = vpop.f32.mrf.mxu0
      %v2360 = vpop.f32.mrf.mxu0
      %v2361 = vadd.f32 0.0, %v2360
      %v2362 = vpop.f32.mrf.mxu0
      %2363 = vmatprep.mubr.bf16.mxu0 0
      %2364 = vmatmul.mubr.bf16.gmra.mxu0 %v1394
      %v2365 = vpop.f32.mrf.mxu0
      %v2366 = vadd.f32 0.0, %v2365
      %v2367 = vpop.f32.mrf.mxu0
      %v2368 = vpop.f32.mrf.mxu0
      %v2369 = vadd.f32 0.0, %v2368
      %v2370 = vpop.f32.mrf.mxu0
      %2371 = vmatprep.mubr.bf16.mxu0 0
      %2372 = vmatmul.mubr.bf16.gmra.mxu0 %v1395
      %v2373 = vpop.f32.mrf.mxu0
      %v2374 = vadd.f32 0.0, %v2373
      %v2375 = vpop.f32.mrf.mxu0
      %v2376 = vpop.f32.mrf.mxu0
      %v2377 = vadd.f32 0.0, %v2376
      %v2378 = vpop.f32.mrf.mxu0
      %2379 = vmatprep.mubr.bf16.mxu0 0
      %2380 = vmatmul.mubr.bf16.gmra.mxu0 %v1396
      %v2381 = vpop.f32.mrf.mxu0
      %v2382 = vadd.f32 0.0, %v2381
      %v2383 = vpop.f32.mrf.mxu0
      %v2384 = vpop.f32.mrf.mxu0
      %v2385 = vadd.f32 0.0, %v2384
      %v2386 = vpop.f32.mrf.mxu0
      %2387 = vmatprep.mubr.bf16.mxu0 0
      %2388 = vmatmul.mubr.bf16.gmra.mxu0 %v1397
      %v2389 = vpop.f32.mrf.mxu0
      %v2390 = vadd.f32 0.0, %v2389
      %v2391 = vpop.f32.mrf.mxu0
      %v2392 = vpop.f32.mrf.mxu0
      %v2393 = vadd.f32 0.0, %v2392
      %v2394 = vpop.f32.mrf.mxu0
      %2395 = vmatprep.mubr.bf16.mxu0 0
      %2396 = vmatmul.mubr.bf16.gmra.mxu0 %v1398
      %v2397 = vpop.f32.mrf.mxu0
      %v2398 = vadd.f32 0.0, %v2397
      %v2399 = vpop.f32.mrf.mxu0
      %v2400 = vpop.f32.mrf.mxu0
      %v2401 = vadd.f32 0.0, %v2400
      %v2402 = vpop.f32.mrf.mxu0
      %2403 = vmatprep.mubr.bf16.mxu0 0
      %2404 = vmatmul.mubr.bf16.gmra.mxu0 %v1399
      %v2405 = vpop.f32.mrf.mxu0
      %v2406 = vadd.f32 0.0, %v2405
      %v2407 = vpop.f32.mrf.mxu0
      %v2408 = vpop.f32.mrf.mxu0
      %v2409 = vadd.f32 0.0, %v2408
      %v2410 = vpop.f32.mrf.mxu0
      %2411 = vmatprep.mubr.bf16.mxu0 0
      %2412 = vmatmul.mubr.bf16.gmra.mxu0 %v2193
      %v2413 = vpop.f32.mrf.mxu0
      %v2414 = vadd.f32 0.0, %v2413
      %v2415 = vpop.f32.mrf.mxu0
      %v2416 = vpop.f32.mrf.mxu0
      %v2417 = vadd.f32 0.0, %v2416
      %v2418 = vpop.f32.mrf.mxu0
      %2419 = vdwg.mxu0
      %v2420 = vadd.f32 %v2154, %v2294
      %v2421 = vadd.f32 %v2155, %v2297
      %v2422 = vadd.f32 %v2156, %v2302
      %v2423 = vadd.f32 %v2157, %v2305
      %v2424 = vadd.f32 %v2158, %v2310
      %v2425 = vadd.f32 %v2159, %v2313
      %v2426 = vadd.f32 %v2160, %v2318
      %v2427 = vadd.f32 %v2161, %v2321
      %v2428 = vadd.f32 %v2162, %v2326
      %v2429 = vadd.f32 %v2163, %v2329
      %v2430 = vadd.f32 %v2164, %v2334
      %v2431 = vadd.f32 %v2165, %v2337
      %v2432 = vadd.f32 %v2166, %v2342
      %v2433 = vadd.f32 %v2167, %v2345
      %v2434 = vadd.f32 %v2168, %v2350
      %v2435 = vadd.f32 %v2169, %v2353
      %v2436 = vadd.f32 %v2170, %v2358
      %v2437 = vadd.f32 %v2171, %v2361
      %v2438 = vadd.f32 %v2172, %v2366
      %v2439 = vadd.f32 %v2173, %v2369
      %v2440 = vadd.f32 %v2174, %v2374
      %v2441 = vadd.f32 %v2175, %v2377
      %v2442 = vadd.f32 %v2176, %v2382
      %v2443 = vadd.f32 %v2177, %v2385
      %v2444 = vadd.f32 %v2178, %v2390
      %v2445 = vadd.f32 %v2179, %v2393
      %v2446 = vadd.f32 %v2180, %v2398
      %v2447 = vadd.f32 %v2181, %v2401
      %v2448 = vadd.f32 %v2182, %v2406
      %v2449 = vadd.f32 %v2183, %v2409
      %v2450 = vadd.f32 %v2184, %v2414
      %v2451 = vadd.f32 %v2185, %v2417
      %v2452 = vpack.c.bf16 %v625, %v624
      %s2453 = scalar_lea.vmem %s1, 384
      %v2454 = vld [vmem:[%s2453] sm:$0xf]
      %v2455 = vld [vmem:[%s2453 + $0x4] sm:$0xf]
      %v2456 = vld [vmem:[%s2453 + $0x8] sm:$0xf]
      %v2457 = vld [vmem:[%s2453 + $0xc] sm:$0xf]
      %v2458 = vld [vmem:[%s2453 + $0x10] sm:$0xf]
      %v2459 = vld [vmem:[%s2453 + $0x14] sm:$0xf]
      %v2460 = vld [vmem:[%s2453 + $0x18] sm:$0xf]
      %v2461 = vld [vmem:[%s2453 + $0x1c] sm:$0xf]
      %v2462 = vld [vmem:[%s2453 + $0x20] sm:$0xf]
      %v2463 = vld [vmem:[%s2453 + $0x24] sm:$0xf]
      %v2464 = vld [vmem:[%s2453 + $0x28] sm:$0xf]
      %v2465 = vld [vmem:[%s2453 + $0x2c] sm:$0xf]
      %v2466 = vld [vmem:[%s2453 + $0x30] sm:$0xf]
      %v2467 = vld [vmem:[%s2453 + $0x34] sm:$0xf]
      %v2468 = vld [vmem:[%s2453 + $0x38] sm:$0xf]
      %v2469 = vld [vmem:[%s2453 + $0x3c] sm:$0xf]
      %v2486 = vunpack.c.l.b16 %v2454
      %v2487 = vunpack.c.l.b16 %v2455
      %v2488 = vunpack.c.l.b16 %v2456
      %v2489 = vunpack.c.l.b16 %v2457
      %v2490 = vunpack.c.l.b16 %v2458
      %v2491 = vunpack.c.l.b16 %v2459
      %v2492 = vunpack.c.l.b16 %v2460
      %v2493 = vunpack.c.l.b16 %v2461
      %v2494 = vunpack.c.l.b16 %v2462
      %v2495 = vunpack.c.l.b16 %v2463
      %v2496 = vunpack.c.l.b16 %v2464
      %v2497 = vunpack.c.l.b16 %v2465
      %v2498 = vunpack.c.l.b16 %v2466
      %v2499 = vunpack.c.l.b16 %v2467
      %v2500 = vunpack.c.l.b16 %v2468
      %v2501 = vunpack.c.l.b16 %v2469
      %v2502 = vpack.c.b16 %v2487, %v2486
      %v2503 = vpack.c.b16 %v2489, %v2488
      %v2504 = vpack.c.b16 %v2491, %v2490
      %v2505 = vpack.c.b16 %v2493, %v2492
      %v2506 = vpack.c.b16 %v2495, %v2494
      %v2507 = vpack.c.b16 %v2497, %v2496
      %v2508 = vpack.c.b16 %v2499, %v2498
      %v2509 = vpack.c.b16 %v2501, %v2500
      %2518 = vmatprep.subr.bf16.mxu0 0
      %2519 = vmatpush1.bf16.msra.mxu0 %v2509
      %2520 = vmatprep.subr.bf16.mxu0 0
      %2521 = vmatpush1.bf16.msra.mxu0 %v2508
      %2522 = vmatprep.subr.bf16.mxu0 0
      %2523 = vmatpush1.bf16.msra.mxu0 %v2507
      %2524 = vmatprep.subr.bf16.mxu0 0
      %2525 = vmatpush1.bf16.msra.mxu0 %v2506
      %2526 = vmatprep.subr.bf16.mxu0 0
      %2527 = vmatpush1.bf16.msra.mxu0 %v2505
      %2528 = vmatprep.subr.bf16.mxu0 0
      %2529 = vmatpush1.bf16.msra.mxu0 %v2504
      %2530 = vmatprep.subr.bf16.mxu0 0
      %2531 = vmatpush1.bf16.msra.mxu0 %v2503
      %2532 = vmatprep.subr.bf16.mxu0 0
      %2533 = vmatpush1.bf16.msra.mxu0 %v2502
      %2534 = vmatprep.subr.bf16.mxu0 0
      %2535 = vmatpush2.bf16.msra.mxu0 0
      %2536 = vmatprep.subr.bf16.mxu0 0
      %2537 = vmatpush2.bf16.msra.mxu0 0
      %2538 = vmatprep.subr.bf16.mxu0 0
      %2539 = vmatpush2.bf16.msra.mxu0 0
      %2540 = vmatprep.subr.bf16.mxu0 0
      %2541 = vmatpush2.bf16.msra.mxu0 0
      %2542 = vmatprep.subr.bf16.mxu0 0
      %2543 = vmatpush2.bf16.msra.mxu0 0
      %2544 = vmatprep.subr.bf16.mxu0 0
      %2545 = vmatpush2.bf16.msra.mxu0 0
      %2546 = vmatprep.subr.bf16.mxu0 0
      %2547 = vmatpush2.bf16.msra.mxu0 0
      %2548 = vmatprep.subr.bf16.mxu0 0
      %2549 = vmatpush2.bf16.msra.mxu0 0
      %2550 = vmatprep.mubr.bf16.mxu0 0
      %2551 = vmatmul.mubr.bf16.gmra.mxu0 %v629
      %v2552 = vpop.f32.mrf.mxu0
      %v2553 = vadd.f32 0.0, %v2552
      %v2554 = vpop.f32.mrf.mxu0
      %v2555 = vpop.f32.mrf.mxu0
      %v2556 = vadd.f32 0.0, %v2555
      %v2557 = vpop.f32.mrf.mxu0
      %2558 = vmatprep.mubr.bf16.mxu0 0
      %2559 = vmatmul.mubr.bf16.gmra.mxu0 %v630
      %v2560 = vpop.f32.mrf.mxu0
      %v2561 = vadd.f32 0.0, %v2560
      %v2562 = vpop.f32.mrf.mxu0
      %v2563 = vpop.f32.mrf.mxu0
      %v2564 = vadd.f32 0.0, %v2563
      %v2565 = vpop.f32.mrf.mxu0
      %2566 = vmatprep.mubr.bf16.mxu0 0
      %2567 = vmatmul.mubr.bf16.gmra.mxu0 %v631
      %v2568 = vpop.f32.mrf.mxu0
      %v2569 = vadd.f32 0.0, %v2568
      %v2570 = vpop.f32.mrf.mxu0
      %v2571 = vpop.f32.mrf.mxu0
      %v2572 = vadd.f32 0.0, %v2571
      %v2573 = vpop.f32.mrf.mxu0
      %2574 = vmatprep.mubr.bf16.mxu0 0
      %2575 = vmatmul.mubr.bf16.gmra.mxu0 %v632
      %v2576 = vpop.f32.mrf.mxu0
      %v2577 = vadd.f32 0.0, %v2576
      %v2578 = vpop.f32.mrf.mxu0
      %v2579 = vpop.f32.mrf.mxu0
      %v2580 = vadd.f32 0.0, %v2579
      %v2581 = vpop.f32.mrf.mxu0
      %2582 = vmatprep.mubr.bf16.mxu0 0
      %2583 = vmatmul.mubr.bf16.gmra.mxu0 %v633
      %v2584 = vpop.f32.mrf.mxu0
      %v2585 = vadd.f32 0.0, %v2584
      %v2586 = vpop.f32.mrf.mxu0
      %v2587 = vpop.f32.mrf.mxu0
      %v2588 = vadd.f32 0.0, %v2587
      %v2589 = vpop.f32.mrf.mxu0
      %2590 = vmatprep.mubr.bf16.mxu0 0
      %2591 = vmatmul.mubr.bf16.gmra.mxu0 %v634
      %v2592 = vpop.f32.mrf.mxu0
      %v2593 = vadd.f32 0.0, %v2592
      %v2594 = vpop.f32.mrf.mxu0
      %v2595 = vpop.f32.mrf.mxu0
      %v2596 = vadd.f32 0.0, %v2595
      %v2597 = vpop.f32.mrf.mxu0
      %2598 = vmatprep.mubr.bf16.mxu0 0
      %2599 = vmatmul.mubr.bf16.gmra.mxu0 %v635
      %v2600 = vpop.f32.mrf.mxu0
      %v2601 = vadd.f32 0.0, %v2600
      %v2602 = vpop.f32.mrf.mxu0
      %v2603 = vpop.f32.mrf.mxu0
      %v2604 = vadd.f32 0.0, %v2603
      %v2605 = vpop.f32.mrf.mxu0
      %2606 = vmatprep.mubr.bf16.mxu0 0
      %2607 = vmatmul.mubr.bf16.gmra.mxu0 %v636
      %v2608 = vpop.f32.mrf.mxu0
      %v2609 = vadd.f32 0.0, %v2608
      %v2610 = vpop.f32.mrf.mxu0
      %v2611 = vpop.f32.mrf.mxu0
      %v2612 = vadd.f32 0.0, %v2611
      %v2613 = vpop.f32.mrf.mxu0
      %2614 = vmatprep.mubr.bf16.mxu0 0
      %2615 = vmatmul.mubr.bf16.gmra.mxu0 %v637
      %v2616 = vpop.f32.mrf.mxu0
      %v2617 = vadd.f32 0.0, %v2616
      %v2618 = vpop.f32.mrf.mxu0
      %v2619 = vpop.f32.mrf.mxu0
      %v2620 = vadd.f32 0.0, %v2619
      %v2621 = vpop.f32.mrf.mxu0
      %2622 = vmatprep.mubr.bf16.mxu0 0
      %2623 = vmatmul.mubr.bf16.gmra.mxu0 %v638
      %v2624 = vpop.f32.mrf.mxu0
      %v2625 = vadd.f32 0.0, %v2624
      %v2626 = vpop.f32.mrf.mxu0
      %v2627 = vpop.f32.mrf.mxu0
      %v2628 = vadd.f32 0.0, %v2627
      %v2629 = vpop.f32.mrf.mxu0
      %2630 = vmatprep.mubr.bf16.mxu0 0
      %2631 = vmatmul.mubr.bf16.gmra.mxu0 %v639
      %v2632 = vpop.f32.mrf.mxu0
      %v2633 = vadd.f32 0.0, %v2632
      %v2634 = vpop.f32.mrf.mxu0
      %v2635 = vpop.f32.mrf.mxu0
      %v2636 = vadd.f32 0.0, %v2635
      %v2637 = vpop.f32.mrf.mxu0
      %2638 = vmatprep.mubr.bf16.mxu0 0
      %2639 = vmatmul.mubr.bf16.gmra.mxu0 %v640
      %v2640 = vpop.f32.mrf.mxu0
      %v2641 = vadd.f32 0.0, %v2640
      %v2642 = vpop.f32.mrf.mxu0
      %v2643 = vpop.f32.mrf.mxu0
      %v2644 = vadd.f32 0.0, %v2643
      %v2645 = vpop.f32.mrf.mxu0
      %2646 = vmatprep.mubr.bf16.mxu0 0
      %2647 = vmatmul.mubr.bf16.gmra.mxu0 %v641
      %v2648 = vpop.f32.mrf.mxu0
      %v2649 = vadd.f32 0.0, %v2648
      %v2650 = vpop.f32.mrf.mxu0
      %v2651 = vpop.f32.mrf.mxu0
      %v2652 = vadd.f32 0.0, %v2651
      %v2653 = vpop.f32.mrf.mxu0
      %2654 = vmatprep.mubr.bf16.mxu0 0
      %2655 = vmatmul.mubr.bf16.gmra.mxu0 %v642
      %v2656 = vpop.f32.mrf.mxu0
      %v2657 = vadd.f32 0.0, %v2656
      %v2658 = vpop.f32.mrf.mxu0
      %v2659 = vpop.f32.mrf.mxu0
      %v2660 = vadd.f32 0.0, %v2659
      %v2661 = vpop.f32.mrf.mxu0
      %2662 = vmatprep.mubr.bf16.mxu0 0
      %2663 = vmatmul.mubr.bf16.gmra.mxu0 %v1658
      %v2664 = vpop.f32.mrf.mxu0
      %v2665 = vadd.f32 0.0, %v2664
      %v2666 = vpop.f32.mrf.mxu0
      %v2667 = vpop.f32.mrf.mxu0
      %v2668 = vadd.f32 0.0, %v2667
      %v2669 = vpop.f32.mrf.mxu0
      %2670 = vmatprep.mubr.bf16.mxu0 0
      %2671 = vmatmul.mubr.bf16.gmra.mxu0 %v2452
      %v2672 = vpop.f32.mrf.mxu0
      %v2673 = vadd.f32 0.0, %v2672
      %v2674 = vpop.f32.mrf.mxu0
      %v2675 = vpop.f32.mrf.mxu0
      %v2676 = vadd.f32 0.0, %v2675
      %v2677 = vpop.f32.mrf.mxu0
      %2678 = vdwg.mxu0
      %v2679 = vadd.f32 %v2420, %v2553
      %v2680 = vadd.f32 %v2421, %v2556
      %v2681 = vadd.f32 %v2422, %v2561
      %v2682 = vadd.f32 %v2423, %v2564
      %v2683 = vadd.f32 %v2424, %v2569
      %v2684 = vadd.f32 %v2425, %v2572
      %v2685 = vadd.f32 %v2426, %v2577
      %v2686 = vadd.f32 %v2427, %v2580
      %v2687 = vadd.f32 %v2428, %v2585
      %v2688 = vadd.f32 %v2429, %v2588
      %v2689 = vadd.f32 %v2430, %v2593
      %v2690 = vadd.f32 %v2431, %v2596
      %v2691 = vadd.f32 %v2432, %v2601
      %v2692 = vadd.f32 %v2433, %v2604
      %v2693 = vadd.f32 %v2434, %v2609
      %v2694 = vadd.f32 %v2435, %v2612
      %v2695 = vadd.f32 %v2436, %v2617
      %v2696 = vadd.f32 %v2437, %v2620
      %v2697 = vadd.f32 %v2438, %v2625
      %v2698 = vadd.f32 %v2439, %v2628
      %v2699 = vadd.f32 %v2440, %v2633
      %v2700 = vadd.f32 %v2441, %v2636
      %v2701 = vadd.f32 %v2442, %v2641
      %v2702 = vadd.f32 %v2443, %v2644
      %v2703 = vadd.f32 %v2444, %v2649
      %v2704 = vadd.f32 %v2445, %v2652
      %v2705 = vadd.f32 %v2446, %v2657
      %v2706 = vadd.f32 %v2447, %v2660
      %v2707 = vadd.f32 %v2448, %v2665
      %v2708 = vadd.f32 %v2449, %v2668
      %v2709 = vadd.f32 %v2450, %v2673
      %v2710 = vadd.f32 %v2451, %v2676
      %v2714 = vrot.slane %v624, 1
      %v2715 = vrot.slane %v625, 1
      %v2716 = vsel %vm707, %v2714, %v2715
      %v2717 = vrot.slane %v626, 1
      %v2718 = vsel %vm707, %v2715, %v2717
      %v2721 = vpack.c.bf16 %v2718, %v2716
      %s2722 = scalar_lea.vmem %s1, 448
      %v2723 = vld [vmem:[%s2722] sm:$0xf]
      %v2724 = vld [vmem:[%s2722 + $0x4] sm:$0xf]
      %v2725 = vld [vmem:[%s2722 + $0x8] sm:$0xf]
      %v2726 = vld [vmem:[%s2722 + $0xc] sm:$0xf]
      %v2727 = vld [vmem:[%s2722 + $0x10] sm:$0xf]
      %v2728 = vld [vmem:[%s2722 + $0x14] sm:$0xf]
      %v2729 = vld [vmem:[%s2722 + $0x18] sm:$0xf]
      %v2730 = vld [vmem:[%s2722 + $0x1c] sm:$0xf]
      %v2731 = vld [vmem:[%s2722 + $0x20] sm:$0xf]
      %v2732 = vld [vmem:[%s2722 + $0x24] sm:$0xf]
      %v2733 = vld [vmem:[%s2722 + $0x28] sm:$0xf]
      %v2734 = vld [vmem:[%s2722 + $0x2c] sm:$0xf]
      %v2735 = vld [vmem:[%s2722 + $0x30] sm:$0xf]
      %v2736 = vld [vmem:[%s2722 + $0x34] sm:$0xf]
      %v2737 = vld [vmem:[%s2722 + $0x38] sm:$0xf]
      %v2738 = vld [vmem:[%s2722 + $0x3c] sm:$0xf]
      %v2755 = vunpack.c.l.b16 %v2723
      %v2756 = vunpack.c.l.b16 %v2724
      %v2757 = vunpack.c.l.b16 %v2725
      %v2758 = vunpack.c.l.b16 %v2726
      %v2759 = vunpack.c.l.b16 %v2727
      %v2760 = vunpack.c.l.b16 %v2728
      %v2761 = vunpack.c.l.b16 %v2729
      %v2762 = vunpack.c.l.b16 %v2730
      %v2763 = vunpack.c.l.b16 %v2731
      %v2764 = vunpack.c.l.b16 %v2732
      %v2765 = vunpack.c.l.b16 %v2733
      %v2766 = vunpack.c.l.b16 %v2734
      %v2767 = vunpack.c.l.b16 %v2735
      %v2768 = vunpack.c.l.b16 %v2736
      %v2769 = vunpack.c.l.b16 %v2737
      %v2770 = vunpack.c.l.b16 %v2738
      %v2771 = vpack.c.b16 %v2756, %v2755
      %v2772 = vpack.c.b16 %v2758, %v2757
      %v2773 = vpack.c.b16 %v2760, %v2759
      %v2774 = vpack.c.b16 %v2762, %v2761
      %v2775 = vpack.c.b16 %v2764, %v2763
      %v2776 = vpack.c.b16 %v2766, %v2765
      %v2777 = vpack.c.b16 %v2768, %v2767
      %v2778 = vpack.c.b16 %v2770, %v2769
      %2787 = vmatprep.subr.bf16.mxu0 0
      %2788 = vmatpush1.bf16.msra.mxu0 %v2778
      %2789 = vmatprep.subr.bf16.mxu0 0
      %2790 = vmatpush1.bf16.msra.mxu0 %v2777
      %2791 = vmatprep.subr.bf16.mxu0 0
      %2792 = vmatpush1.bf16.msra.mxu0 %v2776
      %2793 = vmatprep.subr.bf16.mxu0 0
      %2794 = vmatpush1.bf16.msra.mxu0 %v2775
      %2795 = vmatprep.subr.bf16.mxu0 0
      %2796 = vmatpush1.bf16.msra.mxu0 %v2774
      %2797 = vmatprep.subr.bf16.mxu0 0
      %2798 = vmatpush1.bf16.msra.mxu0 %v2773
      %2799 = vmatprep.subr.bf16.mxu0 0
      %2800 = vmatpush1.bf16.msra.mxu0 %v2772
      %2801 = vmatprep.subr.bf16.mxu0 0
      %2802 = vmatpush1.bf16.msra.mxu0 %v2771
      %2803 = vmatprep.subr.bf16.mxu0 0
      %2804 = vmatpush2.bf16.msra.mxu0 0
      %2805 = vmatprep.subr.bf16.mxu0 0
      %2806 = vmatpush2.bf16.msra.mxu0 0
      %2807 = vmatprep.subr.bf16.mxu0 0
      %2808 = vmatpush2.bf16.msra.mxu0 0
      %2809 = vmatprep.subr.bf16.mxu0 0
      %2810 = vmatpush2.bf16.msra.mxu0 0
      %2811 = vmatprep.subr.bf16.mxu0 0
      %2812 = vmatpush2.bf16.msra.mxu0 0
      %2813 = vmatprep.subr.bf16.mxu0 0
      %2814 = vmatpush2.bf16.msra.mxu0 0
      %2815 = vmatprep.subr.bf16.mxu0 0
      %2816 = vmatpush2.bf16.msra.mxu0 0
      %2817 = vmatprep.subr.bf16.mxu0 0
      %2818 = vmatpush2.bf16.msra.mxu0 0
      %2819 = vmatprep.mubr.bf16.mxu0 0
      %2820 = vmatmul.mubr.bf16.gmra.mxu0 %v822
      %v2821 = vpop.f32.mrf.mxu0
      %v2822 = vadd.f32 0.0, %v2821
      %v2823 = vpop.f32.mrf.mxu0
      %v2824 = vpop.f32.mrf.mxu0
      %v2825 = vadd.f32 0.0, %v2824
      %v2826 = vpop.f32.mrf.mxu0
      %2827 = vmatprep.mubr.bf16.mxu0 0
      %2828 = vmatmul.mubr.bf16.gmra.mxu0 %v823
      %v2829 = vpop.f32.mrf.mxu0
      %v2830 = vadd.f32 0.0, %v2829
      %v2831 = vpop.f32.mrf.mxu0
      %v2832 = vpop.f32.mrf.mxu0
      %v2833 = vadd.f32 0.0, %v2832
      %v2834 = vpop.f32.mrf.mxu0
      %2835 = vmatprep.mubr.bf16.mxu0 0
      %2836 = vmatmul.mubr.bf16.gmra.mxu0 %v824
      %v2837 = vpop.f32.mrf.mxu0
      %v2838 = vadd.f32 0.0, %v2837
      %v2839 = vpop.f32.mrf.mxu0
      %v2840 = vpop.f32.mrf.mxu0
      %v2841 = vadd.f32 0.0, %v2840
      %v2842 = vpop.f32.mrf.mxu0
      %2843 = vmatprep.mubr.bf16.mxu0 0
      %2844 = vmatmul.mubr.bf16.gmra.mxu0 %v825
      %v2845 = vpop.f32.mrf.mxu0
      %v2846 = vadd.f32 0.0, %v2845
      %v2847 = vpop.f32.mrf.mxu0
      %v2848 = vpop.f32.mrf.mxu0
      %v2849 = vadd.f32 0.0, %v2848
      %v2850 = vpop.f32.mrf.mxu0
      %2851 = vmatprep.mubr.bf16.mxu0 0
      %2852 = vmatmul.mubr.bf16.gmra.mxu0 %v826
      %v2853 = vpop.f32.mrf.mxu0
      %v2854 = vadd.f32 0.0, %v2853
      %v2855 = vpop.f32.mrf.mxu0
      %v2856 = vpop.f32.mrf.mxu0
      %v2857 = vadd.f32 0.0, %v2856
      %v2858 = vpop.f32.mrf.mxu0
      %2859 = vmatprep.mubr.bf16.mxu0 0
      %2860 = vmatmul.mubr.bf16.gmra.mxu0 %v827
      %v2861 = vpop.f32.mrf.mxu0
      %v2862 = vadd.f32 0.0, %v2861
      %v2863 = vpop.f32.mrf.mxu0
      %v2864 = vpop.f32.mrf.mxu0
      %v2865 = vadd.f32 0.0, %v2864
      %v2866 = vpop.f32.mrf.mxu0
      %2867 = vmatprep.mubr.bf16.mxu0 0
      %2868 = vmatmul.mubr.bf16.gmra.mxu0 %v828
      %v2869 = vpop.f32.mrf.mxu0
      %v2870 = vadd.f32 0.0, %v2869
      %v2871 = vpop.f32.mrf.mxu0
      %v2872 = vpop.f32.mrf.mxu0
      %v2873 = vadd.f32 0.0, %v2872
      %v2874 = vpop.f32.mrf.mxu0
      %2875 = vmatprep.mubr.bf16.mxu0 0
      %2876 = vmatmul.mubr.bf16.gmra.mxu0 %v829
      %v2877 = vpop.f32.mrf.mxu0
      %v2878 = vadd.f32 0.0, %v2877
      %v2879 = vpop.f32.mrf.mxu0
      %v2880 = vpop.f32.mrf.mxu0
      %v2881 = vadd.f32 0.0, %v2880
      %v2882 = vpop.f32.mrf.mxu0
      %2883 = vmatprep.mubr.bf16.mxu0 0
      %2884 = vmatmul.mubr.bf16.gmra.mxu0 %v830
      %v2885 = vpop.f32.mrf.mxu0
      %v2886 = vadd.f32 0.0, %v2885
      %v2887 = vpop.f32.mrf.mxu0
      %v2888 = vpop.f32.mrf.mxu0
      %v2889 = vadd.f32 0.0, %v2888
      %v2890 = vpop.f32.mrf.mxu0
      %2891 = vmatprep.mubr.bf16.mxu0 0
      %2892 = vmatmul.mubr.bf16.gmra.mxu0 %v831
      %v2893 = vpop.f32.mrf.mxu0
      %v2894 = vadd.f32 0.0, %v2893
      %v2895 = vpop.f32.mrf.mxu0
      %v2896 = vpop.f32.mrf.mxu0
      %v2897 = vadd.f32 0.0, %v2896
      %v2898 = vpop.f32.mrf.mxu0
      %2899 = vmatprep.mubr.bf16.mxu0 0
      %2900 = vmatmul.mubr.bf16.gmra.mxu0 %v832
      %v2901 = vpop.f32.mrf.mxu0
      %v2902 = vadd.f32 0.0, %v2901
      %v2903 = vpop.f32.mrf.mxu0
      %v2904 = vpop.f32.mrf.mxu0
      %v2905 = vadd.f32 0.0, %v2904
      %v2906 = vpop.f32.mrf.mxu0
      %2907 = vmatprep.mubr.bf16.mxu0 0
      %2908 = vmatmul.mubr.bf16.gmra.mxu0 %v833
      %v2909 = vpop.f32.mrf.mxu0
      %v2910 = vadd.f32 0.0, %v2909
      %v2911 = vpop.f32.mrf.mxu0
      %v2912 = vpop.f32.mrf.mxu0
      %v2913 = vadd.f32 0.0, %v2912
      %v2914 = vpop.f32.mrf.mxu0
      %2915 = vmatprep.mubr.bf16.mxu0 0
      %2916 = vmatmul.mubr.bf16.gmra.mxu0 %v834
      %v2917 = vpop.f32.mrf.mxu0
      %v2918 = vadd.f32 0.0, %v2917
      %v2919 = vpop.f32.mrf.mxu0
      %v2920 = vpop.f32.mrf.mxu0
      %v2921 = vadd.f32 0.0, %v2920
      %v2922 = vpop.f32.mrf.mxu0
      %2923 = vmatprep.mubr.bf16.mxu0 0
      %2924 = vmatmul.mubr.bf16.gmra.mxu0 %v835
      %v2925 = vpop.f32.mrf.mxu0
      %v2926 = vadd.f32 0.0, %v2925
      %v2927 = vpop.f32.mrf.mxu0
      %v2928 = vpop.f32.mrf.mxu0
      %v2929 = vadd.f32 0.0, %v2928
      %v2930 = vpop.f32.mrf.mxu0
      %2931 = vmatprep.mubr.bf16.mxu0 0
      %2932 = vmatmul.mubr.bf16.gmra.mxu0 %v1927
      %v2933 = vpop.f32.mrf.mxu0
      %v2934 = vadd.f32 0.0, %v2933
      %v2935 = vpop.f32.mrf.mxu0
      %v2936 = vpop.f32.mrf.mxu0
      %v2937 = vadd.f32 0.0, %v2936
      %v2938 = vpop.f32.mrf.mxu0
      %2939 = vmatprep.mubr.bf16.mxu0 0
      %2940 = vmatmul.mubr.bf16.gmra.mxu0 %v2721
      %v2941 = vpop.f32.mrf.mxu0
      %v2942 = vadd.f32 0.0, %v2941
      %v2943 = vpop.f32.mrf.mxu0
      %v2944 = vpop.f32.mrf.mxu0
      %v2945 = vadd.f32 0.0, %v2944
      %v2946 = vpop.f32.mrf.mxu0
      %2947 = vdwg.mxu0
      %v2948 = vadd.f32 %v2679, %v2822
      %v2949 = vadd.f32 %v2680, %v2825
      %v2950 = vadd.f32 %v2681, %v2830
      %v2951 = vadd.f32 %v2682, %v2833
      %v2952 = vadd.f32 %v2683, %v2838
      %v2953 = vadd.f32 %v2684, %v2841
      %v2954 = vadd.f32 %v2685, %v2846
      %v2955 = vadd.f32 %v2686, %v2849
      %v2956 = vadd.f32 %v2687, %v2854
      %v2957 = vadd.f32 %v2688, %v2857
      %v2958 = vadd.f32 %v2689, %v2862
      %v2959 = vadd.f32 %v2690, %v2865
      %v2960 = vadd.f32 %v2691, %v2870
      %v2961 = vadd.f32 %v2692, %v2873
      %v2962 = vadd.f32 %v2693, %v2878
      %v2963 = vadd.f32 %v2694, %v2881
      %v2964 = vadd.f32 %v2695, %v2886
      %v2965 = vadd.f32 %v2696, %v2889
      %v2966 = vadd.f32 %v2697, %v2894
      %v2967 = vadd.f32 %v2698, %v2897
      %v2968 = vadd.f32 %v2699, %v2902
      %v2969 = vadd.f32 %v2700, %v2905
      %v2970 = vadd.f32 %v2701, %v2910
      %v2971 = vadd.f32 %v2702, %v2913
      %v2972 = vadd.f32 %v2703, %v2918
      %v2973 = vadd.f32 %v2704, %v2921
      %v2974 = vadd.f32 %v2705, %v2926
      %v2975 = vadd.f32 %v2706, %v2929
      %v2976 = vadd.f32 %v2707, %v2934
      %v2977 = vadd.f32 %v2708, %v2937
      %v2978 = vadd.f32 %v2709, %v2942
      %v2979 = vadd.f32 %v2710, %v2945
      %v2980 = vrot.slane %v624, 2
      %v2981 = vrot.slane %v625, 2
      %v2982 = vsel %vm1271, %v2980, %v2981
      %v2983 = vrot.slane %v626, 2
      %v2984 = vsel %vm1271, %v2981, %v2983
      %v2987 = vpack.c.bf16 %v2984, %v2982
      %s2988 = scalar_lea.vmem %s1, 512
      %v2989 = vld [vmem:[%s2988] sm:$0xf]
      %v2990 = vld [vmem:[%s2988 + $0x4] sm:$0xf]
      %v2991 = vld [vmem:[%s2988 + $0x8] sm:$0xf]
      %v2992 = vld [vmem:[%s2988 + $0xc] sm:$0xf]
      %v2993 = vld [vmem:[%s2988 + $0x10] sm:$0xf]
      %v2994 = vld [vmem:[%s2988 + $0x14] sm:$0xf]
      %v2995 = vld [vmem:[%s2988 + $0x18] sm:$0xf]
      %v2996 = vld [vmem:[%s2988 + $0x1c] sm:$0xf]
      %v2997 = vld [vmem:[%s2988 + $0x20] sm:$0xf]
      %v2998 = vld [vmem:[%s2988 + $0x24] sm:$0xf]
      %v2999 = vld [vmem:[%s2988 + $0x28] sm:$0xf]
      %v3000 = vld [vmem:[%s2988 + $0x2c] sm:$0xf]
      %v3001 = vld [vmem:[%s2988 + $0x30] sm:$0xf]
      %v3002 = vld [vmem:[%s2988 + $0x34] sm:$0xf]
      %v3003 = vld [vmem:[%s2988 + $0x38] sm:$0xf]
      %v3004 = vld [vmem:[%s2988 + $0x3c] sm:$0xf]
      %v3021 = vunpack.c.l.b16 %v2989
      %v3022 = vunpack.c.l.b16 %v2990
      %v3023 = vunpack.c.l.b16 %v2991
      %v3024 = vunpack.c.l.b16 %v2992
      %v3025 = vunpack.c.l.b16 %v2993
      %v3026 = vunpack.c.l.b16 %v2994
      %v3027 = vunpack.c.l.b16 %v2995
      %v3028 = vunpack.c.l.b16 %v2996
      %v3029 = vunpack.c.l.b16 %v2997
      %v3030 = vunpack.c.l.b16 %v2998
      %v3031 = vunpack.c.l.b16 %v2999
      %v3032 = vunpack.c.l.b16 %v3000
      %v3033 = vunpack.c.l.b16 %v3001
      %v3034 = vunpack.c.l.b16 %v3002
      %v3035 = vunpack.c.l.b16 %v3003
      %v3036 = vunpack.c.l.b16 %v3004
      %v3037 = vpack.c.b16 %v3022, %v3021
      %v3038 = vpack.c.b16 %v3024, %v3023
      %v3039 = vpack.c.b16 %v3026, %v3025
      %v3040 = vpack.c.b16 %v3028, %v3027
      %v3041 = vpack.c.b16 %v3030, %v3029
      %v3042 = vpack.c.b16 %v3032, %v3031
      %v3043 = vpack.c.b16 %v3034, %v3033
      %v3044 = vpack.c.b16 %v3036, %v3035
      %3053 = vmatprep.subr.bf16.mxu0 0
      %3054 = vmatpush1.bf16.msra.mxu0 %v3044
      %3055 = vmatprep.subr.bf16.mxu0 0
      %3056 = vmatpush1.bf16.msra.mxu0 %v3043
      %3057 = vmatprep.subr.bf16.mxu0 0
      %3058 = vmatpush1.bf16.msra.mxu0 %v3042
      %3059 = vmatprep.subr.bf16.mxu0 0
      %3060 = vmatpush1.bf16.msra.mxu0 %v3041
      %3061 = vmatprep.subr.bf16.mxu0 0
      %3062 = vmatpush1.bf16.msra.mxu0 %v3040
      %3063 = vmatprep.subr.bf16.mxu0 0
      %3064 = vmatpush1.bf16.msra.mxu0 %v3039
      %3065 = vmatprep.subr.bf16.mxu0 0
      %3066 = vmatpush1.bf16.msra.mxu0 %v3038
      %3067 = vmatprep.subr.bf16.mxu0 0
      %3068 = vmatpush1.bf16.msra.mxu0 %v3037
      %3069 = vmatprep.subr.bf16.mxu0 0
      %3070 = vmatpush2.bf16.msra.mxu0 0
      %3071 = vmatprep.subr.bf16.mxu0 0
      %3072 = vmatpush2.bf16.msra.mxu0 0
      %3073 = vmatprep.subr.bf16.mxu0 0
      %3074 = vmatpush2.bf16.msra.mxu0 0
      %3075 = vmatprep.subr.bf16.mxu0 0
      %3076 = vmatpush2.bf16.msra.mxu0 0
      %3077 = vmatprep.subr.bf16.mxu0 0
      %3078 = vmatpush2.bf16.msra.mxu0 0
      %3079 = vmatprep.subr.bf16.mxu0 0
      %3080 = vmatpush2.bf16.msra.mxu0 0
      %3081 = vmatprep.subr.bf16.mxu0 0
      %3082 = vmatpush2.bf16.msra.mxu0 0
      %3083 = vmatprep.subr.bf16.mxu0 0
      %3084 = vmatpush2.bf16.msra.mxu0 0
      %3085 = vmatprep.mubr.bf16.mxu0 0
      %3086 = vmatmul.mubr.bf16.gmra.mxu0 %v1386
      %v3087 = vpop.f32.mrf.mxu0
      %v3088 = vadd.f32 0.0, %v3087
      %v3089 = vpop.f32.mrf.mxu0
      %v3090 = vpop.f32.mrf.mxu0
      %v3091 = vadd.f32 0.0, %v3090
      %v3092 = vpop.f32.mrf.mxu0
      %3093 = vmatprep.mubr.bf16.mxu0 0
      %3094 = vmatmul.mubr.bf16.gmra.mxu0 %v1387
      %v3095 = vpop.f32.mrf.mxu0
      %v3096 = vadd.f32 0.0, %v3095
      %v3097 = vpop.f32.mrf.mxu0
      %v3098 = vpop.f32.mrf.mxu0
      %v3099 = vadd.f32 0.0, %v3098
      %v3100 = vpop.f32.mrf.mxu0
      %3101 = vmatprep.mubr.bf16.mxu0 0
      %3102 = vmatmul.mubr.bf16.gmra.mxu0 %v1388
      %v3103 = vpop.f32.mrf.mxu0
      %v3104 = vadd.f32 0.0, %v3103
      %v3105 = vpop.f32.mrf.mxu0
      %v3106 = vpop.f32.mrf.mxu0
      %v3107 = vadd.f32 0.0, %v3106
      %v3108 = vpop.f32.mrf.mxu0
      %3109 = vmatprep.mubr.bf16.mxu0 0
      %3110 = vmatmul.mubr.bf16.gmra.mxu0 %v1389
      %v3111 = vpop.f32.mrf.mxu0
      %v3112 = vadd.f32 0.0, %v3111
      %v3113 = vpop.f32.mrf.mxu0
      %v3114 = vpop.f32.mrf.mxu0
      %v3115 = vadd.f32 0.0, %v3114
      %v3116 = vpop.f32.mrf.mxu0
      %3117 = vmatprep.mubr.bf16.mxu0 0
      %3118 = vmatmul.mubr.bf16.gmra.mxu0 %v1390
      %v3119 = vpop.f32.mrf.mxu0
      %v3120 = vadd.f32 0.0, %v3119
      %v3121 = vpop.f32.mrf.mxu0
      %v3122 = vpop.f32.mrf.mxu0
      %v3123 = vadd.f32 0.0, %v3122
      %v3124 = vpop.f32.mrf.mxu0
      %3125 = vmatprep.mubr.bf16.mxu0 0
      %3126 = vmatmul.mubr.bf16.gmra.mxu0 %v1391
      %v3127 = vpop.f32.mrf.mxu0
      %v3128 = vadd.f32 0.0, %v3127
      %v3129 = vpop.f32.mrf.mxu0
      %v3130 = vpop.f32.mrf.mxu0
      %v3131 = vadd.f32 0.0, %v3130
      %v3132 = vpop.f32.mrf.mxu0
      %3133 = vmatprep.mubr.bf16.mxu0 0
      %3134 = vmatmul.mubr.bf16.gmra.mxu0 %v1392
      %v3135 = vpop.f32.mrf.mxu0
      %v3136 = vadd.f32 0.0, %v3135
      %v3137 = vpop.f32.mrf.mxu0
      %v3138 = vpop.f32.mrf.mxu0
      %v3139 = vadd.f32 0.0, %v3138
      %v3140 = vpop.f32.mrf.mxu0
      %3141 = vmatprep.mubr.bf16.mxu0 0
      %3142 = vmatmul.mubr.bf16.gmra.mxu0 %v1393
      %v3143 = vpop.f32.mrf.mxu0
      %v3144 = vadd.f32 0.0, %v3143
      %v3145 = vpop.f32.mrf.mxu0
      %v3146 = vpop.f32.mrf.mxu0
      %v3147 = vadd.f32 0.0, %v3146
      %v3148 = vpop.f32.mrf.mxu0
      %3149 = vmatprep.mubr.bf16.mxu0 0
      %3150 = vmatmul.mubr.bf16.gmra.mxu0 %v1394
      %v3151 = vpop.f32.mrf.mxu0
      %v3152 = vadd.f32 0.0, %v3151
      %v3153 = vpop.f32.mrf.mxu0
      %v3154 = vpop.f32.mrf.mxu0
      %v3155 = vadd.f32 0.0, %v3154
      %v3156 = vpop.f32.mrf.mxu0
      %3157 = vmatprep.mubr.bf16.mxu0 0
      %3158 = vmatmul.mubr.bf16.gmra.mxu0 %v1395
      %v3159 = vpop.f32.mrf.mxu0
      %v3160 = vadd.f32 0.0, %v3159
      %v3161 = vpop.f32.mrf.mxu0
      %v3162 = vpop.f32.mrf.mxu0
      %v3163 = vadd.f32 0.0, %v3162
      %v3164 = vpop.f32.mrf.mxu0
      %3165 = vmatprep.mubr.bf16.mxu0 0
      %3166 = vmatmul.mubr.bf16.gmra.mxu0 %v1396
      %v3167 = vpop.f32.mrf.mxu0
      %v3168 = vadd.f32 0.0, %v3167
      %v3169 = vpop.f32.mrf.mxu0
      %v3170 = vpop.f32.mrf.mxu0
      %v3171 = vadd.f32 0.0, %v3170
      %v3172 = vpop.f32.mrf.mxu0
      %3173 = vmatprep.mubr.bf16.mxu0 0
      %3174 = vmatmul.mubr.bf16.gmra.mxu0 %v1397
      %v3175 = vpop.f32.mrf.mxu0
      %v3176 = vadd.f32 0.0, %v3175
      %v3177 = vpop.f32.mrf.mxu0
      %v3178 = vpop.f32.mrf.mxu0
      %v3179 = vadd.f32 0.0, %v3178
      %v3180 = vpop.f32.mrf.mxu0
      %3181 = vmatprep.mubr.bf16.mxu0 0
      %3182 = vmatmul.mubr.bf16.gmra.mxu0 %v1398
      %v3183 = vpop.f32.mrf.mxu0
      %v3184 = vadd.f32 0.0, %v3183
      %v3185 = vpop.f32.mrf.mxu0
      %v3186 = vpop.f32.mrf.mxu0
      %v3187 = vadd.f32 0.0, %v3186
      %v3188 = vpop.f32.mrf.mxu0
      %3189 = vmatprep.mubr.bf16.mxu0 0
      %3190 = vmatmul.mubr.bf16.gmra.mxu0 %v1399
      %v3191 = vpop.f32.mrf.mxu0
      %v3192 = vadd.f32 0.0, %v3191
      %v3193 = vpop.f32.mrf.mxu0
      %v3194 = vpop.f32.mrf.mxu0
      %v3195 = vadd.f32 0.0, %v3194
      %v3196 = vpop.f32.mrf.mxu0
      %3197 = vmatprep.mubr.bf16.mxu0 0
      %3198 = vmatmul.mubr.bf16.gmra.mxu0 %v2193
      %v3199 = vpop.f32.mrf.mxu0
      %v3200 = vadd.f32 0.0, %v3199
      %v3201 = vpop.f32.mrf.mxu0
      %v3202 = vpop.f32.mrf.mxu0
      %v3203 = vadd.f32 0.0, %v3202
      %v3204 = vpop.f32.mrf.mxu0
      %3205 = vmatprep.mubr.bf16.mxu0 0
      %3206 = vmatmul.mubr.bf16.gmra.mxu0 %v2987
      %v3207 = vpop.f32.mrf.mxu0
      %v3208 = vadd.f32 0.0, %v3207
      %v3209 = vpop.f32.mrf.mxu0
      %v3210 = vpop.f32.mrf.mxu0
      %v3211 = vadd.f32 0.0, %v3210
      %v3212 = vpop.f32.mrf.mxu0
      %3213 = vdwg.mxu0
      %v3214 = vadd.f32 %v2948, %v3088
      %v3215 = vadd.f32 %v2949, %v3091
      %v3216 = vadd.f32 %v2950, %v3096
      %v3217 = vadd.f32 %v2951, %v3099
      %v3218 = vadd.f32 %v2952, %v3104
      %v3219 = vadd.f32 %v2953, %v3107
      %v3220 = vadd.f32 %v2954, %v3112
      %v3221 = vadd.f32 %v2955, %v3115
      %v3222 = vadd.f32 %v2956, %v3120
      %v3223 = vadd.f32 %v2957, %v3123
      %v3224 = vadd.f32 %v2958, %v3128
      %v3225 = vadd.f32 %v2959, %v3131
      %v3226 = vadd.f32 %v2960, %v3136
      %v3227 = vadd.f32 %v2961, %v3139
      %v3228 = vadd.f32 %v2962, %v3144
      %v3229 = vadd.f32 %v2963, %v3147
      %v3230 = vadd.f32 %v2964, %v3152
      %v3231 = vadd.f32 %v2965, %v3155
      %v3232 = vadd.f32 %v2966, %v3160
      %v3233 = vadd.f32 %v2967, %v3163
      %v3234 = vadd.f32 %v2968, %v3168
      %v3235 = vadd.f32 %v2969, %v3171
      %v3236 = vadd.f32 %v2970, %v3176
      %v3237 = vadd.f32 %v2971, %v3179
      %v3238 = vadd.f32 %v2972, %v3184
      %v3239 = vadd.f32 %v2973, %v3187
      %v3240 = vadd.f32 %v2974, %v3192
      %v3241 = vadd.f32 %v2975, %v3195
      %v3242 = vadd.f32 %v2976, %v3200
      %v3243 = vadd.f32 %v2977, %v3203
      %v3244 = vadd.f32 %v2978, %v3208
      %v3245 = vadd.f32 %v2979, %v3211
      %3246 = vst [vmem:[%s282] sm:$0xff] %v3214
      %3247 = vst [vmem:[%s282 + $0x8] sm:$0xff] %v3215
      %3248 = vst [vmem:[%s282 + $0x10] sm:$0xff] %v3216
      %3249 = vst [vmem:[%s282 + $0x18] sm:$0xff] %v3217
      %3250 = vst [vmem:[%s282 + $0x20] sm:$0xff] %v3218
      %3251 = vst [vmem:[%s282 + $0x28] sm:$0xff] %v3219
      %3252 = vst [vmem:[%s282 + $0x30] sm:$0xff] %v3220
      %3253 = vst [vmem:[%s282 + $0x38] sm:$0xff] %v3221
      %3254 = vst [vmem:[%s282 + $0x40] sm:$0xff] %v3222
      %3255 = vst [vmem:[%s282 + $0x48] sm:$0xff] %v3223
      %3256 = vst [vmem:[%s282 + $0x50] sm:$0xff] %v3224
      %3257 = vst [vmem:[%s282 + $0x58] sm:$0xff] %v3225
      %3258 = vst [vmem:[%s282 + $0x60] sm:$0xff] %v3226
      %3259 = vst [vmem:[%s282 + $0x68] sm:$0xff] %v3227
      %3260 = vst [vmem:[%s282 + $0x70] sm:$0xff] %v3228
      %3261 = vst [vmem:[%s282 + $0x78] sm:$0xff] %v3229
      %3262 = vst [vmem:[%s282 + $0x80] sm:$0xff] %v3230
      %3263 = vst [vmem:[%s282 + $0x88] sm:$0xff] %v3231
      %3264 = vst [vmem:[%s282 + $0x90] sm:$0xff] %v3232
      %3265 = vst [vmem:[%s282 + $0x98] sm:$0xff] %v3233
      %3266 = vst [vmem:[%s282 + $0xa0] sm:$0xff] %v3234
      %3267 = vst [vmem:[%s282 + $0xa8] sm:$0xff] %v3235
      %3268 = vst [vmem:[%s282 + $0xb0] sm:$0xff] %v3236
      %3269 = vst [vmem:[%s282 + $0xb8] sm:$0xff] %v3237
      %3270 = vst [vmem:[%s282 + $0xc0] sm:$0xff] %v3238
      %3271 = vst [vmem:[%s282 + $0xc8] sm:$0xff] %v3239
      %3272 = vst [vmem:[%s282 + $0xd0] sm:$0xff] %v3240
      %3273 = vst [vmem:[%s282 + $0xd8] sm:$0xff] %v3241
      %3274 = vst [vmem:[%s282 + $0xe0] sm:$0xff] %v3242
      %3275 = vst [vmem:[%s282 + $0xe8] sm:$0xff] %v3243
      %3276 = vst [vmem:[%s282 + $0xf0] sm:$0xff] %v3244
      %3277 = vst [vmem:[%s282 + $0xf8] sm:$0xff] %v3245
      %v3278 = vld [vmem:[%s5] sm:$0x1]
      %v3279 = vadd.f32 %v3214, %v3215
      %v3280 = vadd.f32 %v3279, %v3216
      %v3281 = vadd.f32 %v3280, %v3217
      %v3282 = vadd.f32 %v3281, %v3218
      %v3283 = vadd.f32 %v3282, %v3219
      %v3284 = vadd.f32 %v3283, %v3220
      %v3285 = vadd.f32 %v3284, %v3221
      %v3286 = vadd.f32 %v3285, %v3222
      %v3287 = vadd.f32 %v3286, %v3223
      %v3288 = vadd.f32 %v3287, %v3224
      %v3289 = vadd.f32 %v3288, %v3225
      %v3290 = vadd.f32 %v3289, %v3226
      %v3291 = vadd.f32 %v3290, %v3227
      %v3292 = vadd.f32 %v3291, %v3228
      %v3293 = vadd.f32 %v3292, %v3229
      %v3294 = vadd.f32 %v3293, %v3230
      %v3295 = vadd.f32 %v3294, %v3231
      %v3296 = vadd.f32 %v3295, %v3232
      %v3297 = vadd.f32 %v3296, %v3233
      %v3298 = vadd.f32 %v3297, %v3234
      %v3299 = vadd.f32 %v3298, %v3235
      %v3300 = vadd.f32 %v3299, %v3236
      %v3301 = vadd.f32 %v3300, %v3237
      %v3302 = vadd.f32 %v3301, %v3238
      %v3303 = vadd.f32 %v3302, %v3239
      %v3304 = vadd.f32 %v3303, %v3240
      %v3305 = vadd.f32 %v3304, %v3241
      %v3306 = vadd.f32 %v3305, %v3242
      %v3307 = vadd.f32 %v3306, %v3243
      %v3308 = vadd.f32 %v3307, %v3244
      %v3309 = vadd.f32 %v3308, %v3245
      %v3310 = vrot.slane %v3309, 4
      %v3311 = vadd.f32 %v3309, %v3310
      %v3312 = vrot.slane %v3311, 2
      %v3313 = vadd.f32 %v3311, %v3312
      %v3314 = vrot.slane %v3313, 1
      %v3315 = vadd.f32 %v3313, %v3314
      %v3316 = vadd.f32 %v3278, %v3315
      %3317 = vst [vmem:[%s5] sm:$0x1] %v3316
      %v3318 = vld [vmem:[%s6] sm:$0x1]
      %v3319 = vmul.f32 %v3214, %v3214
      %v3320 = vmul.f32 %v3215, %v3215
      %v3321 = vmul.f32 %v3216, %v3216
      %v3322 = vmul.f32 %v3217, %v3217
      %v3323 = vmul.f32 %v3218, %v3218
      %v3324 = vmul.f32 %v3219, %v3219
      %v3325 = vmul.f32 %v3220, %v3220
      %v3326 = vmul.f32 %v3221, %v3221
      %v3327 = vmul.f32 %v3222, %v3222
      %v3328 = vmul.f32 %v3223, %v3223
      %v3329 = vmul.f32 %v3224, %v3224
      %v3330 = vmul.f32 %v3225, %v3225
      %v3331 = vmul.f32 %v3226, %v3226
      %v3332 = vmul.f32 %v3227, %v3227
      %v3333 = vmul.f32 %v3228, %v3228
      %v3334 = vmul.f32 %v3229, %v3229
      %v3335 = vmul.f32 %v3230, %v3230
      %v3336 = vmul.f32 %v3231, %v3231
      %v3337 = vmul.f32 %v3232, %v3232
      %v3338 = vmul.f32 %v3233, %v3233
      %v3339 = vmul.f32 %v3234, %v3234
      %v3340 = vmul.f32 %v3235, %v3235
      %v3341 = vmul.f32 %v3236, %v3236
      %v3342 = vmul.f32 %v3237, %v3237
      %v3343 = vmul.f32 %v3238, %v3238
      %v3344 = vmul.f32 %v3239, %v3239
      %v3345 = vmul.f32 %v3240, %v3240
      %v3346 = vmul.f32 %v3241, %v3241
      %v3347 = vmul.f32 %v3242, %v3242
      %v3348 = vmul.f32 %v3243, %v3243
      %v3349 = vmul.f32 %v3244, %v3244
      %v3350 = vmul.f32 %v3245, %v3245
      %v3351 = vadd.f32 %v3319, %v3320
      %v3352 = vadd.f32 %v3351, %v3321
      %v3353 = vadd.f32 %v3352, %v3322
      %v3354 = vadd.f32 %v3353, %v3323
      %v3355 = vadd.f32 %v3354, %v3324
      %v3356 = vadd.f32 %v3355, %v3325
      %v3357 = vadd.f32 %v3356, %v3326
      %v3358 = vadd.f32 %v3357, %v3327
      %v3359 = vadd.f32 %v3358, %v3328
      %v3360 = vadd.f32 %v3359, %v3329
      %v3361 = vadd.f32 %v3360, %v3330
      %v3362 = vadd.f32 %v3361, %v3331
      %v3363 = vadd.f32 %v3362, %v3332
      %v3364 = vadd.f32 %v3363, %v3333
      %v3365 = vadd.f32 %v3364, %v3334
      %v3366 = vadd.f32 %v3365, %v3335
      %v3367 = vadd.f32 %v3366, %v3336
      %v3368 = vadd.f32 %v3367, %v3337
      %v3369 = vadd.f32 %v3368, %v3338
      %v3370 = vadd.f32 %v3369, %v3339
      %v3371 = vadd.f32 %v3370, %v3340
      %v3372 = vadd.f32 %v3371, %v3341
      %v3373 = vadd.f32 %v3372, %v3342
      %v3374 = vadd.f32 %v3373, %v3343
      %v3375 = vadd.f32 %v3374, %v3344
      %v3376 = vadd.f32 %v3375, %v3345
      %v3377 = vadd.f32 %v3376, %v3346
      %v3378 = vadd.f32 %v3377, %v3347
      %v3379 = vadd.f32 %v3378, %v3348
      %v3380 = vadd.f32 %v3379, %v3349
      %v3381 = vadd.f32 %v3380, %v3350
      %v3382 = vrot.slane %v3381, 4
      %v3383 = vadd.f32 %v3381, %v3382
      %v3384 = vrot.slane %v3383, 2
      %v3385 = vadd.f32 %v3383, %v3384
      %v3386 = vrot.slane %v3385, 1
      %v3387 = vadd.f32 %v3385, %v3386
      %v3388 = vadd.f32 %v3318, %v3387
      %3389 = vst [vmem:[%s6] sm:$0x1] %v3388
      %p3390 = scmp.lt.s32.totalorder %s22, 1
      %s3391 = scalar_select %p3390, %s22, 1
      %p3392 = scmp.lt.s32.totalorder %s23, 0
      %s3393 = scalar_select %p3392, %s23, 0
      %s3394 = smul.addr %s3393, 32
      %s3395 = smul.addr %s3391, 32
      %s3396 = sadd.s32 %s3394, %s3395
      %s3397 = smul.addr %s3396, 8
      %s3398 = scalar_lea.vmem %s4, %s3397
      // Predicated region
      $region41: #{conv_block_forward.4} parent=35 // pred_check
        %p3399 = pneg %p141
      $region42: #{conv_block_forward.4} parent=35 // pred_check_branch
        %3401 = sbr.rel (%p3399) target = $region44
      $region43: #{conv_block_forward.4} parent=35 // pred_region
        _
      $region44: #{conv_block_forward.4} parent=35 // pred_fallthru
        _
      // Predicated region
      $region45: #{conv_block_forward.4} parent=35 // pred_check
        %p3402 = pneg %p162
      $region46: #{conv_block_forward.4} parent=35 // pred_check_branch
        %3404 = sbr.rel (%p3402) target = $region48
      $region47: #{conv_block_forward.4} parent=35 // pred_region
        _
      $region48: #{conv_block_forward.4} parent=35 // pred_fallthru
        _
      // Predicated region
      $region49: #{conv_block_forward.4} parent=35 // pred_check
        %p3405 = pneg %p183
      $region50: #{conv_block_forward.4} parent=35 // pred_check_branch
        %3407 = sbr.rel (%p3405) target = $region52
      $region51: #{conv_block_forward.4} parent=35 // pred_region
        _
      $region52: #{conv_block_forward.4} parent=35 // pred_fallthru
        _
      // Predicated region
      $region53: #{conv_block_forward.4} parent=35 // pred_check
        %p3408 = pneg %p162
      $region54: #{conv_block_forward.4} parent=35 // pred_check_branch
        %3410 = sbr.rel (%p3408) target = $region56
      $region55: #{conv_block_forward.4} parent=35 // pred_region
        _
      $region56: #{conv_block_forward.4} parent=35 // pred_fallthru
        _
      // Predicated region
      $region57: #{conv_block_forward.4} parent=35 // pred_check
        %p3411 = pneg %p183
      $region58: #{conv_block_forward.4} parent=35 // pred_check_branch
        %3413 = sbr.rel (%p3411) target = $region60
      $region59: #{conv_block_forward.4} parent=35 // pred_region
        _
      $region60: #{conv_block_forward.4} parent=35 // pred_fallthru
        _
    $region36: #{conv_block_forward.4} parent=5 // pred_fallthru
      _
    %p3414 = scmp.le.s32.totalorder 2, %s13
    // Predicated region
    $region61: #{conv_block_forward.4} parent=5 // pred_check
      %p3415 = pneg %p3414
    $region62: #{conv_block_forward.4} parent=5 // pred_check_branch
      %3417 = sbr.rel (%p3415) target = $region64
    $region63: #{conv_block_forward.4} parent=5 // pred_region
      %s3418 = ssub.s32 %s13, 2
      // Predicated region
      $region65: #{conv_block_forward.4} parent=63 // pred_check
        %p3419 = pneg %p147
      $region66: #{conv_block_forward.4} parent=63 // pred_check_branch
        %3421 = sbr.rel (%p3419) target = $region68
      $region67: #{conv_block_forward.4} parent=63 // pred_region
        %p3422 = scmp.lt.s32.totalorder %s24, 1
        %s3423 = scalar_select %p3422, %s24, 1
        %p3424 = scmp.lt.s32.totalorder %s25, 0
        %s3425 = scalar_select %p3424, %s25, 0
        %s3426 = smul.addr %s3425, 32
        %s3427 = smul.addr %s3423, 32
        %s3428 = sadd.s32 %s3426, %s3427
        %s3429 = smul.addr %s3428, 8
        %s3430 = scalar_lea.vmem %s4, %s3429
      $region68: #{conv_block_forward.4} parent=63 // pred_fallthru
        _
    $region64: #{conv_block_forward.4} parent=5 // pred_fallthru
      _
  $region6: #{conv_block_forward.4} parent=0 // loop_footer
    %s17 = sadd.s32 1, %s13
  $region7: #{conv_block_forward.4} parent=0 // loop_footer_branch
    %12 = sbr.rel target = $region3
  $region8: #{conv_block_forward.4} parent=0 // loop_exit
    _

</llo_original>
